<compile_context>
chip_gen: v5e
topology: v5e:2x2
jax: 0.10.0
libtpu: 0.0.40
codegen_flags: <defaults>
</compile_context>

<pallas_src>
import jax
import jax.numpy as jnp
from jax.experimental import pallas as pl
from jax.experimental.pallas import tpu as pltpu

HIDDEN = 1024
OUT_PAD = 128  # lane-dense padded width for the final 1024 -> 1 layer


def adv_net_kernel(x_ref, w1_ref, b1_ref, w2_ref, b2_ref, w3_ref, b3_ref, o_ref):
    # Layer 1: (TB, in) @ (in, 1024), f32 accumulate on the MXU, bias + ReLU.
    h1 = jnp.dot(x_ref[...], w1_ref[...], preferred_element_type=jnp.float32)
    h1 = jnp.maximum(h1 + b1_ref[...], 0.0).astype(jnp.bfloat16)
    # dropout1: identity (eval mode)

    # Layer 2: (TB, 1024) @ (1024, 1024)
    h2 = jnp.dot(h1, w2_ref[...], preferred_element_type=jnp.float32)
    h2 = jnp.maximum(h2 + b2_ref[...], 0.0).astype(jnp.bfloat16)
    # dropout2: identity (eval mode)

    # Layer 3 (lane-dense): (TB, 1024) @ (1024, 128); only column 0 is real.
    h3 = jnp.dot(h2, w3_ref[...], preferred_element_type=jnp.float32)
    o_ref[...] = jax.nn.sigmoid(h3 + b3_ref[...])


def adversarial_network(x, w1, b1, w2, b2, w3, b3, *, tb=128):
    """x: (B, in_feature) f32 -> (B, 1) f32 (eval-mode forward)."""
    B, in_feature = x.shape

    # Pad batch up to a multiple of the batch tile so every block is full.
    n_tiles = pl.cdiv(B, tb)
    Bp = n_tiles * tb
    if Bp != B:
        x = jnp.pad(x, ((0, Bp - B), (0, 0)))

    # bf16 storage for the heavy operands; biases stay f32 (added post-acc).
    xb = x.astype(jnp.bfloat16)
    w1b = w1.astype(jnp.bfloat16)
    w2b = w2.astype(jnp.bfloat16)
    # Lane-dense layer-3 operands: zero-pad N from 1 to 128.
    w3p = jnp.pad(w3, ((0, 0), (0, OUT_PAD - w3.shape[1]))).astype(jnp.bfloat16)
    b3p = jnp.pad(b3, ((0, 0), (0, OUT_PAD - b3.shape[1]))).astype(jnp.float32)
    b1f = b1.astype(jnp.float32)
    b2f = b2.astype(jnp.float32)

    flops = 2 * Bp * (in_feature * HIDDEN + HIDDEN * HIDDEN + HIDDEN * OUT_PAD)
    bytes_accessed = (
        2 * (xb.size + w1b.size + w2b.size + w3p.size)          # bf16 reads
        + 4 * (b1f.size + b2f.size + b3p.size)                  # f32 bias reads
        + 4 * Bp * OUT_PAD                                      # f32 output writes
    )

    out = pl.pallas_call(
        adv_net_kernel,
        out_shape=jax.ShapeDtypeStruct((Bp, OUT_PAD), jnp.float32),
        grid=(n_tiles,),
        in_specs=[
            # x tiled over the batch axis; weights/biases resident (constant
            # block index -> fetched once, not re-DMA'd per grid step).
            pl.BlockSpec((tb, in_feature), lambda i: (i, 0)),
            pl.BlockSpec((in_feature, HIDDEN), lambda i: (0, 0)),
            pl.BlockSpec((1, HIDDEN), lambda i: (0, 0)),
            pl.BlockSpec((HIDDEN, HIDDEN), lambda i: (0, 0)),
            pl.BlockSpec((1, HIDDEN), lambda i: (0, 0)),
            pl.BlockSpec((HIDDEN, OUT_PAD), lambda i: (0, 0)),
            pl.BlockSpec((1, OUT_PAD), lambda i: (0, 0)),
        ],
        out_specs=pl.BlockSpec((tb, OUT_PAD), lambda i: (i, 0)),
        compiler_params=pltpu.CompilerParams(
            dimension_semantics=("parallel",),   # megacore split on v7x
            vmem_limit_bytes=24 << 20,           # footprint ~5 MiB; keep headroom
        ),
        cost_estimate=pl.CostEstimate(
            flops=flops,
            transcendentals=Bp * OUT_PAD,
            bytes_accessed=bytes_accessed,
        ),
    )(xb, w1b, b1f, w2b, b2f, w3p, b3p)

    # Real batch rows, real (unpadded) output column.
    return out[:B, :1]


def init_params(key, in_feature, hidden=HIDDEN):
    k1, k2, k3 = jax.random.split(key, 3)
    # Matches PyTorch init: weight ~ N(0, sigma), bias = 0. Stored as (in, out)
    # so the kernel computes y = x @ W + b.
    w1 = 0.01 * jax.random.normal(k1, (in_feature, hidden), jnp.float32)
    b1 = jnp.zeros((1, hidden), jnp.float32)
    w2 = 0.01 * jax.random.normal(k2, (hidden, hidden), jnp.float32)
    b2 = jnp.zeros((1, hidden), jnp.float32)
    w3 = 0.3 * jax.random.normal(k3, (hidden, 1), jnp.float32)
    b3 = jnp.zeros((1, 1), jnp.float32)
    return w1, b1, w2, b2, w3, b3


if __name__ == "__main__":
    key = jax.random.PRNGKey(0)
    kx, kp = jax.random.split(key)

    batch, in_feature = 256, 32
    x = jax.random.normal(kx, (batch, in_feature), jnp.float32)
    w1, b1, w2, b2, w3, b3 = init_params(kp, in_feature)

    out = adversarial_network(x, w1, b1, w2, b2, w3, b3)
    out = jax.block_until_ready(out)

    # Pure-JAX f32 reference (dropout = identity in eval mode). The kernel
    # runs in bf16, so use a loosened tolerance.
    h1 = jnp.maximum(x @ w1 + b1, 0.0)
    h2 = jnp.maximum(h1 @ w2 + b2, 0.0)
    ref = jax.nn.sigmoid(h2 @ w3 + b3)

    assert out.shape == (batch, 1)
    assert jnp.allclose(out, ref, atol=2e-2, rtol=2e-2), (
        float(jnp.max(jnp.abs(out - ref))))

    print("KERNEL_OK")
</pallas_src>

<mosaic_0001>
module attributes {stable_mosaic.version = 11 : i64} {
  func.func @adv_net_kernel(%arg0: i32, %arg1: memref<128x32xbf16, #tpu.memory_space<vmem>>, %arg2: memref<32x1024xbf16, #tpu.memory_space<vmem>>, %arg3: memref<1x1024xf32, #tpu.memory_space<vmem>>, %arg4: memref<1024x1024xbf16, #tpu.memory_space<vmem>>, %arg5: memref<1x1024xf32, #tpu.memory_space<vmem>>, %arg6: memref<1024x128xbf16, #tpu.memory_space<vmem>>, %arg7: memref<1x128xf32, #tpu.memory_space<vmem>>, %arg8: memref<128x128xf32, #tpu.memory_space<vmem>>) attributes {dimension_semantics = [#tpu.dimension_semantics<parallel>], iteration_bounds = array<i64: 2>, scalar_prefetch = 0 : i64, scratch_operands = 0 : i64, tpu.core_type = #tpu.core_type<tc>, window_params = [{transform_indices = @transform_0, window_bounds = array<i64: 128, 32>}, {pipeline_mode = #tpu.pipeline_mode<synchronous>, transform_indices = @transform_1, window_bounds = array<i64: 32, 1024>}, {pipeline_mode = #tpu.pipeline_mode<synchronous>, transform_indices = @transform_2, window_bounds = array<i64: 1, 1024>}, {pipeline_mode = #tpu.pipeline_mode<synchronous>, transform_indices = @transform_3, window_bounds = array<i64: 1024, 1024>}, {pipeline_mode = #tpu.pipeline_mode<synchronous>, transform_indices = @transform_4, window_bounds = array<i64: 1, 1024>}, {pipeline_mode = #tpu.pipeline_mode<synchronous>, transform_indices = @transform_5, window_bounds = array<i64: 1024, 128>}, {pipeline_mode = #tpu.pipeline_mode<synchronous>, transform_indices = @transform_6, window_bounds = array<i64: 1, 128>}, {transform_indices = @transform_7, window_bounds = array<i64: 128, 128>}]} {
    %c0 = arith.constant 0 : index
    %c0_0 = arith.constant 0 : index
    %0 = vector.load %arg1[%c0, %c0_0] : memref<128x32xbf16, #tpu.memory_space<vmem>>, vector<128x32xbf16>
    %c0_1 = arith.constant 0 : index
    %c0_2 = arith.constant 0 : index
    %1 = vector.load %arg2[%c0_1, %c0_2] : memref<32x1024xbf16, #tpu.memory_space<vmem>>, vector<32x1024xbf16>
    %cst = arith.constant dense<0.000000e+00> : vector<128x1024xf32>
    %2 = tpu.matmul %0, %1, %cst {dimension_numbers = #tpu.dot_dimension_numbers<[1], [0], [0], [1], [0, 0, 1, 1], [], []>} : vector<128x32xbf16>, vector<32x1024xbf16>, vector<128x1024xf32> -> vector<128x1024xf32>
    %c0_3 = arith.constant 0 : index
    %c0_4 = arith.constant 0 : index
    %3 = vector.load %arg3[%c0_3, %c0_4] : memref<1x1024xf32, #tpu.memory_space<vmem>>, vector<1x1024xf32>
    %4 = vector.broadcast %3 : vector<1x1024xf32> to vector<128x1024xf32>
    %5 = arith.addf %2, %4 : vector<128x1024xf32>
    %cst_5 = arith.constant 0.000000e+00 : f32
    %6 = vector.broadcast %cst_5 : f32 to vector<128x1024xf32>
    %7 = arith.maximumf %5, %6 : vector<128x1024xf32>
    %8 = arith.truncf %7 : vector<128x1024xf32> to vector<128x1024xbf16>
    %c0_6 = arith.constant 0 : index
    %c0_7 = arith.constant 0 : index
    %9 = vector.load %arg4[%c0_6, %c0_7] : memref<1024x1024xbf16, #tpu.memory_space<vmem>>, vector<1024x1024xbf16>
    %cst_8 = arith.constant dense<0.000000e+00> : vector<128x1024xf32>
    %10 = tpu.matmul %8, %9, %cst_8 {dimension_numbers = #tpu.dot_dimension_numbers<[1], [0], [0], [1], [0, 0, 1, 1], [], []>} : vector<128x1024xbf16>, vector<1024x1024xbf16>, vector<128x1024xf32> -> vector<128x1024xf32>
    %c0_9 = arith.constant 0 : index
    %c0_10 = arith.constant 0 : index
    %11 = vector.load %arg5[%c0_9, %c0_10] : memref<1x1024xf32, #tpu.memory_space<vmem>>, vector<1x1024xf32>
    %12 = vector.broadcast %11 : vector<1x1024xf32> to vector<128x1024xf32>
    %13 = arith.addf %10, %12 : vector<128x1024xf32>
    %cst_11 = arith.constant 0.000000e+00 : f32
    %14 = vector.broadcast %cst_11 : f32 to vector<128x1024xf32>
    %15 = arith.maximumf %13, %14 : vector<128x1024xf32>
    %16 = arith.truncf %15 : vector<128x1024xf32> to vector<128x1024xbf16>
    %c0_12 = arith.constant 0 : index
    %c0_13 = arith.constant 0 : index
    %17 = vector.load %arg6[%c0_12, %c0_13] : memref<1024x128xbf16, #tpu.memory_space<vmem>>, vector<1024x128xbf16>
    %cst_14 = arith.constant dense<0.000000e+00> : vector<128x128xf32>
    %18 = tpu.matmul %16, %17, %cst_14 {dimension_numbers = #tpu.dot_dimension_numbers<[1], [0], [0], [1], [0, 0, 1, 1], [], []>} : vector<128x1024xbf16>, vector<1024x128xbf16>, vector<128x128xf32> -> vector<128x128xf32>
    %c0_15 = arith.constant 0 : index
    %c0_16 = arith.constant 0 : index
    %19 = vector.load %arg7[%c0_15, %c0_16] : memref<1x128xf32, #tpu.memory_space<vmem>>, vector<1x128xf32>
    %20 = vector.broadcast %19 : vector<1x128xf32> to vector<128x128xf32>
    %21 = arith.addf %18, %20 : vector<128x128xf32>
    %22 = arith.negf %21 : vector<128x128xf32>
    %23 = math.exp %22 : vector<128x128xf32>
    %cst_17 = arith.constant 1.000000e+00 : f32
    %24 = vector.broadcast %cst_17 : f32 to vector<128x128xf32>
    %25 = arith.addf %24, %23 : vector<128x128xf32>
    %26 = arith.divf %24, %25 : vector<128x128xf32>
    %c0_18 = arith.constant 0 : index
    %c0_19 = arith.constant 0 : index
    %27 = vector.load %arg8[%c0_18, %c0_19] : memref<128x128xf32, #tpu.memory_space<vmem>>, vector<128x128xf32>
    tpu.vector_store %arg8[%c0_18, %c0_19], %26 {strides = array<i32>} : memref<128x128xf32, #tpu.memory_space<vmem>>, vector<128x128xf32>,
    return
  }
  func.func @transform_0(%arg0: i32) -> (i32, i32) {
    %c0_i32 = arith.constant 0 : i32
    %c0_i32_0 = arith.constant 0 : i32
    return %arg0, %c0_i32 : i32, i32
  }
  func.func @transform_1(%arg0: i32) -> (i32, i32) {
    %c0_i32 = arith.constant 0 : i32
    %c0_i32_0 = arith.constant 0 : i32
    %c0_i32_1 = arith.constant 0 : i32
    return %c0_i32, %c0_i32_0 : i32, i32
  }
  func.func @transform_2(%arg0: i32) -> (i32, i32) {
    %c0_i32 = arith.constant 0 : i32
    %c0_i32_0 = arith.constant 0 : i32
    %c0_i32_1 = arith.constant 0 : i32
    return %c0_i32, %c0_i32_0 : i32, i32
  }
  func.func @transform_3(%arg0: i32) -> (i32, i32) {
    %c0_i32 = arith.constant 0 : i32
    %c0_i32_0 = arith.constant 0 : i32
    %c0_i32_1 = arith.constant 0 : i32
    return %c0_i32, %c0_i32_0 : i32, i32
  }
  func.func @transform_4(%arg0: i32) -> (i32, i32) {
    %c0_i32 = arith.constant 0 : i32
    %c0_i32_0 = arith.constant 0 : i32
    %c0_i32_1 = arith.constant 0 : i32
    return %c0_i32, %c0_i32_0 : i32, i32
  }
  func.func @transform_5(%arg0: i32) -> (i32, i32) {
    %c0_i32 = arith.constant 0 : i32
    %c0_i32_0 = arith.constant 0 : i32
    %c0_i32_1 = arith.constant 0 : i32
    return %c0_i32, %c0_i32_0 : i32, i32
  }
  func.func @transform_6(%arg0: i32) -> (i32, i32) {
    %c0_i32 = arith.constant 0 : i32
    %c0_i32_0 = arith.constant 0 : i32
    %c0_i32_1 = arith.constant 0 : i32
    return %c0_i32, %c0_i32_0 : i32, i32
  }
  func.func @transform_7(%arg0: i32) -> (i32, i32) {
    %c0_i32 = arith.constant 0 : i32
    %c0_i32_0 = arith.constant 0 : i32
    return %arg0, %c0_i32 : i32, i32
  }
}

</mosaic_0001>

<llo_original>
// kernel: tpu_custom_call.1
$region0: #{tpu_custom_call.1}
  #allocation0 [shape = 'u32[]', space=smem, size = 0x4, offset = 0x4, fixed_abs, tag = 'smem constant byte address 0x4 - core index']
  #allocation1 [shape = 'u32[72,128]{1,0:T(1,128)}', space=vmem, size = 0x9000, scoped, tag = 'internal scratch']
  %s0 = inlined_call_operand.vmem [shape: bf16[256,32], index: 0, kind: input, shape index: {}]
  %s1 = inlined_call_operand.hbm [shape: bf16[32,1024], index: 1, kind: input, shape index: {}]
  %s2 = inlined_call_operand.hbm [shape: f32[1,1024], index: 2, kind: input, shape index: {}]
  %s3 = inlined_call_operand.hbm [shape: bf16[1024,1024], index: 3, kind: input, shape index: {}]
  %s4 = inlined_call_operand.hbm [shape: f32[1,1024], index: 4, kind: input, shape index: {}]
  %s5 = inlined_call_operand.hbm [shape: bf16[1024,128], index: 5, kind: input, shape index: {}]
  %s6 = inlined_call_operand.hbm [shape: f32[1,128], index: 6, kind: input, shape index: {}]
  %s7 = inlined_call_operand.hbm [shape: f32[256,128], index: 7, kind: output, shape index: {}]
  %s8 = sld [smem:[#allocation0]]
  $region85: #{tpu_custom_call.1} parent=0
    _
  %s10 = ssub.s32 1, %s8
  %s11 = scalar_select 0, %s10, %s8
  $region1: #{tpu_custom_call.1} parent=0
    #allocation2 [shape = 'u8[65536]{0}', space=vmem, size = 0x10000, scoped, tag = 'input window, operand 1, single buffered']
    #allocation3 [shape = 's32[2]{0}', space=sflag, size = 0x8, scoped, tag = 'scoped memory for tpu_custom_call.1']
    #allocation4 [shape = 's32[2]{0}', space=sflag, size = 0x8, scoped, tag = 'scoped memory for tpu_custom_call.1']
    #allocation5 [shape = 'u8[4096]{0}', space=vmem, size = 0x1000, scoped, tag = 'input window, operand 2, single buffered']
    #allocation6 [shape = 's32[1]{0}', space=sflag, size = 0x4, scoped, tag = 'scoped memory for tpu_custom_call.1']
    #allocation7 [shape = 'u8[2097152]{0}', space=vmem, size = 0x200000, scoped, tag = 'input window, operand 3, single buffered']
    #allocation8 [shape = 'u8[4096]{0}', space=vmem, size = 0x1000, scoped, tag = 'input window, operand 4, single buffered']
    #allocation9 [shape = 's32[1]{0}', space=sflag, size = 0x4, scoped, tag = 'scoped memory for tpu_custom_call.1']
    #allocation10 [shape = 'u8[262144]{0}', space=vmem, size = 0x40000, scoped, tag = 'input window, operand 5, single buffered']
    #allocation11 [shape = 'u8[512]{0}', space=vmem, size = 0x400, scoped, tag = 'input window, operand 6, single buffered']
    #allocation12 [shape = 's32[1]{0}', space=sflag, size = 0x4, scoped, tag = 'scoped memory for tpu_custom_call.1']
    #allocation13 [shape = 'u8[131072]{0}', space=vmem, size = 0x20000, scoped, tag = 'output window, operand 0']
    %12 = vsyncpa [#allocation3], 0
    %13 = vsyncpa [#allocation6], 0
    %14 = vsyncpa [#allocation9], 0
    %15 = vsyncpa [#allocation12], 0
    %16 = vsyncpa [#allocation4], 0
    %s17 = scalar_lea.sflag [#allocation4], 1
    %18 = vsyncpa %s17, 0
    loop: start=0, step=1, limit=4
    $region2: #{tpu_custom_call.1} parent=1 // loop_pre_header
      _
    $region3: #{tpu_custom_call.1} parent=1 // loop_header
      %s20 = sphi 0, %s24
      %p21 = scmp.ge.s32.totalorder %s20, 4
      %s30 = sphi 0, %s32
      %s33 = sphi 0, %s30
      %s34 = sphi 0, %s33
      %s50 = sphi 0, %s34
      %s54 = sphi 0, %s54
      %s56 = sphi 0, %s54
      %s57 = sphi 0, %s56
      %s71 = sphi 0, %s57
      %s75 = sphi 0, %s75
      %s77 = sphi 0, %s75
      %s78 = sphi 0, %s77
      %s92 = sphi 0, %s78
      %s96 = sphi 0, %s96
      %s98 = sphi 0, %s96
      %s99 = sphi 0, %s98
      %s113 = sphi 0, %s99
      %s117 = sphi 0, %s117
      %s119 = sphi 0, %s117
      %s120 = sphi 0, %s119
      %s134 = sphi 0, %s120
      %s138 = sphi 0, %s138
      %s140 = sphi 0, %s138
      %s141 = sphi 0, %s140
      %s155 = sphi 0, %s141
      %s159 = sphi 0, %s159
      %s161 = sphi 0, %s159
      %s162 = sphi 0, %s161
      %s176 = sphi 0, %s162
      %s182 = sphi 0, %s184
      %s185 = sphi 0, %s182
      %s186 = sphi 0, %s185
      %s202 = sphi 0, %s186
    $region4: #{tpu_custom_call.1} parent=1 // loop_header_branch
      %23 = sbr.rel (%p21) target = $region8
    $region5: #{tpu_custom_call.1} parent=1 // loop_body
      %s25 = ssub.s32 %s20, 1
      %s26 = ssub.s32 %s20, 2
      %s27 = sadd.s32 %s20, 1
      %s28 = ssub.s32 %s20, %s27
      %p29 = scmp.eq.s32.totalorder %s28, 0
      %s31 = sadd.s32 %s30, 1
      %s32 = scalar_select %p29, %s30, %s31
      %p35 = pneg %p29
      %p36 = scmp.eq.s32.totalorder %s20, 1
      %p37 = por %p35, %p36
      %p38 = scmp.ne.s32.totalorder %s30, %s33
      %p39 = scmp.eq.s32.totalorder %s20, 0
      %p40 = por %p38, %p39
      %p41 = scmp.ne.s32.totalorder %s30, %s33
      %p42 = scmp.eq.s32.totalorder %s25, 1
      %p43 = por %p41, %p42
      %p44 = scmp.ne.s32.totalorder %s33, %s34
      %p45 = scmp.eq.s32.totalorder %s25, 0
      %p46 = por %p44, %p45
      %p47 = scmp.ne.s32.totalorder %s33, %s34
      %p48 = scmp.eq.s32.totalorder %s26, 1
      %p49 = por %p47, %p48
      %p51 = scmp.ne.s32.totalorder %s34, %s50
      %p52 = scmp.eq.s32.totalorder %s26, 0
      %p53 = por %p51, %p52
      %s55 = sadd.s32 %s54, 1
      %p58 = scmp.eq.s32.totalorder %s20, 1
      %p59 = scmp.ne.s32.totalorder %s54, %s56
      %p60 = scmp.eq.s32.totalorder %s20, 0
      %p61 = por %p59, %p60
      %p62 = scmp.ne.s32.totalorder %s54, %s56
      %p63 = scmp.eq.s32.totalorder %s25, 1
      %p64 = por %p62, %p63
      %p65 = scmp.ne.s32.totalorder %s56, %s57
      %p66 = scmp.eq.s32.totalorder %s25, 0
      %p67 = por %p65, %p66
      %p68 = scmp.ne.s32.totalorder %s56, %s57
      %p69 = scmp.eq.s32.totalorder %s26, 1
      %p70 = por %p68, %p69
      %p72 = scmp.ne.s32.totalorder %s57, %s71
      %p73 = scmp.eq.s32.totalorder %s26, 0
      %p74 = por %p72, %p73
      %s76 = sadd.s32 %s75, 1
      %p79 = scmp.eq.s32.totalorder %s20, 1
      %p80 = scmp.ne.s32.totalorder %s75, %s77
      %p81 = scmp.eq.s32.totalorder %s20, 0
      %p82 = por %p80, %p81
      %p83 = scmp.ne.s32.totalorder %s75, %s77
      %p84 = scmp.eq.s32.totalorder %s25, 1
      %p85 = por %p83, %p84
      %p86 = scmp.ne.s32.totalorder %s77, %s78
      %p87 = scmp.eq.s32.totalorder %s25, 0
      %p88 = por %p86, %p87
      %p89 = scmp.ne.s32.totalorder %s77, %s78
      %p90 = scmp.eq.s32.totalorder %s26, 1
      %p91 = por %p89, %p90
      %p93 = scmp.ne.s32.totalorder %s78, %s92
      %p94 = scmp.eq.s32.totalorder %s26, 0
      %p95 = por %p93, %p94
      %s97 = sadd.s32 %s96, 1
      %p100 = scmp.eq.s32.totalorder %s20, 1
      %p101 = scmp.ne.s32.totalorder %s96, %s98
      %p102 = scmp.eq.s32.totalorder %s20, 0
      %p103 = por %p101, %p102
      %p104 = scmp.ne.s32.totalorder %s96, %s98
      %p105 = scmp.eq.s32.totalorder %s25, 1
      %p106 = por %p104, %p105
      %p107 = scmp.ne.s32.totalorder %s98, %s99
      %p108 = scmp.eq.s32.totalorder %s25, 0
      %p109 = por %p107, %p108
      %p110 = scmp.ne.s32.totalorder %s98, %s99
      %p111 = scmp.eq.s32.totalorder %s26, 1
      %p112 = por %p110, %p111
      %p114 = scmp.ne.s32.totalorder %s99, %s113
      %p115 = scmp.eq.s32.totalorder %s26, 0
      %p116 = por %p114, %p115
      %s118 = sadd.s32 %s117, 1
      %p121 = scmp.eq.s32.totalorder %s20, 1
      %p122 = scmp.ne.s32.totalorder %s117, %s119
      %p123 = scmp.eq.s32.totalorder %s20, 0
      %p124 = por %p122, %p123
      %p125 = scmp.ne.s32.totalorder %s117, %s119
      %p126 = scmp.eq.s32.totalorder %s25, 1
      %p127 = por %p125, %p126
      %p128 = scmp.ne.s32.totalorder %s119, %s120
      %p129 = scmp.eq.s32.totalorder %s25, 0
      %p130 = por %p128, %p129
      %p131 = scmp.ne.s32.totalorder %s119, %s120
      %p132 = scmp.eq.s32.totalorder %s26, 1
      %p133 = por %p131, %p132
      %p135 = scmp.ne.s32.totalorder %s120, %s134
      %p136 = scmp.eq.s32.totalorder %s26, 0
      %p137 = por %p135, %p136
      %s139 = sadd.s32 %s138, 1
      %p142 = scmp.eq.s32.totalorder %s20, 1
      %p143 = scmp.ne.s32.totalorder %s138, %s140
      %p144 = scmp.eq.s32.totalorder %s20, 0
      %p145 = por %p143, %p144
      %p146 = scmp.ne.s32.totalorder %s138, %s140
      %p147 = scmp.eq.s32.totalorder %s25, 1
      %p148 = por %p146, %p147
      %p149 = scmp.ne.s32.totalorder %s140, %s141
      %p150 = scmp.eq.s32.totalorder %s25, 0
      %p151 = por %p149, %p150
      %p152 = scmp.ne.s32.totalorder %s140, %s141
      %p153 = scmp.eq.s32.totalorder %s26, 1
      %p154 = por %p152, %p153
      %p156 = scmp.ne.s32.totalorder %s141, %s155
      %p157 = scmp.eq.s32.totalorder %s26, 0
      %p158 = por %p156, %p157
      %s160 = sadd.s32 %s159, 1
      %p163 = scmp.eq.s32.totalorder %s20, 1
      %p164 = scmp.ne.s32.totalorder %s159, %s161
      %p165 = scmp.eq.s32.totalorder %s20, 0
      %p166 = por %p164, %p165
      %p167 = scmp.ne.s32.totalorder %s159, %s161
      %p168 = scmp.eq.s32.totalorder %s25, 1
      %p169 = por %p167, %p168
      %p170 = scmp.ne.s32.totalorder %s161, %s162
      %p171 = scmp.eq.s32.totalorder %s25, 0
      %p172 = por %p170, %p171
      %p173 = scmp.ne.s32.totalorder %s161, %s162
      %p174 = scmp.eq.s32.totalorder %s26, 1
      %p175 = por %p173, %p174
      %p177 = scmp.ne.s32.totalorder %s162, %s176
      %p178 = scmp.eq.s32.totalorder %s26, 0
      %p179 = por %p177, %p178
      %s180 = ssub.s32 %s20, %s27
      %p181 = scmp.eq.s32.totalorder %s180, 0
      %s183 = sadd.s32 %s182, 1
      %s184 = scalar_select %p181, %s182, %s183
      %p187 = pneg %p181
      %p188 = scmp.eq.s32.totalorder %s20, 1
      %p189 = por %p187, %p188
      %p190 = scmp.ne.s32.totalorder %s182, %s185
      %p191 = scmp.eq.s32.totalorder %s20, 0
      %p192 = por %p190, %p191
      %p193 = scmp.ne.s32.totalorder %s182, %s185
      %p194 = scmp.eq.s32.totalorder %s25, 1
      %p195 = por %p193, %p194
      %p196 = scmp.ne.s32.totalorder %s185, %s186
      %p197 = scmp.eq.s32.totalorder %s25, 0
      %p198 = por %p196, %p197
      %p199 = scmp.ne.s32.totalorder %s185, %s186
      %p200 = scmp.eq.s32.totalorder %s26, 1
      %p201 = por %p199, %p200
      %p203 = scmp.ne.s32.totalorder %s186, %s202
      %p204 = scmp.eq.s32.totalorder %s26, 0
      %p205 = por %p203, %p204
      %p206 = scmp.le.s32.totalorder 1, %s20
      %p207 = scmp.lt.s32.totalorder %s20, 3
      %p208 = pnand %p206, %p207
      %p209 = pneg %p208
      // Predicated region
      $region9: #{tpu_custom_call.1} parent=5 // pred_check
        _
      $region10: #{tpu_custom_call.1} parent=5 // pred_check_branch
        %211 = sbr.rel (%p208) target = $region12
      $region11: #{tpu_custom_call.1} parent=5 // pred_region
        %s212 = ssub.s32 %s20, 1
        // Predicated region
        $region13: #{tpu_custom_call.1} parent=11 // pred_check
          %p213 = pneg %p67
        $region14: #{tpu_custom_call.1} parent=11 // pred_check_branch
          %215 = sbr.rel (%p213) target = $region16
        $region15: #{tpu_custom_call.1} parent=11 // pred_region
          %217 = vsyncadd [#allocation3], 0
          %s218 = sshll.u32 %s1, 4
          %s219 = int_to_ptr.hbm [resolvable:$true] %s218
          %s220 = sshll.u32 [#allocation2], 4
          %s221 = int_to_ptr.vmem [resolvable:$true] %s220
          %226 = dma.hbm_to_vmem [thread:$0]  %s219, 2048, %s221, [#allocation3], 512, 512, 32
        $region16: #{tpu_custom_call.1} parent=11 // pred_fallthru
          _
        // Predicated region
        $region17: #{tpu_custom_call.1} parent=11 // pred_check
          %p227 = pneg %p88
        $region18: #{tpu_custom_call.1} parent=11 // pred_check_branch
          %229 = sbr.rel (%p227) target = $region20
        $region19: #{tpu_custom_call.1} parent=11 // pred_region
          %231 = vsyncadd [#allocation6], 0
          %s233 = sshll.u32 %s2, 4
          %s234 = int_to_ptr.hbm [resolvable:$true] %s233
          %s235 = sshll.u32 [#allocation5], 4
          %s236 = int_to_ptr.vmem [resolvable:$true] %s235
          %238 = dma.hbm_to_vmem [thread:$0]  %s234, 128, %s236, [#allocation6]
        $region20: #{tpu_custom_call.1} parent=11 // pred_fallthru
          _
        // Predicated region
        $region21: #{tpu_custom_call.1} parent=11 // pred_check
          %p239 = pneg %p109
        $region22: #{tpu_custom_call.1} parent=11 // pred_check_branch
          %241 = sbr.rel (%p239) target = $region24
        $region23: #{tpu_custom_call.1} parent=11 // pred_region
          %243 = vsyncadd [#allocation6], 0
          %s244 = sshll.u32 %s3, 4
          %s245 = int_to_ptr.hbm [resolvable:$true] %s244
          %s246 = sshll.u32 [#allocation7], 4
          %s247 = int_to_ptr.vmem [resolvable:$true] %s246
          %252 = dma.hbm_to_vmem [thread:$0]  %s245, 65536, %s247, [#allocation6], 512, 512, 32
        $region24: #{tpu_custom_call.1} parent=11 // pred_fallthru
          _
        // Predicated region
        $region25: #{tpu_custom_call.1} parent=11 // pred_check
          %p253 = pneg %p130
        $region26: #{tpu_custom_call.1} parent=11 // pred_check_branch
          %255 = sbr.rel (%p253) target = $region28
        $region27: #{tpu_custom_call.1} parent=11 // pred_region
          %257 = vsyncadd [#allocation9], 0
          %s259 = sshll.u32 %s4, 4
          %s260 = int_to_ptr.hbm [resolvable:$true] %s259
          %s261 = sshll.u32 [#allocation8], 4
          %s262 = int_to_ptr.vmem [resolvable:$true] %s261
          %264 = dma.hbm_to_vmem [thread:$0]  %s260, 128, %s262, [#allocation9]
        $region28: #{tpu_custom_call.1} parent=11 // pred_fallthru
          _
        // Predicated region
        $region29: #{tpu_custom_call.1} parent=11 // pred_check
          %p265 = pneg %p151
        $region30: #{tpu_custom_call.1} parent=11 // pred_check_branch
          %267 = sbr.rel (%p265) target = $region32
        $region31: #{tpu_custom_call.1} parent=11 // pred_region
          %269 = vsyncadd [#allocation9], 0
          %s270 = sshll.u32 %s5, 4
          %s271 = int_to_ptr.hbm [resolvable:$true] %s270
          %s272 = sshll.u32 [#allocation10], 4
          %s273 = int_to_ptr.vmem [resolvable:$true] %s272
          %278 = dma.hbm_to_vmem [thread:$0]  %s271, 8192, %s273, [#allocation9], 64, 64, 4
        $region32: #{tpu_custom_call.1} parent=11 // pred_fallthru
          _
        // Predicated region
        $region33: #{tpu_custom_call.1} parent=11 // pred_check
          %p279 = pneg %p172
        $region34: #{tpu_custom_call.1} parent=11 // pred_check_branch
          %281 = sbr.rel (%p279) target = $region36
        $region35: #{tpu_custom_call.1} parent=11 // pred_region
          %283 = vsyncadd [#allocation12], 0
          %s285 = sshll.u32 %s6, 4
          %s286 = int_to_ptr.hbm [resolvable:$true] %s285
          %s287 = sshll.u32 [#allocation11], 4
          %s288 = int_to_ptr.vmem [resolvable:$true] %s287
          %290 = dma.hbm_to_vmem [thread:$0]  %s286, 16, %s288, [#allocation12]
        $region36: #{tpu_custom_call.1} parent=11 // pred_fallthru
          _
      $region12: #{tpu_custom_call.1} parent=5 // pred_fallthru
        _
      %p291 = scmp.lt.s32.totalorder %s20, 2
      // Predicated region
      $region37: #{tpu_custom_call.1} parent=5 // pred_check
        %p292 = pneg %p291
      $region38: #{tpu_custom_call.1} parent=5 // pred_check_branch
        %294 = sbr.rel (%p292) target = $region40
      $region39: #{tpu_custom_call.1} parent=5 // pred_region
        // Predicated region
        $region41: #{tpu_custom_call.1} parent=39 // pred_check
          %p295 = pneg %p40
        $region42: #{tpu_custom_call.1} parent=39 // pred_check_branch
          %297 = sbr.rel (%p295) target = $region44
        $region43: #{tpu_custom_call.1} parent=39 // pred_region
          %s298 = smul.u32 16, %s20
          %p299 = scmp.lt.s32.totalorder %s298, 31
          %s300 = scalar_select %p299, %s298, 31
          %s301 = smul.addr %s300, 4
          %s302 = scalar_lea.vmem %s0, %s301
          %s303 = smul.u32 16, %s20
        $region44: #{tpu_custom_call.1} parent=39 // pred_fallthru
          _
      $region40: #{tpu_custom_call.1} parent=5 // pred_fallthru
        _
      %p304 = scmp.le.s32.totalorder 1, %s20
      %p305 = scmp.lt.s32.totalorder %s20, 3
      %p306 = pnand %p304, %p305
      %p307 = pneg %p306
      // Predicated region
      $region45: #{tpu_custom_call.1} parent=5 // pred_check
        _
      $region46: #{tpu_custom_call.1} parent=5 // pred_check_branch
        %309 = sbr.rel (%p306) target = $region48
      $region47: #{tpu_custom_call.1} parent=5 // pred_region
        %s310 = ssub.s32 %s20, 1
        // Predicated region
        $region49: #{tpu_custom_call.1} parent=47 // pred_check
          %p311 = pneg %p67
        $region50: #{tpu_custom_call.1} parent=47 // pred_check_branch
          %313 = sbr.rel (%p311) target = $region52
        $region51: #{tpu_custom_call.1} parent=47 // pred_region
          %315 = dma.done [#allocation3], 2048
        $region52: #{tpu_custom_call.1} parent=47 // pred_fallthru
          _
        // Predicated region
        $region53: #{tpu_custom_call.1} parent=47 // pred_check
          %p316 = pneg %p88
        $region54: #{tpu_custom_call.1} parent=47 // pred_check_branch
          %318 = sbr.rel (%p316) target = $region56
        $region55: #{tpu_custom_call.1} parent=47 // pred_region
          %320 = dma.done [#allocation6], 128
        $region56: #{tpu_custom_call.1} parent=47 // pred_fallthru
          _
        // Predicated region
        $region57: #{tpu_custom_call.1} parent=47 // pred_check
          %p321 = pneg %p109
        $region58: #{tpu_custom_call.1} parent=47 // pred_check_branch
          %323 = sbr.rel (%p321) target = $region60
        $region59: #{tpu_custom_call.1} parent=47 // pred_region
          %325 = dma.done [#allocation6], 65536
        $region60: #{tpu_custom_call.1} parent=47 // pred_fallthru
          _
        // Predicated region
        $region61: #{tpu_custom_call.1} parent=47 // pred_check
          %p326 = pneg %p130
        $region62: #{tpu_custom_call.1} parent=47 // pred_check_branch
          %328 = sbr.rel (%p326) target = $region64
        $region63: #{tpu_custom_call.1} parent=47 // pred_region
          %330 = dma.done [#allocation9], 128
        $region64: #{tpu_custom_call.1} parent=47 // pred_fallthru
          _
        // Predicated region
        $region65: #{tpu_custom_call.1} parent=47 // pred_check
          %p331 = pneg %p151
        $region66: #{tpu_custom_call.1} parent=47 // pred_check_branch
          %333 = sbr.rel (%p331) target = $region68
        $region67: #{tpu_custom_call.1} parent=47 // pred_region
          %335 = dma.done [#allocation9], 8192
        $region68: #{tpu_custom_call.1} parent=47 // pred_fallthru
          _
        // Predicated region
        $region69: #{tpu_custom_call.1} parent=47 // pred_check
          %p336 = pneg %p172
        $region70: #{tpu_custom_call.1} parent=47 // pred_check_branch
          %338 = sbr.rel (%p336) target = $region72
        $region71: #{tpu_custom_call.1} parent=47 // pred_region
          %340 = dma.done [#allocation12], 16
        $region72: #{tpu_custom_call.1} parent=47 // pred_fallthru
          _
        %s341 = smul.u32 16, %s25
        %p342 = scmp.lt.s32.totalorder %s341, 31
        %s343 = scalar_select %p342, %s341, 31
        %s344 = smul.addr %s343, 4
        %s345 = scalar_lea.vmem %s0, %s344
        %p346 = pneg %p46
        %p347 = pneg %p43
        %p348 = pneg %p67
        %p349 = pneg %p64
        %p350 = pneg %p88
        %p351 = pneg %p85
        %p352 = pneg %p109
        %p353 = pneg %p106
        %p354 = pneg %p130
        %p355 = pneg %p127
        %p356 = pneg %p151
        %p357 = pneg %p148
        %p358 = pneg %p172
        %p359 = pneg %p169
        %p360 = pneg %p198
        %p361 = pneg %p195
        %s362 = sand.u32 %s185, 1
        %s363 = scalar_lea.sflag [#allocation4], %s362
        %s364 = sand.u32 %s185, 1
        %s365 = smul.addr %s364, 128
        %s366 = scalar_lea.vmem [#allocation13], %s365
        %s367 = smul.u32 16, %s25
        %p368 = scmp.lt.s32.totalorder %s367, 31
        %s369 = scalar_select %p368, %s367, 31
        %s370 = smul.addr %s369, 4
        %s371 = scalar_lea.vmem %s0, %s370
        %s372 = smul.u32 16, %s25
        %s373 = smul.u32 16, %s25
        %v375 = vld [vmem:[%s371] sm:$0xf]
        %v376 = vld [vmem:[%s371 + $0x4] sm:$0xf]
        %v377 = vld [vmem:[%s371 + $0x8] sm:$0xf]
        %v378 = vld [vmem:[%s371 + $0xc] sm:$0xf]
        %v379 = vld [vmem:[%s371 + $0x10] sm:$0xf]
        %v380 = vld [vmem:[%s371 + $0x14] sm:$0xf]
        %v381 = vld [vmem:[%s371 + $0x18] sm:$0xf]
        %v382 = vld [vmem:[%s371 + $0x1c] sm:$0xf]
        %v383 = vld [vmem:[%s371 + $0x20] sm:$0xf]
        %v384 = vld [vmem:[%s371 + $0x24] sm:$0xf]
        %v385 = vld [vmem:[%s371 + $0x28] sm:$0xf]
        %v386 = vld [vmem:[%s371 + $0x2c] sm:$0xf]
        %v387 = vld [vmem:[%s371 + $0x30] sm:$0xf]
        %v388 = vld [vmem:[%s371 + $0x34] sm:$0xf]
        %v389 = vld [vmem:[%s371 + $0x38] sm:$0xf]
        %v390 = vld [vmem:[%s371 + $0x3c] sm:$0xf]
        %v391 = vld [vmem:[#allocation2] sm:$0xff]
        %v392 = vld [vmem:[#allocation2 + $0x8] sm:$0xff]
        %v393 = vld [vmem:[#allocation2 + $0x10] sm:$0xff]
        %v394 = vld [vmem:[#allocation2 + $0x18] sm:$0xff]
        %v395 = vld [vmem:[#allocation2 + $0x20] sm:$0xff]
        %v396 = vld [vmem:[#allocation2 + $0x28] sm:$0xff]
        %v397 = vld [vmem:[#allocation2 + $0x30] sm:$0xff]
        %v398 = vld [vmem:[#allocation2 + $0x38] sm:$0xff]
        %v399 = vld [vmem:[#allocation2 + $0x40] sm:$0xff]
        %v400 = vld [vmem:[#allocation2 + $0x48] sm:$0xff]
        %v401 = vld [vmem:[#allocation2 + $0x50] sm:$0xff]
        %v402 = vld [vmem:[#allocation2 + $0x58] sm:$0xff]
        %v403 = vld [vmem:[#allocation2 + $0x60] sm:$0xff]
        %v404 = vld [vmem:[#allocation2 + $0x68] sm:$0xff]
        %v405 = vld [vmem:[#allocation2 + $0x70] sm:$0xff]
        %v406 = vld [vmem:[#allocation2 + $0x78] sm:$0xff]
        %v407 = vld [vmem:[#allocation5] sm:$0xff]
        %v409 = vperm.slane %v407, 0
        %v410 = vperm.slane %v407, 1
        %v411 = vperm.slane %v407, 2
        %v412 = vperm.slane %v407, 3
        %v413 = vperm.slane %v407, 4
        %v414 = vperm.slane %v407, 5
        %v415 = vperm.slane %v407, 6
        %v416 = vperm.slane %v407, 7
        %v441 = vunpack.c.l.b16 %v375
        %v442 = vunpack.c.l.b16 %v376
        %v443 = vunpack.c.l.b16 %v377
        %v444 = vunpack.c.l.b16 %v378
        %v445 = vunpack.c.l.b16 %v379
        %v446 = vunpack.c.l.b16 %v380
        %v447 = vunpack.c.l.b16 %v381
        %v448 = vunpack.c.l.b16 %v382
        %v449 = vunpack.c.l.b16 %v383
        %v450 = vunpack.c.l.b16 %v384
        %v451 = vunpack.c.l.b16 %v385
        %v452 = vunpack.c.l.b16 %v386
        %v453 = vunpack.c.l.b16 %v387
        %v454 = vunpack.c.l.b16 %v388
        %v455 = vunpack.c.l.b16 %v389
        %v456 = vunpack.c.l.b16 %v390
        %v457 = vpack.c.b16 %v442, %v441
        %v458 = vpack.c.b16 %v444, %v443
        %v459 = vpack.c.b16 %v446, %v445
        %v460 = vpack.c.b16 %v448, %v447
        %v461 = vpack.c.b16 %v450, %v449
        %v462 = vpack.c.b16 %v452, %v451
        %v463 = vpack.c.b16 %v454, %v453
        %v464 = vpack.c.b16 %v456, %v455
        %v481 = vunpack.c.l.b16 %v391
        %v482 = vunpack.c.h.b16 %v391
        %v483 = vunpack.c.l.b16 %v392
        %v484 = vunpack.c.h.b16 %v392
        %v485 = vunpack.c.l.b16 %v393
        %v486 = vunpack.c.h.b16 %v393
        %v487 = vunpack.c.l.b16 %v394
        %v488 = vunpack.c.h.b16 %v394
        %v489 = vunpack.c.l.b16 %v395
        %v490 = vunpack.c.h.b16 %v395
        %v491 = vunpack.c.l.b16 %v396
        %v492 = vunpack.c.h.b16 %v396
        %v493 = vunpack.c.l.b16 %v397
        %v494 = vunpack.c.h.b16 %v397
        %v495 = vunpack.c.l.b16 %v398
        %v496 = vunpack.c.h.b16 %v398
        %v497 = vunpack.c.l.b16 %v399
        %v498 = vunpack.c.h.b16 %v399
        %v499 = vunpack.c.l.b16 %v400
        %v500 = vunpack.c.h.b16 %v400
        %v501 = vunpack.c.l.b16 %v401
        %v502 = vunpack.c.h.b16 %v401
        %v503 = vunpack.c.l.b16 %v402
        %v504 = vunpack.c.h.b16 %v402
        %v505 = vunpack.c.l.b16 %v403
        %v506 = vunpack.c.h.b16 %v403
        %v507 = vunpack.c.l.b16 %v404
        %v508 = vunpack.c.h.b16 %v404
        %v509 = vunpack.c.l.b16 %v405
        %v510 = vunpack.c.h.b16 %v405
        %v511 = vunpack.c.l.b16 %v406
        %v512 = vunpack.c.h.b16 %v406
        %v513 = vpack.c.b16 %v489, %v481
        %v514 = vpack.c.b16 %v490, %v482
        %v515 = vpack.c.b16 %v491, %v483
        %v516 = vpack.c.b16 %v492, %v484
        %v517 = vpack.c.b16 %v493, %v485
        %v518 = vpack.c.b16 %v494, %v486
        %v519 = vpack.c.b16 %v495, %v487
        %v520 = vpack.c.b16 %v496, %v488
        %v521 = vpack.c.b16 %v505, %v497
        %v522 = vpack.c.b16 %v506, %v498
        %v523 = vpack.c.b16 %v507, %v499
        %v524 = vpack.c.b16 %v508, %v500
        %v525 = vpack.c.b16 %v509, %v501
        %v526 = vpack.c.b16 %v510, %v502
        %v527 = vpack.c.b16 %v511, %v503
        %v528 = vpack.c.b16 %v512, %v504
        %vm545 = vcmask 261120
        %v547 = vsel %vm545, %v457, 0
        %v550 = vsel %vm545, %v458, 0
        %v553 = vsel %vm545, %v459, 0
        %v556 = vsel %vm545, %v460, 0
        %v559 = vsel %vm545, %v461, 0
        %v562 = vsel %vm545, %v462, 0
        %v565 = vsel %vm545, %v463, 0
        %v568 = vsel %vm545, %v464, 0
        %570 = vmatpush.bf16.msra.mxu0 0
        %571 = vmatpush.bf16.msra.mxu0 0
        %572 = vmatpush.bf16.msra.mxu0 0
        %573 = vmatpush.bf16.msra.mxu0 0
        %574 = vmatpush.bf16.msra.mxu0 0
        %575 = vmatpush.bf16.msra.mxu0 0
        %576 = vmatpush.bf16.msra.mxu0 %v521
        %577 = vmatpush.bf16.msra.mxu0 %v513
        %578 = vmatmul.bf16.gmra.mxu0 %v547
        %v579 = vpop.f32.mrf.mxu0
        %v580 = vadd.f32 %v409, %v579
        %v581 = vpop.f32.mrf.mxu0
        %v582 = vadd.f32 %v409, %v581
        %583 = vmatmul.bf16.gmra.mxu0 %v550
        %v584 = vpop.f32.mrf.mxu0
        %v585 = vadd.f32 %v409, %v584
        %v586 = vpop.f32.mrf.mxu0
        %v587 = vadd.f32 %v409, %v586
        %588 = vmatmul.bf16.gmra.mxu0 %v553
        %v589 = vpop.f32.mrf.mxu0
        %v590 = vadd.f32 %v409, %v589
        %v591 = vpop.f32.mrf.mxu0
        %v592 = vadd.f32 %v409, %v591
        %593 = vmatmul.bf16.gmra.mxu0 %v556
        %v594 = vpop.f32.mrf.mxu0
        %v595 = vadd.f32 %v409, %v594
        %v596 = vpop.f32.mrf.mxu0
        %v597 = vadd.f32 %v409, %v596
        %598 = vmatmul.bf16.gmra.mxu0 %v559
        %v599 = vpop.f32.mrf.mxu0
        %v600 = vadd.f32 %v409, %v599
        %v601 = vpop.f32.mrf.mxu0
        %v602 = vadd.f32 %v409, %v601
        %603 = vmatmul.bf16.gmra.mxu0 %v562
        %v604 = vpop.f32.mrf.mxu0
        %v605 = vadd.f32 %v409, %v604
        %v606 = vpop.f32.mrf.mxu0
        %v607 = vadd.f32 %v409, %v606
        %608 = vmatmul.bf16.gmra.mxu0 %v565
        %v609 = vpop.f32.mrf.mxu0
        %v610 = vadd.f32 %v409, %v609
        %v611 = vpop.f32.mrf.mxu0
        %v612 = vadd.f32 %v409, %v611
        %613 = vmatmul.bf16.gmra.mxu0 %v568
        %v614 = vpop.f32.mrf.mxu0
        %v615 = vadd.f32 %v409, %v614
        %v616 = vpop.f32.mrf.mxu0
        %v617 = vadd.f32 %v409, %v616
        %618 = vdwg.mxu0
        %619 = vmatpush.bf16.msra.mxu0 0
        %620 = vmatpush.bf16.msra.mxu0 0
        %621 = vmatpush.bf16.msra.mxu0 0
        %622 = vmatpush.bf16.msra.mxu0 0
        %623 = vmatpush.bf16.msra.mxu0 0
        %624 = vmatpush.bf16.msra.mxu0 0
        %625 = vmatpush.bf16.msra.mxu0 %v522
        %626 = vmatpush.bf16.msra.mxu0 %v514
        %627 = vmatmul.bf16.gmra.mxu0 %v547
        %v628 = vpop.f32.mrf.mxu0
        %v629 = vadd.f32 %v410, %v628
        %v630 = vpop.f32.mrf.mxu0
        %v631 = vadd.f32 %v410, %v630
        %632 = vmatmul.bf16.gmra.mxu0 %v550
        %v633 = vpop.f32.mrf.mxu0
        %v634 = vadd.f32 %v410, %v633
        %v635 = vpop.f32.mrf.mxu0
        %v636 = vadd.f32 %v410, %v635
        %637 = vmatmul.bf16.gmra.mxu0 %v553
        %v638 = vpop.f32.mrf.mxu0
        %v639 = vadd.f32 %v410, %v638
        %v640 = vpop.f32.mrf.mxu0
        %v641 = vadd.f32 %v410, %v640
        %642 = vmatmul.bf16.gmra.mxu0 %v556
        %v643 = vpop.f32.mrf.mxu0
        %v644 = vadd.f32 %v410, %v643
        %v645 = vpop.f32.mrf.mxu0
        %v646 = vadd.f32 %v410, %v645
        %647 = vmatmul.bf16.gmra.mxu0 %v559
        %v648 = vpop.f32.mrf.mxu0
        %v649 = vadd.f32 %v410, %v648
        %v650 = vpop.f32.mrf.mxu0
        %v651 = vadd.f32 %v410, %v650
        %652 = vmatmul.bf16.gmra.mxu0 %v562
        %v653 = vpop.f32.mrf.mxu0
        %v654 = vadd.f32 %v410, %v653
        %v655 = vpop.f32.mrf.mxu0
        %v656 = vadd.f32 %v410, %v655
        %657 = vmatmul.bf16.gmra.mxu0 %v565
        %v658 = vpop.f32.mrf.mxu0
        %v659 = vadd.f32 %v410, %v658
        %v660 = vpop.f32.mrf.mxu0
        %v661 = vadd.f32 %v410, %v660
        %662 = vmatmul.bf16.gmra.mxu0 %v568
        %v663 = vpop.f32.mrf.mxu0
        %v664 = vadd.f32 %v410, %v663
        %v665 = vpop.f32.mrf.mxu0
        %v666 = vadd.f32 %v410, %v665
        %667 = vdwg.mxu0
        %668 = vmatpush.bf16.msra.mxu0 0
        %669 = vmatpush.bf16.msra.mxu0 0
        %670 = vmatpush.bf16.msra.mxu0 0
        %671 = vmatpush.bf16.msra.mxu0 0
        %672 = vmatpush.bf16.msra.mxu0 0
        %673 = vmatpush.bf16.msra.mxu0 0
        %674 = vmatpush.bf16.msra.mxu0 %v523
        %675 = vmatpush.bf16.msra.mxu0 %v515
        %676 = vmatmul.bf16.gmra.mxu0 %v547
        %v677 = vpop.f32.mrf.mxu0
        %v678 = vadd.f32 %v411, %v677
        %v679 = vpop.f32.mrf.mxu0
        %v680 = vadd.f32 %v411, %v679
        %681 = vmatmul.bf16.gmra.mxu0 %v550
        %v682 = vpop.f32.mrf.mxu0
        %v683 = vadd.f32 %v411, %v682
        %v684 = vpop.f32.mrf.mxu0
        %v685 = vadd.f32 %v411, %v684
        %686 = vmatmul.bf16.gmra.mxu0 %v553
        %v687 = vpop.f32.mrf.mxu0
        %v688 = vadd.f32 %v411, %v687
        %v689 = vpop.f32.mrf.mxu0
        %v690 = vadd.f32 %v411, %v689
        %691 = vmatmul.bf16.gmra.mxu0 %v556
        %v692 = vpop.f32.mrf.mxu0
        %v693 = vadd.f32 %v411, %v692
        %v694 = vpop.f32.mrf.mxu0
        %v695 = vadd.f32 %v411, %v694
        %696 = vmatmul.bf16.gmra.mxu0 %v559
        %v697 = vpop.f32.mrf.mxu0
        %v698 = vadd.f32 %v411, %v697
        %v699 = vpop.f32.mrf.mxu0
        %v700 = vadd.f32 %v411, %v699
        %701 = vmatmul.bf16.gmra.mxu0 %v562
        %v702 = vpop.f32.mrf.mxu0
        %v703 = vadd.f32 %v411, %v702
        %v704 = vpop.f32.mrf.mxu0
        %v705 = vadd.f32 %v411, %v704
        %706 = vmatmul.bf16.gmra.mxu0 %v565
        %v707 = vpop.f32.mrf.mxu0
        %v708 = vadd.f32 %v411, %v707
        %v709 = vpop.f32.mrf.mxu0
        %v710 = vadd.f32 %v411, %v709
        %711 = vmatmul.bf16.gmra.mxu0 %v568
        %v712 = vpop.f32.mrf.mxu0
        %v713 = vadd.f32 %v411, %v712
        %v714 = vpop.f32.mrf.mxu0
        %v715 = vadd.f32 %v411, %v714
        %716 = vdwg.mxu0
        %717 = vmatpush.bf16.msra.mxu0 0
        %718 = vmatpush.bf16.msra.mxu0 0
        %719 = vmatpush.bf16.msra.mxu0 0
        %720 = vmatpush.bf16.msra.mxu0 0
        %721 = vmatpush.bf16.msra.mxu0 0
        %722 = vmatpush.bf16.msra.mxu0 0
        %723 = vmatpush.bf16.msra.mxu0 %v524
        %724 = vmatpush.bf16.msra.mxu0 %v516
        %725 = vmatmul.bf16.gmra.mxu0 %v547
        %v726 = vpop.f32.mrf.mxu0
        %v727 = vadd.f32 %v412, %v726
        %v728 = vpop.f32.mrf.mxu0
        %v729 = vadd.f32 %v412, %v728
        %730 = vmatmul.bf16.gmra.mxu0 %v550
        %v731 = vpop.f32.mrf.mxu0
        %v732 = vadd.f32 %v412, %v731
        %v733 = vpop.f32.mrf.mxu0
        %v734 = vadd.f32 %v412, %v733
        %735 = vmatmul.bf16.gmra.mxu0 %v553
        %v736 = vpop.f32.mrf.mxu0
        %v737 = vadd.f32 %v412, %v736
        %v738 = vpop.f32.mrf.mxu0
        %v739 = vadd.f32 %v412, %v738
        %740 = vmatmul.bf16.gmra.mxu0 %v556
        %v741 = vpop.f32.mrf.mxu0
        %v742 = vadd.f32 %v412, %v741
        %v743 = vpop.f32.mrf.mxu0
        %v744 = vadd.f32 %v412, %v743
        %745 = vmatmul.bf16.gmra.mxu0 %v559
        %v746 = vpop.f32.mrf.mxu0
        %v747 = vadd.f32 %v412, %v746
        %v748 = vpop.f32.mrf.mxu0
        %v749 = vadd.f32 %v412, %v748
        %750 = vmatmul.bf16.gmra.mxu0 %v562
        %v751 = vpop.f32.mrf.mxu0
        %v752 = vadd.f32 %v412, %v751
        %v753 = vpop.f32.mrf.mxu0
        %v754 = vadd.f32 %v412, %v753
        %755 = vmatmul.bf16.gmra.mxu0 %v565
        %v756 = vpop.f32.mrf.mxu0
        %v757 = vadd.f32 %v412, %v756
        %v758 = vpop.f32.mrf.mxu0
        %v759 = vadd.f32 %v412, %v758
        %760 = vmatmul.bf16.gmra.mxu0 %v568
        %v761 = vpop.f32.mrf.mxu0
        %v762 = vadd.f32 %v412, %v761
        %v763 = vpop.f32.mrf.mxu0
        %v764 = vadd.f32 %v412, %v763
        %765 = vdwg.mxu0
        %766 = vmatpush.bf16.msra.mxu0 0
        %767 = vmatpush.bf16.msra.mxu0 0
        %768 = vmatpush.bf16.msra.mxu0 0
        %769 = vmatpush.bf16.msra.mxu0 0
        %770 = vmatpush.bf16.msra.mxu0 0
        %771 = vmatpush.bf16.msra.mxu0 0
        %772 = vmatpush.bf16.msra.mxu0 %v525
        %773 = vmatpush.bf16.msra.mxu0 %v517
        %774 = vmatmul.bf16.gmra.mxu0 %v547
        %v775 = vpop.f32.mrf.mxu0
        %v776 = vadd.f32 %v413, %v775
        %v777 = vpop.f32.mrf.mxu0
        %v778 = vadd.f32 %v413, %v777
        %779 = vmatmul.bf16.gmra.mxu0 %v550
        %v780 = vpop.f32.mrf.mxu0
        %v781 = vadd.f32 %v413, %v780
        %v782 = vpop.f32.mrf.mxu0
        %v783 = vadd.f32 %v413, %v782
        %784 = vmatmul.bf16.gmra.mxu0 %v553
        %v785 = vpop.f32.mrf.mxu0
        %v786 = vadd.f32 %v413, %v785
        %v787 = vpop.f32.mrf.mxu0
        %v788 = vadd.f32 %v413, %v787
        %789 = vmatmul.bf16.gmra.mxu0 %v556
        %v790 = vpop.f32.mrf.mxu0
        %v791 = vadd.f32 %v413, %v790
        %v792 = vpop.f32.mrf.mxu0
        %v793 = vadd.f32 %v413, %v792
        %794 = vmatmul.bf16.gmra.mxu0 %v559
        %v795 = vpop.f32.mrf.mxu0
        %v796 = vadd.f32 %v413, %v795
        %v797 = vpop.f32.mrf.mxu0
        %v798 = vadd.f32 %v413, %v797
        %799 = vmatmul.bf16.gmra.mxu0 %v562
        %v800 = vpop.f32.mrf.mxu0
        %v801 = vadd.f32 %v413, %v800
        %v802 = vpop.f32.mrf.mxu0
        %v803 = vadd.f32 %v413, %v802
        %804 = vmatmul.bf16.gmra.mxu0 %v565
        %v805 = vpop.f32.mrf.mxu0
        %v806 = vadd.f32 %v413, %v805
        %v807 = vpop.f32.mrf.mxu0
        %v808 = vadd.f32 %v413, %v807
        %809 = vmatmul.bf16.gmra.mxu0 %v568
        %v810 = vpop.f32.mrf.mxu0
        %v811 = vadd.f32 %v413, %v810
        %v812 = vpop.f32.mrf.mxu0
        %v813 = vadd.f32 %v413, %v812
        %814 = vdwg.mxu0
        %815 = vmatpush.bf16.msra.mxu0 0
        %816 = vmatpush.bf16.msra.mxu0 0
        %817 = vmatpush.bf16.msra.mxu0 0
        %818 = vmatpush.bf16.msra.mxu0 0
        %819 = vmatpush.bf16.msra.mxu0 0
        %820 = vmatpush.bf16.msra.mxu0 0
        %821 = vmatpush.bf16.msra.mxu0 %v526
        %822 = vmatpush.bf16.msra.mxu0 %v518
        %823 = vmatmul.bf16.gmra.mxu0 %v547
        %v824 = vpop.f32.mrf.mxu0
        %v825 = vadd.f32 %v414, %v824
        %v826 = vpop.f32.mrf.mxu0
        %v827 = vadd.f32 %v414, %v826
        %828 = vmatmul.bf16.gmra.mxu0 %v550
        %v829 = vpop.f32.mrf.mxu0
        %v830 = vadd.f32 %v414, %v829
        %v831 = vpop.f32.mrf.mxu0
        %v832 = vadd.f32 %v414, %v831
        %833 = vmatmul.bf16.gmra.mxu0 %v553
        %v834 = vpop.f32.mrf.mxu0
        %v835 = vadd.f32 %v414, %v834
        %v836 = vpop.f32.mrf.mxu0
        %v837 = vadd.f32 %v414, %v836
        %838 = vmatmul.bf16.gmra.mxu0 %v556
        %v839 = vpop.f32.mrf.mxu0
        %v840 = vadd.f32 %v414, %v839
        %v841 = vpop.f32.mrf.mxu0
        %v842 = vadd.f32 %v414, %v841
        %843 = vmatmul.bf16.gmra.mxu0 %v559
        %v844 = vpop.f32.mrf.mxu0
        %v845 = vadd.f32 %v414, %v844
        %v846 = vpop.f32.mrf.mxu0
        %v847 = vadd.f32 %v414, %v846
        %848 = vmatmul.bf16.gmra.mxu0 %v562
        %v849 = vpop.f32.mrf.mxu0
        %v850 = vadd.f32 %v414, %v849
        %v851 = vpop.f32.mrf.mxu0
        %v852 = vadd.f32 %v414, %v851
        %853 = vmatmul.bf16.gmra.mxu0 %v565
        %v854 = vpop.f32.mrf.mxu0
        %v855 = vadd.f32 %v414, %v854
        %v856 = vpop.f32.mrf.mxu0
        %v857 = vadd.f32 %v414, %v856
        %858 = vmatmul.bf16.gmra.mxu0 %v568
        %v859 = vpop.f32.mrf.mxu0
        %v860 = vadd.f32 %v414, %v859
        %v861 = vpop.f32.mrf.mxu0
        %v862 = vadd.f32 %v414, %v861
        %863 = vdwg.mxu0
        %864 = vmatpush.bf16.msra.mxu0 0
        %865 = vmatpush.bf16.msra.mxu0 0
        %866 = vmatpush.bf16.msra.mxu0 0
        %867 = vmatpush.bf16.msra.mxu0 0
        %868 = vmatpush.bf16.msra.mxu0 0
        %869 = vmatpush.bf16.msra.mxu0 0
        %870 = vmatpush.bf16.msra.mxu0 %v527
        %871 = vmatpush.bf16.msra.mxu0 %v519
        %872 = vmatmul.bf16.gmra.mxu0 %v547
        %v873 = vpop.f32.mrf.mxu0
        %v874 = vadd.f32 %v415, %v873
        %v875 = vpop.f32.mrf.mxu0
        %v876 = vadd.f32 %v415, %v875
        %877 = vmatmul.bf16.gmra.mxu0 %v550
        %v878 = vpop.f32.mrf.mxu0
        %v879 = vadd.f32 %v415, %v878
        %v880 = vpop.f32.mrf.mxu0
        %v881 = vadd.f32 %v415, %v880
        %882 = vmatmul.bf16.gmra.mxu0 %v553
        %v883 = vpop.f32.mrf.mxu0
        %v884 = vadd.f32 %v415, %v883
        %v885 = vpop.f32.mrf.mxu0
        %v886 = vadd.f32 %v415, %v885
        %887 = vmatmul.bf16.gmra.mxu0 %v556
        %v888 = vpop.f32.mrf.mxu0
        %v889 = vadd.f32 %v415, %v888
        %v890 = vpop.f32.mrf.mxu0
        %v891 = vadd.f32 %v415, %v890
        %892 = vmatmul.bf16.gmra.mxu0 %v559
        %v893 = vpop.f32.mrf.mxu0
        %v894 = vadd.f32 %v415, %v893
        %v895 = vpop.f32.mrf.mxu0
        %v896 = vadd.f32 %v415, %v895
        %897 = vmatmul.bf16.gmra.mxu0 %v562
        %v898 = vpop.f32.mrf.mxu0
        %v899 = vadd.f32 %v415, %v898
        %v900 = vpop.f32.mrf.mxu0
        %v901 = vadd.f32 %v415, %v900
        %902 = vmatmul.bf16.gmra.mxu0 %v565
        %v903 = vpop.f32.mrf.mxu0
        %v904 = vadd.f32 %v415, %v903
        %v905 = vpop.f32.mrf.mxu0
        %v906 = vadd.f32 %v415, %v905
        %907 = vmatmul.bf16.gmra.mxu0 %v568
        %v908 = vpop.f32.mrf.mxu0
        %v909 = vadd.f32 %v415, %v908
        %v910 = vpop.f32.mrf.mxu0
        %v911 = vadd.f32 %v415, %v910
        %912 = vdwg.mxu0
        %913 = vmatpush.bf16.msra.mxu0 0
        %914 = vmatpush.bf16.msra.mxu0 0
        %915 = vmatpush.bf16.msra.mxu0 0
        %916 = vmatpush.bf16.msra.mxu0 0
        %917 = vmatpush.bf16.msra.mxu0 0
        %918 = vmatpush.bf16.msra.mxu0 0
        %919 = vmatpush.bf16.msra.mxu0 %v528
        %920 = vmatpush.bf16.msra.mxu0 %v520
        %921 = vmatmul.bf16.gmra.mxu0 %v547
        %v922 = vpop.f32.mrf.mxu0
        %v923 = vadd.f32 %v416, %v922
        %v924 = vpop.f32.mrf.mxu0
        %v925 = vadd.f32 %v416, %v924
        %926 = vmatmul.bf16.gmra.mxu0 %v550
        %v927 = vpop.f32.mrf.mxu0
        %v928 = vadd.f32 %v416, %v927
        %v929 = vpop.f32.mrf.mxu0
        %v930 = vadd.f32 %v416, %v929
        %931 = vmatmul.bf16.gmra.mxu0 %v553
        %v932 = vpop.f32.mrf.mxu0
        %v933 = vadd.f32 %v416, %v932
        %v934 = vpop.f32.mrf.mxu0
        %v935 = vadd.f32 %v416, %v934
        %936 = vmatmul.bf16.gmra.mxu0 %v556
        %v937 = vpop.f32.mrf.mxu0
        %v938 = vadd.f32 %v416, %v937
        %v939 = vpop.f32.mrf.mxu0
        %v940 = vadd.f32 %v416, %v939
        %941 = vmatmul.bf16.gmra.mxu0 %v559
        %v942 = vpop.f32.mrf.mxu0
        %v943 = vadd.f32 %v416, %v942
        %v944 = vpop.f32.mrf.mxu0
        %v945 = vadd.f32 %v416, %v944
        %946 = vmatmul.bf16.gmra.mxu0 %v562
        %v947 = vpop.f32.mrf.mxu0
        %v948 = vadd.f32 %v416, %v947
        %v949 = vpop.f32.mrf.mxu0
        %v950 = vadd.f32 %v416, %v949
        %951 = vmatmul.bf16.gmra.mxu0 %v565
        %v952 = vpop.f32.mrf.mxu0
        %v953 = vadd.f32 %v416, %v952
        %v954 = vpop.f32.mrf.mxu0
        %v955 = vadd.f32 %v416, %v954
        %956 = vmatmul.bf16.gmra.mxu0 %v568
        %v957 = vpop.f32.mrf.mxu0
        %v958 = vadd.f32 %v416, %v957
        %v959 = vpop.f32.mrf.mxu0
        %v960 = vadd.f32 %v416, %v959
        %961 = vdwg.mxu0
        %v962 = vmax.f32 %v580, 0.0
        %v963 = vmax.f32 %v629, 0.0
        %v964 = vmax.f32 %v678, 0.0
        %v965 = vmax.f32 %v727, 0.0
        %v966 = vmax.f32 %v776, 0.0
        %v967 = vmax.f32 %v825, 0.0
        %v968 = vmax.f32 %v874, 0.0
        %v969 = vmax.f32 %v923, 0.0
        %v970 = vmax.f32 %v582, 0.0
        %v971 = vmax.f32 %v631, 0.0
        %v972 = vmax.f32 %v680, 0.0
        %v973 = vmax.f32 %v729, 0.0
        %v974 = vmax.f32 %v778, 0.0
        %v975 = vmax.f32 %v827, 0.0
        %v976 = vmax.f32 %v876, 0.0
        %v977 = vmax.f32 %v925, 0.0
        %v978 = vmax.f32 %v585, 0.0
        %v979 = vmax.f32 %v634, 0.0
        %v980 = vmax.f32 %v683, 0.0
        %v981 = vmax.f32 %v732, 0.0
        %v982 = vmax.f32 %v781, 0.0
        %v983 = vmax.f32 %v830, 0.0
        %v984 = vmax.f32 %v879, 0.0
        %v985 = vmax.f32 %v928, 0.0
        %v986 = vmax.f32 %v587, 0.0
        %v987 = vmax.f32 %v636, 0.0
        %v988 = vmax.f32 %v685, 0.0
        %v989 = vmax.f32 %v734, 0.0
        %v990 = vmax.f32 %v783, 0.0
        %v991 = vmax.f32 %v832, 0.0
        %v992 = vmax.f32 %v881, 0.0
        %v993 = vmax.f32 %v930, 0.0
        %v994 = vmax.f32 %v590, 0.0
        %v995 = vmax.f32 %v639, 0.0
        %v996 = vmax.f32 %v688, 0.0
        %v997 = vmax.f32 %v737, 0.0
        %v998 = vmax.f32 %v786, 0.0
        %v999 = vmax.f32 %v835, 0.0
        %v1000 = vmax.f32 %v884, 0.0
        %v1001 = vmax.f32 %v933, 0.0
        %v1002 = vmax.f32 %v592, 0.0
        %v1003 = vmax.f32 %v641, 0.0
        %v1004 = vmax.f32 %v690, 0.0
        %v1005 = vmax.f32 %v739, 0.0
        %v1006 = vmax.f32 %v788, 0.0
        %v1007 = vmax.f32 %v837, 0.0
        %v1008 = vmax.f32 %v886, 0.0
        %v1009 = vmax.f32 %v935, 0.0
        %v1010 = vmax.f32 %v595, 0.0
        %v1011 = vmax.f32 %v644, 0.0
        %v1012 = vmax.f32 %v693, 0.0
        %v1013 = vmax.f32 %v742, 0.0
        %v1014 = vmax.f32 %v791, 0.0
        %v1015 = vmax.f32 %v840, 0.0
        %v1016 = vmax.f32 %v889, 0.0
        %v1017 = vmax.f32 %v938, 0.0
        %v1018 = vmax.f32 %v597, 0.0
        %v1019 = vmax.f32 %v646, 0.0
        %v1020 = vmax.f32 %v695, 0.0
        %v1021 = vmax.f32 %v744, 0.0
        %v1022 = vmax.f32 %v793, 0.0
        %v1023 = vmax.f32 %v842, 0.0
        %v1024 = vmax.f32 %v891, 0.0
        %v1025 = vmax.f32 %v940, 0.0
        %v1026 = vmax.f32 %v600, 0.0
        %v1027 = vmax.f32 %v649, 0.0
        %v1028 = vmax.f32 %v698, 0.0
        %v1029 = vmax.f32 %v747, 0.0
        %v1030 = vmax.f32 %v796, 0.0
        %v1031 = vmax.f32 %v845, 0.0
        %v1032 = vmax.f32 %v894, 0.0
        %v1033 = vmax.f32 %v943, 0.0
        %v1034 = vmax.f32 %v602, 0.0
        %v1035 = vmax.f32 %v651, 0.0
        %v1036 = vmax.f32 %v700, 0.0
        %v1037 = vmax.f32 %v749, 0.0
        %v1038 = vmax.f32 %v798, 0.0
        %v1039 = vmax.f32 %v847, 0.0
        %v1040 = vmax.f32 %v896, 0.0
        %v1041 = vmax.f32 %v945, 0.0
        %v1042 = vmax.f32 %v605, 0.0
        %v1043 = vmax.f32 %v654, 0.0
        %v1044 = vmax.f32 %v703, 0.0
        %v1045 = vmax.f32 %v752, 0.0
        %v1046 = vmax.f32 %v801, 0.0
        %v1047 = vmax.f32 %v850, 0.0
        %v1048 = vmax.f32 %v899, 0.0
        %v1049 = vmax.f32 %v948, 0.0
        %v1050 = vmax.f32 %v607, 0.0
        %v1051 = vmax.f32 %v656, 0.0
        %v1052 = vmax.f32 %v705, 0.0
        %v1053 = vmax.f32 %v754, 0.0
        %v1054 = vmax.f32 %v803, 0.0
        %v1055 = vmax.f32 %v852, 0.0
        %v1056 = vmax.f32 %v901, 0.0
        %v1057 = vmax.f32 %v950, 0.0
        %v1058 = vmax.f32 %v610, 0.0
        %v1059 = vmax.f32 %v659, 0.0
        %v1060 = vmax.f32 %v708, 0.0
        %v1061 = vmax.f32 %v757, 0.0
        %v1062 = vmax.f32 %v806, 0.0
        %v1063 = vmax.f32 %v855, 0.0
        %v1064 = vmax.f32 %v904, 0.0
        %v1065 = vmax.f32 %v953, 0.0
        %v1066 = vmax.f32 %v612, 0.0
        %v1067 = vmax.f32 %v661, 0.0
        %v1068 = vmax.f32 %v710, 0.0
        %v1069 = vmax.f32 %v759, 0.0
        %v1070 = vmax.f32 %v808, 0.0
        %v1071 = vmax.f32 %v857, 0.0
        %v1072 = vmax.f32 %v906, 0.0
        %v1073 = vmax.f32 %v955, 0.0
        %v1074 = vmax.f32 %v615, 0.0
        %v1075 = vmax.f32 %v664, 0.0
        %v1076 = vmax.f32 %v713, 0.0
        %v1077 = vmax.f32 %v762, 0.0
        %v1078 = vmax.f32 %v811, 0.0
        %v1079 = vmax.f32 %v860, 0.0
        %v1080 = vmax.f32 %v909, 0.0
        %v1081 = vmax.f32 %v958, 0.0
        %v1082 = vmax.f32 %v617, 0.0
        %v1083 = vmax.f32 %v666, 0.0
        %v1084 = vmax.f32 %v715, 0.0
        %v1085 = vmax.f32 %v764, 0.0
        %v1086 = vmax.f32 %v813, 0.0
        %v1087 = vmax.f32 %v862, 0.0
        %v1088 = vmax.f32 %v911, 0.0
        %v1089 = vmax.f32 %v960, 0.0
        %v1090 = vpack.c.bf16 %v970, %v962
        %v1091 = vpack.c.bf16 %v971, %v963
        %v1092 = vpack.c.bf16 %v972, %v964
        %v1093 = vpack.c.bf16 %v973, %v965
        %v1094 = vpack.c.bf16 %v974, %v966
        %v1095 = vpack.c.bf16 %v975, %v967
        %v1096 = vpack.c.bf16 %v976, %v968
        %v1097 = vpack.c.bf16 %v977, %v969
        %v1098 = vpack.c.bf16 %v986, %v978
        %v1099 = vpack.c.bf16 %v987, %v979
        %v1100 = vpack.c.bf16 %v988, %v980
        %v1101 = vpack.c.bf16 %v989, %v981
        %v1102 = vpack.c.bf16 %v990, %v982
        %v1103 = vpack.c.bf16 %v991, %v983
        %v1104 = vpack.c.bf16 %v992, %v984
        %v1105 = vpack.c.bf16 %v993, %v985
        %v1106 = vpack.c.bf16 %v1002, %v994
        %v1107 = vpack.c.bf16 %v1003, %v995
        %v1108 = vpack.c.bf16 %v1004, %v996
        %v1109 = vpack.c.bf16 %v1005, %v997
        %v1110 = vpack.c.bf16 %v1006, %v998
        %v1111 = vpack.c.bf16 %v1007, %v999
        %v1112 = vpack.c.bf16 %v1008, %v1000
        %v1113 = vpack.c.bf16 %v1009, %v1001
        %v1114 = vpack.c.bf16 %v1018, %v1010
        %v1115 = vpack.c.bf16 %v1019, %v1011
        %v1116 = vpack.c.bf16 %v1020, %v1012
        %v1117 = vpack.c.bf16 %v1021, %v1013
        %v1118 = vpack.c.bf16 %v1022, %v1014
        %v1119 = vpack.c.bf16 %v1023, %v1015
        %v1120 = vpack.c.bf16 %v1024, %v1016
        %v1121 = vpack.c.bf16 %v1025, %v1017
        %v1122 = vpack.c.bf16 %v1034, %v1026
        %v1123 = vpack.c.bf16 %v1035, %v1027
        %v1124 = vpack.c.bf16 %v1036, %v1028
        %v1125 = vpack.c.bf16 %v1037, %v1029
        %v1126 = vpack.c.bf16 %v1038, %v1030
        %v1127 = vpack.c.bf16 %v1039, %v1031
        %v1128 = vpack.c.bf16 %v1040, %v1032
        %v1129 = vpack.c.bf16 %v1041, %v1033
        %v1130 = vpack.c.bf16 %v1050, %v1042
        %v1131 = vpack.c.bf16 %v1051, %v1043
        %v1132 = vpack.c.bf16 %v1052, %v1044
        %v1133 = vpack.c.bf16 %v1053, %v1045
        %v1134 = vpack.c.bf16 %v1054, %v1046
        %v1135 = vpack.c.bf16 %v1055, %v1047
        %v1136 = vpack.c.bf16 %v1056, %v1048
        %v1137 = vpack.c.bf16 %v1057, %v1049
        %v1138 = vpack.c.bf16 %v1066, %v1058
        %v1139 = vpack.c.bf16 %v1067, %v1059
        %v1140 = vpack.c.bf16 %v1068, %v1060
        %v1141 = vpack.c.bf16 %v1069, %v1061
        %v1142 = vpack.c.bf16 %v1070, %v1062
        %v1143 = vpack.c.bf16 %v1071, %v1063
        %v1144 = vpack.c.bf16 %v1072, %v1064
        %v1145 = vpack.c.bf16 %v1073, %v1065
        %v1146 = vpack.c.bf16 %v1082, %v1074
        %v1147 = vpack.c.bf16 %v1083, %v1075
        %v1148 = vpack.c.bf16 %v1084, %v1076
        %v1149 = vpack.c.bf16 %v1085, %v1077
        %v1150 = vpack.c.bf16 %v1086, %v1078
        %v1151 = vpack.c.bf16 %v1087, %v1079
        %v1152 = vpack.c.bf16 %v1088, %v1080
        %v1153 = vpack.c.bf16 %v1089, %v1081
        %v1154 = vld [vmem:[#allocation7] sm:$0xff]
        %v1155 = vld [vmem:[#allocation7 + $0x8] sm:$0xff]
        %v1156 = vld [vmem:[#allocation7 + $0x10] sm:$0xff]
        %v1157 = vld [vmem:[#allocation7 + $0x18] sm:$0xff]
        %v1158 = vld [vmem:[#allocation7 + $0x20] sm:$0xff]
        %v1159 = vld [vmem:[#allocation7 + $0x28] sm:$0xff]
        %v1160 = vld [vmem:[#allocation7 + $0x30] sm:$0xff]
        %v1161 = vld [vmem:[#allocation7 + $0x38] sm:$0xff]
        %v1162 = vld [vmem:[#allocation7 + $0x40] sm:$0xff]
        %v1163 = vld [vmem:[#allocation7 + $0x48] sm:$0xff]
        %v1164 = vld [vmem:[#allocation7 + $0x50] sm:$0xff]
        %v1165 = vld [vmem:[#allocation7 + $0x58] sm:$0xff]
        %v1166 = vld [vmem:[#allocation7 + $0x60] sm:$0xff]
        %v1167 = vld [vmem:[#allocation7 + $0x68] sm:$0xff]
        %v1168 = vld [vmem:[#allocation7 + $0x70] sm:$0xff]
        %v1169 = vld [vmem:[#allocation7 + $0x78] sm:$0xff]
        %v1170 = vld [vmem:[#allocation7 + $0x80] sm:$0xff]
        %v1171 = vld [vmem:[#allocation7 + $0x88] sm:$0xff]
        %v1172 = vld [vmem:[#allocation7 + $0x90] sm:$0xff]
        %v1173 = vld [vmem:[#allocation7 + $0x98] sm:$0xff]
        %v1174 = vld [vmem:[#allocation7 + $0xa0] sm:$0xff]
        %v1175 = vld [vmem:[#allocation7 + $0xa8] sm:$0xff]
        %v1176 = vld [vmem:[#allocation7 + $0xb0] sm:$0xff]
        %v1177 = vld [vmem:[#allocation7 + $0xb8] sm:$0xff]
        %v1178 = vld [vmem:[#allocation7 + $0xc0] sm:$0xff]
        %v1179 = vld [vmem:[#allocation7 + $0xc8] sm:$0xff]
        %v1180 = vld [vmem:[#allocation7 + $0xd0] sm:$0xff]
        %v1181 = vld [vmem:[#allocation7 + $0xd8] sm:$0xff]
        %v1182 = vld [vmem:[#allocation7 + $0xe0] sm:$0xff]
        %v1183 = vld [vmem:[#allocation7 + $0xe8] sm:$0xff]
        %v1184 = vld [vmem:[#allocation7 + $0xf0] sm:$0xff]
        %v1185 = vld [vmem:[#allocation7 + $0xf8] sm:$0xff]
        %v1186 = vld [vmem:[#allocation7 + $0x100] sm:$0xff]
        %v1187 = vld [vmem:[#allocation7 + $0x108] sm:$0xff]
        %v1188 = vld [vmem:[#allocation7 + $0x110] sm:$0xff]
        %v1189 = vld [vmem:[#allocation7 + $0x118] sm:$0xff]
        %v1190 = vld [vmem:[#allocation7 + $0x120] sm:$0xff]
        %v1191 = vld [vmem:[#allocation7 + $0x128] sm:$0xff]
        %v1192 = vld [vmem:[#allocation7 + $0x130] sm:$0xff]
        %v1193 = vld [vmem:[#allocation7 + $0x138] sm:$0xff]
        %v1194 = vld [vmem:[#allocation7 + $0x140] sm:$0xff]
        %v1195 = vld [vmem:[#allocation7 + $0x148] sm:$0xff]
        %v1196 = vld [vmem:[#allocation7 + $0x150] sm:$0xff]
        %v1197 = vld [vmem:[#allocation7 + $0x158] sm:$0xff]
        %v1198 = vld [vmem:[#allocation7 + $0x160] sm:$0xff]
        %v1199 = vld [vmem:[#allocation7 + $0x168] sm:$0xff]
        %v1200 = vld [vmem:[#allocation7 + $0x170] sm:$0xff]
        %v1201 = vld [vmem:[#allocation7 + $0x178] sm:$0xff]
        %v1202 = vld [vmem:[#allocation7 + $0x180] sm:$0xff]
        %v1203 = vld [vmem:[#allocation7 + $0x188] sm:$0xff]
        %v1204 = vld [vmem:[#allocation7 + $0x190] sm:$0xff]
        %v1205 = vld [vmem:[#allocation7 + $0x198] sm:$0xff]
        %v1206 = vld [vmem:[#allocation7 + $0x1a0] sm:$0xff]
        %v1207 = vld [vmem:[#allocation7 + $0x1a8] sm:$0xff]
        %v1208 = vld [vmem:[#allocation7 + $0x1b0] sm:$0xff]
        %v1209 = vld [vmem:[#allocation7 + $0x1b8] sm:$0xff]
        %v1210 = vld [vmem:[#allocation7 + $0x1c0] sm:$0xff]
        %v1211 = vld [vmem:[#allocation7 + $0x1c8] sm:$0xff]
        %v1212 = vld [vmem:[#allocation7 + $0x1d0] sm:$0xff]
        %v1213 = vld [vmem:[#allocation7 + $0x1d8] sm:$0xff]
        %v1214 = vld [vmem:[#allocation7 + $0x1e0] sm:$0xff]
        %v1215 = vld [vmem:[#allocation7 + $0x1e8] sm:$0xff]
        %v1216 = vld [vmem:[#allocation7 + $0x1f0] sm:$0xff]
        %v1217 = vld [vmem:[#allocation7 + $0x1f8] sm:$0xff]
        %v1218 = vld [vmem:[#allocation7 + $0x200] sm:$0xff]
        %v1219 = vld [vmem:[#allocation7 + $0x208] sm:$0xff]
        %v1220 = vld [vmem:[#allocation7 + $0x210] sm:$0xff]
        %v1221 = vld [vmem:[#allocation7 + $0x218] sm:$0xff]
        %v1222 = vld [vmem:[#allocation7 + $0x220] sm:$0xff]
        %v1223 = vld [vmem:[#allocation7 + $0x228] sm:$0xff]
        %v1224 = vld [vmem:[#allocation7 + $0x230] sm:$0xff]
        %v1225 = vld [vmem:[#allocation7 + $0x238] sm:$0xff]
        %v1226 = vld [vmem:[#allocation7 + $0x240] sm:$0xff]
        %v1227 = vld [vmem:[#allocation7 + $0x248] sm:$0xff]
        %v1228 = vld [vmem:[#allocation7 + $0x250] sm:$0xff]
        %v1229 = vld [vmem:[#allocation7 + $0x258] sm:$0xff]
        %v1230 = vld [vmem:[#allocation7 + $0x260] sm:$0xff]
        %v1231 = vld [vmem:[#allocation7 + $0x268] sm:$0xff]
        %v1232 = vld [vmem:[#allocation7 + $0x270] sm:$0xff]
        %v1233 = vld [vmem:[#allocation7 + $0x278] sm:$0xff]
        %v1234 = vld [vmem:[#allocation7 + $0x280] sm:$0xff]
        %v1235 = vld [vmem:[#allocation7 + $0x288] sm:$0xff]
        %v1236 = vld [vmem:[#allocation7 + $0x290] sm:$0xff]
        %v1237 = vld [vmem:[#allocation7 + $0x298] sm:$0xff]
        %v1238 = vld [vmem:[#allocation7 + $0x2a0] sm:$0xff]
        %v1239 = vld [vmem:[#allocation7 + $0x2a8] sm:$0xff]
        %v1240 = vld [vmem:[#allocation7 + $0x2b0] sm:$0xff]
        %v1241 = vld [vmem:[#allocation7 + $0x2b8] sm:$0xff]
        %v1242 = vld [vmem:[#allocation7 + $0x2c0] sm:$0xff]
        %v1243 = vld [vmem:[#allocation7 + $0x2c8] sm:$0xff]
        %v1244 = vld [vmem:[#allocation7 + $0x2d0] sm:$0xff]
        %v1245 = vld [vmem:[#allocation7 + $0x2d8] sm:$0xff]
        %v1246 = vld [vmem:[#allocation7 + $0x2e0] sm:$0xff]
        %v1247 = vld [vmem:[#allocation7 + $0x2e8] sm:$0xff]
        %v1248 = vld [vmem:[#allocation7 + $0x2f0] sm:$0xff]
        %v1249 = vld [vmem:[#allocation7 + $0x2f8] sm:$0xff]
        %v1250 = vld [vmem:[#allocation7 + $0x300] sm:$0xff]
        %v1251 = vld [vmem:[#allocation7 + $0x308] sm:$0xff]
        %v1252 = vld [vmem:[#allocation7 + $0x310] sm:$0xff]
        %v1253 = vld [vmem:[#allocation7 + $0x318] sm:$0xff]
        %v1254 = vld [vmem:[#allocation7 + $0x320] sm:$0xff]
        %v1255 = vld [vmem:[#allocation7 + $0x328] sm:$0xff]
        %v1256 = vld [vmem:[#allocation7 + $0x330] sm:$0xff]
        %v1257 = vld [vmem:[#allocation7 + $0x338] sm:$0xff]
        %v1258 = vld [vmem:[#allocation7 + $0x340] sm:$0xff]
        %v1259 = vld [vmem:[#allocation7 + $0x348] sm:$0xff]
        %v1260 = vld [vmem:[#allocation7 + $0x350] sm:$0xff]
        %v1261 = vld [vmem:[#allocation7 + $0x358] sm:$0xff]
        %v1262 = vld [vmem:[#allocation7 + $0x360] sm:$0xff]
        %v1263 = vld [vmem:[#allocation7 + $0x368] sm:$0xff]
        %v1264 = vld [vmem:[#allocation7 + $0x370] sm:$0xff]
        %v1265 = vld [vmem:[#allocation7 + $0x378] sm:$0xff]
        %v1266 = vld [vmem:[#allocation7 + $0x380] sm:$0xff]
        %v1267 = vld [vmem:[#allocation7 + $0x388] sm:$0xff]
        %v1268 = vld [vmem:[#allocation7 + $0x390] sm:$0xff]
        %v1269 = vld [vmem:[#allocation7 + $0x398] sm:$0xff]
        %v1270 = vld [vmem:[#allocation7 + $0x3a0] sm:$0xff]
        %v1271 = vld [vmem:[#allocation7 + $0x3a8] sm:$0xff]
        %v1272 = vld [vmem:[#allocation7 + $0x3b0] sm:$0xff]
        %v1273 = vld [vmem:[#allocation7 + $0x3b8] sm:$0xff]
        %v1274 = vld [vmem:[#allocation7 + $0x3c0] sm:$0xff]
        %v1275 = vld [vmem:[#allocation7 + $0x3c8] sm:$0xff]
        %v1276 = vld [vmem:[#allocation7 + $0x3d0] sm:$0xff]
        %v1277 = vld [vmem:[#allocation7 + $0x3d8] sm:$0xff]
        %v1278 = vld [vmem:[#allocation7 + $0x3e0] sm:$0xff]
        %v1279 = vld [vmem:[#allocation7 + $0x3e8] sm:$0xff]
        %v1280 = vld [vmem:[#allocation7 + $0x3f0] sm:$0xff]
        %v1281 = vld [vmem:[#allocation7 + $0x3f8] sm:$0xff]
        %v1282 = vld [vmem:[#allocation7 + $0x400] sm:$0xff]
        %v1283 = vld [vmem:[#allocation7 + $0x408] sm:$0xff]
        %v1284 = vld [vmem:[#allocation7 + $0x410] sm:$0xff]
        %v1285 = vld [vmem:[#allocation7 + $0x418] sm:$0xff]
        %v1286 = vld [vmem:[#allocation7 + $0x420] sm:$0xff]
        %v1287 = vld [vmem:[#allocation7 + $0x428] sm:$0xff]
        %v1288 = vld [vmem:[#allocation7 + $0x430] sm:$0xff]
        %v1289 = vld [vmem:[#allocation7 + $0x438] sm:$0xff]
        %v1290 = vld [vmem:[#allocation7 + $0x440] sm:$0xff]
        %v1291 = vld [vmem:[#allocation7 + $0x448] sm:$0xff]
        %v1292 = vld [vmem:[#allocation7 + $0x450] sm:$0xff]
        %v1293 = vld [vmem:[#allocation7 + $0x458] sm:$0xff]
        %v1294 = vld [vmem:[#allocation7 + $0x460] sm:$0xff]
        %v1295 = vld [vmem:[#allocation7 + $0x468] sm:$0xff]
        %v1296 = vld [vmem:[#allocation7 + $0x470] sm:$0xff]
        %v1297 = vld [vmem:[#allocation7 + $0x478] sm:$0xff]
        %v1298 = vld [vmem:[#allocation7 + $0x480] sm:$0xff]
        %v1299 = vld [vmem:[#allocation7 + $0x488] sm:$0xff]
        %v1300 = vld [vmem:[#allocation7 + $0x490] sm:$0xff]
        %v1301 = vld [vmem:[#allocation7 + $0x498] sm:$0xff]
        %v1302 = vld [vmem:[#allocation7 + $0x4a0] sm:$0xff]
        %v1303 = vld [vmem:[#allocation7 + $0x4a8] sm:$0xff]
        %v1304 = vld [vmem:[#allocation7 + $0x4b0] sm:$0xff]
        %v1305 = vld [vmem:[#allocation7 + $0x4b8] sm:$0xff]
        %v1306 = vld [vmem:[#allocation7 + $0x4c0] sm:$0xff]
        %v1307 = vld [vmem:[#allocation7 + $0x4c8] sm:$0xff]
        %v1308 = vld [vmem:[#allocation7 + $0x4d0] sm:$0xff]
        %v1309 = vld [vmem:[#allocation7 + $0x4d8] sm:$0xff]
        %v1310 = vld [vmem:[#allocation7 + $0x4e0] sm:$0xff]
        %v1311 = vld [vmem:[#allocation7 + $0x4e8] sm:$0xff]
        %v1312 = vld [vmem:[#allocation7 + $0x4f0] sm:$0xff]
        %v1313 = vld [vmem:[#allocation7 + $0x4f8] sm:$0xff]
        %v1314 = vld [vmem:[#allocation7 + $0x500] sm:$0xff]
        %v1315 = vld [vmem:[#allocation7 + $0x508] sm:$0xff]
        %v1316 = vld [vmem:[#allocation7 + $0x510] sm:$0xff]
        %v1317 = vld [vmem:[#allocation7 + $0x518] sm:$0xff]
        %v1318 = vld [vmem:[#allocation7 + $0x520] sm:$0xff]
        %v1319 = vld [vmem:[#allocation7 + $0x528] sm:$0xff]
        %v1320 = vld [vmem:[#allocation7 + $0x530] sm:$0xff]
        %v1321 = vld [vmem:[#allocation7 + $0x538] sm:$0xff]
        %v1322 = vld [vmem:[#allocation7 + $0x540] sm:$0xff]
        %v1323 = vld [vmem:[#allocation7 + $0x548] sm:$0xff]
        %v1324 = vld [vmem:[#allocation7 + $0x550] sm:$0xff]
        %v1325 = vld [vmem:[#allocation7 + $0x558] sm:$0xff]
        %v1326 = vld [vmem:[#allocation7 + $0x560] sm:$0xff]
        %v1327 = vld [vmem:[#allocation7 + $0x568] sm:$0xff]
        %v1328 = vld [vmem:[#allocation7 + $0x570] sm:$0xff]
        %v1329 = vld [vmem:[#allocation7 + $0x578] sm:$0xff]
        %v1330 = vld [vmem:[#allocation7 + $0x580] sm:$0xff]
        %v1331 = vld [vmem:[#allocation7 + $0x588] sm:$0xff]
        %v1332 = vld [vmem:[#allocation7 + $0x590] sm:$0xff]
        %v1333 = vld [vmem:[#allocation7 + $0x598] sm:$0xff]
        %v1334 = vld [vmem:[#allocation7 + $0x5a0] sm:$0xff]
        %v1335 = vld [vmem:[#allocation7 + $0x5a8] sm:$0xff]
        %v1336 = vld [vmem:[#allocation7 + $0x5b0] sm:$0xff]
        %v1337 = vld [vmem:[#allocation7 + $0x5b8] sm:$0xff]
        %v1338 = vld [vmem:[#allocation7 + $0x5c0] sm:$0xff]
        %v1339 = vld [vmem:[#allocation7 + $0x5c8] sm:$0xff]
        %v1340 = vld [vmem:[#allocation7 + $0x5d0] sm:$0xff]
        %v1341 = vld [vmem:[#allocation7 + $0x5d8] sm:$0xff]
        %v1342 = vld [vmem:[#allocation7 + $0x5e0] sm:$0xff]
        %v1343 = vld [vmem:[#allocation7 + $0x5e8] sm:$0xff]
        %v1344 = vld [vmem:[#allocation7 + $0x5f0] sm:$0xff]
        %v1345 = vld [vmem:[#allocation7 + $0x5f8] sm:$0xff]
        %v1346 = vld [vmem:[#allocation7 + $0x600] sm:$0xff]
        %v1347 = vld [vmem:[#allocation7 + $0x608] sm:$0xff]
        %v1348 = vld [vmem:[#allocation7 + $0x610] sm:$0xff]
        %v1349 = vld [vmem:[#allocation7 + $0x618] sm:$0xff]
        %v1350 = vld [vmem:[#allocation7 + $0x620] sm:$0xff]
        %v1351 = vld [vmem:[#allocation7 + $0x628] sm:$0xff]
        %v1352 = vld [vmem:[#allocation7 + $0x630] sm:$0xff]
        %v1353 = vld [vmem:[#allocation7 + $0x638] sm:$0xff]
        %v1354 = vld [vmem:[#allocation7 + $0x640] sm:$0xff]
        %v1355 = vld [vmem:[#allocation7 + $0x648] sm:$0xff]
        %v1356 = vld [vmem:[#allocation7 + $0x650] sm:$0xff]
        %v1357 = vld [vmem:[#allocation7 + $0x658] sm:$0xff]
        %v1358 = vld [vmem:[#allocation7 + $0x660] sm:$0xff]
        %v1359 = vld [vmem:[#allocation7 + $0x668] sm:$0xff]
        %v1360 = vld [vmem:[#allocation7 + $0x670] sm:$0xff]
        %v1361 = vld [vmem:[#allocation7 + $0x678] sm:$0xff]
        %v1362 = vld [vmem:[#allocation7 + $0x680] sm:$0xff]
        %v1363 = vld [vmem:[#allocation7 + $0x688] sm:$0xff]
        %v1364 = vld [vmem:[#allocation7 + $0x690] sm:$0xff]
        %v1365 = vld [vmem:[#allocation7 + $0x698] sm:$0xff]
        %v1366 = vld [vmem:[#allocation7 + $0x6a0] sm:$0xff]
        %v1367 = vld [vmem:[#allocation7 + $0x6a8] sm:$0xff]
        %v1368 = vld [vmem:[#allocation7 + $0x6b0] sm:$0xff]
        %v1369 = vld [vmem:[#allocation7 + $0x6b8] sm:$0xff]
        %v1370 = vld [vmem:[#allocation7 + $0x6c0] sm:$0xff]
        %v1371 = vld [vmem:[#allocation7 + $0x6c8] sm:$0xff]
        %v1372 = vld [vmem:[#allocation7 + $0x6d0] sm:$0xff]
        %v1373 = vld [vmem:[#allocation7 + $0x6d8] sm:$0xff]
        %v1374 = vld [vmem:[#allocation7 + $0x6e0] sm:$0xff]
        %v1375 = vld [vmem:[#allocation7 + $0x6e8] sm:$0xff]
        %v1376 = vld [vmem:[#allocation7 + $0x6f0] sm:$0xff]
        %v1377 = vld [vmem:[#allocation7 + $0x6f8] sm:$0xff]
        %v1378 = vld [vmem:[#allocation7 + $0x700] sm:$0xff]
        %v1379 = vld [vmem:[#allocation7 + $0x708] sm:$0xff]
        %v1380 = vld [vmem:[#allocation7 + $0x710] sm:$0xff]
        %v1381 = vld [vmem:[#allocation7 + $0x718] sm:$0xff]
        %v1382 = vld [vmem:[#allocation7 + $0x720] sm:$0xff]
        %v1383 = vld [vmem:[#allocation7 + $0x728] sm:$0xff]
        %v1384 = vld [vmem:[#allocation7 + $0x730] sm:$0xff]
        %v1385 = vld [vmem:[#allocation7 + $0x738] sm:$0xff]
        %v1386 = vld [vmem:[#allocation7 + $0x740] sm:$0xff]
        %v1387 = vld [vmem:[#allocation7 + $0x748] sm:$0xff]
        %v1388 = vld [vmem:[#allocation7 + $0x750] sm:$0xff]
        %v1389 = vld [vmem:[#allocation7 + $0x758] sm:$0xff]
        %v1390 = vld [vmem:[#allocation7 + $0x760] sm:$0xff]
        %v1391 = vld [vmem:[#allocation7 + $0x768] sm:$0xff]
        %v1392 = vld [vmem:[#allocation7 + $0x770] sm:$0xff]
        %v1393 = vld [vmem:[#allocation7 + $0x778] sm:$0xff]
        %v1394 = vld [vmem:[#allocation7 + $0x780] sm:$0xff]
        %v1395 = vld [vmem:[#allocation7 + $0x788] sm:$0xff]
        %v1396 = vld [vmem:[#allocation7 + $0x790] sm:$0xff]
        %v1397 = vld [vmem:[#allocation7 + $0x798] sm:$0xff]
        %v1398 = vld [vmem:[#allocation7 + $0x7a0] sm:$0xff]
        %v1399 = vld [vmem:[#allocation7 + $0x7a8] sm:$0xff]
        %v1400 = vld [vmem:[#allocation7 + $0x7b0] sm:$0xff]
        %v1401 = vld [vmem:[#allocation7 + $0x7b8] sm:$0xff]
        %v1402 = vld [vmem:[#allocation7 + $0x7c0] sm:$0xff]
        %v1403 = vld [vmem:[#allocation7 + $0x7c8] sm:$0xff]
        %v1404 = vld [vmem:[#allocation7 + $0x7d0] sm:$0xff]
        %v1405 = vld [vmem:[#allocation7 + $0x7d8] sm:$0xff]
        %v1406 = vld [vmem:[#allocation7 + $0x7e0] sm:$0xff]
        %v1407 = vld [vmem:[#allocation7 + $0x7e8] sm:$0xff]
        %v1408 = vld [vmem:[#allocation7 + $0x7f0] sm:$0xff]
        %v1409 = vld [vmem:[#allocation7 + $0x7f8] sm:$0xff]
        %v1410 = vld [vmem:[#allocation7 + $0x800] sm:$0xff]
        %v1411 = vld [vmem:[#allocation7 + $0x808] sm:$0xff]
        %v1412 = vld [vmem:[#allocation7 + $0x810] sm:$0xff]
        %v1413 = vld [vmem:[#allocation7 + $0x818] sm:$0xff]
        %v1414 = vld [vmem:[#allocation7 + $0x820] sm:$0xff]
        %v1415 = vld [vmem:[#allocation7 + $0x828] sm:$0xff]
        %v1416 = vld [vmem:[#allocation7 + $0x830] sm:$0xff]
        %v1417 = vld [vmem:[#allocation7 + $0x838] sm:$0xff]
        %v1418 = vld [vmem:[#allocation7 + $0x840] sm:$0xff]
        %v1419 = vld [vmem:[#allocation7 + $0x848] sm:$0xff]
        %v1420 = vld [vmem:[#allocation7 + $0x850] sm:$0xff]
        %v1421 = vld [vmem:[#allocation7 + $0x858] sm:$0xff]
        %v1422 = vld [vmem:[#allocation7 + $0x860] sm:$0xff]
        %v1423 = vld [vmem:[#allocation7 + $0x868] sm:$0xff]
        %v1424 = vld [vmem:[#allocation7 + $0x870] sm:$0xff]
        %v1425 = vld [vmem:[#allocation7 + $0x878] sm:$0xff]
        %v1426 = vld [vmem:[#allocation7 + $0x880] sm:$0xff]
        %v1427 = vld [vmem:[#allocation7 + $0x888] sm:$0xff]
        %v1428 = vld [vmem:[#allocation7 + $0x890] sm:$0xff]
        %v1429 = vld [vmem:[#allocation7 + $0x898] sm:$0xff]
        %v1430 = vld [vmem:[#allocation7 + $0x8a0] sm:$0xff]
        %v1431 = vld [vmem:[#allocation7 + $0x8a8] sm:$0xff]
        %v1432 = vld [vmem:[#allocation7 + $0x8b0] sm:$0xff]
        %v1433 = vld [vmem:[#allocation7 + $0x8b8] sm:$0xff]
        %v1434 = vld [vmem:[#allocation7 + $0x8c0] sm:$0xff]
        %v1435 = vld [vmem:[#allocation7 + $0x8c8] sm:$0xff]
        %v1436 = vld [vmem:[#allocation7 + $0x8d0] sm:$0xff]
        %v1437 = vld [vmem:[#allocation7 + $0x8d8] sm:$0xff]
        %v1438 = vld [vmem:[#allocation7 + $0x8e0] sm:$0xff]
        %v1439 = vld [vmem:[#allocation7 + $0x8e8] sm:$0xff]
        %v1440 = vld [vmem:[#allocation7 + $0x8f0] sm:$0xff]
        %v1441 = vld [vmem:[#allocation7 + $0x8f8] sm:$0xff]
        %v1442 = vld [vmem:[#allocation7 + $0x900] sm:$0xff]
        %v1443 = vld [vmem:[#allocation7 + $0x908] sm:$0xff]
        %v1444 = vld [vmem:[#allocation7 + $0x910] sm:$0xff]
        %v1445 = vld [vmem:[#allocation7 + $0x918] sm:$0xff]
        %v1446 = vld [vmem:[#allocation7 + $0x920] sm:$0xff]
        %v1447 = vld [vmem:[#allocation7 + $0x928] sm:$0xff]
        %v1448 = vld [vmem:[#allocation7 + $0x930] sm:$0xff]
        %v1449 = vld [vmem:[#allocation7 + $0x938] sm:$0xff]
        %v1450 = vld [vmem:[#allocation7 + $0x940] sm:$0xff]
        %v1451 = vld [vmem:[#allocation7 + $0x948] sm:$0xff]
        %v1452 = vld [vmem:[#allocation7 + $0x950] sm:$0xff]
        %v1453 = vld [vmem:[#allocation7 + $0x958] sm:$0xff]
        %v1454 = vld [vmem:[#allocation7 + $0x960] sm:$0xff]
        %v1455 = vld [vmem:[#allocation7 + $0x968] sm:$0xff]
        %v1456 = vld [vmem:[#allocation7 + $0x970] sm:$0xff]
        %v1457 = vld [vmem:[#allocation7 + $0x978] sm:$0xff]
        %v1458 = vld [vmem:[#allocation7 + $0x980] sm:$0xff]
        %v1459 = vld [vmem:[#allocation7 + $0x988] sm:$0xff]
        %v1460 = vld [vmem:[#allocation7 + $0x990] sm:$0xff]
        %v1461 = vld [vmem:[#allocation7 + $0x998] sm:$0xff]
        %v1462 = vld [vmem:[#allocation7 + $0x9a0] sm:$0xff]
        %v1463 = vld [vmem:[#allocation7 + $0x9a8] sm:$0xff]
        %v1464 = vld [vmem:[#allocation7 + $0x9b0] sm:$0xff]
        %v1465 = vld [vmem:[#allocation7 + $0x9b8] sm:$0xff]
        %v1466 = vld [vmem:[#allocation7 + $0x9c0] sm:$0xff]
        %v1467 = vld [vmem:[#allocation7 + $0x9c8] sm:$0xff]
        %v1468 = vld [vmem:[#allocation7 + $0x9d0] sm:$0xff]
        %v1469 = vld [vmem:[#allocation7 + $0x9d8] sm:$0xff]
        %v1470 = vld [vmem:[#allocation7 + $0x9e0] sm:$0xff]
        %v1471 = vld [vmem:[#allocation7 + $0x9e8] sm:$0xff]
        %v1472 = vld [vmem:[#allocation7 + $0x9f0] sm:$0xff]
        %v1473 = vld [vmem:[#allocation7 + $0x9f8] sm:$0xff]
        %v1474 = vld [vmem:[#allocation7 + $0xa00] sm:$0xff]
        %v1475 = vld [vmem:[#allocation7 + $0xa08] sm:$0xff]
        %v1476 = vld [vmem:[#allocation7 + $0xa10] sm:$0xff]
        %v1477 = vld [vmem:[#allocation7 + $0xa18] sm:$0xff]
        %v1478 = vld [vmem:[#allocation7 + $0xa20] sm:$0xff]
        %v1479 = vld [vmem:[#allocation7 + $0xa28] sm:$0xff]
        %v1480 = vld [vmem:[#allocation7 + $0xa30] sm:$0xff]
        %v1481 = vld [vmem:[#allocation7 + $0xa38] sm:$0xff]
        %v1482 = vld [vmem:[#allocation7 + $0xa40] sm:$0xff]
        %v1483 = vld [vmem:[#allocation7 + $0xa48] sm:$0xff]
        %v1484 = vld [vmem:[#allocation7 + $0xa50] sm:$0xff]
        %v1485 = vld [vmem:[#allocation7 + $0xa58] sm:$0xff]
        %v1486 = vld [vmem:[#allocation7 + $0xa60] sm:$0xff]
        %v1487 = vld [vmem:[#allocation7 + $0xa68] sm:$0xff]
        %v1488 = vld [vmem:[#allocation7 + $0xa70] sm:$0xff]
        %v1489 = vld [vmem:[#allocation7 + $0xa78] sm:$0xff]
        %v1490 = vld [vmem:[#allocation7 + $0xa80] sm:$0xff]
        %v1491 = vld [vmem:[#allocation7 + $0xa88] sm:$0xff]
        %v1492 = vld [vmem:[#allocation7 + $0xa90] sm:$0xff]
        %v1493 = vld [vmem:[#allocation7 + $0xa98] sm:$0xff]
        %v1494 = vld [vmem:[#allocation7 + $0xaa0] sm:$0xff]
        %v1495 = vld [vmem:[#allocation7 + $0xaa8] sm:$0xff]
        %v1496 = vld [vmem:[#allocation7 + $0xab0] sm:$0xff]
        %v1497 = vld [vmem:[#allocation7 + $0xab8] sm:$0xff]
        %v1498 = vld [vmem:[#allocation7 + $0xac0] sm:$0xff]
        %v1499 = vld [vmem:[#allocation7 + $0xac8] sm:$0xff]
        %v1500 = vld [vmem:[#allocation7 + $0xad0] sm:$0xff]
        %v1501 = vld [vmem:[#allocation7 + $0xad8] sm:$0xff]
        %v1502 = vld [vmem:[#allocation7 + $0xae0] sm:$0xff]
        %v1503 = vld [vmem:[#allocation7 + $0xae8] sm:$0xff]
        %v1504 = vld [vmem:[#allocation7 + $0xaf0] sm:$0xff]
        %v1505 = vld [vmem:[#allocation7 + $0xaf8] sm:$0xff]
        %v1506 = vld [vmem:[#allocation7 + $0xb00] sm:$0xff]
        %v1507 = vld [vmem:[#allocation7 + $0xb08] sm:$0xff]
        %v1508 = vld [vmem:[#allocation7 + $0xb10] sm:$0xff]
        %v1509 = vld [vmem:[#allocation7 + $0xb18] sm:$0xff]
        %v1510 = vld [vmem:[#allocation7 + $0xb20] sm:$0xff]
        %v1511 = vld [vmem:[#allocation7 + $0xb28] sm:$0xff]
        %v1512 = vld [vmem:[#allocation7 + $0xb30] sm:$0xff]
        %v1513 = vld [vmem:[#allocation7 + $0xb38] sm:$0xff]
        %v1514 = vld [vmem:[#allocation7 + $0xb40] sm:$0xff]
        %v1515 = vld [vmem:[#allocation7 + $0xb48] sm:$0xff]
        %v1516 = vld [vmem:[#allocation7 + $0xb50] sm:$0xff]
        %v1517 = vld [vmem:[#allocation7 + $0xb58] sm:$0xff]
        %v1518 = vld [vmem:[#allocation7 + $0xb60] sm:$0xff]
        %v1519 = vld [vmem:[#allocation7 + $0xb68] sm:$0xff]
        %v1520 = vld [vmem:[#allocation7 + $0xb70] sm:$0xff]
        %v1521 = vld [vmem:[#allocation7 + $0xb78] sm:$0xff]
        %v1522 = vld [vmem:[#allocation7 + $0xb80] sm:$0xff]
        %v1523 = vld [vmem:[#allocation7 + $0xb88] sm:$0xff]
        %v1524 = vld [vmem:[#allocation7 + $0xb90] sm:$0xff]
        %v1525 = vld [vmem:[#allocation7 + $0xb98] sm:$0xff]
        %v1526 = vld [vmem:[#allocation7 + $0xba0] sm:$0xff]
        %v1527 = vld [vmem:[#allocation7 + $0xba8] sm:$0xff]
        %v1528 = vld [vmem:[#allocation7 + $0xbb0] sm:$0xff]
        %v1529 = vld [vmem:[#allocation7 + $0xbb8] sm:$0xff]
        %v1530 = vld [vmem:[#allocation7 + $0xbc0] sm:$0xff]
        %v1531 = vld [vmem:[#allocation7 + $0xbc8] sm:$0xff]
        %v1532 = vld [vmem:[#allocation7 + $0xbd0] sm:$0xff]
        %v1533 = vld [vmem:[#allocation7 + $0xbd8] sm:$0xff]
        %v1534 = vld [vmem:[#allocation7 + $0xbe0] sm:$0xff]
        %v1535 = vld [vmem:[#allocation7 + $0xbe8] sm:$0xff]
        %v1536 = vld [vmem:[#allocation7 + $0xbf0] sm:$0xff]
        %v1537 = vld [vmem:[#allocation7 + $0xbf8] sm:$0xff]
        %v1538 = vld [vmem:[#allocation7 + $0xc00] sm:$0xff]
        %v1539 = vld [vmem:[#allocation7 + $0xc08] sm:$0xff]
        %v1540 = vld [vmem:[#allocation7 + $0xc10] sm:$0xff]
        %v1541 = vld [vmem:[#allocation7 + $0xc18] sm:$0xff]
        %v1542 = vld [vmem:[#allocation7 + $0xc20] sm:$0xff]
        %v1543 = vld [vmem:[#allocation7 + $0xc28] sm:$0xff]
        %v1544 = vld [vmem:[#allocation7 + $0xc30] sm:$0xff]
        %v1545 = vld [vmem:[#allocation7 + $0xc38] sm:$0xff]
        %v1546 = vld [vmem:[#allocation7 + $0xc40] sm:$0xff]
        %v1547 = vld [vmem:[#allocation7 + $0xc48] sm:$0xff]
        %v1548 = vld [vmem:[#allocation7 + $0xc50] sm:$0xff]
        %v1549 = vld [vmem:[#allocation7 + $0xc58] sm:$0xff]
        %v1550 = vld [vmem:[#allocation7 + $0xc60] sm:$0xff]
        %v1551 = vld [vmem:[#allocation7 + $0xc68] sm:$0xff]
        %v1552 = vld [vmem:[#allocation7 + $0xc70] sm:$0xff]
        %v1553 = vld [vmem:[#allocation7 + $0xc78] sm:$0xff]
        %v1554 = vld [vmem:[#allocation7 + $0xc80] sm:$0xff]
        %v1555 = vld [vmem:[#allocation7 + $0xc88] sm:$0xff]
        %v1556 = vld [vmem:[#allocation7 + $0xc90] sm:$0xff]
        %v1557 = vld [vmem:[#allocation7 + $0xc98] sm:$0xff]
        %v1558 = vld [vmem:[#allocation7 + $0xca0] sm:$0xff]
        %v1559 = vld [vmem:[#allocation7 + $0xca8] sm:$0xff]
        %v1560 = vld [vmem:[#allocation7 + $0xcb0] sm:$0xff]
        %v1561 = vld [vmem:[#allocation7 + $0xcb8] sm:$0xff]
        %v1562 = vld [vmem:[#allocation7 + $0xcc0] sm:$0xff]
        %v1563 = vld [vmem:[#allocation7 + $0xcc8] sm:$0xff]
        %v1564 = vld [vmem:[#allocation7 + $0xcd0] sm:$0xff]
        %v1565 = vld [vmem:[#allocation7 + $0xcd8] sm:$0xff]
        %v1566 = vld [vmem:[#allocation7 + $0xce0] sm:$0xff]
        %v1567 = vld [vmem:[#allocation7 + $0xce8] sm:$0xff]
        %v1568 = vld [vmem:[#allocation7 + $0xcf0] sm:$0xff]
        %v1569 = vld [vmem:[#allocation7 + $0xcf8] sm:$0xff]
        %v1570 = vld [vmem:[#allocation7 + $0xd00] sm:$0xff]
        %v1571 = vld [vmem:[#allocation7 + $0xd08] sm:$0xff]
        %v1572 = vld [vmem:[#allocation7 + $0xd10] sm:$0xff]
        %v1573 = vld [vmem:[#allocation7 + $0xd18] sm:$0xff]
        %v1574 = vld [vmem:[#allocation7 + $0xd20] sm:$0xff]
        %v1575 = vld [vmem:[#allocation7 + $0xd28] sm:$0xff]
        %v1576 = vld [vmem:[#allocation7 + $0xd30] sm:$0xff]
        %v1577 = vld [vmem:[#allocation7 + $0xd38] sm:$0xff]
        %v1578 = vld [vmem:[#allocation7 + $0xd40] sm:$0xff]
        %v1579 = vld [vmem:[#allocation7 + $0xd48] sm:$0xff]
        %v1580 = vld [vmem:[#allocation7 + $0xd50] sm:$0xff]
        %v1581 = vld [vmem:[#allocation7 + $0xd58] sm:$0xff]
        %v1582 = vld [vmem:[#allocation7 + $0xd60] sm:$0xff]
        %v1583 = vld [vmem:[#allocation7 + $0xd68] sm:$0xff]
        %v1584 = vld [vmem:[#allocation7 + $0xd70] sm:$0xff]
        %v1585 = vld [vmem:[#allocation7 + $0xd78] sm:$0xff]
        %v1586 = vld [vmem:[#allocation7 + $0xd80] sm:$0xff]
        %v1587 = vld [vmem:[#allocation7 + $0xd88] sm:$0xff]
        %v1588 = vld [vmem:[#allocation7 + $0xd90] sm:$0xff]
        %v1589 = vld [vmem:[#allocation7 + $0xd98] sm:$0xff]
        %v1590 = vld [vmem:[#allocation7 + $0xda0] sm:$0xff]
        %v1591 = vld [vmem:[#allocation7 + $0xda8] sm:$0xff]
        %v1592 = vld [vmem:[#allocation7 + $0xdb0] sm:$0xff]
        %v1593 = vld [vmem:[#allocation7 + $0xdb8] sm:$0xff]
        %v1594 = vld [vmem:[#allocation7 + $0xdc0] sm:$0xff]
        %v1595 = vld [vmem:[#allocation7 + $0xdc8] sm:$0xff]
        %v1596 = vld [vmem:[#allocation7 + $0xdd0] sm:$0xff]
        %v1597 = vld [vmem:[#allocation7 + $0xdd8] sm:$0xff]
        %v1598 = vld [vmem:[#allocation7 + $0xde0] sm:$0xff]
        %v1599 = vld [vmem:[#allocation7 + $0xde8] sm:$0xff]
        %v1600 = vld [vmem:[#allocation7 + $0xdf0] sm:$0xff]
        %v1601 = vld [vmem:[#allocation7 + $0xdf8] sm:$0xff]
        %v1602 = vld [vmem:[#allocation7 + $0xe00] sm:$0xff]
        %v1603 = vld [vmem:[#allocation7 + $0xe08] sm:$0xff]
        %v1604 = vld [vmem:[#allocation7 + $0xe10] sm:$0xff]
        %v1605 = vld [vmem:[#allocation7 + $0xe18] sm:$0xff]
        %v1606 = vld [vmem:[#allocation7 + $0xe20] sm:$0xff]
        %v1607 = vld [vmem:[#allocation7 + $0xe28] sm:$0xff]
        %v1608 = vld [vmem:[#allocation7 + $0xe30] sm:$0xff]
        %v1609 = vld [vmem:[#allocation7 + $0xe38] sm:$0xff]
        %v1610 = vld [vmem:[#allocation7 + $0xe40] sm:$0xff]
        %v1611 = vld [vmem:[#allocation7 + $0xe48] sm:$0xff]
        %v1612 = vld [vmem:[#allocation7 + $0xe50] sm:$0xff]
        %v1613 = vld [vmem:[#allocation7 + $0xe58] sm:$0xff]
        %v1614 = vld [vmem:[#allocation7 + $0xe60] sm:$0xff]
        %v1615 = vld [vmem:[#allocation7 + $0xe68] sm:$0xff]
        %v1616 = vld [vmem:[#allocation7 + $0xe70] sm:$0xff]
        %v1617 = vld [vmem:[#allocation7 + $0xe78] sm:$0xff]
        %v1618 = vld [vmem:[#allocation7 + $0xe80] sm:$0xff]
        %v1619 = vld [vmem:[#allocation7 + $0xe88] sm:$0xff]
        %v1620 = vld [vmem:[#allocation7 + $0xe90] sm:$0xff]
        %v1621 = vld [vmem:[#allocation7 + $0xe98] sm:$0xff]
        %v1622 = vld [vmem:[#allocation7 + $0xea0] sm:$0xff]
        %v1623 = vld [vmem:[#allocation7 + $0xea8] sm:$0xff]
        %v1624 = vld [vmem:[#allocation7 + $0xeb0] sm:$0xff]
        %v1625 = vld [vmem:[#allocation7 + $0xeb8] sm:$0xff]
        %v1626 = vld [vmem:[#allocation7 + $0xec0] sm:$0xff]
        %v1627 = vld [vmem:[#allocation7 + $0xec8] sm:$0xff]
        %v1628 = vld [vmem:[#allocation7 + $0xed0] sm:$0xff]
        %v1629 = vld [vmem:[#allocation7 + $0xed8] sm:$0xff]
        %v1630 = vld [vmem:[#allocation7 + $0xee0] sm:$0xff]
        %v1631 = vld [vmem:[#allocation7 + $0xee8] sm:$0xff]
        %v1632 = vld [vmem:[#allocation7 + $0xef0] sm:$0xff]
        %v1633 = vld [vmem:[#allocation7 + $0xef8] sm:$0xff]
        %v1634 = vld [vmem:[#allocation7 + $0xf00] sm:$0xff]
        %v1635 = vld [vmem:[#allocation7 + $0xf08] sm:$0xff]
        %v1636 = vld [vmem:[#allocation7 + $0xf10] sm:$0xff]
        %v1637 = vld [vmem:[#allocation7 + $0xf18] sm:$0xff]
        %v1638 = vld [vmem:[#allocation7 + $0xf20] sm:$0xff]
        %v1639 = vld [vmem:[#allocation7 + $0xf28] sm:$0xff]
        %v1640 = vld [vmem:[#allocation7 + $0xf30] sm:$0xff]
        %v1641 = vld [vmem:[#allocation7 + $0xf38] sm:$0xff]
        %v1642 = vld [vmem:[#allocation7 + $0xf40] sm:$0xff]
        %v1643 = vld [vmem:[#allocation7 + $0xf48] sm:$0xff]
        %v1644 = vld [vmem:[#allocation7 + $0xf50] sm:$0xff]
        %v1645 = vld [vmem:[#allocation7 + $0xf58] sm:$0xff]
        %v1646 = vld [vmem:[#allocation7 + $0xf60] sm:$0xff]
        %v1647 = vld [vmem:[#allocation7 + $0xf68] sm:$0xff]
        %v1648 = vld [vmem:[#allocation7 + $0xf70] sm:$0xff]
        %v1649 = vld [vmem:[#allocation7 + $0xf78] sm:$0xff]
        %v1650 = vld [vmem:[#allocation7 + $0xf80] sm:$0xff]
        %v1651 = vld [vmem:[#allocation7 + $0xf88] sm:$0xff]
        %v1652 = vld [vmem:[#allocation7 + $0xf90] sm:$0xff]
        %v1653 = vld [vmem:[#allocation7 + $0xf98] sm:$0xff]
        %v1654 = vld [vmem:[#allocation7 + $0xfa0] sm:$0xff]
        %v1655 = vld [vmem:[#allocation7 + $0xfa8] sm:$0xff]
        %v1656 = vld [vmem:[#allocation7 + $0xfb0] sm:$0xff]
        %v1657 = vld [vmem:[#allocation7 + $0xfb8] sm:$0xff]
        %v1658 = vld [vmem:[#allocation7 + $0xfc0] sm:$0xff]
        %v1659 = vld [vmem:[#allocation7 + $0xfc8] sm:$0xff]
        %v1660 = vld [vmem:[#allocation7 + $0xfd0] sm:$0xff]
        %v1661 = vld [vmem:[#allocation7 + $0xfd8] sm:$0xff]
        %v1662 = vld [vmem:[#allocation7 + $0xfe0] sm:$0xff]
        %v1663 = vld [vmem:[#allocation7 + $0xfe8] sm:$0xff]
        %v1664 = vld [vmem:[#allocation7 + $0xff0] sm:$0xff]
        %v1665 = vld [vmem:[#allocation7 + $0xff8] sm:$0xff]
        %v1666 = vld [vmem:[#allocation8] sm:$0xff]
        %v1668 = vperm.slane %v1666, 0
        %v1669 = vperm.slane %v1666, 1
        %v1670 = vperm.slane %v1666, 2
        %v1671 = vperm.slane %v1666, 3
        %v1672 = vperm.slane %v1666, 4
        %v1673 = vperm.slane %v1666, 5
        %v1674 = vperm.slane %v1666, 6
        %v1675 = vperm.slane %v1666, 7
        %v2196 = vunpack.c.l.b16 %v1154
        %v2197 = vunpack.c.h.b16 %v1154
        %v2198 = vunpack.c.l.b16 %v1155
        %v2199 = vunpack.c.h.b16 %v1155
        %v2200 = vunpack.c.l.b16 %v1156
        %v2201 = vunpack.c.h.b16 %v1156
        %v2202 = vunpack.c.l.b16 %v1157
        %v2203 = vunpack.c.h.b16 %v1157
        %v2204 = vunpack.c.l.b16 %v1158
        %v2205 = vunpack.c.h.b16 %v1158
        %v2206 = vunpack.c.l.b16 %v1159
        %v2207 = vunpack.c.h.b16 %v1159
        %v2208 = vunpack.c.l.b16 %v1160
        %v2209 = vunpack.c.h.b16 %v1160
        %v2210 = vunpack.c.l.b16 %v1161
        %v2211 = vunpack.c.h.b16 %v1161
        %v2212 = vunpack.c.l.b16 %v1162
        %v2213 = vunpack.c.h.b16 %v1162
        %v2214 = vunpack.c.l.b16 %v1163
        %v2215 = vunpack.c.h.b16 %v1163
        %v2216 = vunpack.c.l.b16 %v1164
        %v2217 = vunpack.c.h.b16 %v1164
        %v2218 = vunpack.c.l.b16 %v1165
        %v2219 = vunpack.c.h.b16 %v1165
        %v2220 = vunpack.c.l.b16 %v1166
        %v2221 = vunpack.c.h.b16 %v1166
        %v2222 = vunpack.c.l.b16 %v1167
        %v2223 = vunpack.c.h.b16 %v1167
        %v2224 = vunpack.c.l.b16 %v1168
        %v2225 = vunpack.c.h.b16 %v1168
        %v2226 = vunpack.c.l.b16 %v1169
        %v2227 = vunpack.c.h.b16 %v1169
        %v2228 = vunpack.c.l.b16 %v1170
        %v2229 = vunpack.c.h.b16 %v1170
        %v2230 = vunpack.c.l.b16 %v1171
        %v2231 = vunpack.c.h.b16 %v1171
        %v2232 = vunpack.c.l.b16 %v1172
        %v2233 = vunpack.c.h.b16 %v1172
        %v2234 = vunpack.c.l.b16 %v1173
        %v2235 = vunpack.c.h.b16 %v1173
        %v2236 = vunpack.c.l.b16 %v1174
        %v2237 = vunpack.c.h.b16 %v1174
        %v2238 = vunpack.c.l.b16 %v1175
        %v2239 = vunpack.c.h.b16 %v1175
        %v2240 = vunpack.c.l.b16 %v1176
        %v2241 = vunpack.c.h.b16 %v1176
        %v2242 = vunpack.c.l.b16 %v1177
        %v2243 = vunpack.c.h.b16 %v1177
        %v2244 = vunpack.c.l.b16 %v1178
        %v2245 = vunpack.c.h.b16 %v1178
        %v2246 = vunpack.c.l.b16 %v1179
        %v2247 = vunpack.c.h.b16 %v1179
        %v2248 = vunpack.c.l.b16 %v1180
        %v2249 = vunpack.c.h.b16 %v1180
        %v2250 = vunpack.c.l.b16 %v1181
        %v2251 = vunpack.c.h.b16 %v1181
        %v2252 = vunpack.c.l.b16 %v1182
        %v2253 = vunpack.c.h.b16 %v1182
        %v2254 = vunpack.c.l.b16 %v1183
        %v2255 = vunpack.c.h.b16 %v1183
        %v2256 = vunpack.c.l.b16 %v1184
        %v2257 = vunpack.c.h.b16 %v1184
        %v2258 = vunpack.c.l.b16 %v1185
        %v2259 = vunpack.c.h.b16 %v1185
        %v2260 = vunpack.c.l.b16 %v1186
        %v2261 = vunpack.c.h.b16 %v1186
        %v2262 = vunpack.c.l.b16 %v1187
        %v2263 = vunpack.c.h.b16 %v1187
        %v2264 = vunpack.c.l.b16 %v1188
        %v2265 = vunpack.c.h.b16 %v1188
        %v2266 = vunpack.c.l.b16 %v1189
        %v2267 = vunpack.c.h.b16 %v1189
        %v2268 = vunpack.c.l.b16 %v1190
        %v2269 = vunpack.c.h.b16 %v1190
        %v2270 = vunpack.c.l.b16 %v1191
        %v2271 = vunpack.c.h.b16 %v1191
        %v2272 = vunpack.c.l.b16 %v1192
        %v2273 = vunpack.c.h.b16 %v1192
        %v2274 = vunpack.c.l.b16 %v1193
        %v2275 = vunpack.c.h.b16 %v1193
        %v2276 = vunpack.c.l.b16 %v1194
        %v2277 = vunpack.c.h.b16 %v1194
        %v2278 = vunpack.c.l.b16 %v1195
        %v2279 = vunpack.c.h.b16 %v1195
        %v2280 = vunpack.c.l.b16 %v1196
        %v2281 = vunpack.c.h.b16 %v1196
        %v2282 = vunpack.c.l.b16 %v1197
        %v2283 = vunpack.c.h.b16 %v1197
        %v2284 = vunpack.c.l.b16 %v1198
        %v2285 = vunpack.c.h.b16 %v1198
        %v2286 = vunpack.c.l.b16 %v1199
        %v2287 = vunpack.c.h.b16 %v1199
        %v2288 = vunpack.c.l.b16 %v1200
        %v2289 = vunpack.c.h.b16 %v1200
        %v2290 = vunpack.c.l.b16 %v1201
        %v2291 = vunpack.c.h.b16 %v1201
        %v2292 = vunpack.c.l.b16 %v1202
        %v2293 = vunpack.c.h.b16 %v1202
        %v2294 = vunpack.c.l.b16 %v1203
        %v2295 = vunpack.c.h.b16 %v1203
        %v2296 = vunpack.c.l.b16 %v1204
        %v2297 = vunpack.c.h.b16 %v1204
        %v2298 = vunpack.c.l.b16 %v1205
        %v2299 = vunpack.c.h.b16 %v1205
        %v2300 = vunpack.c.l.b16 %v1206
        %v2301 = vunpack.c.h.b16 %v1206
        %v2302 = vunpack.c.l.b16 %v1207
        %v2303 = vunpack.c.h.b16 %v1207
        %v2304 = vunpack.c.l.b16 %v1208
        %v2305 = vunpack.c.h.b16 %v1208
        %v2306 = vunpack.c.l.b16 %v1209
        %v2307 = vunpack.c.h.b16 %v1209
        %v2308 = vunpack.c.l.b16 %v1210
        %v2309 = vunpack.c.h.b16 %v1210
        %v2310 = vunpack.c.l.b16 %v1211
        %v2311 = vunpack.c.h.b16 %v1211
        %v2312 = vunpack.c.l.b16 %v1212
        %v2313 = vunpack.c.h.b16 %v1212
        %v2314 = vunpack.c.l.b16 %v1213
        %v2315 = vunpack.c.h.b16 %v1213
        %v2316 = vunpack.c.l.b16 %v1214
        %v2317 = vunpack.c.h.b16 %v1214
        %v2318 = vunpack.c.l.b16 %v1215
        %v2319 = vunpack.c.h.b16 %v1215
        %v2320 = vunpack.c.l.b16 %v1216
        %v2321 = vunpack.c.h.b16 %v1216
        %v2322 = vunpack.c.l.b16 %v1217
        %v2323 = vunpack.c.h.b16 %v1217
        %v2324 = vunpack.c.l.b16 %v1218
        %v2325 = vunpack.c.h.b16 %v1218
        %v2326 = vunpack.c.l.b16 %v1219
        %v2327 = vunpack.c.h.b16 %v1219
        %v2328 = vunpack.c.l.b16 %v1220
        %v2329 = vunpack.c.h.b16 %v1220
        %v2330 = vunpack.c.l.b16 %v1221
        %v2331 = vunpack.c.h.b16 %v1221
        %v2332 = vunpack.c.l.b16 %v1222
        %v2333 = vunpack.c.h.b16 %v1222
        %v2334 = vunpack.c.l.b16 %v1223
        %v2335 = vunpack.c.h.b16 %v1223
        %v2336 = vunpack.c.l.b16 %v1224
        %v2337 = vunpack.c.h.b16 %v1224
        %v2338 = vunpack.c.l.b16 %v1225
        %v2339 = vunpack.c.h.b16 %v1225
        %v2340 = vunpack.c.l.b16 %v1226
        %v2341 = vunpack.c.h.b16 %v1226
        %v2342 = vunpack.c.l.b16 %v1227
        %v2343 = vunpack.c.h.b16 %v1227
        %v2344 = vunpack.c.l.b16 %v1228
        %v2345 = vunpack.c.h.b16 %v1228
        %v2346 = vunpack.c.l.b16 %v1229
        %v2347 = vunpack.c.h.b16 %v1229
        %v2348 = vunpack.c.l.b16 %v1230
        %v2349 = vunpack.c.h.b16 %v1230
        %v2350 = vunpack.c.l.b16 %v1231
        %v2351 = vunpack.c.h.b16 %v1231
        %v2352 = vunpack.c.l.b16 %v1232
        %v2353 = vunpack.c.h.b16 %v1232
        %v2354 = vunpack.c.l.b16 %v1233
        %v2355 = vunpack.c.h.b16 %v1233
        %v2356 = vunpack.c.l.b16 %v1234
        %v2357 = vunpack.c.h.b16 %v1234
        %v2358 = vunpack.c.l.b16 %v1235
        %v2359 = vunpack.c.h.b16 %v1235
        %v2360 = vunpack.c.l.b16 %v1236
        %v2361 = vunpack.c.h.b16 %v1236
        %v2362 = vunpack.c.l.b16 %v1237
        %v2363 = vunpack.c.h.b16 %v1237
        %v2364 = vunpack.c.l.b16 %v1238
        %v2365 = vunpack.c.h.b16 %v1238
        %v2366 = vunpack.c.l.b16 %v1239
        %v2367 = vunpack.c.h.b16 %v1239
        %v2368 = vunpack.c.l.b16 %v1240
        %v2369 = vunpack.c.h.b16 %v1240
        %v2370 = vunpack.c.l.b16 %v1241
        %v2371 = vunpack.c.h.b16 %v1241
        %v2372 = vunpack.c.l.b16 %v1242
        %v2373 = vunpack.c.h.b16 %v1242
        %v2374 = vunpack.c.l.b16 %v1243
        %v2375 = vunpack.c.h.b16 %v1243
        %v2376 = vunpack.c.l.b16 %v1244
        %v2377 = vunpack.c.h.b16 %v1244
        %v2378 = vunpack.c.l.b16 %v1245
        %v2379 = vunpack.c.h.b16 %v1245
        %v2380 = vunpack.c.l.b16 %v1246
        %v2381 = vunpack.c.h.b16 %v1246
        %v2382 = vunpack.c.l.b16 %v1247
        %v2383 = vunpack.c.h.b16 %v1247
        %v2384 = vunpack.c.l.b16 %v1248
        %v2385 = vunpack.c.h.b16 %v1248
        %v2386 = vunpack.c.l.b16 %v1249
        %v2387 = vunpack.c.h.b16 %v1249
        %v2388 = vunpack.c.l.b16 %v1250
        %v2389 = vunpack.c.h.b16 %v1250
        %v2390 = vunpack.c.l.b16 %v1251
        %v2391 = vunpack.c.h.b16 %v1251
        %v2392 = vunpack.c.l.b16 %v1252
        %v2393 = vunpack.c.h.b16 %v1252
        %v2394 = vunpack.c.l.b16 %v1253
        %v2395 = vunpack.c.h.b16 %v1253
        %v2396 = vunpack.c.l.b16 %v1254
        %v2397 = vunpack.c.h.b16 %v1254
        %v2398 = vunpack.c.l.b16 %v1255
        %v2399 = vunpack.c.h.b16 %v1255
        %v2400 = vunpack.c.l.b16 %v1256
        %v2401 = vunpack.c.h.b16 %v1256
        %v2402 = vunpack.c.l.b16 %v1257
        %v2403 = vunpack.c.h.b16 %v1257
        %v2404 = vunpack.c.l.b16 %v1258
        %v2405 = vunpack.c.h.b16 %v1258
        %v2406 = vunpack.c.l.b16 %v1259
        %v2407 = vunpack.c.h.b16 %v1259
        %v2408 = vunpack.c.l.b16 %v1260
        %v2409 = vunpack.c.h.b16 %v1260
        %v2410 = vunpack.c.l.b16 %v1261
        %v2411 = vunpack.c.h.b16 %v1261
        %v2412 = vunpack.c.l.b16 %v1262
        %v2413 = vunpack.c.h.b16 %v1262
        %v2414 = vunpack.c.l.b16 %v1263
        %v2415 = vunpack.c.h.b16 %v1263
        %v2416 = vunpack.c.l.b16 %v1264
        %v2417 = vunpack.c.h.b16 %v1264
        %v2418 = vunpack.c.l.b16 %v1265
        %v2419 = vunpack.c.h.b16 %v1265
        %v2420 = vunpack.c.l.b16 %v1266
        %v2421 = vunpack.c.h.b16 %v1266
        %v2422 = vunpack.c.l.b16 %v1267
        %v2423 = vunpack.c.h.b16 %v1267
        %v2424 = vunpack.c.l.b16 %v1268
        %v2425 = vunpack.c.h.b16 %v1268
        %v2426 = vunpack.c.l.b16 %v1269
        %v2427 = vunpack.c.h.b16 %v1269
        %v2428 = vunpack.c.l.b16 %v1270
        %v2429 = vunpack.c.h.b16 %v1270
        %v2430 = vunpack.c.l.b16 %v1271
        %v2431 = vunpack.c.h.b16 %v1271
        %v2432 = vunpack.c.l.b16 %v1272
        %v2433 = vunpack.c.h.b16 %v1272
        %v2434 = vunpack.c.l.b16 %v1273
        %v2435 = vunpack.c.h.b16 %v1273
        %v2436 = vunpack.c.l.b16 %v1274
        %v2437 = vunpack.c.h.b16 %v1274
        %v2438 = vunpack.c.l.b16 %v1275
        %v2439 = vunpack.c.h.b16 %v1275
        %v2440 = vunpack.c.l.b16 %v1276
        %v2441 = vunpack.c.h.b16 %v1276
        %v2442 = vunpack.c.l.b16 %v1277
        %v2443 = vunpack.c.h.b16 %v1277
        %v2444 = vunpack.c.l.b16 %v1278
        %v2445 = vunpack.c.h.b16 %v1278
        %v2446 = vunpack.c.l.b16 %v1279
        %v2447 = vunpack.c.h.b16 %v1279
        %v2448 = vunpack.c.l.b16 %v1280
        %v2449 = vunpack.c.h.b16 %v1280
        %v2450 = vunpack.c.l.b16 %v1281
        %v2451 = vunpack.c.h.b16 %v1281
        %v2452 = vunpack.c.l.b16 %v1282
        %v2453 = vunpack.c.h.b16 %v1282
        %v2454 = vunpack.c.l.b16 %v1283
        %v2455 = vunpack.c.h.b16 %v1283
        %v2456 = vunpack.c.l.b16 %v1284
        %v2457 = vunpack.c.h.b16 %v1284
        %v2458 = vunpack.c.l.b16 %v1285
        %v2459 = vunpack.c.h.b16 %v1285
        %v2460 = vunpack.c.l.b16 %v1286
        %v2461 = vunpack.c.h.b16 %v1286
        %v2462 = vunpack.c.l.b16 %v1287
        %v2463 = vunpack.c.h.b16 %v1287
        %v2464 = vunpack.c.l.b16 %v1288
        %v2465 = vunpack.c.h.b16 %v1288
        %v2466 = vunpack.c.l.b16 %v1289
        %v2467 = vunpack.c.h.b16 %v1289
        %v2468 = vunpack.c.l.b16 %v1290
        %v2469 = vunpack.c.h.b16 %v1290
        %v2470 = vunpack.c.l.b16 %v1291
        %v2471 = vunpack.c.h.b16 %v1291
        %v2472 = vunpack.c.l.b16 %v1292
        %v2473 = vunpack.c.h.b16 %v1292
        %v2474 = vunpack.c.l.b16 %v1293
        %v2475 = vunpack.c.h.b16 %v1293
        %v2476 = vunpack.c.l.b16 %v1294
        %v2477 = vunpack.c.h.b16 %v1294
        %v2478 = vunpack.c.l.b16 %v1295
        %v2479 = vunpack.c.h.b16 %v1295
        %v2480 = vunpack.c.l.b16 %v1296
        %v2481 = vunpack.c.h.b16 %v1296
        %v2482 = vunpack.c.l.b16 %v1297
        %v2483 = vunpack.c.h.b16 %v1297
        %v2484 = vunpack.c.l.b16 %v1298
        %v2485 = vunpack.c.h.b16 %v1298
        %v2486 = vunpack.c.l.b16 %v1299
        %v2487 = vunpack.c.h.b16 %v1299
        %v2488 = vunpack.c.l.b16 %v1300
        %v2489 = vunpack.c.h.b16 %v1300
        %v2490 = vunpack.c.l.b16 %v1301
        %v2491 = vunpack.c.h.b16 %v1301
        %v2492 = vunpack.c.l.b16 %v1302
        %v2493 = vunpack.c.h.b16 %v1302
        %v2494 = vunpack.c.l.b16 %v1303
        %v2495 = vunpack.c.h.b16 %v1303
        %v2496 = vunpack.c.l.b16 %v1304
        %v2497 = vunpack.c.h.b16 %v1304
        %v2498 = vunpack.c.l.b16 %v1305
        %v2499 = vunpack.c.h.b16 %v1305
        %v2500 = vunpack.c.l.b16 %v1306
        %v2501 = vunpack.c.h.b16 %v1306
        %v2502 = vunpack.c.l.b16 %v1307
        %v2503 = vunpack.c.h.b16 %v1307
        %v2504 = vunpack.c.l.b16 %v1308
        %v2505 = vunpack.c.h.b16 %v1308
        %v2506 = vunpack.c.l.b16 %v1309
        %v2507 = vunpack.c.h.b16 %v1309
        %v2508 = vunpack.c.l.b16 %v1310
        %v2509 = vunpack.c.h.b16 %v1310
        %v2510 = vunpack.c.l.b16 %v1311
        %v2511 = vunpack.c.h.b16 %v1311
        %v2512 = vunpack.c.l.b16 %v1312
        %v2513 = vunpack.c.h.b16 %v1312
        %v2514 = vunpack.c.l.b16 %v1313
        %v2515 = vunpack.c.h.b16 %v1313
        %v2516 = vunpack.c.l.b16 %v1314
        %v2517 = vunpack.c.h.b16 %v1314
        %v2518 = vunpack.c.l.b16 %v1315
        %v2519 = vunpack.c.h.b16 %v1315
        %v2520 = vunpack.c.l.b16 %v1316
        %v2521 = vunpack.c.h.b16 %v1316
        %v2522 = vunpack.c.l.b16 %v1317
        %v2523 = vunpack.c.h.b16 %v1317
        %v2524 = vunpack.c.l.b16 %v1318
        %v2525 = vunpack.c.h.b16 %v1318
        %v2526 = vunpack.c.l.b16 %v1319
        %v2527 = vunpack.c.h.b16 %v1319
        %v2528 = vunpack.c.l.b16 %v1320
        %v2529 = vunpack.c.h.b16 %v1320
        %v2530 = vunpack.c.l.b16 %v1321
        %v2531 = vunpack.c.h.b16 %v1321
        %v2532 = vunpack.c.l.b16 %v1322
        %v2533 = vunpack.c.h.b16 %v1322
        %v2534 = vunpack.c.l.b16 %v1323
        %v2535 = vunpack.c.h.b16 %v1323
        %v2536 = vunpack.c.l.b16 %v1324
        %v2537 = vunpack.c.h.b16 %v1324
        %v2538 = vunpack.c.l.b16 %v1325
        %v2539 = vunpack.c.h.b16 %v1325
        %v2540 = vunpack.c.l.b16 %v1326
        %v2541 = vunpack.c.h.b16 %v1326
        %v2542 = vunpack.c.l.b16 %v1327
        %v2543 = vunpack.c.h.b16 %v1327
        %v2544 = vunpack.c.l.b16 %v1328
        %v2545 = vunpack.c.h.b16 %v1328
        %v2546 = vunpack.c.l.b16 %v1329
        %v2547 = vunpack.c.h.b16 %v1329
        %v2548 = vunpack.c.l.b16 %v1330
        %v2549 = vunpack.c.h.b16 %v1330
        %v2550 = vunpack.c.l.b16 %v1331
        %v2551 = vunpack.c.h.b16 %v1331
        %v2552 = vunpack.c.l.b16 %v1332
        %v2553 = vunpack.c.h.b16 %v1332
        %v2554 = vunpack.c.l.b16 %v1333
        %v2555 = vunpack.c.h.b16 %v1333
        %v2556 = vunpack.c.l.b16 %v1334
        %v2557 = vunpack.c.h.b16 %v1334
        %v2558 = vunpack.c.l.b16 %v1335
        %v2559 = vunpack.c.h.b16 %v1335
        %v2560 = vunpack.c.l.b16 %v1336
        %v2561 = vunpack.c.h.b16 %v1336
        %v2562 = vunpack.c.l.b16 %v1337
        %v2563 = vunpack.c.h.b16 %v1337
        %v2564 = vunpack.c.l.b16 %v1338
        %v2565 = vunpack.c.h.b16 %v1338
        %v2566 = vunpack.c.l.b16 %v1339
        %v2567 = vunpack.c.h.b16 %v1339
        %v2568 = vunpack.c.l.b16 %v1340
        %v2569 = vunpack.c.h.b16 %v1340
        %v2570 = vunpack.c.l.b16 %v1341
        %v2571 = vunpack.c.h.b16 %v1341
        %v2572 = vunpack.c.l.b16 %v1342
        %v2573 = vunpack.c.h.b16 %v1342
        %v2574 = vunpack.c.l.b16 %v1343
        %v2575 = vunpack.c.h.b16 %v1343
        %v2576 = vunpack.c.l.b16 %v1344
        %v2577 = vunpack.c.h.b16 %v1344
        %v2578 = vunpack.c.l.b16 %v1345
        %v2579 = vunpack.c.h.b16 %v1345
        %v2580 = vunpack.c.l.b16 %v1346
        %v2581 = vunpack.c.h.b16 %v1346
        %v2582 = vunpack.c.l.b16 %v1347
        %v2583 = vunpack.c.h.b16 %v1347
        %v2584 = vunpack.c.l.b16 %v1348
        %v2585 = vunpack.c.h.b16 %v1348
        %v2586 = vunpack.c.l.b16 %v1349
        %v2587 = vunpack.c.h.b16 %v1349
        %v2588 = vunpack.c.l.b16 %v1350
        %v2589 = vunpack.c.h.b16 %v1350
        %v2590 = vunpack.c.l.b16 %v1351
        %v2591 = vunpack.c.h.b16 %v1351
        %v2592 = vunpack.c.l.b16 %v1352
        %v2593 = vunpack.c.h.b16 %v1352
        %v2594 = vunpack.c.l.b16 %v1353
        %v2595 = vunpack.c.h.b16 %v1353
        %v2596 = vunpack.c.l.b16 %v1354
        %v2597 = vunpack.c.h.b16 %v1354
        %v2598 = vunpack.c.l.b16 %v1355
        %v2599 = vunpack.c.h.b16 %v1355
        %v2600 = vunpack.c.l.b16 %v1356
        %v2601 = vunpack.c.h.b16 %v1356
        %v2602 = vunpack.c.l.b16 %v1357
        %v2603 = vunpack.c.h.b16 %v1357
        %v2604 = vunpack.c.l.b16 %v1358
        %v2605 = vunpack.c.h.b16 %v1358
        %v2606 = vunpack.c.l.b16 %v1359
        %v2607 = vunpack.c.h.b16 %v1359
        %v2608 = vunpack.c.l.b16 %v1360
        %v2609 = vunpack.c.h.b16 %v1360
        %v2610 = vunpack.c.l.b16 %v1361
        %v2611 = vunpack.c.h.b16 %v1361
        %v2612 = vunpack.c.l.b16 %v1362
        %v2613 = vunpack.c.h.b16 %v1362
        %v2614 = vunpack.c.l.b16 %v1363
        %v2615 = vunpack.c.h.b16 %v1363
        %v2616 = vunpack.c.l.b16 %v1364
        %v2617 = vunpack.c.h.b16 %v1364
        %v2618 = vunpack.c.l.b16 %v1365
        %v2619 = vunpack.c.h.b16 %v1365
        %v2620 = vunpack.c.l.b16 %v1366
        %v2621 = vunpack.c.h.b16 %v1366
        %v2622 = vunpack.c.l.b16 %v1367
        %v2623 = vunpack.c.h.b16 %v1367
        %v2624 = vunpack.c.l.b16 %v1368
        %v2625 = vunpack.c.h.b16 %v1368
        %v2626 = vunpack.c.l.b16 %v1369
        %v2627 = vunpack.c.h.b16 %v1369
        %v2628 = vunpack.c.l.b16 %v1370
        %v2629 = vunpack.c.h.b16 %v1370
        %v2630 = vunpack.c.l.b16 %v1371
        %v2631 = vunpack.c.h.b16 %v1371
        %v2632 = vunpack.c.l.b16 %v1372
        %v2633 = vunpack.c.h.b16 %v1372
        %v2634 = vunpack.c.l.b16 %v1373
        %v2635 = vunpack.c.h.b16 %v1373
        %v2636 = vunpack.c.l.b16 %v1374
        %v2637 = vunpack.c.h.b16 %v1374
        %v2638 = vunpack.c.l.b16 %v1375
        %v2639 = vunpack.c.h.b16 %v1375
        %v2640 = vunpack.c.l.b16 %v1376
        %v2641 = vunpack.c.h.b16 %v1376
        %v2642 = vunpack.c.l.b16 %v1377
        %v2643 = vunpack.c.h.b16 %v1377
        %v2644 = vunpack.c.l.b16 %v1378
        %v2645 = vunpack.c.h.b16 %v1378
        %v2646 = vunpack.c.l.b16 %v1379
        %v2647 = vunpack.c.h.b16 %v1379
        %v2648 = vunpack.c.l.b16 %v1380
        %v2649 = vunpack.c.h.b16 %v1380
        %v2650 = vunpack.c.l.b16 %v1381
        %v2651 = vunpack.c.h.b16 %v1381
        %v2652 = vunpack.c.l.b16 %v1382
        %v2653 = vunpack.c.h.b16 %v1382
        %v2654 = vunpack.c.l.b16 %v1383
        %v2655 = vunpack.c.h.b16 %v1383
        %v2656 = vunpack.c.l.b16 %v1384
        %v2657 = vunpack.c.h.b16 %v1384
        %v2658 = vunpack.c.l.b16 %v1385
        %v2659 = vunpack.c.h.b16 %v1385
        %v2660 = vunpack.c.l.b16 %v1386
        %v2661 = vunpack.c.h.b16 %v1386
        %v2662 = vunpack.c.l.b16 %v1387
        %v2663 = vunpack.c.h.b16 %v1387
        %v2664 = vunpack.c.l.b16 %v1388
        %v2665 = vunpack.c.h.b16 %v1388
        %v2666 = vunpack.c.l.b16 %v1389
        %v2667 = vunpack.c.h.b16 %v1389
        %v2668 = vunpack.c.l.b16 %v1390
        %v2669 = vunpack.c.h.b16 %v1390
        %v2670 = vunpack.c.l.b16 %v1391
        %v2671 = vunpack.c.h.b16 %v1391
        %v2672 = vunpack.c.l.b16 %v1392
        %v2673 = vunpack.c.h.b16 %v1392
        %v2674 = vunpack.c.l.b16 %v1393
        %v2675 = vunpack.c.h.b16 %v1393
        %v2676 = vunpack.c.l.b16 %v1394
        %v2677 = vunpack.c.h.b16 %v1394
        %v2678 = vunpack.c.l.b16 %v1395
        %v2679 = vunpack.c.h.b16 %v1395
        %v2680 = vunpack.c.l.b16 %v1396
        %v2681 = vunpack.c.h.b16 %v1396
        %v2682 = vunpack.c.l.b16 %v1397
        %v2683 = vunpack.c.h.b16 %v1397
        %v2684 = vunpack.c.l.b16 %v1398
        %v2685 = vunpack.c.h.b16 %v1398
        %v2686 = vunpack.c.l.b16 %v1399
        %v2687 = vunpack.c.h.b16 %v1399
        %v2688 = vunpack.c.l.b16 %v1400
        %v2689 = vunpack.c.h.b16 %v1400
        %v2690 = vunpack.c.l.b16 %v1401
        %v2691 = vunpack.c.h.b16 %v1401
        %v2692 = vunpack.c.l.b16 %v1402
        %v2693 = vunpack.c.h.b16 %v1402
        %v2694 = vunpack.c.l.b16 %v1403
        %v2695 = vunpack.c.h.b16 %v1403
        %v2696 = vunpack.c.l.b16 %v1404
        %v2697 = vunpack.c.h.b16 %v1404
        %v2698 = vunpack.c.l.b16 %v1405
        %v2699 = vunpack.c.h.b16 %v1405
        %v2700 = vunpack.c.l.b16 %v1406
        %v2701 = vunpack.c.h.b16 %v1406
        %v2702 = vunpack.c.l.b16 %v1407
        %v2703 = vunpack.c.h.b16 %v1407
        %v2704 = vunpack.c.l.b16 %v1408
        %v2705 = vunpack.c.h.b16 %v1408
        %v2706 = vunpack.c.l.b16 %v1409
        %v2707 = vunpack.c.h.b16 %v1409
        %v2708 = vunpack.c.l.b16 %v1410
        %v2709 = vunpack.c.h.b16 %v1410
        %v2710 = vunpack.c.l.b16 %v1411
        %v2711 = vunpack.c.h.b16 %v1411
        %v2712 = vunpack.c.l.b16 %v1412
        %v2713 = vunpack.c.h.b16 %v1412
        %v2714 = vunpack.c.l.b16 %v1413
        %v2715 = vunpack.c.h.b16 %v1413
        %v2716 = vunpack.c.l.b16 %v1414
        %v2717 = vunpack.c.h.b16 %v1414
        %v2718 = vunpack.c.l.b16 %v1415
        %v2719 = vunpack.c.h.b16 %v1415
        %v2720 = vunpack.c.l.b16 %v1416
        %v2721 = vunpack.c.h.b16 %v1416
        %v2722 = vunpack.c.l.b16 %v1417
        %v2723 = vunpack.c.h.b16 %v1417
        %v2724 = vunpack.c.l.b16 %v1418
        %v2725 = vunpack.c.h.b16 %v1418
        %v2726 = vunpack.c.l.b16 %v1419
        %v2727 = vunpack.c.h.b16 %v1419
        %v2728 = vunpack.c.l.b16 %v1420
        %v2729 = vunpack.c.h.b16 %v1420
        %v2730 = vunpack.c.l.b16 %v1421
        %v2731 = vunpack.c.h.b16 %v1421
        %v2732 = vunpack.c.l.b16 %v1422
        %v2733 = vunpack.c.h.b16 %v1422
        %v2734 = vunpack.c.l.b16 %v1423
        %v2735 = vunpack.c.h.b16 %v1423
        %v2736 = vunpack.c.l.b16 %v1424
        %v2737 = vunpack.c.h.b16 %v1424
        %v2738 = vunpack.c.l.b16 %v1425
        %v2739 = vunpack.c.h.b16 %v1425
        %v2740 = vunpack.c.l.b16 %v1426
        %v2741 = vunpack.c.h.b16 %v1426
        %v2742 = vunpack.c.l.b16 %v1427
        %v2743 = vunpack.c.h.b16 %v1427
        %v2744 = vunpack.c.l.b16 %v1428
        %v2745 = vunpack.c.h.b16 %v1428
        %v2746 = vunpack.c.l.b16 %v1429
        %v2747 = vunpack.c.h.b16 %v1429
        %v2748 = vunpack.c.l.b16 %v1430
        %v2749 = vunpack.c.h.b16 %v1430
        %v2750 = vunpack.c.l.b16 %v1431
        %v2751 = vunpack.c.h.b16 %v1431
        %v2752 = vunpack.c.l.b16 %v1432
        %v2753 = vunpack.c.h.b16 %v1432
        %v2754 = vunpack.c.l.b16 %v1433
        %v2755 = vunpack.c.h.b16 %v1433
        %v2756 = vunpack.c.l.b16 %v1434
        %v2757 = vunpack.c.h.b16 %v1434
        %v2758 = vunpack.c.l.b16 %v1435
        %v2759 = vunpack.c.h.b16 %v1435
        %v2760 = vunpack.c.l.b16 %v1436
        %v2761 = vunpack.c.h.b16 %v1436
        %v2762 = vunpack.c.l.b16 %v1437
        %v2763 = vunpack.c.h.b16 %v1437
        %v2764 = vunpack.c.l.b16 %v1438
        %v2765 = vunpack.c.h.b16 %v1438
        %v2766 = vunpack.c.l.b16 %v1439
        %v2767 = vunpack.c.h.b16 %v1439
        %v2768 = vunpack.c.l.b16 %v1440
        %v2769 = vunpack.c.h.b16 %v1440
        %v2770 = vunpack.c.l.b16 %v1441
        %v2771 = vunpack.c.h.b16 %v1441
        %v2772 = vunpack.c.l.b16 %v1442
        %v2773 = vunpack.c.h.b16 %v1442
        %v2774 = vunpack.c.l.b16 %v1443
        %v2775 = vunpack.c.h.b16 %v1443
        %v2776 = vunpack.c.l.b16 %v1444
        %v2777 = vunpack.c.h.b16 %v1444
        %v2778 = vunpack.c.l.b16 %v1445
        %v2779 = vunpack.c.h.b16 %v1445
        %v2780 = vunpack.c.l.b16 %v1446
        %v2781 = vunpack.c.h.b16 %v1446
        %v2782 = vunpack.c.l.b16 %v1447
        %v2783 = vunpack.c.h.b16 %v1447
        %v2784 = vunpack.c.l.b16 %v1448
        %v2785 = vunpack.c.h.b16 %v1448
        %v2786 = vunpack.c.l.b16 %v1449
        %v2787 = vunpack.c.h.b16 %v1449
        %v2788 = vunpack.c.l.b16 %v1450
        %v2789 = vunpack.c.h.b16 %v1450
        %v2790 = vunpack.c.l.b16 %v1451
        %v2791 = vunpack.c.h.b16 %v1451
        %v2792 = vunpack.c.l.b16 %v1452
        %v2793 = vunpack.c.h.b16 %v1452
        %v2794 = vunpack.c.l.b16 %v1453
        %v2795 = vunpack.c.h.b16 %v1453
        %v2796 = vunpack.c.l.b16 %v1454
        %v2797 = vunpack.c.h.b16 %v1454
        %v2798 = vunpack.c.l.b16 %v1455
        %v2799 = vunpack.c.h.b16 %v1455
        %v2800 = vunpack.c.l.b16 %v1456
        %v2801 = vunpack.c.h.b16 %v1456
        %v2802 = vunpack.c.l.b16 %v1457
        %v2803 = vunpack.c.h.b16 %v1457
        %v2804 = vunpack.c.l.b16 %v1458
        %v2805 = vunpack.c.h.b16 %v1458
        %v2806 = vunpack.c.l.b16 %v1459
        %v2807 = vunpack.c.h.b16 %v1459
        %v2808 = vunpack.c.l.b16 %v1460
        %v2809 = vunpack.c.h.b16 %v1460
        %v2810 = vunpack.c.l.b16 %v1461
        %v2811 = vunpack.c.h.b16 %v1461
        %v2812 = vunpack.c.l.b16 %v1462
        %v2813 = vunpack.c.h.b16 %v1462
        %v2814 = vunpack.c.l.b16 %v1463
        %v2815 = vunpack.c.h.b16 %v1463
        %v2816 = vunpack.c.l.b16 %v1464
        %v2817 = vunpack.c.h.b16 %v1464
        %v2818 = vunpack.c.l.b16 %v1465
        %v2819 = vunpack.c.h.b16 %v1465
        %v2820 = vunpack.c.l.b16 %v1466
        %v2821 = vunpack.c.h.b16 %v1466
        %v2822 = vunpack.c.l.b16 %v1467
        %v2823 = vunpack.c.h.b16 %v1467
        %v2824 = vunpack.c.l.b16 %v1468
        %v2825 = vunpack.c.h.b16 %v1468
        %v2826 = vunpack.c.l.b16 %v1469
        %v2827 = vunpack.c.h.b16 %v1469
        %v2828 = vunpack.c.l.b16 %v1470
        %v2829 = vunpack.c.h.b16 %v1470
        %v2830 = vunpack.c.l.b16 %v1471
        %v2831 = vunpack.c.h.b16 %v1471
        %v2832 = vunpack.c.l.b16 %v1472
        %v2833 = vunpack.c.h.b16 %v1472
        %v2834 = vunpack.c.l.b16 %v1473
        %v2835 = vunpack.c.h.b16 %v1473
        %v2836 = vunpack.c.l.b16 %v1474
        %v2837 = vunpack.c.h.b16 %v1474
        %v2838 = vunpack.c.l.b16 %v1475
        %v2839 = vunpack.c.h.b16 %v1475
        %v2840 = vunpack.c.l.b16 %v1476
        %v2841 = vunpack.c.h.b16 %v1476
        %v2842 = vunpack.c.l.b16 %v1477
        %v2843 = vunpack.c.h.b16 %v1477
        %v2844 = vunpack.c.l.b16 %v1478
        %v2845 = vunpack.c.h.b16 %v1478
        %v2846 = vunpack.c.l.b16 %v1479
        %v2847 = vunpack.c.h.b16 %v1479
        %v2848 = vunpack.c.l.b16 %v1480
        %v2849 = vunpack.c.h.b16 %v1480
        %v2850 = vunpack.c.l.b16 %v1481
        %v2851 = vunpack.c.h.b16 %v1481
        %v2852 = vunpack.c.l.b16 %v1482
        %v2853 = vunpack.c.h.b16 %v1482
        %v2854 = vunpack.c.l.b16 %v1483
        %v2855 = vunpack.c.h.b16 %v1483
        %v2856 = vunpack.c.l.b16 %v1484
        %v2857 = vunpack.c.h.b16 %v1484
        %v2858 = vunpack.c.l.b16 %v1485
        %v2859 = vunpack.c.h.b16 %v1485
        %v2860 = vunpack.c.l.b16 %v1486
        %v2861 = vunpack.c.h.b16 %v1486
        %v2862 = vunpack.c.l.b16 %v1487
        %v2863 = vunpack.c.h.b16 %v1487
        %v2864 = vunpack.c.l.b16 %v1488
        %v2865 = vunpack.c.h.b16 %v1488
        %v2866 = vunpack.c.l.b16 %v1489
        %v2867 = vunpack.c.h.b16 %v1489
        %v2868 = vunpack.c.l.b16 %v1490
        %v2869 = vunpack.c.h.b16 %v1490
        %v2870 = vunpack.c.l.b16 %v1491
        %v2871 = vunpack.c.h.b16 %v1491
        %v2872 = vunpack.c.l.b16 %v1492
        %v2873 = vunpack.c.h.b16 %v1492
        %v2874 = vunpack.c.l.b16 %v1493
        %v2875 = vunpack.c.h.b16 %v1493
        %v2876 = vunpack.c.l.b16 %v1494
        %v2877 = vunpack.c.h.b16 %v1494
        %v2878 = vunpack.c.l.b16 %v1495
        %v2879 = vunpack.c.h.b16 %v1495
        %v2880 = vunpack.c.l.b16 %v1496
        %v2881 = vunpack.c.h.b16 %v1496
        %v2882 = vunpack.c.l.b16 %v1497
        %v2883 = vunpack.c.h.b16 %v1497
        %v2884 = vunpack.c.l.b16 %v1498
        %v2885 = vunpack.c.h.b16 %v1498
        %v2886 = vunpack.c.l.b16 %v1499
        %v2887 = vunpack.c.h.b16 %v1499
        %v2888 = vunpack.c.l.b16 %v1500
        %v2889 = vunpack.c.h.b16 %v1500
        %v2890 = vunpack.c.l.b16 %v1501
        %v2891 = vunpack.c.h.b16 %v1501
        %v2892 = vunpack.c.l.b16 %v1502
        %v2893 = vunpack.c.h.b16 %v1502
        %v2894 = vunpack.c.l.b16 %v1503
        %v2895 = vunpack.c.h.b16 %v1503
        %v2896 = vunpack.c.l.b16 %v1504
        %v2897 = vunpack.c.h.b16 %v1504
        %v2898 = vunpack.c.l.b16 %v1505
        %v2899 = vunpack.c.h.b16 %v1505
        %v2900 = vunpack.c.l.b16 %v1506
        %v2901 = vunpack.c.h.b16 %v1506
        %v2902 = vunpack.c.l.b16 %v1507
        %v2903 = vunpack.c.h.b16 %v1507
        %v2904 = vunpack.c.l.b16 %v1508
        %v2905 = vunpack.c.h.b16 %v1508
        %v2906 = vunpack.c.l.b16 %v1509
        %v2907 = vunpack.c.h.b16 %v1509
        %v2908 = vunpack.c.l.b16 %v1510
        %v2909 = vunpack.c.h.b16 %v1510
        %v2910 = vunpack.c.l.b16 %v1511
        %v2911 = vunpack.c.h.b16 %v1511
        %v2912 = vunpack.c.l.b16 %v1512
        %v2913 = vunpack.c.h.b16 %v1512
        %v2914 = vunpack.c.l.b16 %v1513
        %v2915 = vunpack.c.h.b16 %v1513
        %v2916 = vunpack.c.l.b16 %v1514
        %v2917 = vunpack.c.h.b16 %v1514
        %v2918 = vunpack.c.l.b16 %v1515
        %v2919 = vunpack.c.h.b16 %v1515
        %v2920 = vunpack.c.l.b16 %v1516
        %v2921 = vunpack.c.h.b16 %v1516
        %v2922 = vunpack.c.l.b16 %v1517
        %v2923 = vunpack.c.h.b16 %v1517
        %v2924 = vunpack.c.l.b16 %v1518
        %v2925 = vunpack.c.h.b16 %v1518
        %v2926 = vunpack.c.l.b16 %v1519
        %v2927 = vunpack.c.h.b16 %v1519
        %v2928 = vunpack.c.l.b16 %v1520
        %v2929 = vunpack.c.h.b16 %v1520
        %v2930 = vunpack.c.l.b16 %v1521
        %v2931 = vunpack.c.h.b16 %v1521
        %v2932 = vunpack.c.l.b16 %v1522
        %v2933 = vunpack.c.h.b16 %v1522
        %v2934 = vunpack.c.l.b16 %v1523
        %v2935 = vunpack.c.h.b16 %v1523
        %v2936 = vunpack.c.l.b16 %v1524
        %v2937 = vunpack.c.h.b16 %v1524
        %v2938 = vunpack.c.l.b16 %v1525
        %v2939 = vunpack.c.h.b16 %v1525
        %v2940 = vunpack.c.l.b16 %v1526
        %v2941 = vunpack.c.h.b16 %v1526
        %v2942 = vunpack.c.l.b16 %v1527
        %v2943 = vunpack.c.h.b16 %v1527
        %v2944 = vunpack.c.l.b16 %v1528
        %v2945 = vunpack.c.h.b16 %v1528
        %v2946 = vunpack.c.l.b16 %v1529
        %v2947 = vunpack.c.h.b16 %v1529
        %v2948 = vunpack.c.l.b16 %v1530
        %v2949 = vunpack.c.h.b16 %v1530
        %v2950 = vunpack.c.l.b16 %v1531
        %v2951 = vunpack.c.h.b16 %v1531
        %v2952 = vunpack.c.l.b16 %v1532
        %v2953 = vunpack.c.h.b16 %v1532
        %v2954 = vunpack.c.l.b16 %v1533
        %v2955 = vunpack.c.h.b16 %v1533
        %v2956 = vunpack.c.l.b16 %v1534
        %v2957 = vunpack.c.h.b16 %v1534
        %v2958 = vunpack.c.l.b16 %v1535
        %v2959 = vunpack.c.h.b16 %v1535
        %v2960 = vunpack.c.l.b16 %v1536
        %v2961 = vunpack.c.h.b16 %v1536
        %v2962 = vunpack.c.l.b16 %v1537
        %v2963 = vunpack.c.h.b16 %v1537
        %v2964 = vunpack.c.l.b16 %v1538
        %v2965 = vunpack.c.h.b16 %v1538
        %v2966 = vunpack.c.l.b16 %v1539
        %v2967 = vunpack.c.h.b16 %v1539
        %v2968 = vunpack.c.l.b16 %v1540
        %v2969 = vunpack.c.h.b16 %v1540
        %v2970 = vunpack.c.l.b16 %v1541
        %v2971 = vunpack.c.h.b16 %v1541
        %v2972 = vunpack.c.l.b16 %v1542
        %v2973 = vunpack.c.h.b16 %v1542
        %v2974 = vunpack.c.l.b16 %v1543
        %v2975 = vunpack.c.h.b16 %v1543
        %v2976 = vunpack.c.l.b16 %v1544
        %v2977 = vunpack.c.h.b16 %v1544
        %v2978 = vunpack.c.l.b16 %v1545
        %v2979 = vunpack.c.h.b16 %v1545
        %v2980 = vunpack.c.l.b16 %v1546
        %v2981 = vunpack.c.h.b16 %v1546
        %v2982 = vunpack.c.l.b16 %v1547
        %v2983 = vunpack.c.h.b16 %v1547
        %v2984 = vunpack.c.l.b16 %v1548
        %v2985 = vunpack.c.h.b16 %v1548
        %v2986 = vunpack.c.l.b16 %v1549
        %v2987 = vunpack.c.h.b16 %v1549
        %v2988 = vunpack.c.l.b16 %v1550
        %v2989 = vunpack.c.h.b16 %v1550
        %v2990 = vunpack.c.l.b16 %v1551
        %v2991 = vunpack.c.h.b16 %v1551
        %v2992 = vunpack.c.l.b16 %v1552
        %v2993 = vunpack.c.h.b16 %v1552
        %v2994 = vunpack.c.l.b16 %v1553
        %v2995 = vunpack.c.h.b16 %v1553
        %v2996 = vunpack.c.l.b16 %v1554
        %v2997 = vunpack.c.h.b16 %v1554
        %v2998 = vunpack.c.l.b16 %v1555
        %v2999 = vunpack.c.h.b16 %v1555
        %v3000 = vunpack.c.l.b16 %v1556
        %v3001 = vunpack.c.h.b16 %v1556
        %v3002 = vunpack.c.l.b16 %v1557
        %v3003 = vunpack.c.h.b16 %v1557
        %v3004 = vunpack.c.l.b16 %v1558
        %v3005 = vunpack.c.h.b16 %v1558
        %v3006 = vunpack.c.l.b16 %v1559
        %v3007 = vunpack.c.h.b16 %v1559
        %v3008 = vunpack.c.l.b16 %v1560
        %v3009 = vunpack.c.h.b16 %v1560
        %v3010 = vunpack.c.l.b16 %v1561
        %v3011 = vunpack.c.h.b16 %v1561
        %v3012 = vunpack.c.l.b16 %v1562
        %v3013 = vunpack.c.h.b16 %v1562
        %v3014 = vunpack.c.l.b16 %v1563
        %v3015 = vunpack.c.h.b16 %v1563
        %v3016 = vunpack.c.l.b16 %v1564
        %v3017 = vunpack.c.h.b16 %v1564
        %v3018 = vunpack.c.l.b16 %v1565
        %v3019 = vunpack.c.h.b16 %v1565
        %v3020 = vunpack.c.l.b16 %v1566
        %v3021 = vunpack.c.h.b16 %v1566
        %v3022 = vunpack.c.l.b16 %v1567
        %v3023 = vunpack.c.h.b16 %v1567
        %v3024 = vunpack.c.l.b16 %v1568
        %v3025 = vunpack.c.h.b16 %v1568
        %v3026 = vunpack.c.l.b16 %v1569
        %v3027 = vunpack.c.h.b16 %v1569
        %v3028 = vunpack.c.l.b16 %v1570
        %v3029 = vunpack.c.h.b16 %v1570
        %v3030 = vunpack.c.l.b16 %v1571
        %v3031 = vunpack.c.h.b16 %v1571
        %v3032 = vunpack.c.l.b16 %v1572
        %v3033 = vunpack.c.h.b16 %v1572
        %v3034 = vunpack.c.l.b16 %v1573
        %v3035 = vunpack.c.h.b16 %v1573
        %v3036 = vunpack.c.l.b16 %v1574
        %v3037 = vunpack.c.h.b16 %v1574
        %v3038 = vunpack.c.l.b16 %v1575
        %v3039 = vunpack.c.h.b16 %v1575
        %v3040 = vunpack.c.l.b16 %v1576
        %v3041 = vunpack.c.h.b16 %v1576
        %v3042 = vunpack.c.l.b16 %v1577
        %v3043 = vunpack.c.h.b16 %v1577
        %v3044 = vunpack.c.l.b16 %v1578
        %v3045 = vunpack.c.h.b16 %v1578
        %v3046 = vunpack.c.l.b16 %v1579
        %v3047 = vunpack.c.h.b16 %v1579
        %v3048 = vunpack.c.l.b16 %v1580
        %v3049 = vunpack.c.h.b16 %v1580
        %v3050 = vunpack.c.l.b16 %v1581
        %v3051 = vunpack.c.h.b16 %v1581
        %v3052 = vunpack.c.l.b16 %v1582
        %v3053 = vunpack.c.h.b16 %v1582
        %v3054 = vunpack.c.l.b16 %v1583
        %v3055 = vunpack.c.h.b16 %v1583
        %v3056 = vunpack.c.l.b16 %v1584
        %v3057 = vunpack.c.h.b16 %v1584
        %v3058 = vunpack.c.l.b16 %v1585
        %v3059 = vunpack.c.h.b16 %v1585
        %v3060 = vunpack.c.l.b16 %v1586
        %v3061 = vunpack.c.h.b16 %v1586
        %v3062 = vunpack.c.l.b16 %v1587
        %v3063 = vunpack.c.h.b16 %v1587
        %v3064 = vunpack.c.l.b16 %v1588
        %v3065 = vunpack.c.h.b16 %v1588
        %v3066 = vunpack.c.l.b16 %v1589
        %v3067 = vunpack.c.h.b16 %v1589
        %v3068 = vunpack.c.l.b16 %v1590
        %v3069 = vunpack.c.h.b16 %v1590
        %v3070 = vunpack.c.l.b16 %v1591
        %v3071 = vunpack.c.h.b16 %v1591
        %v3072 = vunpack.c.l.b16 %v1592
        %v3073 = vunpack.c.h.b16 %v1592
        %v3074 = vunpack.c.l.b16 %v1593
        %v3075 = vunpack.c.h.b16 %v1593
        %v3076 = vunpack.c.l.b16 %v1594
        %v3077 = vunpack.c.h.b16 %v1594
        %v3078 = vunpack.c.l.b16 %v1595
        %v3079 = vunpack.c.h.b16 %v1595
        %v3080 = vunpack.c.l.b16 %v1596
        %v3081 = vunpack.c.h.b16 %v1596
        %v3082 = vunpack.c.l.b16 %v1597
        %v3083 = vunpack.c.h.b16 %v1597
        %v3084 = vunpack.c.l.b16 %v1598
        %v3085 = vunpack.c.h.b16 %v1598
        %v3086 = vunpack.c.l.b16 %v1599
        %v3087 = vunpack.c.h.b16 %v1599
        %v3088 = vunpack.c.l.b16 %v1600
        %v3089 = vunpack.c.h.b16 %v1600
        %v3090 = vunpack.c.l.b16 %v1601
        %v3091 = vunpack.c.h.b16 %v1601
        %v3092 = vunpack.c.l.b16 %v1602
        %v3093 = vunpack.c.h.b16 %v1602
        %v3094 = vunpack.c.l.b16 %v1603
        %v3095 = vunpack.c.h.b16 %v1603
        %v3096 = vunpack.c.l.b16 %v1604
        %v3097 = vunpack.c.h.b16 %v1604
        %v3098 = vunpack.c.l.b16 %v1605
        %v3099 = vunpack.c.h.b16 %v1605
        %v3100 = vunpack.c.l.b16 %v1606
        %v3101 = vunpack.c.h.b16 %v1606
        %v3102 = vunpack.c.l.b16 %v1607
        %v3103 = vunpack.c.h.b16 %v1607
        %v3104 = vunpack.c.l.b16 %v1608
        %v3105 = vunpack.c.h.b16 %v1608
        %v3106 = vunpack.c.l.b16 %v1609
        %v3107 = vunpack.c.h.b16 %v1609
        %v3108 = vunpack.c.l.b16 %v1610
        %v3109 = vunpack.c.h.b16 %v1610
        %v3110 = vunpack.c.l.b16 %v1611
        %v3111 = vunpack.c.h.b16 %v1611
        %v3112 = vunpack.c.l.b16 %v1612
        %v3113 = vunpack.c.h.b16 %v1612
        %v3114 = vunpack.c.l.b16 %v1613
        %v3115 = vunpack.c.h.b16 %v1613
        %v3116 = vunpack.c.l.b16 %v1614
        %v3117 = vunpack.c.h.b16 %v1614
        %v3118 = vunpack.c.l.b16 %v1615
        %v3119 = vunpack.c.h.b16 %v1615
        %v3120 = vunpack.c.l.b16 %v1616
        %v3121 = vunpack.c.h.b16 %v1616
        %v3122 = vunpack.c.l.b16 %v1617
        %v3123 = vunpack.c.h.b16 %v1617
        %v3124 = vunpack.c.l.b16 %v1618
        %v3125 = vunpack.c.h.b16 %v1618
        %v3126 = vunpack.c.l.b16 %v1619
        %v3127 = vunpack.c.h.b16 %v1619
        %v3128 = vunpack.c.l.b16 %v1620
        %v3129 = vunpack.c.h.b16 %v1620
        %v3130 = vunpack.c.l.b16 %v1621
        %v3131 = vunpack.c.h.b16 %v1621
        %v3132 = vunpack.c.l.b16 %v1622
        %v3133 = vunpack.c.h.b16 %v1622
        %v3134 = vunpack.c.l.b16 %v1623
        %v3135 = vunpack.c.h.b16 %v1623
        %v3136 = vunpack.c.l.b16 %v1624
        %v3137 = vunpack.c.h.b16 %v1624
        %v3138 = vunpack.c.l.b16 %v1625
        %v3139 = vunpack.c.h.b16 %v1625
        %v3140 = vunpack.c.l.b16 %v1626
        %v3141 = vunpack.c.h.b16 %v1626
        %v3142 = vunpack.c.l.b16 %v1627
        %v3143 = vunpack.c.h.b16 %v1627
        %v3144 = vunpack.c.l.b16 %v1628
        %v3145 = vunpack.c.h.b16 %v1628
        %v3146 = vunpack.c.l.b16 %v1629
        %v3147 = vunpack.c.h.b16 %v1629
        %v3148 = vunpack.c.l.b16 %v1630
        %v3149 = vunpack.c.h.b16 %v1630
        %v3150 = vunpack.c.l.b16 %v1631
        %v3151 = vunpack.c.h.b16 %v1631
        %v3152 = vunpack.c.l.b16 %v1632
        %v3153 = vunpack.c.h.b16 %v1632
        %v3154 = vunpack.c.l.b16 %v1633
        %v3155 = vunpack.c.h.b16 %v1633
        %v3156 = vunpack.c.l.b16 %v1634
        %v3157 = vunpack.c.h.b16 %v1634
        %v3158 = vunpack.c.l.b16 %v1635
        %v3159 = vunpack.c.h.b16 %v1635
        %v3160 = vunpack.c.l.b16 %v1636
        %v3161 = vunpack.c.h.b16 %v1636
        %v3162 = vunpack.c.l.b16 %v1637
        %v3163 = vunpack.c.h.b16 %v1637
        %v3164 = vunpack.c.l.b16 %v1638
        %v3165 = vunpack.c.h.b16 %v1638
        %v3166 = vunpack.c.l.b16 %v1639
        %v3167 = vunpack.c.h.b16 %v1639
        %v3168 = vunpack.c.l.b16 %v1640
        %v3169 = vunpack.c.h.b16 %v1640
        %v3170 = vunpack.c.l.b16 %v1641
        %v3171 = vunpack.c.h.b16 %v1641
        %v3172 = vunpack.c.l.b16 %v1642
        %v3173 = vunpack.c.h.b16 %v1642
        %v3174 = vunpack.c.l.b16 %v1643
        %v3175 = vunpack.c.h.b16 %v1643
        %v3176 = vunpack.c.l.b16 %v1644
        %v3177 = vunpack.c.h.b16 %v1644
        %v3178 = vunpack.c.l.b16 %v1645
        %v3179 = vunpack.c.h.b16 %v1645
        %v3180 = vunpack.c.l.b16 %v1646
        %v3181 = vunpack.c.h.b16 %v1646
        %v3182 = vunpack.c.l.b16 %v1647
        %v3183 = vunpack.c.h.b16 %v1647
        %v3184 = vunpack.c.l.b16 %v1648
        %v3185 = vunpack.c.h.b16 %v1648
        %v3186 = vunpack.c.l.b16 %v1649
        %v3187 = vunpack.c.h.b16 %v1649
        %v3188 = vunpack.c.l.b16 %v1650
        %v3189 = vunpack.c.h.b16 %v1650
        %v3190 = vunpack.c.l.b16 %v1651
        %v3191 = vunpack.c.h.b16 %v1651
        %v3192 = vunpack.c.l.b16 %v1652
        %v3193 = vunpack.c.h.b16 %v1652
        %v3194 = vunpack.c.l.b16 %v1653
        %v3195 = vunpack.c.h.b16 %v1653
        %v3196 = vunpack.c.l.b16 %v1654
        %v3197 = vunpack.c.h.b16 %v1654
        %v3198 = vunpack.c.l.b16 %v1655
        %v3199 = vunpack.c.h.b16 %v1655
        %v3200 = vunpack.c.l.b16 %v1656
        %v3201 = vunpack.c.h.b16 %v1656
        %v3202 = vunpack.c.l.b16 %v1657
        %v3203 = vunpack.c.h.b16 %v1657
        %v3204 = vunpack.c.l.b16 %v1658
        %v3205 = vunpack.c.h.b16 %v1658
        %v3206 = vunpack.c.l.b16 %v1659
        %v3207 = vunpack.c.h.b16 %v1659
        %v3208 = vunpack.c.l.b16 %v1660
        %v3209 = vunpack.c.h.b16 %v1660
        %v3210 = vunpack.c.l.b16 %v1661
        %v3211 = vunpack.c.h.b16 %v1661
        %v3212 = vunpack.c.l.b16 %v1662
        %v3213 = vunpack.c.h.b16 %v1662
        %v3214 = vunpack.c.l.b16 %v1663
        %v3215 = vunpack.c.h.b16 %v1663
        %v3216 = vunpack.c.l.b16 %v1664
        %v3217 = vunpack.c.h.b16 %v1664
        %v3218 = vunpack.c.l.b16 %v1665
        %v3219 = vunpack.c.h.b16 %v1665
        %v3220 = vpack.c.b16 %v2204, %v2196
        %v3221 = vpack.c.b16 %v2205, %v2197
        %v3222 = vpack.c.b16 %v2206, %v2198
        %v3223 = vpack.c.b16 %v2207, %v2199
        %v3224 = vpack.c.b16 %v2208, %v2200
        %v3225 = vpack.c.b16 %v2209, %v2201
        %v3226 = vpack.c.b16 %v2210, %v2202
        %v3227 = vpack.c.b16 %v2211, %v2203
        %v3228 = vpack.c.b16 %v2220, %v2212
        %v3229 = vpack.c.b16 %v2221, %v2213
        %v3230 = vpack.c.b16 %v2222, %v2214
        %v3231 = vpack.c.b16 %v2223, %v2215
        %v3232 = vpack.c.b16 %v2224, %v2216
        %v3233 = vpack.c.b16 %v2225, %v2217
        %v3234 = vpack.c.b16 %v2226, %v2218
        %v3235 = vpack.c.b16 %v2227, %v2219
        %v3236 = vpack.c.b16 %v2236, %v2228
        %v3237 = vpack.c.b16 %v2237, %v2229
        %v3238 = vpack.c.b16 %v2238, %v2230
        %v3239 = vpack.c.b16 %v2239, %v2231
        %v3240 = vpack.c.b16 %v2240, %v2232
        %v3241 = vpack.c.b16 %v2241, %v2233
        %v3242 = vpack.c.b16 %v2242, %v2234
        %v3243 = vpack.c.b16 %v2243, %v2235
        %v3244 = vpack.c.b16 %v2252, %v2244
        %v3245 = vpack.c.b16 %v2253, %v2245
        %v3246 = vpack.c.b16 %v2254, %v2246
        %v3247 = vpack.c.b16 %v2255, %v2247
        %v3248 = vpack.c.b16 %v2256, %v2248
        %v3249 = vpack.c.b16 %v2257, %v2249
        %v3250 = vpack.c.b16 %v2258, %v2250
        %v3251 = vpack.c.b16 %v2259, %v2251
        %v3252 = vpack.c.b16 %v2268, %v2260
        %v3253 = vpack.c.b16 %v2269, %v2261
        %v3254 = vpack.c.b16 %v2270, %v2262
        %v3255 = vpack.c.b16 %v2271, %v2263
        %v3256 = vpack.c.b16 %v2272, %v2264
        %v3257 = vpack.c.b16 %v2273, %v2265
        %v3258 = vpack.c.b16 %v2274, %v2266
        %v3259 = vpack.c.b16 %v2275, %v2267
        %v3260 = vpack.c.b16 %v2284, %v2276
        %v3261 = vpack.c.b16 %v2285, %v2277
        %v3262 = vpack.c.b16 %v2286, %v2278
        %v3263 = vpack.c.b16 %v2287, %v2279
        %v3264 = vpack.c.b16 %v2288, %v2280
        %v3265 = vpack.c.b16 %v2289, %v2281
        %v3266 = vpack.c.b16 %v2290, %v2282
        %v3267 = vpack.c.b16 %v2291, %v2283
        %v3268 = vpack.c.b16 %v2300, %v2292
        %v3269 = vpack.c.b16 %v2301, %v2293
        %v3270 = vpack.c.b16 %v2302, %v2294
        %v3271 = vpack.c.b16 %v2303, %v2295
        %v3272 = vpack.c.b16 %v2304, %v2296
        %v3273 = vpack.c.b16 %v2305, %v2297
        %v3274 = vpack.c.b16 %v2306, %v2298
        %v3275 = vpack.c.b16 %v2307, %v2299
        %v3276 = vpack.c.b16 %v2316, %v2308
        %v3277 = vpack.c.b16 %v2317, %v2309
        %v3278 = vpack.c.b16 %v2318, %v2310
        %v3279 = vpack.c.b16 %v2319, %v2311
        %v3280 = vpack.c.b16 %v2320, %v2312
        %v3281 = vpack.c.b16 %v2321, %v2313
        %v3282 = vpack.c.b16 %v2322, %v2314
        %v3283 = vpack.c.b16 %v2323, %v2315
        %v3284 = vpack.c.b16 %v2332, %v2324
        %v3285 = vpack.c.b16 %v2333, %v2325
        %v3286 = vpack.c.b16 %v2334, %v2326
        %v3287 = vpack.c.b16 %v2335, %v2327
        %v3288 = vpack.c.b16 %v2336, %v2328
        %v3289 = vpack.c.b16 %v2337, %v2329
        %v3290 = vpack.c.b16 %v2338, %v2330
        %v3291 = vpack.c.b16 %v2339, %v2331
        %v3292 = vpack.c.b16 %v2348, %v2340
        %v3293 = vpack.c.b16 %v2349, %v2341
        %v3294 = vpack.c.b16 %v2350, %v2342
        %v3295 = vpack.c.b16 %v2351, %v2343
        %v3296 = vpack.c.b16 %v2352, %v2344
        %v3297 = vpack.c.b16 %v2353, %v2345
        %v3298 = vpack.c.b16 %v2354, %v2346
        %v3299 = vpack.c.b16 %v2355, %v2347
        %v3300 = vpack.c.b16 %v2364, %v2356
        %v3301 = vpack.c.b16 %v2365, %v2357
        %v3302 = vpack.c.b16 %v2366, %v2358
        %v3303 = vpack.c.b16 %v2367, %v2359
        %v3304 = vpack.c.b16 %v2368, %v2360
        %v3305 = vpack.c.b16 %v2369, %v2361
        %v3306 = vpack.c.b16 %v2370, %v2362
        %v3307 = vpack.c.b16 %v2371, %v2363
        %v3308 = vpack.c.b16 %v2380, %v2372
        %v3309 = vpack.c.b16 %v2381, %v2373
        %v3310 = vpack.c.b16 %v2382, %v2374
        %v3311 = vpack.c.b16 %v2383, %v2375
        %v3312 = vpack.c.b16 %v2384, %v2376
        %v3313 = vpack.c.b16 %v2385, %v2377
        %v3314 = vpack.c.b16 %v2386, %v2378
        %v3315 = vpack.c.b16 %v2387, %v2379
        %v3316 = vpack.c.b16 %v2396, %v2388
        %v3317 = vpack.c.b16 %v2397, %v2389
        %v3318 = vpack.c.b16 %v2398, %v2390
        %v3319 = vpack.c.b16 %v2399, %v2391
        %v3320 = vpack.c.b16 %v2400, %v2392
        %v3321 = vpack.c.b16 %v2401, %v2393
        %v3322 = vpack.c.b16 %v2402, %v2394
        %v3323 = vpack.c.b16 %v2403, %v2395
        %v3324 = vpack.c.b16 %v2412, %v2404
        %v3325 = vpack.c.b16 %v2413, %v2405
        %v3326 = vpack.c.b16 %v2414, %v2406
        %v3327 = vpack.c.b16 %v2415, %v2407
        %v3328 = vpack.c.b16 %v2416, %v2408
        %v3329 = vpack.c.b16 %v2417, %v2409
        %v3330 = vpack.c.b16 %v2418, %v2410
        %v3331 = vpack.c.b16 %v2419, %v2411
        %v3332 = vpack.c.b16 %v2428, %v2420
        %v3333 = vpack.c.b16 %v2429, %v2421
        %v3334 = vpack.c.b16 %v2430, %v2422
        %v3335 = vpack.c.b16 %v2431, %v2423
        %v3336 = vpack.c.b16 %v2432, %v2424
        %v3337 = vpack.c.b16 %v2433, %v2425
        %v3338 = vpack.c.b16 %v2434, %v2426
        %v3339 = vpack.c.b16 %v2435, %v2427
        %v3340 = vpack.c.b16 %v2444, %v2436
        %v3341 = vpack.c.b16 %v2445, %v2437
        %v3342 = vpack.c.b16 %v2446, %v2438
        %v3343 = vpack.c.b16 %v2447, %v2439
        %v3344 = vpack.c.b16 %v2448, %v2440
        %v3345 = vpack.c.b16 %v2449, %v2441
        %v3346 = vpack.c.b16 %v2450, %v2442
        %v3347 = vpack.c.b16 %v2451, %v2443
        %v3348 = vpack.c.b16 %v2460, %v2452
        %v3349 = vpack.c.b16 %v2461, %v2453
        %v3350 = vpack.c.b16 %v2462, %v2454
        %v3351 = vpack.c.b16 %v2463, %v2455
        %v3352 = vpack.c.b16 %v2464, %v2456
        %v3353 = vpack.c.b16 %v2465, %v2457
        %v3354 = vpack.c.b16 %v2466, %v2458
        %v3355 = vpack.c.b16 %v2467, %v2459
        %v3356 = vpack.c.b16 %v2476, %v2468
        %v3357 = vpack.c.b16 %v2477, %v2469
        %v3358 = vpack.c.b16 %v2478, %v2470
        %v3359 = vpack.c.b16 %v2479, %v2471
        %v3360 = vpack.c.b16 %v2480, %v2472
        %v3361 = vpack.c.b16 %v2481, %v2473
        %v3362 = vpack.c.b16 %v2482, %v2474
        %v3363 = vpack.c.b16 %v2483, %v2475
        %v3364 = vpack.c.b16 %v2492, %v2484
        %v3365 = vpack.c.b16 %v2493, %v2485
        %v3366 = vpack.c.b16 %v2494, %v2486
        %v3367 = vpack.c.b16 %v2495, %v2487
        %v3368 = vpack.c.b16 %v2496, %v2488
        %v3369 = vpack.c.b16 %v2497, %v2489
        %v3370 = vpack.c.b16 %v2498, %v2490
        %v3371 = vpack.c.b16 %v2499, %v2491
        %v3372 = vpack.c.b16 %v2508, %v2500
        %v3373 = vpack.c.b16 %v2509, %v2501
        %v3374 = vpack.c.b16 %v2510, %v2502
        %v3375 = vpack.c.b16 %v2511, %v2503
        %v3376 = vpack.c.b16 %v2512, %v2504
        %v3377 = vpack.c.b16 %v2513, %v2505
        %v3378 = vpack.c.b16 %v2514, %v2506
        %v3379 = vpack.c.b16 %v2515, %v2507
        %v3380 = vpack.c.b16 %v2524, %v2516
        %v3381 = vpack.c.b16 %v2525, %v2517
        %v3382 = vpack.c.b16 %v2526, %v2518
        %v3383 = vpack.c.b16 %v2527, %v2519
        %v3384 = vpack.c.b16 %v2528, %v2520
        %v3385 = vpack.c.b16 %v2529, %v2521
        %v3386 = vpack.c.b16 %v2530, %v2522
        %v3387 = vpack.c.b16 %v2531, %v2523
        %v3388 = vpack.c.b16 %v2540, %v2532
        %v3389 = vpack.c.b16 %v2541, %v2533
        %v3390 = vpack.c.b16 %v2542, %v2534
        %v3391 = vpack.c.b16 %v2543, %v2535
        %v3392 = vpack.c.b16 %v2544, %v2536
        %v3393 = vpack.c.b16 %v2545, %v2537
        %v3394 = vpack.c.b16 %v2546, %v2538
        %v3395 = vpack.c.b16 %v2547, %v2539
        %v3396 = vpack.c.b16 %v2556, %v2548
        %v3397 = vpack.c.b16 %v2557, %v2549
        %v3398 = vpack.c.b16 %v2558, %v2550
        %v3399 = vpack.c.b16 %v2559, %v2551
        %v3400 = vpack.c.b16 %v2560, %v2552
        %v3401 = vpack.c.b16 %v2561, %v2553
        %v3402 = vpack.c.b16 %v2562, %v2554
        %v3403 = vpack.c.b16 %v2563, %v2555
        %v3404 = vpack.c.b16 %v2572, %v2564
        %v3405 = vpack.c.b16 %v2573, %v2565
        %v3406 = vpack.c.b16 %v2574, %v2566
        %v3407 = vpack.c.b16 %v2575, %v2567
        %v3408 = vpack.c.b16 %v2576, %v2568
        %v3409 = vpack.c.b16 %v2577, %v2569
        %v3410 = vpack.c.b16 %v2578, %v2570
        %v3411 = vpack.c.b16 %v2579, %v2571
        %v3412 = vpack.c.b16 %v2588, %v2580
        %v3413 = vpack.c.b16 %v2589, %v2581
        %v3414 = vpack.c.b16 %v2590, %v2582
        %v3415 = vpack.c.b16 %v2591, %v2583
        %v3416 = vpack.c.b16 %v2592, %v2584
        %v3417 = vpack.c.b16 %v2593, %v2585
        %v3418 = vpack.c.b16 %v2594, %v2586
        %v3419 = vpack.c.b16 %v2595, %v2587
        %v3420 = vpack.c.b16 %v2604, %v2596
        %v3421 = vpack.c.b16 %v2605, %v2597
        %v3422 = vpack.c.b16 %v2606, %v2598
        %v3423 = vpack.c.b16 %v2607, %v2599
        %v3424 = vpack.c.b16 %v2608, %v2600
        %v3425 = vpack.c.b16 %v2609, %v2601
        %v3426 = vpack.c.b16 %v2610, %v2602
        %v3427 = vpack.c.b16 %v2611, %v2603
        %v3428 = vpack.c.b16 %v2620, %v2612
        %v3429 = vpack.c.b16 %v2621, %v2613
        %v3430 = vpack.c.b16 %v2622, %v2614
        %v3431 = vpack.c.b16 %v2623, %v2615
        %v3432 = vpack.c.b16 %v2624, %v2616
        %v3433 = vpack.c.b16 %v2625, %v2617
        %v3434 = vpack.c.b16 %v2626, %v2618
        %v3435 = vpack.c.b16 %v2627, %v2619
        %v3436 = vpack.c.b16 %v2636, %v2628
        %v3437 = vpack.c.b16 %v2637, %v2629
        %v3438 = vpack.c.b16 %v2638, %v2630
        %v3439 = vpack.c.b16 %v2639, %v2631
        %v3440 = vpack.c.b16 %v2640, %v2632
        %v3441 = vpack.c.b16 %v2641, %v2633
        %v3442 = vpack.c.b16 %v2642, %v2634
        %v3443 = vpack.c.b16 %v2643, %v2635
        %v3444 = vpack.c.b16 %v2652, %v2644
        %v3445 = vpack.c.b16 %v2653, %v2645
        %v3446 = vpack.c.b16 %v2654, %v2646
        %v3447 = vpack.c.b16 %v2655, %v2647
        %v3448 = vpack.c.b16 %v2656, %v2648
        %v3449 = vpack.c.b16 %v2657, %v2649
        %v3450 = vpack.c.b16 %v2658, %v2650
        %v3451 = vpack.c.b16 %v2659, %v2651
        %v3452 = vpack.c.b16 %v2668, %v2660
        %v3453 = vpack.c.b16 %v2669, %v2661
        %v3454 = vpack.c.b16 %v2670, %v2662
        %v3455 = vpack.c.b16 %v2671, %v2663
        %v3456 = vpack.c.b16 %v2672, %v2664
        %v3457 = vpack.c.b16 %v2673, %v2665
        %v3458 = vpack.c.b16 %v2674, %v2666
        %v3459 = vpack.c.b16 %v2675, %v2667
        %v3460 = vpack.c.b16 %v2684, %v2676
        %v3461 = vpack.c.b16 %v2685, %v2677
        %v3462 = vpack.c.b16 %v2686, %v2678
        %v3463 = vpack.c.b16 %v2687, %v2679
        %v3464 = vpack.c.b16 %v2688, %v2680
        %v3465 = vpack.c.b16 %v2689, %v2681
        %v3466 = vpack.c.b16 %v2690, %v2682
        %v3467 = vpack.c.b16 %v2691, %v2683
        %v3468 = vpack.c.b16 %v2700, %v2692
        %v3469 = vpack.c.b16 %v2701, %v2693
        %v3470 = vpack.c.b16 %v2702, %v2694
        %v3471 = vpack.c.b16 %v2703, %v2695
        %v3472 = vpack.c.b16 %v2704, %v2696
        %v3473 = vpack.c.b16 %v2705, %v2697
        %v3474 = vpack.c.b16 %v2706, %v2698
        %v3475 = vpack.c.b16 %v2707, %v2699
        %v3476 = vpack.c.b16 %v2716, %v2708
        %v3477 = vpack.c.b16 %v2717, %v2709
        %v3478 = vpack.c.b16 %v2718, %v2710
        %v3479 = vpack.c.b16 %v2719, %v2711
        %v3480 = vpack.c.b16 %v2720, %v2712
        %v3481 = vpack.c.b16 %v2721, %v2713
        %v3482 = vpack.c.b16 %v2722, %v2714
        %v3483 = vpack.c.b16 %v2723, %v2715
        %v3484 = vpack.c.b16 %v2732, %v2724
        %v3485 = vpack.c.b16 %v2733, %v2725
        %v3486 = vpack.c.b16 %v2734, %v2726
        %v3487 = vpack.c.b16 %v2735, %v2727
        %v3488 = vpack.c.b16 %v2736, %v2728
        %v3489 = vpack.c.b16 %v2737, %v2729
        %v3490 = vpack.c.b16 %v2738, %v2730
        %v3491 = vpack.c.b16 %v2739, %v2731
        %v3492 = vpack.c.b16 %v2748, %v2740
        %v3493 = vpack.c.b16 %v2749, %v2741
        %v3494 = vpack.c.b16 %v2750, %v2742
        %v3495 = vpack.c.b16 %v2751, %v2743
        %v3496 = vpack.c.b16 %v2752, %v2744
        %v3497 = vpack.c.b16 %v2753, %v2745
        %v3498 = vpack.c.b16 %v2754, %v2746
        %v3499 = vpack.c.b16 %v2755, %v2747
        %v3500 = vpack.c.b16 %v2764, %v2756
        %v3501 = vpack.c.b16 %v2765, %v2757
        %v3502 = vpack.c.b16 %v2766, %v2758
        %v3503 = vpack.c.b16 %v2767, %v2759
        %v3504 = vpack.c.b16 %v2768, %v2760
        %v3505 = vpack.c.b16 %v2769, %v2761
        %v3506 = vpack.c.b16 %v2770, %v2762
        %v3507 = vpack.c.b16 %v2771, %v2763
        %v3508 = vpack.c.b16 %v2780, %v2772
        %v3509 = vpack.c.b16 %v2781, %v2773
        %v3510 = vpack.c.b16 %v2782, %v2774
        %v3511 = vpack.c.b16 %v2783, %v2775
        %v3512 = vpack.c.b16 %v2784, %v2776
        %v3513 = vpack.c.b16 %v2785, %v2777
        %v3514 = vpack.c.b16 %v2786, %v2778
        %v3515 = vpack.c.b16 %v2787, %v2779
        %v3516 = vpack.c.b16 %v2796, %v2788
        %v3517 = vpack.c.b16 %v2797, %v2789
        %v3518 = vpack.c.b16 %v2798, %v2790
        %v3519 = vpack.c.b16 %v2799, %v2791
        %v3520 = vpack.c.b16 %v2800, %v2792
        %v3521 = vpack.c.b16 %v2801, %v2793
        %v3522 = vpack.c.b16 %v2802, %v2794
        %v3523 = vpack.c.b16 %v2803, %v2795
        %v3524 = vpack.c.b16 %v2812, %v2804
        %v3525 = vpack.c.b16 %v2813, %v2805
        %v3526 = vpack.c.b16 %v2814, %v2806
        %v3527 = vpack.c.b16 %v2815, %v2807
        %v3528 = vpack.c.b16 %v2816, %v2808
        %v3529 = vpack.c.b16 %v2817, %v2809
        %v3530 = vpack.c.b16 %v2818, %v2810
        %v3531 = vpack.c.b16 %v2819, %v2811
        %v3532 = vpack.c.b16 %v2828, %v2820
        %v3533 = vpack.c.b16 %v2829, %v2821
        %v3534 = vpack.c.b16 %v2830, %v2822
        %v3535 = vpack.c.b16 %v2831, %v2823
        %v3536 = vpack.c.b16 %v2832, %v2824
        %v3537 = vpack.c.b16 %v2833, %v2825
        %v3538 = vpack.c.b16 %v2834, %v2826
        %v3539 = vpack.c.b16 %v2835, %v2827
        %v3540 = vpack.c.b16 %v2844, %v2836
        %v3541 = vpack.c.b16 %v2845, %v2837
        %v3542 = vpack.c.b16 %v2846, %v2838
        %v3543 = vpack.c.b16 %v2847, %v2839
        %v3544 = vpack.c.b16 %v2848, %v2840
        %v3545 = vpack.c.b16 %v2849, %v2841
        %v3546 = vpack.c.b16 %v2850, %v2842
        %v3547 = vpack.c.b16 %v2851, %v2843
        %v3548 = vpack.c.b16 %v2860, %v2852
        %v3549 = vpack.c.b16 %v2861, %v2853
        %v3550 = vpack.c.b16 %v2862, %v2854
        %v3551 = vpack.c.b16 %v2863, %v2855
        %v3552 = vpack.c.b16 %v2864, %v2856
        %v3553 = vpack.c.b16 %v2865, %v2857
        %v3554 = vpack.c.b16 %v2866, %v2858
        %v3555 = vpack.c.b16 %v2867, %v2859
        %v3556 = vpack.c.b16 %v2876, %v2868
        %v3557 = vpack.c.b16 %v2877, %v2869
        %v3558 = vpack.c.b16 %v2878, %v2870
        %v3559 = vpack.c.b16 %v2879, %v2871
        %v3560 = vpack.c.b16 %v2880, %v2872
        %v3561 = vpack.c.b16 %v2881, %v2873
        %v3562 = vpack.c.b16 %v2882, %v2874
        %v3563 = vpack.c.b16 %v2883, %v2875
        %v3564 = vpack.c.b16 %v2892, %v2884
        %v3565 = vpack.c.b16 %v2893, %v2885
        %v3566 = vpack.c.b16 %v2894, %v2886
        %v3567 = vpack.c.b16 %v2895, %v2887
        %v3568 = vpack.c.b16 %v2896, %v2888
        %v3569 = vpack.c.b16 %v2897, %v2889
        %v3570 = vpack.c.b16 %v2898, %v2890
        %v3571 = vpack.c.b16 %v2899, %v2891
        %v3572 = vpack.c.b16 %v2908, %v2900
        %v3573 = vpack.c.b16 %v2909, %v2901
        %v3574 = vpack.c.b16 %v2910, %v2902
        %v3575 = vpack.c.b16 %v2911, %v2903
        %v3576 = vpack.c.b16 %v2912, %v2904
        %v3577 = vpack.c.b16 %v2913, %v2905
        %v3578 = vpack.c.b16 %v2914, %v2906
        %v3579 = vpack.c.b16 %v2915, %v2907
        %v3580 = vpack.c.b16 %v2924, %v2916
        %v3581 = vpack.c.b16 %v2925, %v2917
        %v3582 = vpack.c.b16 %v2926, %v2918
        %v3583 = vpack.c.b16 %v2927, %v2919
        %v3584 = vpack.c.b16 %v2928, %v2920
        %v3585 = vpack.c.b16 %v2929, %v2921
        %v3586 = vpack.c.b16 %v2930, %v2922
        %v3587 = vpack.c.b16 %v2931, %v2923
        %v3588 = vpack.c.b16 %v2940, %v2932
        %v3589 = vpack.c.b16 %v2941, %v2933
        %v3590 = vpack.c.b16 %v2942, %v2934
        %v3591 = vpack.c.b16 %v2943, %v2935
        %v3592 = vpack.c.b16 %v2944, %v2936
        %v3593 = vpack.c.b16 %v2945, %v2937
        %v3594 = vpack.c.b16 %v2946, %v2938
        %v3595 = vpack.c.b16 %v2947, %v2939
        %v3596 = vpack.c.b16 %v2956, %v2948
        %v3597 = vpack.c.b16 %v2957, %v2949
        %v3598 = vpack.c.b16 %v2958, %v2950
        %v3599 = vpack.c.b16 %v2959, %v2951
        %v3600 = vpack.c.b16 %v2960, %v2952
        %v3601 = vpack.c.b16 %v2961, %v2953
        %v3602 = vpack.c.b16 %v2962, %v2954
        %v3603 = vpack.c.b16 %v2963, %v2955
        %v3604 = vpack.c.b16 %v2972, %v2964
        %v3605 = vpack.c.b16 %v2973, %v2965
        %v3606 = vpack.c.b16 %v2974, %v2966
        %v3607 = vpack.c.b16 %v2975, %v2967
        %v3608 = vpack.c.b16 %v2976, %v2968
        %v3609 = vpack.c.b16 %v2977, %v2969
        %v3610 = vpack.c.b16 %v2978, %v2970
        %v3611 = vpack.c.b16 %v2979, %v2971
        %v3612 = vpack.c.b16 %v2988, %v2980
        %v3613 = vpack.c.b16 %v2989, %v2981
        %v3614 = vpack.c.b16 %v2990, %v2982
        %v3615 = vpack.c.b16 %v2991, %v2983
        %v3616 = vpack.c.b16 %v2992, %v2984
        %v3617 = vpack.c.b16 %v2993, %v2985
        %v3618 = vpack.c.b16 %v2994, %v2986
        %v3619 = vpack.c.b16 %v2995, %v2987
        %v3620 = vpack.c.b16 %v3004, %v2996
        %v3621 = vpack.c.b16 %v3005, %v2997
        %v3622 = vpack.c.b16 %v3006, %v2998
        %v3623 = vpack.c.b16 %v3007, %v2999
        %v3624 = vpack.c.b16 %v3008, %v3000
        %v3625 = vpack.c.b16 %v3009, %v3001
        %v3626 = vpack.c.b16 %v3010, %v3002
        %v3627 = vpack.c.b16 %v3011, %v3003
        %v3628 = vpack.c.b16 %v3020, %v3012
        %v3629 = vpack.c.b16 %v3021, %v3013
        %v3630 = vpack.c.b16 %v3022, %v3014
        %v3631 = vpack.c.b16 %v3023, %v3015
        %v3632 = vpack.c.b16 %v3024, %v3016
        %v3633 = vpack.c.b16 %v3025, %v3017
        %v3634 = vpack.c.b16 %v3026, %v3018
        %v3635 = vpack.c.b16 %v3027, %v3019
        %v3636 = vpack.c.b16 %v3036, %v3028
        %v3637 = vpack.c.b16 %v3037, %v3029
        %v3638 = vpack.c.b16 %v3038, %v3030
        %v3639 = vpack.c.b16 %v3039, %v3031
        %v3640 = vpack.c.b16 %v3040, %v3032
        %v3641 = vpack.c.b16 %v3041, %v3033
        %v3642 = vpack.c.b16 %v3042, %v3034
        %v3643 = vpack.c.b16 %v3043, %v3035
        %v3644 = vpack.c.b16 %v3052, %v3044
        %v3645 = vpack.c.b16 %v3053, %v3045
        %v3646 = vpack.c.b16 %v3054, %v3046
        %v3647 = vpack.c.b16 %v3055, %v3047
        %v3648 = vpack.c.b16 %v3056, %v3048
        %v3649 = vpack.c.b16 %v3057, %v3049
        %v3650 = vpack.c.b16 %v3058, %v3050
        %v3651 = vpack.c.b16 %v3059, %v3051
        %v3652 = vpack.c.b16 %v3068, %v3060
        %v3653 = vpack.c.b16 %v3069, %v3061
        %v3654 = vpack.c.b16 %v3070, %v3062
        %v3655 = vpack.c.b16 %v3071, %v3063
        %v3656 = vpack.c.b16 %v3072, %v3064
        %v3657 = vpack.c.b16 %v3073, %v3065
        %v3658 = vpack.c.b16 %v3074, %v3066
        %v3659 = vpack.c.b16 %v3075, %v3067
        %v3660 = vpack.c.b16 %v3084, %v3076
        %v3661 = vpack.c.b16 %v3085, %v3077
        %v3662 = vpack.c.b16 %v3086, %v3078
        %v3663 = vpack.c.b16 %v3087, %v3079
        %v3664 = vpack.c.b16 %v3088, %v3080
        %v3665 = vpack.c.b16 %v3089, %v3081
        %v3666 = vpack.c.b16 %v3090, %v3082
        %v3667 = vpack.c.b16 %v3091, %v3083
        %v3668 = vpack.c.b16 %v3100, %v3092
        %v3669 = vpack.c.b16 %v3101, %v3093
        %v3670 = vpack.c.b16 %v3102, %v3094
        %v3671 = vpack.c.b16 %v3103, %v3095
        %v3672 = vpack.c.b16 %v3104, %v3096
        %v3673 = vpack.c.b16 %v3105, %v3097
        %v3674 = vpack.c.b16 %v3106, %v3098
        %v3675 = vpack.c.b16 %v3107, %v3099
        %v3676 = vpack.c.b16 %v3116, %v3108
        %v3677 = vpack.c.b16 %v3117, %v3109
        %v3678 = vpack.c.b16 %v3118, %v3110
        %v3679 = vpack.c.b16 %v3119, %v3111
        %v3680 = vpack.c.b16 %v3120, %v3112
        %v3681 = vpack.c.b16 %v3121, %v3113
        %v3682 = vpack.c.b16 %v3122, %v3114
        %v3683 = vpack.c.b16 %v3123, %v3115
        %v3684 = vpack.c.b16 %v3132, %v3124
        %v3685 = vpack.c.b16 %v3133, %v3125
        %v3686 = vpack.c.b16 %v3134, %v3126
        %v3687 = vpack.c.b16 %v3135, %v3127
        %v3688 = vpack.c.b16 %v3136, %v3128
        %v3689 = vpack.c.b16 %v3137, %v3129
        %v3690 = vpack.c.b16 %v3138, %v3130
        %v3691 = vpack.c.b16 %v3139, %v3131
        %v3692 = vpack.c.b16 %v3148, %v3140
        %v3693 = vpack.c.b16 %v3149, %v3141
        %v3694 = vpack.c.b16 %v3150, %v3142
        %v3695 = vpack.c.b16 %v3151, %v3143
        %v3696 = vpack.c.b16 %v3152, %v3144
        %v3697 = vpack.c.b16 %v3153, %v3145
        %v3698 = vpack.c.b16 %v3154, %v3146
        %v3699 = vpack.c.b16 %v3155, %v3147
        %v3700 = vpack.c.b16 %v3164, %v3156
        %v3701 = vpack.c.b16 %v3165, %v3157
        %v3702 = vpack.c.b16 %v3166, %v3158
        %v3703 = vpack.c.b16 %v3167, %v3159
        %v3704 = vpack.c.b16 %v3168, %v3160
        %v3705 = vpack.c.b16 %v3169, %v3161
        %v3706 = vpack.c.b16 %v3170, %v3162
        %v3707 = vpack.c.b16 %v3171, %v3163
        %v3708 = vpack.c.b16 %v3180, %v3172
        %v3709 = vpack.c.b16 %v3181, %v3173
        %v3710 = vpack.c.b16 %v3182, %v3174
        %v3711 = vpack.c.b16 %v3183, %v3175
        %v3712 = vpack.c.b16 %v3184, %v3176
        %v3713 = vpack.c.b16 %v3185, %v3177
        %v3714 = vpack.c.b16 %v3186, %v3178
        %v3715 = vpack.c.b16 %v3187, %v3179
        %v3716 = vpack.c.b16 %v3196, %v3188
        %v3717 = vpack.c.b16 %v3197, %v3189
        %v3718 = vpack.c.b16 %v3198, %v3190
        %v3719 = vpack.c.b16 %v3199, %v3191
        %v3720 = vpack.c.b16 %v3200, %v3192
        %v3721 = vpack.c.b16 %v3201, %v3193
        %v3722 = vpack.c.b16 %v3202, %v3194
        %v3723 = vpack.c.b16 %v3203, %v3195
        %v3724 = vpack.c.b16 %v3212, %v3204
        %v3725 = vpack.c.b16 %v3213, %v3205
        %v3726 = vpack.c.b16 %v3214, %v3206
        %v3727 = vpack.c.b16 %v3215, %v3207
        %v3728 = vpack.c.b16 %v3216, %v3208
        %v3729 = vpack.c.b16 %v3217, %v3209
        %v3730 = vpack.c.b16 %v3218, %v3210
        %v3731 = vpack.c.b16 %v3219, %v3211
        %4244 = vmatpush.bf16.msra.mxu0 %v3276
        %4245 = vmatpush.bf16.msra.mxu0 %v3268
        %4246 = vmatpush.bf16.msra.mxu0 %v3260
        %4247 = vmatpush.bf16.msra.mxu0 %v3252
        %4248 = vmatpush.bf16.msra.mxu0 %v3244
        %4249 = vmatpush.bf16.msra.mxu0 %v3236
        %4250 = vmatpush.bf16.msra.mxu0 %v3228
        %4251 = vmatpush.bf16.msra.mxu0 %v3220
        %4252 = vmatmul.bf16.gmra.mxu0 %v1090
        %v4253 = vpop.f32.mrf.mxu0
        %v4254 = vadd.f32 %v1668, %v4253
        %v4255 = vpop.f32.mrf.mxu0
        %v4256 = vadd.f32 %v1668, %v4255
        %4257 = vmatmul.bf16.gmra.mxu0 %v1098
        %v4258 = vpop.f32.mrf.mxu0
        %v4259 = vadd.f32 %v1668, %v4258
        %v4260 = vpop.f32.mrf.mxu0
        %v4261 = vadd.f32 %v1668, %v4260
        %4262 = vmatmul.bf16.gmra.mxu0 %v1106
        %v4263 = vpop.f32.mrf.mxu0
        %v4264 = vadd.f32 %v1668, %v4263
        %v4265 = vpop.f32.mrf.mxu0
        %v4266 = vadd.f32 %v1668, %v4265
        %4267 = vmatmul.bf16.gmra.mxu0 %v1114
        %v4268 = vpop.f32.mrf.mxu0
        %v4269 = vadd.f32 %v1668, %v4268
        %v4270 = vpop.f32.mrf.mxu0
        %v4271 = vadd.f32 %v1668, %v4270
        %4272 = vmatmul.bf16.gmra.mxu0 %v1122
        %v4273 = vpop.f32.mrf.mxu0
        %v4274 = vadd.f32 %v1668, %v4273
        %v4275 = vpop.f32.mrf.mxu0
        %v4276 = vadd.f32 %v1668, %v4275
        %4277 = vmatmul.bf16.gmra.mxu0 %v1130
        %v4278 = vpop.f32.mrf.mxu0
        %v4279 = vadd.f32 %v1668, %v4278
        %v4280 = vpop.f32.mrf.mxu0
        %v4281 = vadd.f32 %v1668, %v4280
        %4282 = vmatmul.bf16.gmra.mxu0 %v1138
        %v4283 = vpop.f32.mrf.mxu0
        %v4284 = vadd.f32 %v1668, %v4283
        %v4285 = vpop.f32.mrf.mxu0
        %v4286 = vadd.f32 %v1668, %v4285
        %4287 = vmatmul.bf16.gmra.mxu0 %v1146
        %v4288 = vpop.f32.mrf.mxu0
        %v4289 = vadd.f32 %v1668, %v4288
        %v4290 = vpop.f32.mrf.mxu0
        %v4291 = vadd.f32 %v1668, %v4290
        %4292 = vdwg.mxu0
        %4293 = vmatpush.bf16.msra.mxu0 %v3340
        %4294 = vmatpush.bf16.msra.mxu0 %v3332
        %4295 = vmatpush.bf16.msra.mxu0 %v3324
        %4296 = vmatpush.bf16.msra.mxu0 %v3316
        %4297 = vmatpush.bf16.msra.mxu0 %v3308
        %4298 = vmatpush.bf16.msra.mxu0 %v3300
        %4299 = vmatpush.bf16.msra.mxu0 %v3292
        %4300 = vmatpush.bf16.msra.mxu0 %v3284
        %4301 = vmatmul.bf16.gmra.mxu0 %v1091
        %v4302 = vpop.f32.mrf.mxu0
        %v4303 = vadd.f32 %v4254, %v4302
        %v4304 = vpop.f32.mrf.mxu0
        %v4305 = vadd.f32 %v4256, %v4304
        %4306 = vmatmul.bf16.gmra.mxu0 %v1099
        %v4307 = vpop.f32.mrf.mxu0
        %v4308 = vadd.f32 %v4259, %v4307
        %v4309 = vpop.f32.mrf.mxu0
        %v4310 = vadd.f32 %v4261, %v4309
        %4311 = vmatmul.bf16.gmra.mxu0 %v1107
        %v4312 = vpop.f32.mrf.mxu0
        %v4313 = vadd.f32 %v4264, %v4312
        %v4314 = vpop.f32.mrf.mxu0
        %v4315 = vadd.f32 %v4266, %v4314
        %4316 = vmatmul.bf16.gmra.mxu0 %v1115
        %v4317 = vpop.f32.mrf.mxu0
        %v4318 = vadd.f32 %v4269, %v4317
        %v4319 = vpop.f32.mrf.mxu0
        %v4320 = vadd.f32 %v4271, %v4319
        %4321 = vmatmul.bf16.gmra.mxu0 %v1123
        %v4322 = vpop.f32.mrf.mxu0
        %v4323 = vadd.f32 %v4274, %v4322
        %v4324 = vpop.f32.mrf.mxu0
        %v4325 = vadd.f32 %v4276, %v4324
        %4326 = vmatmul.bf16.gmra.mxu0 %v1131
        %v4327 = vpop.f32.mrf.mxu0
        %v4328 = vadd.f32 %v4279, %v4327
        %v4329 = vpop.f32.mrf.mxu0
        %v4330 = vadd.f32 %v4281, %v4329
        %4331 = vmatmul.bf16.gmra.mxu0 %v1139
        %v4332 = vpop.f32.mrf.mxu0
        %v4333 = vadd.f32 %v4284, %v4332
        %v4334 = vpop.f32.mrf.mxu0
        %v4335 = vadd.f32 %v4286, %v4334
        %4336 = vmatmul.bf16.gmra.mxu0 %v1147
        %v4337 = vpop.f32.mrf.mxu0
        %v4338 = vadd.f32 %v4289, %v4337
        %v4339 = vpop.f32.mrf.mxu0
        %v4340 = vadd.f32 %v4291, %v4339
        %4341 = vdwg.mxu0
        %4342 = vmatpush.bf16.msra.mxu0 %v3404
        %4343 = vmatpush.bf16.msra.mxu0 %v3396
        %4344 = vmatpush.bf16.msra.mxu0 %v3388
        %4345 = vmatpush.bf16.msra.mxu0 %v3380
        %4346 = vmatpush.bf16.msra.mxu0 %v3372
        %4347 = vmatpush.bf16.msra.mxu0 %v3364
        %4348 = vmatpush.bf16.msra.mxu0 %v3356
        %4349 = vmatpush.bf16.msra.mxu0 %v3348
        %4350 = vmatmul.bf16.gmra.mxu0 %v1092
        %v4351 = vpop.f32.mrf.mxu0
        %v4352 = vadd.f32 %v4303, %v4351
        %v4353 = vpop.f32.mrf.mxu0
        %v4354 = vadd.f32 %v4305, %v4353
        %4355 = vmatmul.bf16.gmra.mxu0 %v1100
        %v4356 = vpop.f32.mrf.mxu0
        %v4357 = vadd.f32 %v4308, %v4356
        %v4358 = vpop.f32.mrf.mxu0
        %v4359 = vadd.f32 %v4310, %v4358
        %4360 = vmatmul.bf16.gmra.mxu0 %v1108
        %v4361 = vpop.f32.mrf.mxu0
        %v4362 = vadd.f32 %v4313, %v4361
        %v4363 = vpop.f32.mrf.mxu0
        %v4364 = vadd.f32 %v4315, %v4363
        %4365 = vmatmul.bf16.gmra.mxu0 %v1116
        %v4366 = vpop.f32.mrf.mxu0
        %v4367 = vadd.f32 %v4318, %v4366
        %v4368 = vpop.f32.mrf.mxu0
        %v4369 = vadd.f32 %v4320, %v4368
        %4370 = vmatmul.bf16.gmra.mxu0 %v1124
        %v4371 = vpop.f32.mrf.mxu0
        %v4372 = vadd.f32 %v4323, %v4371
        %v4373 = vpop.f32.mrf.mxu0
        %v4374 = vadd.f32 %v4325, %v4373
        %4375 = vmatmul.bf16.gmra.mxu0 %v1132
        %v4376 = vpop.f32.mrf.mxu0
        %v4377 = vadd.f32 %v4328, %v4376
        %v4378 = vpop.f32.mrf.mxu0
        %v4379 = vadd.f32 %v4330, %v4378
        %4380 = vmatmul.bf16.gmra.mxu0 %v1140
        %v4381 = vpop.f32.mrf.mxu0
        %v4382 = vadd.f32 %v4333, %v4381
        %v4383 = vpop.f32.mrf.mxu0
        %v4384 = vadd.f32 %v4335, %v4383
        %4385 = vmatmul.bf16.gmra.mxu0 %v1148
        %v4386 = vpop.f32.mrf.mxu0
        %v4387 = vadd.f32 %v4338, %v4386
        %v4388 = vpop.f32.mrf.mxu0
        %v4389 = vadd.f32 %v4340, %v4388
        %4390 = vdwg.mxu0
        %4391 = vmatpush.bf16.msra.mxu0 %v3468
        %4392 = vmatpush.bf16.msra.mxu0 %v3460
        %4393 = vmatpush.bf16.msra.mxu0 %v3452
        %4394 = vmatpush.bf16.msra.mxu0 %v3444
        %4395 = vmatpush.bf16.msra.mxu0 %v3436
        %4396 = vmatpush.bf16.msra.mxu0 %v3428
        %4397 = vmatpush.bf16.msra.mxu0 %v3420
        %4398 = vmatpush.bf16.msra.mxu0 %v3412
        %4399 = vmatmul.bf16.gmra.mxu0 %v1093
        %v4400 = vpop.f32.mrf.mxu0
        %v4401 = vadd.f32 %v4352, %v4400
        %v4402 = vpop.f32.mrf.mxu0
        %v4403 = vadd.f32 %v4354, %v4402
        %4404 = vmatmul.bf16.gmra.mxu0 %v1101
        %v4405 = vpop.f32.mrf.mxu0
        %v4406 = vadd.f32 %v4357, %v4405
        %v4407 = vpop.f32.mrf.mxu0
        %v4408 = vadd.f32 %v4359, %v4407
        %4409 = vmatmul.bf16.gmra.mxu0 %v1109
        %v4410 = vpop.f32.mrf.mxu0
        %v4411 = vadd.f32 %v4362, %v4410
        %v4412 = vpop.f32.mrf.mxu0
        %v4413 = vadd.f32 %v4364, %v4412
        %4414 = vmatmul.bf16.gmra.mxu0 %v1117
        %v4415 = vpop.f32.mrf.mxu0
        %v4416 = vadd.f32 %v4367, %v4415
        %v4417 = vpop.f32.mrf.mxu0
        %v4418 = vadd.f32 %v4369, %v4417
        %4419 = vmatmul.bf16.gmra.mxu0 %v1125
        %v4420 = vpop.f32.mrf.mxu0
        %v4421 = vadd.f32 %v4372, %v4420
        %v4422 = vpop.f32.mrf.mxu0
        %v4423 = vadd.f32 %v4374, %v4422
        %4424 = vmatmul.bf16.gmra.mxu0 %v1133
        %v4425 = vpop.f32.mrf.mxu0
        %v4426 = vadd.f32 %v4377, %v4425
        %v4427 = vpop.f32.mrf.mxu0
        %v4428 = vadd.f32 %v4379, %v4427
        %4429 = vmatmul.bf16.gmra.mxu0 %v1141
        %v4430 = vpop.f32.mrf.mxu0
        %v4431 = vadd.f32 %v4382, %v4430
        %v4432 = vpop.f32.mrf.mxu0
        %v4433 = vadd.f32 %v4384, %v4432
        %4434 = vmatmul.bf16.gmra.mxu0 %v1149
        %v4435 = vpop.f32.mrf.mxu0
        %v4436 = vadd.f32 %v4387, %v4435
        %v4437 = vpop.f32.mrf.mxu0
        %v4438 = vadd.f32 %v4389, %v4437
        %4439 = vdwg.mxu0
        %4440 = vmatpush.bf16.msra.mxu0 %v3532
        %4441 = vmatpush.bf16.msra.mxu0 %v3524
        %4442 = vmatpush.bf16.msra.mxu0 %v3516
        %4443 = vmatpush.bf16.msra.mxu0 %v3508
        %4444 = vmatpush.bf16.msra.mxu0 %v3500
        %4445 = vmatpush.bf16.msra.mxu0 %v3492
        %4446 = vmatpush.bf16.msra.mxu0 %v3484
        %4447 = vmatpush.bf16.msra.mxu0 %v3476
        %4448 = vmatmul.bf16.gmra.mxu0 %v1094
        %v4449 = vpop.f32.mrf.mxu0
        %v4450 = vadd.f32 %v4401, %v4449
        %v4451 = vpop.f32.mrf.mxu0
        %v4452 = vadd.f32 %v4403, %v4451
        %4453 = vmatmul.bf16.gmra.mxu0 %v1102
        %v4454 = vpop.f32.mrf.mxu0
        %v4455 = vadd.f32 %v4406, %v4454
        %v4456 = vpop.f32.mrf.mxu0
        %v4457 = vadd.f32 %v4408, %v4456
        %4458 = vmatmul.bf16.gmra.mxu0 %v1110
        %v4459 = vpop.f32.mrf.mxu0
        %v4460 = vadd.f32 %v4411, %v4459
        %v4461 = vpop.f32.mrf.mxu0
        %v4462 = vadd.f32 %v4413, %v4461
        %4463 = vmatmul.bf16.gmra.mxu0 %v1118
        %v4464 = vpop.f32.mrf.mxu0
        %v4465 = vadd.f32 %v4416, %v4464
        %v4466 = vpop.f32.mrf.mxu0
        %v4467 = vadd.f32 %v4418, %v4466
        %4468 = vmatmul.bf16.gmra.mxu0 %v1126
        %v4469 = vpop.f32.mrf.mxu0
        %v4470 = vadd.f32 %v4421, %v4469
        %v4471 = vpop.f32.mrf.mxu0
        %v4472 = vadd.f32 %v4423, %v4471
        %4473 = vmatmul.bf16.gmra.mxu0 %v1134
        %v4474 = vpop.f32.mrf.mxu0
        %v4475 = vadd.f32 %v4426, %v4474
        %v4476 = vpop.f32.mrf.mxu0
        %v4477 = vadd.f32 %v4428, %v4476
        %4478 = vmatmul.bf16.gmra.mxu0 %v1142
        %v4479 = vpop.f32.mrf.mxu0
        %v4480 = vadd.f32 %v4431, %v4479
        %v4481 = vpop.f32.mrf.mxu0
        %v4482 = vadd.f32 %v4433, %v4481
        %4483 = vmatmul.bf16.gmra.mxu0 %v1150
        %v4484 = vpop.f32.mrf.mxu0
        %v4485 = vadd.f32 %v4436, %v4484
        %v4486 = vpop.f32.mrf.mxu0
        %v4487 = vadd.f32 %v4438, %v4486
        %4488 = vdwg.mxu0
        %4489 = vmatpush.bf16.msra.mxu0 %v3596
        %4490 = vmatpush.bf16.msra.mxu0 %v3588
        %4491 = vmatpush.bf16.msra.mxu0 %v3580
        %4492 = vmatpush.bf16.msra.mxu0 %v3572
        %4493 = vmatpush.bf16.msra.mxu0 %v3564
        %4494 = vmatpush.bf16.msra.mxu0 %v3556
        %4495 = vmatpush.bf16.msra.mxu0 %v3548
        %4496 = vmatpush.bf16.msra.mxu0 %v3540
        %4497 = vmatmul.bf16.gmra.mxu0 %v1095
        %v4498 = vpop.f32.mrf.mxu0
        %v4499 = vadd.f32 %v4450, %v4498
        %v4500 = vpop.f32.mrf.mxu0
        %v4501 = vadd.f32 %v4452, %v4500
        %4502 = vmatmul.bf16.gmra.mxu0 %v1103
        %v4503 = vpop.f32.mrf.mxu0
        %v4504 = vadd.f32 %v4455, %v4503
        %v4505 = vpop.f32.mrf.mxu0
        %v4506 = vadd.f32 %v4457, %v4505
        %4507 = vmatmul.bf16.gmra.mxu0 %v1111
        %v4508 = vpop.f32.mrf.mxu0
        %v4509 = vadd.f32 %v4460, %v4508
        %v4510 = vpop.f32.mrf.mxu0
        %v4511 = vadd.f32 %v4462, %v4510
        %4512 = vmatmul.bf16.gmra.mxu0 %v1119
        %v4513 = vpop.f32.mrf.mxu0
        %v4514 = vadd.f32 %v4465, %v4513
        %v4515 = vpop.f32.mrf.mxu0
        %v4516 = vadd.f32 %v4467, %v4515
        %4517 = vmatmul.bf16.gmra.mxu0 %v1127
        %v4518 = vpop.f32.mrf.mxu0
        %v4519 = vadd.f32 %v4470, %v4518
        %v4520 = vpop.f32.mrf.mxu0
        %v4521 = vadd.f32 %v4472, %v4520
        %4522 = vmatmul.bf16.gmra.mxu0 %v1135
        %v4523 = vpop.f32.mrf.mxu0
        %v4524 = vadd.f32 %v4475, %v4523
        %v4525 = vpop.f32.mrf.mxu0
        %v4526 = vadd.f32 %v4477, %v4525
        %4527 = vmatmul.bf16.gmra.mxu0 %v1143
        %v4528 = vpop.f32.mrf.mxu0
        %v4529 = vadd.f32 %v4480, %v4528
        %v4530 = vpop.f32.mrf.mxu0
        %v4531 = vadd.f32 %v4482, %v4530
        %4532 = vmatmul.bf16.gmra.mxu0 %v1151
        %v4533 = vpop.f32.mrf.mxu0
        %v4534 = vadd.f32 %v4485, %v4533
        %v4535 = vpop.f32.mrf.mxu0
        %v4536 = vadd.f32 %v4487, %v4535
        %4537 = vdwg.mxu0
        %4538 = vmatpush.bf16.msra.mxu0 %v3660
        %4539 = vmatpush.bf16.msra.mxu0 %v3652
        %4540 = vmatpush.bf16.msra.mxu0 %v3644
        %4541 = vmatpush.bf16.msra.mxu0 %v3636
        %4542 = vmatpush.bf16.msra.mxu0 %v3628
        %4543 = vmatpush.bf16.msra.mxu0 %v3620
        %4544 = vmatpush.bf16.msra.mxu0 %v3612
        %4545 = vmatpush.bf16.msra.mxu0 %v3604
        %4546 = vmatmul.bf16.gmra.mxu0 %v1096
        %v4547 = vpop.f32.mrf.mxu0
        %v4548 = vadd.f32 %v4499, %v4547
        %v4549 = vpop.f32.mrf.mxu0
        %v4550 = vadd.f32 %v4501, %v4549
        %4551 = vmatmul.bf16.gmra.mxu0 %v1104
        %v4552 = vpop.f32.mrf.mxu0
        %v4553 = vadd.f32 %v4504, %v4552
        %v4554 = vpop.f32.mrf.mxu0
        %v4555 = vadd.f32 %v4506, %v4554
        %4556 = vmatmul.bf16.gmra.mxu0 %v1112
        %v4557 = vpop.f32.mrf.mxu0
        %v4558 = vadd.f32 %v4509, %v4557
        %v4559 = vpop.f32.mrf.mxu0
        %v4560 = vadd.f32 %v4511, %v4559
        %4561 = vmatmul.bf16.gmra.mxu0 %v1120
        %v4562 = vpop.f32.mrf.mxu0
        %v4563 = vadd.f32 %v4514, %v4562
        %v4564 = vpop.f32.mrf.mxu0
        %v4565 = vadd.f32 %v4516, %v4564
        %4566 = vmatmul.bf16.gmra.mxu0 %v1128
        %v4567 = vpop.f32.mrf.mxu0
        %v4568 = vadd.f32 %v4519, %v4567
        %v4569 = vpop.f32.mrf.mxu0
        %v4570 = vadd.f32 %v4521, %v4569
        %4571 = vmatmul.bf16.gmra.mxu0 %v1136
        %v4572 = vpop.f32.mrf.mxu0
        %v4573 = vadd.f32 %v4524, %v4572
        %v4574 = vpop.f32.mrf.mxu0
        %v4575 = vadd.f32 %v4526, %v4574
        %4576 = vmatmul.bf16.gmra.mxu0 %v1144
        %v4577 = vpop.f32.mrf.mxu0
        %v4578 = vadd.f32 %v4529, %v4577
        %v4579 = vpop.f32.mrf.mxu0
        %v4580 = vadd.f32 %v4531, %v4579
        %4581 = vmatmul.bf16.gmra.mxu0 %v1152
        %v4582 = vpop.f32.mrf.mxu0
        %v4583 = vadd.f32 %v4534, %v4582
        %v4584 = vpop.f32.mrf.mxu0
        %v4585 = vadd.f32 %v4536, %v4584
        %4586 = vdwg.mxu0
        %4587 = vmatpush.bf16.msra.mxu0 %v3724
        %4588 = vmatpush.bf16.msra.mxu0 %v3716
        %4589 = vmatpush.bf16.msra.mxu0 %v3708
        %4590 = vmatpush.bf16.msra.mxu0 %v3700
        %4591 = vmatpush.bf16.msra.mxu0 %v3692
        %4592 = vmatpush.bf16.msra.mxu0 %v3684
        %4593 = vmatpush.bf16.msra.mxu0 %v3676
        %4594 = vmatpush.bf16.msra.mxu0 %v3668
        %4595 = vmatmul.bf16.gmra.mxu0 %v1097
        %v4596 = vpop.f32.mrf.mxu0
        %v4597 = vadd.f32 %v4548, %v4596
        %v4598 = vpop.f32.mrf.mxu0
        %v4599 = vadd.f32 %v4550, %v4598
        %4600 = vmatmul.bf16.gmra.mxu0 %v1105
        %v4601 = vpop.f32.mrf.mxu0
        %v4602 = vadd.f32 %v4553, %v4601
        %v4603 = vpop.f32.mrf.mxu0
        %v4604 = vadd.f32 %v4555, %v4603
        %4605 = vmatmul.bf16.gmra.mxu0 %v1113
        %v4606 = vpop.f32.mrf.mxu0
        %v4607 = vadd.f32 %v4558, %v4606
        %v4608 = vpop.f32.mrf.mxu0
        %v4609 = vadd.f32 %v4560, %v4608
        %4610 = vmatmul.bf16.gmra.mxu0 %v1121
        %v4611 = vpop.f32.mrf.mxu0
        %v4612 = vadd.f32 %v4563, %v4611
        %v4613 = vpop.f32.mrf.mxu0
        %v4614 = vadd.f32 %v4565, %v4613
        %4615 = vmatmul.bf16.gmra.mxu0 %v1129
        %v4616 = vpop.f32.mrf.mxu0
        %v4617 = vadd.f32 %v4568, %v4616
        %v4618 = vpop.f32.mrf.mxu0
        %v4619 = vadd.f32 %v4570, %v4618
        %4620 = vmatmul.bf16.gmra.mxu0 %v1137
        %v4621 = vpop.f32.mrf.mxu0
        %v4622 = vadd.f32 %v4573, %v4621
        %v4623 = vpop.f32.mrf.mxu0
        %v4624 = vadd.f32 %v4575, %v4623
        %4625 = vmatmul.bf16.gmra.mxu0 %v1145
        %v4626 = vpop.f32.mrf.mxu0
        %v4627 = vadd.f32 %v4578, %v4626
        %v4628 = vpop.f32.mrf.mxu0
        %v4629 = vadd.f32 %v4580, %v4628
        %4630 = vmatmul.bf16.gmra.mxu0 %v1153
        %v4631 = vpop.f32.mrf.mxu0
        %v4632 = vadd.f32 %v4583, %v4631
        %v4633 = vpop.f32.mrf.mxu0
        %v4634 = vadd.f32 %v4585, %v4633
        %4635 = vdwg.mxu0
        %4636 = vmatpush.bf16.msra.mxu0 %v3277
        %4637 = vmatpush.bf16.msra.mxu0 %v3269
        %4638 = vmatpush.bf16.msra.mxu0 %v3261
        %4639 = vmatpush.bf16.msra.mxu0 %v3253
        %4640 = vmatpush.bf16.msra.mxu0 %v3245
        %4641 = vmatpush.bf16.msra.mxu0 %v3237
        %4642 = vmatpush.bf16.msra.mxu0 %v3229
        %4643 = vmatpush.bf16.msra.mxu0 %v3221
        %4644 = vmatmul.bf16.gmra.mxu0 %v1090
        %v4645 = vpop.f32.mrf.mxu0
        %v4646 = vadd.f32 %v1669, %v4645
        %v4647 = vpop.f32.mrf.mxu0
        %v4648 = vadd.f32 %v1669, %v4647
        %4649 = vmatmul.bf16.gmra.mxu0 %v1098
        %v4650 = vpop.f32.mrf.mxu0
        %v4651 = vadd.f32 %v1669, %v4650
        %v4652 = vpop.f32.mrf.mxu0
        %v4653 = vadd.f32 %v1669, %v4652
        %4654 = vmatmul.bf16.gmra.mxu0 %v1106
        %v4655 = vpop.f32.mrf.mxu0
        %v4656 = vadd.f32 %v1669, %v4655
        %v4657 = vpop.f32.mrf.mxu0
        %v4658 = vadd.f32 %v1669, %v4657
        %4659 = vmatmul.bf16.gmra.mxu0 %v1114
        %v4660 = vpop.f32.mrf.mxu0
        %v4661 = vadd.f32 %v1669, %v4660
        %v4662 = vpop.f32.mrf.mxu0
        %v4663 = vadd.f32 %v1669, %v4662
        %4664 = vmatmul.bf16.gmra.mxu0 %v1122
        %v4665 = vpop.f32.mrf.mxu0
        %v4666 = vadd.f32 %v1669, %v4665
        %v4667 = vpop.f32.mrf.mxu0
        %v4668 = vadd.f32 %v1669, %v4667
        %4669 = vmatmul.bf16.gmra.mxu0 %v1130
        %v4670 = vpop.f32.mrf.mxu0
        %v4671 = vadd.f32 %v1669, %v4670
        %v4672 = vpop.f32.mrf.mxu0
        %v4673 = vadd.f32 %v1669, %v4672
        %4674 = vmatmul.bf16.gmra.mxu0 %v1138
        %v4675 = vpop.f32.mrf.mxu0
        %v4676 = vadd.f32 %v1669, %v4675
        %v4677 = vpop.f32.mrf.mxu0
        %v4678 = vadd.f32 %v1669, %v4677
        %4679 = vmatmul.bf16.gmra.mxu0 %v1146
        %v4680 = vpop.f32.mrf.mxu0
        %v4681 = vadd.f32 %v1669, %v4680
        %v4682 = vpop.f32.mrf.mxu0
        %v4683 = vadd.f32 %v1669, %v4682
        %4684 = vdwg.mxu0
        %4685 = vmatpush.bf16.msra.mxu0 %v3341
        %4686 = vmatpush.bf16.msra.mxu0 %v3333
        %4687 = vmatpush.bf16.msra.mxu0 %v3325
        %4688 = vmatpush.bf16.msra.mxu0 %v3317
        %4689 = vmatpush.bf16.msra.mxu0 %v3309
        %4690 = vmatpush.bf16.msra.mxu0 %v3301
        %4691 = vmatpush.bf16.msra.mxu0 %v3293
        %4692 = vmatpush.bf16.msra.mxu0 %v3285
        %4693 = vmatmul.bf16.gmra.mxu0 %v1091
        %v4694 = vpop.f32.mrf.mxu0
        %v4695 = vadd.f32 %v4646, %v4694
        %v4696 = vpop.f32.mrf.mxu0
        %v4697 = vadd.f32 %v4648, %v4696
        %4698 = vmatmul.bf16.gmra.mxu0 %v1099
        %v4699 = vpop.f32.mrf.mxu0
        %v4700 = vadd.f32 %v4651, %v4699
        %v4701 = vpop.f32.mrf.mxu0
        %v4702 = vadd.f32 %v4653, %v4701
        %4703 = vmatmul.bf16.gmra.mxu0 %v1107
        %v4704 = vpop.f32.mrf.mxu0
        %v4705 = vadd.f32 %v4656, %v4704
        %v4706 = vpop.f32.mrf.mxu0
        %v4707 = vadd.f32 %v4658, %v4706
        %4708 = vmatmul.bf16.gmra.mxu0 %v1115
        %v4709 = vpop.f32.mrf.mxu0
        %v4710 = vadd.f32 %v4661, %v4709
        %v4711 = vpop.f32.mrf.mxu0
        %v4712 = vadd.f32 %v4663, %v4711
        %4713 = vmatmul.bf16.gmra.mxu0 %v1123
        %v4714 = vpop.f32.mrf.mxu0
        %v4715 = vadd.f32 %v4666, %v4714
        %v4716 = vpop.f32.mrf.mxu0
        %v4717 = vadd.f32 %v4668, %v4716
        %4718 = vmatmul.bf16.gmra.mxu0 %v1131
        %v4719 = vpop.f32.mrf.mxu0
        %v4720 = vadd.f32 %v4671, %v4719
        %v4721 = vpop.f32.mrf.mxu0
        %v4722 = vadd.f32 %v4673, %v4721
        %4723 = vmatmul.bf16.gmra.mxu0 %v1139
        %v4724 = vpop.f32.mrf.mxu0
        %v4725 = vadd.f32 %v4676, %v4724
        %v4726 = vpop.f32.mrf.mxu0
        %v4727 = vadd.f32 %v4678, %v4726
        %4728 = vmatmul.bf16.gmra.mxu0 %v1147
        %v4729 = vpop.f32.mrf.mxu0
        %v4730 = vadd.f32 %v4681, %v4729
        %v4731 = vpop.f32.mrf.mxu0
        %v4732 = vadd.f32 %v4683, %v4731
        %4733 = vdwg.mxu0
        %4734 = vmatpush.bf16.msra.mxu0 %v3405
        %4735 = vmatpush.bf16.msra.mxu0 %v3397
        %4736 = vmatpush.bf16.msra.mxu0 %v3389
        %4737 = vmatpush.bf16.msra.mxu0 %v3381
        %4738 = vmatpush.bf16.msra.mxu0 %v3373
        %4739 = vmatpush.bf16.msra.mxu0 %v3365
        %4740 = vmatpush.bf16.msra.mxu0 %v3357
        %4741 = vmatpush.bf16.msra.mxu0 %v3349
        %4742 = vmatmul.bf16.gmra.mxu0 %v1092
        %v4743 = vpop.f32.mrf.mxu0
        %v4744 = vadd.f32 %v4695, %v4743
        %v4745 = vpop.f32.mrf.mxu0
        %v4746 = vadd.f32 %v4697, %v4745
        %4747 = vmatmul.bf16.gmra.mxu0 %v1100
        %v4748 = vpop.f32.mrf.mxu0
        %v4749 = vadd.f32 %v4700, %v4748
        %v4750 = vpop.f32.mrf.mxu0
        %v4751 = vadd.f32 %v4702, %v4750
        %4752 = vmatmul.bf16.gmra.mxu0 %v1108
        %v4753 = vpop.f32.mrf.mxu0
        %v4754 = vadd.f32 %v4705, %v4753
        %v4755 = vpop.f32.mrf.mxu0
        %v4756 = vadd.f32 %v4707, %v4755
        %4757 = vmatmul.bf16.gmra.mxu0 %v1116
        %v4758 = vpop.f32.mrf.mxu0
        %v4759 = vadd.f32 %v4710, %v4758
        %v4760 = vpop.f32.mrf.mxu0
        %v4761 = vadd.f32 %v4712, %v4760
        %4762 = vmatmul.bf16.gmra.mxu0 %v1124
        %v4763 = vpop.f32.mrf.mxu0
        %v4764 = vadd.f32 %v4715, %v4763
        %v4765 = vpop.f32.mrf.mxu0
        %v4766 = vadd.f32 %v4717, %v4765
        %4767 = vmatmul.bf16.gmra.mxu0 %v1132
        %v4768 = vpop.f32.mrf.mxu0
        %v4769 = vadd.f32 %v4720, %v4768
        %v4770 = vpop.f32.mrf.mxu0
        %v4771 = vadd.f32 %v4722, %v4770
        %4772 = vmatmul.bf16.gmra.mxu0 %v1140
        %v4773 = vpop.f32.mrf.mxu0
        %v4774 = vadd.f32 %v4725, %v4773
        %v4775 = vpop.f32.mrf.mxu0
        %v4776 = vadd.f32 %v4727, %v4775
        %4777 = vmatmul.bf16.gmra.mxu0 %v1148
        %v4778 = vpop.f32.mrf.mxu0
        %v4779 = vadd.f32 %v4730, %v4778
        %v4780 = vpop.f32.mrf.mxu0
        %v4781 = vadd.f32 %v4732, %v4780
        %4782 = vdwg.mxu0
        %4783 = vmatpush.bf16.msra.mxu0 %v3469
        %4784 = vmatpush.bf16.msra.mxu0 %v3461
        %4785 = vmatpush.bf16.msra.mxu0 %v3453
        %4786 = vmatpush.bf16.msra.mxu0 %v3445
        %4787 = vmatpush.bf16.msra.mxu0 %v3437
        %4788 = vmatpush.bf16.msra.mxu0 %v3429
        %4789 = vmatpush.bf16.msra.mxu0 %v3421
        %4790 = vmatpush.bf16.msra.mxu0 %v3413
        %4791 = vmatmul.bf16.gmra.mxu0 %v1093
        %v4792 = vpop.f32.mrf.mxu0
        %v4793 = vadd.f32 %v4744, %v4792
        %v4794 = vpop.f32.mrf.mxu0
        %v4795 = vadd.f32 %v4746, %v4794
        %4796 = vmatmul.bf16.gmra.mxu0 %v1101
        %v4797 = vpop.f32.mrf.mxu0
        %v4798 = vadd.f32 %v4749, %v4797
        %v4799 = vpop.f32.mrf.mxu0
        %v4800 = vadd.f32 %v4751, %v4799
        %4801 = vmatmul.bf16.gmra.mxu0 %v1109
        %v4802 = vpop.f32.mrf.mxu0
        %v4803 = vadd.f32 %v4754, %v4802
        %v4804 = vpop.f32.mrf.mxu0
        %v4805 = vadd.f32 %v4756, %v4804
        %4806 = vmatmul.bf16.gmra.mxu0 %v1117
        %v4807 = vpop.f32.mrf.mxu0
        %v4808 = vadd.f32 %v4759, %v4807
        %v4809 = vpop.f32.mrf.mxu0
        %v4810 = vadd.f32 %v4761, %v4809
        %4811 = vmatmul.bf16.gmra.mxu0 %v1125
        %v4812 = vpop.f32.mrf.mxu0
        %v4813 = vadd.f32 %v4764, %v4812
        %v4814 = vpop.f32.mrf.mxu0
        %v4815 = vadd.f32 %v4766, %v4814
        %4816 = vmatmul.bf16.gmra.mxu0 %v1133
        %v4817 = vpop.f32.mrf.mxu0
        %v4818 = vadd.f32 %v4769, %v4817
        %v4819 = vpop.f32.mrf.mxu0
        %v4820 = vadd.f32 %v4771, %v4819
        %4821 = vmatmul.bf16.gmra.mxu0 %v1141
        %v4822 = vpop.f32.mrf.mxu0
        %v4823 = vadd.f32 %v4774, %v4822
        %v4824 = vpop.f32.mrf.mxu0
        %v4825 = vadd.f32 %v4776, %v4824
        %4826 = vmatmul.bf16.gmra.mxu0 %v1149
        %v4827 = vpop.f32.mrf.mxu0
        %v4828 = vadd.f32 %v4779, %v4827
        %v4829 = vpop.f32.mrf.mxu0
        %v4830 = vadd.f32 %v4781, %v4829
        %4831 = vdwg.mxu0
        %4832 = vmatpush.bf16.msra.mxu0 %v3533
        %4833 = vmatpush.bf16.msra.mxu0 %v3525
        %4834 = vmatpush.bf16.msra.mxu0 %v3517
        %4835 = vmatpush.bf16.msra.mxu0 %v3509
        %4836 = vmatpush.bf16.msra.mxu0 %v3501
        %4837 = vmatpush.bf16.msra.mxu0 %v3493
        %4838 = vmatpush.bf16.msra.mxu0 %v3485
        %4839 = vmatpush.bf16.msra.mxu0 %v3477
        %4840 = vmatmul.bf16.gmra.mxu0 %v1094
        %v4841 = vpop.f32.mrf.mxu0
        %v4842 = vadd.f32 %v4793, %v4841
        %v4843 = vpop.f32.mrf.mxu0
        %v4844 = vadd.f32 %v4795, %v4843
        %4845 = vmatmul.bf16.gmra.mxu0 %v1102
        %v4846 = vpop.f32.mrf.mxu0
        %v4847 = vadd.f32 %v4798, %v4846
        %v4848 = vpop.f32.mrf.mxu0
        %v4849 = vadd.f32 %v4800, %v4848
        %4850 = vmatmul.bf16.gmra.mxu0 %v1110
        %v4851 = vpop.f32.mrf.mxu0
        %v4852 = vadd.f32 %v4803, %v4851
        %v4853 = vpop.f32.mrf.mxu0
        %v4854 = vadd.f32 %v4805, %v4853
        %4855 = vmatmul.bf16.gmra.mxu0 %v1118
        %v4856 = vpop.f32.mrf.mxu0
        %v4857 = vadd.f32 %v4808, %v4856
        %v4858 = vpop.f32.mrf.mxu0
        %v4859 = vadd.f32 %v4810, %v4858
        %4860 = vmatmul.bf16.gmra.mxu0 %v1126
        %v4861 = vpop.f32.mrf.mxu0
        %v4862 = vadd.f32 %v4813, %v4861
        %v4863 = vpop.f32.mrf.mxu0
        %v4864 = vadd.f32 %v4815, %v4863
        %4865 = vmatmul.bf16.gmra.mxu0 %v1134
        %v4866 = vpop.f32.mrf.mxu0
        %v4867 = vadd.f32 %v4818, %v4866
        %v4868 = vpop.f32.mrf.mxu0
        %v4869 = vadd.f32 %v4820, %v4868
        %4870 = vmatmul.bf16.gmra.mxu0 %v1142
        %v4871 = vpop.f32.mrf.mxu0
        %v4872 = vadd.f32 %v4823, %v4871
        %v4873 = vpop.f32.mrf.mxu0
        %v4874 = vadd.f32 %v4825, %v4873
        %4875 = vmatmul.bf16.gmra.mxu0 %v1150
        %v4876 = vpop.f32.mrf.mxu0
        %v4877 = vadd.f32 %v4828, %v4876
        %v4878 = vpop.f32.mrf.mxu0
        %v4879 = vadd.f32 %v4830, %v4878
        %4880 = vdwg.mxu0
        %4881 = vmatpush.bf16.msra.mxu0 %v3597
        %4882 = vmatpush.bf16.msra.mxu0 %v3589
        %4883 = vmatpush.bf16.msra.mxu0 %v3581
        %4884 = vmatpush.bf16.msra.mxu0 %v3573
        %4885 = vmatpush.bf16.msra.mxu0 %v3565
        %4886 = vmatpush.bf16.msra.mxu0 %v3557
        %4887 = vmatpush.bf16.msra.mxu0 %v3549
        %4888 = vmatpush.bf16.msra.mxu0 %v3541
        %4889 = vmatmul.bf16.gmra.mxu0 %v1095
        %v4890 = vpop.f32.mrf.mxu0
        %v4891 = vadd.f32 %v4842, %v4890
        %v4892 = vpop.f32.mrf.mxu0
        %v4893 = vadd.f32 %v4844, %v4892
        %4894 = vmatmul.bf16.gmra.mxu0 %v1103
        %v4895 = vpop.f32.mrf.mxu0
        %v4896 = vadd.f32 %v4847, %v4895
        %v4897 = vpop.f32.mrf.mxu0
        %v4898 = vadd.f32 %v4849, %v4897
        %4899 = vmatmul.bf16.gmra.mxu0 %v1111
        %v4900 = vpop.f32.mrf.mxu0
        %v4901 = vadd.f32 %v4852, %v4900
        %v4902 = vpop.f32.mrf.mxu0
        %v4903 = vadd.f32 %v4854, %v4902
        %4904 = vmatmul.bf16.gmra.mxu0 %v1119
        %v4905 = vpop.f32.mrf.mxu0
        %v4906 = vadd.f32 %v4857, %v4905
        %v4907 = vpop.f32.mrf.mxu0
        %v4908 = vadd.f32 %v4859, %v4907
        %4909 = vmatmul.bf16.gmra.mxu0 %v1127
        %v4910 = vpop.f32.mrf.mxu0
        %v4911 = vadd.f32 %v4862, %v4910
        %v4912 = vpop.f32.mrf.mxu0
        %v4913 = vadd.f32 %v4864, %v4912
        %4914 = vmatmul.bf16.gmra.mxu0 %v1135
        %v4915 = vpop.f32.mrf.mxu0
        %v4916 = vadd.f32 %v4867, %v4915
        %v4917 = vpop.f32.mrf.mxu0
        %v4918 = vadd.f32 %v4869, %v4917
        %4919 = vmatmul.bf16.gmra.mxu0 %v1143
        %v4920 = vpop.f32.mrf.mxu0
        %v4921 = vadd.f32 %v4872, %v4920
        %v4922 = vpop.f32.mrf.mxu0
        %v4923 = vadd.f32 %v4874, %v4922
        %4924 = vmatmul.bf16.gmra.mxu0 %v1151
        %v4925 = vpop.f32.mrf.mxu0
        %v4926 = vadd.f32 %v4877, %v4925
        %v4927 = vpop.f32.mrf.mxu0
        %v4928 = vadd.f32 %v4879, %v4927
        %4929 = vdwg.mxu0
        %4930 = vmatpush.bf16.msra.mxu0 %v3661
        %4931 = vmatpush.bf16.msra.mxu0 %v3653
        %4932 = vmatpush.bf16.msra.mxu0 %v3645
        %4933 = vmatpush.bf16.msra.mxu0 %v3637
        %4934 = vmatpush.bf16.msra.mxu0 %v3629
        %4935 = vmatpush.bf16.msra.mxu0 %v3621
        %4936 = vmatpush.bf16.msra.mxu0 %v3613
        %4937 = vmatpush.bf16.msra.mxu0 %v3605
        %4938 = vmatmul.bf16.gmra.mxu0 %v1096
        %v4939 = vpop.f32.mrf.mxu0
        %v4940 = vadd.f32 %v4891, %v4939
        %v4941 = vpop.f32.mrf.mxu0
        %v4942 = vadd.f32 %v4893, %v4941
        %4943 = vmatmul.bf16.gmra.mxu0 %v1104
        %v4944 = vpop.f32.mrf.mxu0
        %v4945 = vadd.f32 %v4896, %v4944
        %v4946 = vpop.f32.mrf.mxu0
        %v4947 = vadd.f32 %v4898, %v4946
        %4948 = vmatmul.bf16.gmra.mxu0 %v1112
        %v4949 = vpop.f32.mrf.mxu0
        %v4950 = vadd.f32 %v4901, %v4949
        %v4951 = vpop.f32.mrf.mxu0
        %v4952 = vadd.f32 %v4903, %v4951
        %4953 = vmatmul.bf16.gmra.mxu0 %v1120
        %v4954 = vpop.f32.mrf.mxu0
        %v4955 = vadd.f32 %v4906, %v4954
        %v4956 = vpop.f32.mrf.mxu0
        %v4957 = vadd.f32 %v4908, %v4956
        %4958 = vmatmul.bf16.gmra.mxu0 %v1128
        %v4959 = vpop.f32.mrf.mxu0
        %v4960 = vadd.f32 %v4911, %v4959
        %v4961 = vpop.f32.mrf.mxu0
        %v4962 = vadd.f32 %v4913, %v4961
        %4963 = vmatmul.bf16.gmra.mxu0 %v1136
        %v4964 = vpop.f32.mrf.mxu0
        %v4965 = vadd.f32 %v4916, %v4964
        %v4966 = vpop.f32.mrf.mxu0
        %v4967 = vadd.f32 %v4918, %v4966
        %4968 = vmatmul.bf16.gmra.mxu0 %v1144
        %v4969 = vpop.f32.mrf.mxu0
        %v4970 = vadd.f32 %v4921, %v4969
        %v4971 = vpop.f32.mrf.mxu0
        %v4972 = vadd.f32 %v4923, %v4971
        %4973 = vmatmul.bf16.gmra.mxu0 %v1152
        %v4974 = vpop.f32.mrf.mxu0
        %v4975 = vadd.f32 %v4926, %v4974
        %v4976 = vpop.f32.mrf.mxu0
        %v4977 = vadd.f32 %v4928, %v4976
        %4978 = vdwg.mxu0
        %4979 = vmatpush.bf16.msra.mxu0 %v3725
        %4980 = vmatpush.bf16.msra.mxu0 %v3717
        %4981 = vmatpush.bf16.msra.mxu0 %v3709
        %4982 = vmatpush.bf16.msra.mxu0 %v3701
        %4983 = vmatpush.bf16.msra.mxu0 %v3693
        %4984 = vmatpush.bf16.msra.mxu0 %v3685
        %4985 = vmatpush.bf16.msra.mxu0 %v3677
        %4986 = vmatpush.bf16.msra.mxu0 %v3669
        %4987 = vmatmul.bf16.gmra.mxu0 %v1097
        %v4988 = vpop.f32.mrf.mxu0
        %v4989 = vadd.f32 %v4940, %v4988
        %v4990 = vpop.f32.mrf.mxu0
        %v4991 = vadd.f32 %v4942, %v4990
        %4992 = vmatmul.bf16.gmra.mxu0 %v1105
        %v4993 = vpop.f32.mrf.mxu0
        %v4994 = vadd.f32 %v4945, %v4993
        %v4995 = vpop.f32.mrf.mxu0
        %v4996 = vadd.f32 %v4947, %v4995
        %4997 = vmatmul.bf16.gmra.mxu0 %v1113
        %v4998 = vpop.f32.mrf.mxu0
        %v4999 = vadd.f32 %v4950, %v4998
        %v5000 = vpop.f32.mrf.mxu0
        %v5001 = vadd.f32 %v4952, %v5000
        %5002 = vmatmul.bf16.gmra.mxu0 %v1121
        %v5003 = vpop.f32.mrf.mxu0
        %v5004 = vadd.f32 %v4955, %v5003
        %v5005 = vpop.f32.mrf.mxu0
        %v5006 = vadd.f32 %v4957, %v5005
        %5007 = vmatmul.bf16.gmra.mxu0 %v1129
        %v5008 = vpop.f32.mrf.mxu0
        %v5009 = vadd.f32 %v4960, %v5008
        %v5010 = vpop.f32.mrf.mxu0
        %v5011 = vadd.f32 %v4962, %v5010
        %5012 = vmatmul.bf16.gmra.mxu0 %v1137
        %v5013 = vpop.f32.mrf.mxu0
        %v5014 = vadd.f32 %v4965, %v5013
        %v5015 = vpop.f32.mrf.mxu0
        %v5016 = vadd.f32 %v4967, %v5015
        %5017 = vmatmul.bf16.gmra.mxu0 %v1145
        %v5018 = vpop.f32.mrf.mxu0
        %v5019 = vadd.f32 %v4970, %v5018
        %v5020 = vpop.f32.mrf.mxu0
        %v5021 = vadd.f32 %v4972, %v5020
        %5022 = vmatmul.bf16.gmra.mxu0 %v1153
        %v5023 = vpop.f32.mrf.mxu0
        %v5024 = vadd.f32 %v4975, %v5023
        %v5025 = vpop.f32.mrf.mxu0
        %v5026 = vadd.f32 %v4977, %v5025
        %5027 = vdwg.mxu0
        %5028 = vmatpush.bf16.msra.mxu0 %v3278
        %5029 = vmatpush.bf16.msra.mxu0 %v3270
        %5030 = vmatpush.bf16.msra.mxu0 %v3262
        %5031 = vmatpush.bf16.msra.mxu0 %v3254
        %5032 = vmatpush.bf16.msra.mxu0 %v3246
        %5033 = vmatpush.bf16.msra.mxu0 %v3238
        %5034 = vmatpush.bf16.msra.mxu0 %v3230
        %5035 = vmatpush.bf16.msra.mxu0 %v3222
        %5036 = vmatmul.bf16.gmra.mxu0 %v1090
        %v5037 = vpop.f32.mrf.mxu0
        %v5038 = vadd.f32 %v1670, %v5037
        %v5039 = vpop.f32.mrf.mxu0
        %v5040 = vadd.f32 %v1670, %v5039
        %5041 = vmatmul.bf16.gmra.mxu0 %v1098
        %v5042 = vpop.f32.mrf.mxu0
        %v5043 = vadd.f32 %v1670, %v5042
        %v5044 = vpop.f32.mrf.mxu0
        %v5045 = vadd.f32 %v1670, %v5044
        %5046 = vmatmul.bf16.gmra.mxu0 %v1106
        %v5047 = vpop.f32.mrf.mxu0
        %v5048 = vadd.f32 %v1670, %v5047
        %v5049 = vpop.f32.mrf.mxu0
        %v5050 = vadd.f32 %v1670, %v5049
        %5051 = vmatmul.bf16.gmra.mxu0 %v1114
        %v5052 = vpop.f32.mrf.mxu0
        %v5053 = vadd.f32 %v1670, %v5052
        %v5054 = vpop.f32.mrf.mxu0
        %v5055 = vadd.f32 %v1670, %v5054
        %5056 = vmatmul.bf16.gmra.mxu0 %v1122
        %v5057 = vpop.f32.mrf.mxu0
        %v5058 = vadd.f32 %v1670, %v5057
        %v5059 = vpop.f32.mrf.mxu0
        %v5060 = vadd.f32 %v1670, %v5059
        %5061 = vmatmul.bf16.gmra.mxu0 %v1130
        %v5062 = vpop.f32.mrf.mxu0
        %v5063 = vadd.f32 %v1670, %v5062
        %v5064 = vpop.f32.mrf.mxu0
        %v5065 = vadd.f32 %v1670, %v5064
        %5066 = vmatmul.bf16.gmra.mxu0 %v1138
        %v5067 = vpop.f32.mrf.mxu0
        %v5068 = vadd.f32 %v1670, %v5067
        %v5069 = vpop.f32.mrf.mxu0
        %v5070 = vadd.f32 %v1670, %v5069
        %5071 = vmatmul.bf16.gmra.mxu0 %v1146
        %v5072 = vpop.f32.mrf.mxu0
        %v5073 = vadd.f32 %v1670, %v5072
        %v5074 = vpop.f32.mrf.mxu0
        %v5075 = vadd.f32 %v1670, %v5074
        %5076 = vdwg.mxu0
        %5077 = vmatpush.bf16.msra.mxu0 %v3342
        %5078 = vmatpush.bf16.msra.mxu0 %v3334
        %5079 = vmatpush.bf16.msra.mxu0 %v3326
        %5080 = vmatpush.bf16.msra.mxu0 %v3318
        %5081 = vmatpush.bf16.msra.mxu0 %v3310
        %5082 = vmatpush.bf16.msra.mxu0 %v3302
        %5083 = vmatpush.bf16.msra.mxu0 %v3294
        %5084 = vmatpush.bf16.msra.mxu0 %v3286
        %5085 = vmatmul.bf16.gmra.mxu0 %v1091
        %v5086 = vpop.f32.mrf.mxu0
        %v5087 = vadd.f32 %v5038, %v5086
        %v5088 = vpop.f32.mrf.mxu0
        %v5089 = vadd.f32 %v5040, %v5088
        %5090 = vmatmul.bf16.gmra.mxu0 %v1099
        %v5091 = vpop.f32.mrf.mxu0
        %v5092 = vadd.f32 %v5043, %v5091
        %v5093 = vpop.f32.mrf.mxu0
        %v5094 = vadd.f32 %v5045, %v5093
        %5095 = vmatmul.bf16.gmra.mxu0 %v1107
        %v5096 = vpop.f32.mrf.mxu0
        %v5097 = vadd.f32 %v5048, %v5096
        %v5098 = vpop.f32.mrf.mxu0
        %v5099 = vadd.f32 %v5050, %v5098
        %5100 = vmatmul.bf16.gmra.mxu0 %v1115
        %v5101 = vpop.f32.mrf.mxu0
        %v5102 = vadd.f32 %v5053, %v5101
        %v5103 = vpop.f32.mrf.mxu0
        %v5104 = vadd.f32 %v5055, %v5103
        %5105 = vmatmul.bf16.gmra.mxu0 %v1123
        %v5106 = vpop.f32.mrf.mxu0
        %v5107 = vadd.f32 %v5058, %v5106
        %v5108 = vpop.f32.mrf.mxu0
        %v5109 = vadd.f32 %v5060, %v5108
        %5110 = vmatmul.bf16.gmra.mxu0 %v1131
        %v5111 = vpop.f32.mrf.mxu0
        %v5112 = vadd.f32 %v5063, %v5111
        %v5113 = vpop.f32.mrf.mxu0
        %v5114 = vadd.f32 %v5065, %v5113
        %5115 = vmatmul.bf16.gmra.mxu0 %v1139
        %v5116 = vpop.f32.mrf.mxu0
        %v5117 = vadd.f32 %v5068, %v5116
        %v5118 = vpop.f32.mrf.mxu0
        %v5119 = vadd.f32 %v5070, %v5118
        %5120 = vmatmul.bf16.gmra.mxu0 %v1147
        %v5121 = vpop.f32.mrf.mxu0
        %v5122 = vadd.f32 %v5073, %v5121
        %v5123 = vpop.f32.mrf.mxu0
        %v5124 = vadd.f32 %v5075, %v5123
        %5125 = vdwg.mxu0
        %5126 = vmatpush.bf16.msra.mxu0 %v3406
        %5127 = vmatpush.bf16.msra.mxu0 %v3398
        %5128 = vmatpush.bf16.msra.mxu0 %v3390
        %5129 = vmatpush.bf16.msra.mxu0 %v3382
        %5130 = vmatpush.bf16.msra.mxu0 %v3374
        %5131 = vmatpush.bf16.msra.mxu0 %v3366
        %5132 = vmatpush.bf16.msra.mxu0 %v3358
        %5133 = vmatpush.bf16.msra.mxu0 %v3350
        %5134 = vmatmul.bf16.gmra.mxu0 %v1092
        %v5135 = vpop.f32.mrf.mxu0
        %v5136 = vadd.f32 %v5087, %v5135
        %v5137 = vpop.f32.mrf.mxu0
        %v5138 = vadd.f32 %v5089, %v5137
        %5139 = vmatmul.bf16.gmra.mxu0 %v1100
        %v5140 = vpop.f32.mrf.mxu0
        %v5141 = vadd.f32 %v5092, %v5140
        %v5142 = vpop.f32.mrf.mxu0
        %v5143 = vadd.f32 %v5094, %v5142
        %5144 = vmatmul.bf16.gmra.mxu0 %v1108
        %v5145 = vpop.f32.mrf.mxu0
        %v5146 = vadd.f32 %v5097, %v5145
        %v5147 = vpop.f32.mrf.mxu0
        %v5148 = vadd.f32 %v5099, %v5147
        %5149 = vmatmul.bf16.gmra.mxu0 %v1116
        %v5150 = vpop.f32.mrf.mxu0
        %v5151 = vadd.f32 %v5102, %v5150
        %v5152 = vpop.f32.mrf.mxu0
        %v5153 = vadd.f32 %v5104, %v5152
        %5154 = vmatmul.bf16.gmra.mxu0 %v1124
        %v5155 = vpop.f32.mrf.mxu0
        %v5156 = vadd.f32 %v5107, %v5155
        %v5157 = vpop.f32.mrf.mxu0
        %v5158 = vadd.f32 %v5109, %v5157
        %5159 = vmatmul.bf16.gmra.mxu0 %v1132
        %v5160 = vpop.f32.mrf.mxu0
        %v5161 = vadd.f32 %v5112, %v5160
        %v5162 = vpop.f32.mrf.mxu0
        %v5163 = vadd.f32 %v5114, %v5162
        %5164 = vmatmul.bf16.gmra.mxu0 %v1140
        %v5165 = vpop.f32.mrf.mxu0
        %v5166 = vadd.f32 %v5117, %v5165
        %v5167 = vpop.f32.mrf.mxu0
        %v5168 = vadd.f32 %v5119, %v5167
        %5169 = vmatmul.bf16.gmra.mxu0 %v1148
        %v5170 = vpop.f32.mrf.mxu0
        %v5171 = vadd.f32 %v5122, %v5170
        %v5172 = vpop.f32.mrf.mxu0
        %v5173 = vadd.f32 %v5124, %v5172
        %5174 = vdwg.mxu0
        %5175 = vmatpush.bf16.msra.mxu0 %v3470
        %5176 = vmatpush.bf16.msra.mxu0 %v3462
        %5177 = vmatpush.bf16.msra.mxu0 %v3454
        %5178 = vmatpush.bf16.msra.mxu0 %v3446
        %5179 = vmatpush.bf16.msra.mxu0 %v3438
        %5180 = vmatpush.bf16.msra.mxu0 %v3430
        %5181 = vmatpush.bf16.msra.mxu0 %v3422
        %5182 = vmatpush.bf16.msra.mxu0 %v3414
        %5183 = vmatmul.bf16.gmra.mxu0 %v1093
        %v5184 = vpop.f32.mrf.mxu0
        %v5185 = vadd.f32 %v5136, %v5184
        %v5186 = vpop.f32.mrf.mxu0
        %v5187 = vadd.f32 %v5138, %v5186
        %5188 = vmatmul.bf16.gmra.mxu0 %v1101
        %v5189 = vpop.f32.mrf.mxu0
        %v5190 = vadd.f32 %v5141, %v5189
        %v5191 = vpop.f32.mrf.mxu0
        %v5192 = vadd.f32 %v5143, %v5191
        %5193 = vmatmul.bf16.gmra.mxu0 %v1109
        %v5194 = vpop.f32.mrf.mxu0
        %v5195 = vadd.f32 %v5146, %v5194
        %v5196 = vpop.f32.mrf.mxu0
        %v5197 = vadd.f32 %v5148, %v5196
        %5198 = vmatmul.bf16.gmra.mxu0 %v1117
        %v5199 = vpop.f32.mrf.mxu0
        %v5200 = vadd.f32 %v5151, %v5199
        %v5201 = vpop.f32.mrf.mxu0
        %v5202 = vadd.f32 %v5153, %v5201
        %5203 = vmatmul.bf16.gmra.mxu0 %v1125
        %v5204 = vpop.f32.mrf.mxu0
        %v5205 = vadd.f32 %v5156, %v5204
        %v5206 = vpop.f32.mrf.mxu0
        %v5207 = vadd.f32 %v5158, %v5206
        %5208 = vmatmul.bf16.gmra.mxu0 %v1133
        %v5209 = vpop.f32.mrf.mxu0
        %v5210 = vadd.f32 %v5161, %v5209
        %v5211 = vpop.f32.mrf.mxu0
        %v5212 = vadd.f32 %v5163, %v5211
        %5213 = vmatmul.bf16.gmra.mxu0 %v1141
        %v5214 = vpop.f32.mrf.mxu0
        %v5215 = vadd.f32 %v5166, %v5214
        %v5216 = vpop.f32.mrf.mxu0
        %v5217 = vadd.f32 %v5168, %v5216
        %5218 = vmatmul.bf16.gmra.mxu0 %v1149
        %v5219 = vpop.f32.mrf.mxu0
        %v5220 = vadd.f32 %v5171, %v5219
        %v5221 = vpop.f32.mrf.mxu0
        %v5222 = vadd.f32 %v5173, %v5221
        %5223 = vdwg.mxu0
        %5224 = vmatpush.bf16.msra.mxu0 %v3534
        %5225 = vmatpush.bf16.msra.mxu0 %v3526
        %5226 = vmatpush.bf16.msra.mxu0 %v3518
        %5227 = vmatpush.bf16.msra.mxu0 %v3510
        %5228 = vmatpush.bf16.msra.mxu0 %v3502
        %5229 = vmatpush.bf16.msra.mxu0 %v3494
        %5230 = vmatpush.bf16.msra.mxu0 %v3486
        %5231 = vmatpush.bf16.msra.mxu0 %v3478
        %5232 = vmatmul.bf16.gmra.mxu0 %v1094
        %v5233 = vpop.f32.mrf.mxu0
        %v5234 = vadd.f32 %v5185, %v5233
        %v5235 = vpop.f32.mrf.mxu0
        %v5236 = vadd.f32 %v5187, %v5235
        %5237 = vmatmul.bf16.gmra.mxu0 %v1102
        %v5238 = vpop.f32.mrf.mxu0
        %v5239 = vadd.f32 %v5190, %v5238
        %v5240 = vpop.f32.mrf.mxu0
        %v5241 = vadd.f32 %v5192, %v5240
        %5242 = vmatmul.bf16.gmra.mxu0 %v1110
        %v5243 = vpop.f32.mrf.mxu0
        %v5244 = vadd.f32 %v5195, %v5243
        %v5245 = vpop.f32.mrf.mxu0
        %v5246 = vadd.f32 %v5197, %v5245
        %5247 = vmatmul.bf16.gmra.mxu0 %v1118
        %v5248 = vpop.f32.mrf.mxu0
        %v5249 = vadd.f32 %v5200, %v5248
        %v5250 = vpop.f32.mrf.mxu0
        %v5251 = vadd.f32 %v5202, %v5250
        %5252 = vmatmul.bf16.gmra.mxu0 %v1126
        %v5253 = vpop.f32.mrf.mxu0
        %v5254 = vadd.f32 %v5205, %v5253
        %v5255 = vpop.f32.mrf.mxu0
        %v5256 = vadd.f32 %v5207, %v5255
        %5257 = vmatmul.bf16.gmra.mxu0 %v1134
        %v5258 = vpop.f32.mrf.mxu0
        %v5259 = vadd.f32 %v5210, %v5258
        %v5260 = vpop.f32.mrf.mxu0
        %v5261 = vadd.f32 %v5212, %v5260
        %5262 = vmatmul.bf16.gmra.mxu0 %v1142
        %v5263 = vpop.f32.mrf.mxu0
        %v5264 = vadd.f32 %v5215, %v5263
        %v5265 = vpop.f32.mrf.mxu0
        %v5266 = vadd.f32 %v5217, %v5265
        %5267 = vmatmul.bf16.gmra.mxu0 %v1150
        %v5268 = vpop.f32.mrf.mxu0
        %v5269 = vadd.f32 %v5220, %v5268
        %v5270 = vpop.f32.mrf.mxu0
        %v5271 = vadd.f32 %v5222, %v5270
        %5272 = vdwg.mxu0
        %5273 = vmatpush.bf16.msra.mxu0 %v3598
        %5274 = vmatpush.bf16.msra.mxu0 %v3590
        %5275 = vmatpush.bf16.msra.mxu0 %v3582
        %5276 = vmatpush.bf16.msra.mxu0 %v3574
        %5277 = vmatpush.bf16.msra.mxu0 %v3566
        %5278 = vmatpush.bf16.msra.mxu0 %v3558
        %5279 = vmatpush.bf16.msra.mxu0 %v3550
        %5280 = vmatpush.bf16.msra.mxu0 %v3542
        %5281 = vmatmul.bf16.gmra.mxu0 %v1095
        %v5282 = vpop.f32.mrf.mxu0
        %v5283 = vadd.f32 %v5234, %v5282
        %v5284 = vpop.f32.mrf.mxu0
        %v5285 = vadd.f32 %v5236, %v5284
        %5286 = vmatmul.bf16.gmra.mxu0 %v1103
        %v5287 = vpop.f32.mrf.mxu0
        %v5288 = vadd.f32 %v5239, %v5287
        %v5289 = vpop.f32.mrf.mxu0
        %v5290 = vadd.f32 %v5241, %v5289
        %5291 = vmatmul.bf16.gmra.mxu0 %v1111
        %v5292 = vpop.f32.mrf.mxu0
        %v5293 = vadd.f32 %v5244, %v5292
        %v5294 = vpop.f32.mrf.mxu0
        %v5295 = vadd.f32 %v5246, %v5294
        %5296 = vmatmul.bf16.gmra.mxu0 %v1119
        %v5297 = vpop.f32.mrf.mxu0
        %v5298 = vadd.f32 %v5249, %v5297
        %v5299 = vpop.f32.mrf.mxu0
        %v5300 = vadd.f32 %v5251, %v5299
        %5301 = vmatmul.bf16.gmra.mxu0 %v1127
        %v5302 = vpop.f32.mrf.mxu0
        %v5303 = vadd.f32 %v5254, %v5302
        %v5304 = vpop.f32.mrf.mxu0
        %v5305 = vadd.f32 %v5256, %v5304
        %5306 = vmatmul.bf16.gmra.mxu0 %v1135
        %v5307 = vpop.f32.mrf.mxu0
        %v5308 = vadd.f32 %v5259, %v5307
        %v5309 = vpop.f32.mrf.mxu0
        %v5310 = vadd.f32 %v5261, %v5309
        %5311 = vmatmul.bf16.gmra.mxu0 %v1143
        %v5312 = vpop.f32.mrf.mxu0
        %v5313 = vadd.f32 %v5264, %v5312
        %v5314 = vpop.f32.mrf.mxu0
        %v5315 = vadd.f32 %v5266, %v5314
        %5316 = vmatmul.bf16.gmra.mxu0 %v1151
        %v5317 = vpop.f32.mrf.mxu0
        %v5318 = vadd.f32 %v5269, %v5317
        %v5319 = vpop.f32.mrf.mxu0
        %v5320 = vadd.f32 %v5271, %v5319
        %5321 = vdwg.mxu0
        %5322 = vmatpush.bf16.msra.mxu0 %v3662
        %5323 = vmatpush.bf16.msra.mxu0 %v3654
        %5324 = vmatpush.bf16.msra.mxu0 %v3646
        %5325 = vmatpush.bf16.msra.mxu0 %v3638
        %5326 = vmatpush.bf16.msra.mxu0 %v3630
        %5327 = vmatpush.bf16.msra.mxu0 %v3622
        %5328 = vmatpush.bf16.msra.mxu0 %v3614
        %5329 = vmatpush.bf16.msra.mxu0 %v3606
        %5330 = vmatmul.bf16.gmra.mxu0 %v1096
        %v5331 = vpop.f32.mrf.mxu0
        %v5332 = vadd.f32 %v5283, %v5331
        %v5333 = vpop.f32.mrf.mxu0
        %v5334 = vadd.f32 %v5285, %v5333
        %5335 = vmatmul.bf16.gmra.mxu0 %v1104
        %v5336 = vpop.f32.mrf.mxu0
        %v5337 = vadd.f32 %v5288, %v5336
        %v5338 = vpop.f32.mrf.mxu0
        %v5339 = vadd.f32 %v5290, %v5338
        %5340 = vmatmul.bf16.gmra.mxu0 %v1112
        %v5341 = vpop.f32.mrf.mxu0
        %v5342 = vadd.f32 %v5293, %v5341
        %v5343 = vpop.f32.mrf.mxu0
        %v5344 = vadd.f32 %v5295, %v5343
        %5345 = vmatmul.bf16.gmra.mxu0 %v1120
        %v5346 = vpop.f32.mrf.mxu0
        %v5347 = vadd.f32 %v5298, %v5346
        %v5348 = vpop.f32.mrf.mxu0
        %v5349 = vadd.f32 %v5300, %v5348
        %5350 = vmatmul.bf16.gmra.mxu0 %v1128
        %v5351 = vpop.f32.mrf.mxu0
        %v5352 = vadd.f32 %v5303, %v5351
        %v5353 = vpop.f32.mrf.mxu0
        %v5354 = vadd.f32 %v5305, %v5353
        %5355 = vmatmul.bf16.gmra.mxu0 %v1136
        %v5356 = vpop.f32.mrf.mxu0
        %v5357 = vadd.f32 %v5308, %v5356
        %v5358 = vpop.f32.mrf.mxu0
        %v5359 = vadd.f32 %v5310, %v5358
        %5360 = vmatmul.bf16.gmra.mxu0 %v1144
        %v5361 = vpop.f32.mrf.mxu0
        %v5362 = vadd.f32 %v5313, %v5361
        %v5363 = vpop.f32.mrf.mxu0
        %v5364 = vadd.f32 %v5315, %v5363
        %5365 = vmatmul.bf16.gmra.mxu0 %v1152
        %v5366 = vpop.f32.mrf.mxu0
        %v5367 = vadd.f32 %v5318, %v5366
        %v5368 = vpop.f32.mrf.mxu0
        %v5369 = vadd.f32 %v5320, %v5368
        %5370 = vdwg.mxu0
        %5371 = vmatpush.bf16.msra.mxu0 %v3726
        %5372 = vmatpush.bf16.msra.mxu0 %v3718
        %5373 = vmatpush.bf16.msra.mxu0 %v3710
        %5374 = vmatpush.bf16.msra.mxu0 %v3702
        %5375 = vmatpush.bf16.msra.mxu0 %v3694
        %5376 = vmatpush.bf16.msra.mxu0 %v3686
        %5377 = vmatpush.bf16.msra.mxu0 %v3678
        %5378 = vmatpush.bf16.msra.mxu0 %v3670
        %5379 = vmatmul.bf16.gmra.mxu0 %v1097
        %v5380 = vpop.f32.mrf.mxu0
        %v5381 = vadd.f32 %v5332, %v5380
        %v5382 = vpop.f32.mrf.mxu0
        %v5383 = vadd.f32 %v5334, %v5382
        %5384 = vmatmul.bf16.gmra.mxu0 %v1105
        %v5385 = vpop.f32.mrf.mxu0
        %v5386 = vadd.f32 %v5337, %v5385
        %v5387 = vpop.f32.mrf.mxu0
        %v5388 = vadd.f32 %v5339, %v5387
        %5389 = vmatmul.bf16.gmra.mxu0 %v1113
        %v5390 = vpop.f32.mrf.mxu0
        %v5391 = vadd.f32 %v5342, %v5390
        %v5392 = vpop.f32.mrf.mxu0
        %v5393 = vadd.f32 %v5344, %v5392
        %5394 = vmatmul.bf16.gmra.mxu0 %v1121
        %v5395 = vpop.f32.mrf.mxu0
        %v5396 = vadd.f32 %v5347, %v5395
        %v5397 = vpop.f32.mrf.mxu0
        %v5398 = vadd.f32 %v5349, %v5397
        %5399 = vmatmul.bf16.gmra.mxu0 %v1129
        %v5400 = vpop.f32.mrf.mxu0
        %v5401 = vadd.f32 %v5352, %v5400
        %v5402 = vpop.f32.mrf.mxu0
        %v5403 = vadd.f32 %v5354, %v5402
        %5404 = vmatmul.bf16.gmra.mxu0 %v1137
        %v5405 = vpop.f32.mrf.mxu0
        %v5406 = vadd.f32 %v5357, %v5405
        %v5407 = vpop.f32.mrf.mxu0
        %v5408 = vadd.f32 %v5359, %v5407
        %5409 = vmatmul.bf16.gmra.mxu0 %v1145
        %v5410 = vpop.f32.mrf.mxu0
        %v5411 = vadd.f32 %v5362, %v5410
        %v5412 = vpop.f32.mrf.mxu0
        %v5413 = vadd.f32 %v5364, %v5412
        %5414 = vmatmul.bf16.gmra.mxu0 %v1153
        %v5415 = vpop.f32.mrf.mxu0
        %v5416 = vadd.f32 %v5367, %v5415
        %v5417 = vpop.f32.mrf.mxu0
        %v5418 = vadd.f32 %v5369, %v5417
        %5419 = vdwg.mxu0
        %5420 = vmatpush.bf16.msra.mxu0 %v3279
        %5421 = vmatpush.bf16.msra.mxu0 %v3271
        %5422 = vmatpush.bf16.msra.mxu0 %v3263
        %5423 = vmatpush.bf16.msra.mxu0 %v3255
        %5424 = vmatpush.bf16.msra.mxu0 %v3247
        %5425 = vmatpush.bf16.msra.mxu0 %v3239
        %5426 = vmatpush.bf16.msra.mxu0 %v3231
        %5427 = vmatpush.bf16.msra.mxu0 %v3223
        %5428 = vmatmul.bf16.gmra.mxu0 %v1090
        %v5429 = vpop.f32.mrf.mxu0
        %v5430 = vadd.f32 %v1671, %v5429
        %v5431 = vpop.f32.mrf.mxu0
        %v5432 = vadd.f32 %v1671, %v5431
        %5433 = vmatmul.bf16.gmra.mxu0 %v1098
        %v5434 = vpop.f32.mrf.mxu0
        %v5435 = vadd.f32 %v1671, %v5434
        %v5436 = vpop.f32.mrf.mxu0
        %v5437 = vadd.f32 %v1671, %v5436
        %5438 = vmatmul.bf16.gmra.mxu0 %v1106
        %v5439 = vpop.f32.mrf.mxu0
        %v5440 = vadd.f32 %v1671, %v5439
        %v5441 = vpop.f32.mrf.mxu0
        %v5442 = vadd.f32 %v1671, %v5441
        %5443 = vmatmul.bf16.gmra.mxu0 %v1114
        %v5444 = vpop.f32.mrf.mxu0
        %v5445 = vadd.f32 %v1671, %v5444
        %v5446 = vpop.f32.mrf.mxu0
        %v5447 = vadd.f32 %v1671, %v5446
        %5448 = vmatmul.bf16.gmra.mxu0 %v1122
        %v5449 = vpop.f32.mrf.mxu0
        %v5450 = vadd.f32 %v1671, %v5449
        %v5451 = vpop.f32.mrf.mxu0
        %v5452 = vadd.f32 %v1671, %v5451
        %5453 = vmatmul.bf16.gmra.mxu0 %v1130
        %v5454 = vpop.f32.mrf.mxu0
        %v5455 = vadd.f32 %v1671, %v5454
        %v5456 = vpop.f32.mrf.mxu0
        %v5457 = vadd.f32 %v1671, %v5456
        %5458 = vmatmul.bf16.gmra.mxu0 %v1138
        %v5459 = vpop.f32.mrf.mxu0
        %v5460 = vadd.f32 %v1671, %v5459
        %v5461 = vpop.f32.mrf.mxu0
        %v5462 = vadd.f32 %v1671, %v5461
        %5463 = vmatmul.bf16.gmra.mxu0 %v1146
        %v5464 = vpop.f32.mrf.mxu0
        %v5465 = vadd.f32 %v1671, %v5464
        %v5466 = vpop.f32.mrf.mxu0
        %v5467 = vadd.f32 %v1671, %v5466
        %5468 = vdwg.mxu0
        %5469 = vmatpush.bf16.msra.mxu0 %v3343
        %5470 = vmatpush.bf16.msra.mxu0 %v3335
        %5471 = vmatpush.bf16.msra.mxu0 %v3327
        %5472 = vmatpush.bf16.msra.mxu0 %v3319
        %5473 = vmatpush.bf16.msra.mxu0 %v3311
        %5474 = vmatpush.bf16.msra.mxu0 %v3303
        %5475 = vmatpush.bf16.msra.mxu0 %v3295
        %5476 = vmatpush.bf16.msra.mxu0 %v3287
        %5477 = vmatmul.bf16.gmra.mxu0 %v1091
        %v5478 = vpop.f32.mrf.mxu0
        %v5479 = vadd.f32 %v5430, %v5478
        %v5480 = vpop.f32.mrf.mxu0
        %v5481 = vadd.f32 %v5432, %v5480
        %5482 = vmatmul.bf16.gmra.mxu0 %v1099
        %v5483 = vpop.f32.mrf.mxu0
        %v5484 = vadd.f32 %v5435, %v5483
        %v5485 = vpop.f32.mrf.mxu0
        %v5486 = vadd.f32 %v5437, %v5485
        %5487 = vmatmul.bf16.gmra.mxu0 %v1107
        %v5488 = vpop.f32.mrf.mxu0
        %v5489 = vadd.f32 %v5440, %v5488
        %v5490 = vpop.f32.mrf.mxu0
        %v5491 = vadd.f32 %v5442, %v5490
        %5492 = vmatmul.bf16.gmra.mxu0 %v1115
        %v5493 = vpop.f32.mrf.mxu0
        %v5494 = vadd.f32 %v5445, %v5493
        %v5495 = vpop.f32.mrf.mxu0
        %v5496 = vadd.f32 %v5447, %v5495
        %5497 = vmatmul.bf16.gmra.mxu0 %v1123
        %v5498 = vpop.f32.mrf.mxu0
        %v5499 = vadd.f32 %v5450, %v5498
        %v5500 = vpop.f32.mrf.mxu0
        %v5501 = vadd.f32 %v5452, %v5500
        %5502 = vmatmul.bf16.gmra.mxu0 %v1131
        %v5503 = vpop.f32.mrf.mxu0
        %v5504 = vadd.f32 %v5455, %v5503
        %v5505 = vpop.f32.mrf.mxu0
        %v5506 = vadd.f32 %v5457, %v5505
        %5507 = vmatmul.bf16.gmra.mxu0 %v1139
        %v5508 = vpop.f32.mrf.mxu0
        %v5509 = vadd.f32 %v5460, %v5508
        %v5510 = vpop.f32.mrf.mxu0
        %v5511 = vadd.f32 %v5462, %v5510
        %5512 = vmatmul.bf16.gmra.mxu0 %v1147
        %v5513 = vpop.f32.mrf.mxu0
        %v5514 = vadd.f32 %v5465, %v5513
        %v5515 = vpop.f32.mrf.mxu0
        %v5516 = vadd.f32 %v5467, %v5515
        %5517 = vdwg.mxu0
        %5518 = vmatpush.bf16.msra.mxu0 %v3407
        %5519 = vmatpush.bf16.msra.mxu0 %v3399
        %5520 = vmatpush.bf16.msra.mxu0 %v3391
        %5521 = vmatpush.bf16.msra.mxu0 %v3383
        %5522 = vmatpush.bf16.msra.mxu0 %v3375
        %5523 = vmatpush.bf16.msra.mxu0 %v3367
        %5524 = vmatpush.bf16.msra.mxu0 %v3359
        %5525 = vmatpush.bf16.msra.mxu0 %v3351
        %5526 = vmatmul.bf16.gmra.mxu0 %v1092
        %v5527 = vpop.f32.mrf.mxu0
        %v5528 = vadd.f32 %v5479, %v5527
        %v5529 = vpop.f32.mrf.mxu0
        %v5530 = vadd.f32 %v5481, %v5529
        %5531 = vmatmul.bf16.gmra.mxu0 %v1100
        %v5532 = vpop.f32.mrf.mxu0
        %v5533 = vadd.f32 %v5484, %v5532
        %v5534 = vpop.f32.mrf.mxu0
        %v5535 = vadd.f32 %v5486, %v5534
        %5536 = vmatmul.bf16.gmra.mxu0 %v1108
        %v5537 = vpop.f32.mrf.mxu0
        %v5538 = vadd.f32 %v5489, %v5537
        %v5539 = vpop.f32.mrf.mxu0
        %v5540 = vadd.f32 %v5491, %v5539
        %5541 = vmatmul.bf16.gmra.mxu0 %v1116
        %v5542 = vpop.f32.mrf.mxu0
        %v5543 = vadd.f32 %v5494, %v5542
        %v5544 = vpop.f32.mrf.mxu0
        %v5545 = vadd.f32 %v5496, %v5544
        %5546 = vmatmul.bf16.gmra.mxu0 %v1124
        %v5547 = vpop.f32.mrf.mxu0
        %v5548 = vadd.f32 %v5499, %v5547
        %v5549 = vpop.f32.mrf.mxu0
        %v5550 = vadd.f32 %v5501, %v5549
        %5551 = vmatmul.bf16.gmra.mxu0 %v1132
        %v5552 = vpop.f32.mrf.mxu0
        %v5553 = vadd.f32 %v5504, %v5552
        %v5554 = vpop.f32.mrf.mxu0
        %v5555 = vadd.f32 %v5506, %v5554
        %5556 = vmatmul.bf16.gmra.mxu0 %v1140
        %v5557 = vpop.f32.mrf.mxu0
        %v5558 = vadd.f32 %v5509, %v5557
        %v5559 = vpop.f32.mrf.mxu0
        %v5560 = vadd.f32 %v5511, %v5559
        %5561 = vmatmul.bf16.gmra.mxu0 %v1148
        %v5562 = vpop.f32.mrf.mxu0
        %v5563 = vadd.f32 %v5514, %v5562
        %v5564 = vpop.f32.mrf.mxu0
        %v5565 = vadd.f32 %v5516, %v5564
        %5566 = vdwg.mxu0
        %5567 = vmatpush.bf16.msra.mxu0 %v3471
        %5568 = vmatpush.bf16.msra.mxu0 %v3463
        %5569 = vmatpush.bf16.msra.mxu0 %v3455
        %5570 = vmatpush.bf16.msra.mxu0 %v3447
        %5571 = vmatpush.bf16.msra.mxu0 %v3439
        %5572 = vmatpush.bf16.msra.mxu0 %v3431
        %5573 = vmatpush.bf16.msra.mxu0 %v3423
        %5574 = vmatpush.bf16.msra.mxu0 %v3415
        %5575 = vmatmul.bf16.gmra.mxu0 %v1093
        %v5576 = vpop.f32.mrf.mxu0
        %v5577 = vadd.f32 %v5528, %v5576
        %v5578 = vpop.f32.mrf.mxu0
        %v5579 = vadd.f32 %v5530, %v5578
        %5580 = vmatmul.bf16.gmra.mxu0 %v1101
        %v5581 = vpop.f32.mrf.mxu0
        %v5582 = vadd.f32 %v5533, %v5581
        %v5583 = vpop.f32.mrf.mxu0
        %v5584 = vadd.f32 %v5535, %v5583
        %5585 = vmatmul.bf16.gmra.mxu0 %v1109
        %v5586 = vpop.f32.mrf.mxu0
        %v5587 = vadd.f32 %v5538, %v5586
        %v5588 = vpop.f32.mrf.mxu0
        %v5589 = vadd.f32 %v5540, %v5588
        %5590 = vmatmul.bf16.gmra.mxu0 %v1117
        %v5591 = vpop.f32.mrf.mxu0
        %v5592 = vadd.f32 %v5543, %v5591
        %v5593 = vpop.f32.mrf.mxu0
        %v5594 = vadd.f32 %v5545, %v5593
        %5595 = vmatmul.bf16.gmra.mxu0 %v1125
        %v5596 = vpop.f32.mrf.mxu0
        %v5597 = vadd.f32 %v5548, %v5596
        %v5598 = vpop.f32.mrf.mxu0
        %v5599 = vadd.f32 %v5550, %v5598
        %5600 = vmatmul.bf16.gmra.mxu0 %v1133
        %v5601 = vpop.f32.mrf.mxu0
        %v5602 = vadd.f32 %v5553, %v5601
        %v5603 = vpop.f32.mrf.mxu0
        %v5604 = vadd.f32 %v5555, %v5603
        %5605 = vmatmul.bf16.gmra.mxu0 %v1141
        %v5606 = vpop.f32.mrf.mxu0
        %v5607 = vadd.f32 %v5558, %v5606
        %v5608 = vpop.f32.mrf.mxu0
        %v5609 = vadd.f32 %v5560, %v5608
        %5610 = vmatmul.bf16.gmra.mxu0 %v1149
        %v5611 = vpop.f32.mrf.mxu0
        %v5612 = vadd.f32 %v5563, %v5611
        %v5613 = vpop.f32.mrf.mxu0
        %v5614 = vadd.f32 %v5565, %v5613
        %5615 = vdwg.mxu0
        %5616 = vmatpush.bf16.msra.mxu0 %v3535
        %5617 = vmatpush.bf16.msra.mxu0 %v3527
        %5618 = vmatpush.bf16.msra.mxu0 %v3519
        %5619 = vmatpush.bf16.msra.mxu0 %v3511
        %5620 = vmatpush.bf16.msra.mxu0 %v3503
        %5621 = vmatpush.bf16.msra.mxu0 %v3495
        %5622 = vmatpush.bf16.msra.mxu0 %v3487
        %5623 = vmatpush.bf16.msra.mxu0 %v3479
        %5624 = vmatmul.bf16.gmra.mxu0 %v1094
        %v5625 = vpop.f32.mrf.mxu0
        %v5626 = vadd.f32 %v5577, %v5625
        %v5627 = vpop.f32.mrf.mxu0
        %v5628 = vadd.f32 %v5579, %v5627
        %5629 = vmatmul.bf16.gmra.mxu0 %v1102
        %v5630 = vpop.f32.mrf.mxu0
        %v5631 = vadd.f32 %v5582, %v5630
        %v5632 = vpop.f32.mrf.mxu0
        %v5633 = vadd.f32 %v5584, %v5632
        %5634 = vmatmul.bf16.gmra.mxu0 %v1110
        %v5635 = vpop.f32.mrf.mxu0
        %v5636 = vadd.f32 %v5587, %v5635
        %v5637 = vpop.f32.mrf.mxu0
        %v5638 = vadd.f32 %v5589, %v5637
        %5639 = vmatmul.bf16.gmra.mxu0 %v1118
        %v5640 = vpop.f32.mrf.mxu0
        %v5641 = vadd.f32 %v5592, %v5640
        %v5642 = vpop.f32.mrf.mxu0
        %v5643 = vadd.f32 %v5594, %v5642
        %5644 = vmatmul.bf16.gmra.mxu0 %v1126
        %v5645 = vpop.f32.mrf.mxu0
        %v5646 = vadd.f32 %v5597, %v5645
        %v5647 = vpop.f32.mrf.mxu0
        %v5648 = vadd.f32 %v5599, %v5647
        %5649 = vmatmul.bf16.gmra.mxu0 %v1134
        %v5650 = vpop.f32.mrf.mxu0
        %v5651 = vadd.f32 %v5602, %v5650
        %v5652 = vpop.f32.mrf.mxu0
        %v5653 = vadd.f32 %v5604, %v5652
        %5654 = vmatmul.bf16.gmra.mxu0 %v1142
        %v5655 = vpop.f32.mrf.mxu0
        %v5656 = vadd.f32 %v5607, %v5655
        %v5657 = vpop.f32.mrf.mxu0
        %v5658 = vadd.f32 %v5609, %v5657
        %5659 = vmatmul.bf16.gmra.mxu0 %v1150
        %v5660 = vpop.f32.mrf.mxu0
        %v5661 = vadd.f32 %v5612, %v5660
        %v5662 = vpop.f32.mrf.mxu0
        %v5663 = vadd.f32 %v5614, %v5662
        %5664 = vdwg.mxu0
        %5665 = vmatpush.bf16.msra.mxu0 %v3599
        %5666 = vmatpush.bf16.msra.mxu0 %v3591
        %5667 = vmatpush.bf16.msra.mxu0 %v3583
        %5668 = vmatpush.bf16.msra.mxu0 %v3575
        %5669 = vmatpush.bf16.msra.mxu0 %v3567
        %5670 = vmatpush.bf16.msra.mxu0 %v3559
        %5671 = vmatpush.bf16.msra.mxu0 %v3551
        %5672 = vmatpush.bf16.msra.mxu0 %v3543
        %5673 = vmatmul.bf16.gmra.mxu0 %v1095
        %v5674 = vpop.f32.mrf.mxu0
        %v5675 = vadd.f32 %v5626, %v5674
        %v5676 = vpop.f32.mrf.mxu0
        %v5677 = vadd.f32 %v5628, %v5676
        %5678 = vmatmul.bf16.gmra.mxu0 %v1103
        %v5679 = vpop.f32.mrf.mxu0
        %v5680 = vadd.f32 %v5631, %v5679
        %v5681 = vpop.f32.mrf.mxu0
        %v5682 = vadd.f32 %v5633, %v5681
        %5683 = vmatmul.bf16.gmra.mxu0 %v1111
        %v5684 = vpop.f32.mrf.mxu0
        %v5685 = vadd.f32 %v5636, %v5684
        %v5686 = vpop.f32.mrf.mxu0
        %v5687 = vadd.f32 %v5638, %v5686
        %5688 = vmatmul.bf16.gmra.mxu0 %v1119
        %v5689 = vpop.f32.mrf.mxu0
        %v5690 = vadd.f32 %v5641, %v5689
        %v5691 = vpop.f32.mrf.mxu0
        %v5692 = vadd.f32 %v5643, %v5691
        %5693 = vmatmul.bf16.gmra.mxu0 %v1127
        %v5694 = vpop.f32.mrf.mxu0
        %v5695 = vadd.f32 %v5646, %v5694
        %v5696 = vpop.f32.mrf.mxu0
        %v5697 = vadd.f32 %v5648, %v5696
        %5698 = vmatmul.bf16.gmra.mxu0 %v1135
        %v5699 = vpop.f32.mrf.mxu0
        %v5700 = vadd.f32 %v5651, %v5699
        %v5701 = vpop.f32.mrf.mxu0
        %v5702 = vadd.f32 %v5653, %v5701
        %5703 = vmatmul.bf16.gmra.mxu0 %v1143
        %v5704 = vpop.f32.mrf.mxu0
        %v5705 = vadd.f32 %v5656, %v5704
        %v5706 = vpop.f32.mrf.mxu0
        %v5707 = vadd.f32 %v5658, %v5706
        %5708 = vmatmul.bf16.gmra.mxu0 %v1151
        %v5709 = vpop.f32.mrf.mxu0
        %v5710 = vadd.f32 %v5661, %v5709
        %v5711 = vpop.f32.mrf.mxu0
        %v5712 = vadd.f32 %v5663, %v5711
        %5713 = vdwg.mxu0
        %5714 = vmatpush.bf16.msra.mxu0 %v3663
        %5715 = vmatpush.bf16.msra.mxu0 %v3655
        %5716 = vmatpush.bf16.msra.mxu0 %v3647
        %5717 = vmatpush.bf16.msra.mxu0 %v3639
        %5718 = vmatpush.bf16.msra.mxu0 %v3631
        %5719 = vmatpush.bf16.msra.mxu0 %v3623
        %5720 = vmatpush.bf16.msra.mxu0 %v3615
        %5721 = vmatpush.bf16.msra.mxu0 %v3607
        %5722 = vmatmul.bf16.gmra.mxu0 %v1096
        %v5723 = vpop.f32.mrf.mxu0
        %v5724 = vadd.f32 %v5675, %v5723
        %v5725 = vpop.f32.mrf.mxu0
        %v5726 = vadd.f32 %v5677, %v5725
        %5727 = vmatmul.bf16.gmra.mxu0 %v1104
        %v5728 = vpop.f32.mrf.mxu0
        %v5729 = vadd.f32 %v5680, %v5728
        %v5730 = vpop.f32.mrf.mxu0
        %v5731 = vadd.f32 %v5682, %v5730
        %5732 = vmatmul.bf16.gmra.mxu0 %v1112
        %v5733 = vpop.f32.mrf.mxu0
        %v5734 = vadd.f32 %v5685, %v5733
        %v5735 = vpop.f32.mrf.mxu0
        %v5736 = vadd.f32 %v5687, %v5735
        %5737 = vmatmul.bf16.gmra.mxu0 %v1120
        %v5738 = vpop.f32.mrf.mxu0
        %v5739 = vadd.f32 %v5690, %v5738
        %v5740 = vpop.f32.mrf.mxu0
        %v5741 = vadd.f32 %v5692, %v5740
        %5742 = vmatmul.bf16.gmra.mxu0 %v1128
        %v5743 = vpop.f32.mrf.mxu0
        %v5744 = vadd.f32 %v5695, %v5743
        %v5745 = vpop.f32.mrf.mxu0
        %v5746 = vadd.f32 %v5697, %v5745
        %5747 = vmatmul.bf16.gmra.mxu0 %v1136
        %v5748 = vpop.f32.mrf.mxu0
        %v5749 = vadd.f32 %v5700, %v5748
        %v5750 = vpop.f32.mrf.mxu0
        %v5751 = vadd.f32 %v5702, %v5750
        %5752 = vmatmul.bf16.gmra.mxu0 %v1144
        %v5753 = vpop.f32.mrf.mxu0
        %v5754 = vadd.f32 %v5705, %v5753
        %v5755 = vpop.f32.mrf.mxu0
        %v5756 = vadd.f32 %v5707, %v5755
        %5757 = vmatmul.bf16.gmra.mxu0 %v1152
        %v5758 = vpop.f32.mrf.mxu0
        %v5759 = vadd.f32 %v5710, %v5758
        %v5760 = vpop.f32.mrf.mxu0
        %v5761 = vadd.f32 %v5712, %v5760
        %5762 = vdwg.mxu0
        %5763 = vmatpush.bf16.msra.mxu0 %v3727
        %5764 = vmatpush.bf16.msra.mxu0 %v3719
        %5765 = vmatpush.bf16.msra.mxu0 %v3711
        %5766 = vmatpush.bf16.msra.mxu0 %v3703
        %5767 = vmatpush.bf16.msra.mxu0 %v3695
        %5768 = vmatpush.bf16.msra.mxu0 %v3687
        %5769 = vmatpush.bf16.msra.mxu0 %v3679
        %5770 = vmatpush.bf16.msra.mxu0 %v3671
        %5771 = vmatmul.bf16.gmra.mxu0 %v1097
        %v5772 = vpop.f32.mrf.mxu0
        %v5773 = vadd.f32 %v5724, %v5772
        %v5774 = vpop.f32.mrf.mxu0
        %v5775 = vadd.f32 %v5726, %v5774
        %5776 = vmatmul.bf16.gmra.mxu0 %v1105
        %v5777 = vpop.f32.mrf.mxu0
        %v5778 = vadd.f32 %v5729, %v5777
        %v5779 = vpop.f32.mrf.mxu0
        %v5780 = vadd.f32 %v5731, %v5779
        %5781 = vmatmul.bf16.gmra.mxu0 %v1113
        %v5782 = vpop.f32.mrf.mxu0
        %v5783 = vadd.f32 %v5734, %v5782
        %v5784 = vpop.f32.mrf.mxu0
        %v5785 = vadd.f32 %v5736, %v5784
        %5786 = vmatmul.bf16.gmra.mxu0 %v1121
        %v5787 = vpop.f32.mrf.mxu0
        %v5788 = vadd.f32 %v5739, %v5787
        %v5789 = vpop.f32.mrf.mxu0
        %v5790 = vadd.f32 %v5741, %v5789
        %5791 = vmatmul.bf16.gmra.mxu0 %v1129
        %v5792 = vpop.f32.mrf.mxu0
        %v5793 = vadd.f32 %v5744, %v5792
        %v5794 = vpop.f32.mrf.mxu0
        %v5795 = vadd.f32 %v5746, %v5794
        %5796 = vmatmul.bf16.gmra.mxu0 %v1137
        %v5797 = vpop.f32.mrf.mxu0
        %v5798 = vadd.f32 %v5749, %v5797
        %v5799 = vpop.f32.mrf.mxu0
        %v5800 = vadd.f32 %v5751, %v5799
        %5801 = vmatmul.bf16.gmra.mxu0 %v1145
        %v5802 = vpop.f32.mrf.mxu0
        %v5803 = vadd.f32 %v5754, %v5802
        %v5804 = vpop.f32.mrf.mxu0
        %v5805 = vadd.f32 %v5756, %v5804
        %5806 = vmatmul.bf16.gmra.mxu0 %v1153
        %v5807 = vpop.f32.mrf.mxu0
        %v5808 = vadd.f32 %v5759, %v5807
        %v5809 = vpop.f32.mrf.mxu0
        %v5810 = vadd.f32 %v5761, %v5809
        %5811 = vdwg.mxu0
        %5812 = vmatpush.bf16.msra.mxu0 %v3280
        %5813 = vmatpush.bf16.msra.mxu0 %v3272
        %5814 = vmatpush.bf16.msra.mxu0 %v3264
        %5815 = vmatpush.bf16.msra.mxu0 %v3256
        %5816 = vmatpush.bf16.msra.mxu0 %v3248
        %5817 = vmatpush.bf16.msra.mxu0 %v3240
        %5818 = vmatpush.bf16.msra.mxu0 %v3232
        %5819 = vmatpush.bf16.msra.mxu0 %v3224
        %5820 = vmatmul.bf16.gmra.mxu0 %v1090
        %v5821 = vpop.f32.mrf.mxu0
        %v5822 = vadd.f32 %v1672, %v5821
        %v5823 = vpop.f32.mrf.mxu0
        %v5824 = vadd.f32 %v1672, %v5823
        %5825 = vmatmul.bf16.gmra.mxu0 %v1098
        %v5826 = vpop.f32.mrf.mxu0
        %v5827 = vadd.f32 %v1672, %v5826
        %v5828 = vpop.f32.mrf.mxu0
        %v5829 = vadd.f32 %v1672, %v5828
        %5830 = vmatmul.bf16.gmra.mxu0 %v1106
        %v5831 = vpop.f32.mrf.mxu0
        %v5832 = vadd.f32 %v1672, %v5831
        %v5833 = vpop.f32.mrf.mxu0
        %v5834 = vadd.f32 %v1672, %v5833
        %5835 = vmatmul.bf16.gmra.mxu0 %v1114
        %v5836 = vpop.f32.mrf.mxu0
        %v5837 = vadd.f32 %v1672, %v5836
        %v5838 = vpop.f32.mrf.mxu0
        %v5839 = vadd.f32 %v1672, %v5838
        %5840 = vmatmul.bf16.gmra.mxu0 %v1122
        %v5841 = vpop.f32.mrf.mxu0
        %v5842 = vadd.f32 %v1672, %v5841
        %v5843 = vpop.f32.mrf.mxu0
        %v5844 = vadd.f32 %v1672, %v5843
        %5845 = vmatmul.bf16.gmra.mxu0 %v1130
        %v5846 = vpop.f32.mrf.mxu0
        %v5847 = vadd.f32 %v1672, %v5846
        %v5848 = vpop.f32.mrf.mxu0
        %v5849 = vadd.f32 %v1672, %v5848
        %5850 = vmatmul.bf16.gmra.mxu0 %v1138
        %v5851 = vpop.f32.mrf.mxu0
        %v5852 = vadd.f32 %v1672, %v5851
        %v5853 = vpop.f32.mrf.mxu0
        %v5854 = vadd.f32 %v1672, %v5853
        %5855 = vmatmul.bf16.gmra.mxu0 %v1146
        %v5856 = vpop.f32.mrf.mxu0
        %v5857 = vadd.f32 %v1672, %v5856
        %v5858 = vpop.f32.mrf.mxu0
        %v5859 = vadd.f32 %v1672, %v5858
        %5860 = vdwg.mxu0
        %5861 = vmatpush.bf16.msra.mxu0 %v3344
        %5862 = vmatpush.bf16.msra.mxu0 %v3336
        %5863 = vmatpush.bf16.msra.mxu0 %v3328
        %5864 = vmatpush.bf16.msra.mxu0 %v3320
        %5865 = vmatpush.bf16.msra.mxu0 %v3312
        %5866 = vmatpush.bf16.msra.mxu0 %v3304
        %5867 = vmatpush.bf16.msra.mxu0 %v3296
        %5868 = vmatpush.bf16.msra.mxu0 %v3288
        %5869 = vmatmul.bf16.gmra.mxu0 %v1091
        %v5870 = vpop.f32.mrf.mxu0
        %v5871 = vadd.f32 %v5822, %v5870
        %v5872 = vpop.f32.mrf.mxu0
        %v5873 = vadd.f32 %v5824, %v5872
        %5874 = vmatmul.bf16.gmra.mxu0 %v1099
        %v5875 = vpop.f32.mrf.mxu0
        %v5876 = vadd.f32 %v5827, %v5875
        %v5877 = vpop.f32.mrf.mxu0
        %v5878 = vadd.f32 %v5829, %v5877
        %5879 = vmatmul.bf16.gmra.mxu0 %v1107
        %v5880 = vpop.f32.mrf.mxu0
        %v5881 = vadd.f32 %v5832, %v5880
        %v5882 = vpop.f32.mrf.mxu0
        %v5883 = vadd.f32 %v5834, %v5882
        %5884 = vmatmul.bf16.gmra.mxu0 %v1115
        %v5885 = vpop.f32.mrf.mxu0
        %v5886 = vadd.f32 %v5837, %v5885
        %v5887 = vpop.f32.mrf.mxu0
        %v5888 = vadd.f32 %v5839, %v5887
        %5889 = vmatmul.bf16.gmra.mxu0 %v1123
        %v5890 = vpop.f32.mrf.mxu0
        %v5891 = vadd.f32 %v5842, %v5890
        %v5892 = vpop.f32.mrf.mxu0
        %v5893 = vadd.f32 %v5844, %v5892
        %5894 = vmatmul.bf16.gmra.mxu0 %v1131
        %v5895 = vpop.f32.mrf.mxu0
        %v5896 = vadd.f32 %v5847, %v5895
        %v5897 = vpop.f32.mrf.mxu0
        %v5898 = vadd.f32 %v5849, %v5897
        %5899 = vmatmul.bf16.gmra.mxu0 %v1139
        %v5900 = vpop.f32.mrf.mxu0
        %v5901 = vadd.f32 %v5852, %v5900
        %v5902 = vpop.f32.mrf.mxu0
        %v5903 = vadd.f32 %v5854, %v5902
        %5904 = vmatmul.bf16.gmra.mxu0 %v1147
        %v5905 = vpop.f32.mrf.mxu0
        %v5906 = vadd.f32 %v5857, %v5905
        %v5907 = vpop.f32.mrf.mxu0
        %v5908 = vadd.f32 %v5859, %v5907
        %5909 = vdwg.mxu0
        %5910 = vmatpush.bf16.msra.mxu0 %v3408
        %5911 = vmatpush.bf16.msra.mxu0 %v3400
        %5912 = vmatpush.bf16.msra.mxu0 %v3392
        %5913 = vmatpush.bf16.msra.mxu0 %v3384
        %5914 = vmatpush.bf16.msra.mxu0 %v3376
        %5915 = vmatpush.bf16.msra.mxu0 %v3368
        %5916 = vmatpush.bf16.msra.mxu0 %v3360
        %5917 = vmatpush.bf16.msra.mxu0 %v3352
        %5918 = vmatmul.bf16.gmra.mxu0 %v1092
        %v5919 = vpop.f32.mrf.mxu0
        %v5920 = vadd.f32 %v5871, %v5919
        %v5921 = vpop.f32.mrf.mxu0
        %v5922 = vadd.f32 %v5873, %v5921
        %5923 = vmatmul.bf16.gmra.mxu0 %v1100
        %v5924 = vpop.f32.mrf.mxu0
        %v5925 = vadd.f32 %v5876, %v5924
        %v5926 = vpop.f32.mrf.mxu0
        %v5927 = vadd.f32 %v5878, %v5926
        %5928 = vmatmul.bf16.gmra.mxu0 %v1108
        %v5929 = vpop.f32.mrf.mxu0
        %v5930 = vadd.f32 %v5881, %v5929
        %v5931 = vpop.f32.mrf.mxu0
        %v5932 = vadd.f32 %v5883, %v5931
        %5933 = vmatmul.bf16.gmra.mxu0 %v1116
        %v5934 = vpop.f32.mrf.mxu0
        %v5935 = vadd.f32 %v5886, %v5934
        %v5936 = vpop.f32.mrf.mxu0
        %v5937 = vadd.f32 %v5888, %v5936
        %5938 = vmatmul.bf16.gmra.mxu0 %v1124
        %v5939 = vpop.f32.mrf.mxu0
        %v5940 = vadd.f32 %v5891, %v5939
        %v5941 = vpop.f32.mrf.mxu0
        %v5942 = vadd.f32 %v5893, %v5941
        %5943 = vmatmul.bf16.gmra.mxu0 %v1132
        %v5944 = vpop.f32.mrf.mxu0
        %v5945 = vadd.f32 %v5896, %v5944
        %v5946 = vpop.f32.mrf.mxu0
        %v5947 = vadd.f32 %v5898, %v5946
        %5948 = vmatmul.bf16.gmra.mxu0 %v1140
        %v5949 = vpop.f32.mrf.mxu0
        %v5950 = vadd.f32 %v5901, %v5949
        %v5951 = vpop.f32.mrf.mxu0
        %v5952 = vadd.f32 %v5903, %v5951
        %5953 = vmatmul.bf16.gmra.mxu0 %v1148
        %v5954 = vpop.f32.mrf.mxu0
        %v5955 = vadd.f32 %v5906, %v5954
        %v5956 = vpop.f32.mrf.mxu0
        %v5957 = vadd.f32 %v5908, %v5956
        %5958 = vdwg.mxu0
        %5959 = vmatpush.bf16.msra.mxu0 %v3472
        %5960 = vmatpush.bf16.msra.mxu0 %v3464
        %5961 = vmatpush.bf16.msra.mxu0 %v3456
        %5962 = vmatpush.bf16.msra.mxu0 %v3448
        %5963 = vmatpush.bf16.msra.mxu0 %v3440
        %5964 = vmatpush.bf16.msra.mxu0 %v3432
        %5965 = vmatpush.bf16.msra.mxu0 %v3424
        %5966 = vmatpush.bf16.msra.mxu0 %v3416
        %5967 = vmatmul.bf16.gmra.mxu0 %v1093
        %v5968 = vpop.f32.mrf.mxu0
        %v5969 = vadd.f32 %v5920, %v5968
        %v5970 = vpop.f32.mrf.mxu0
        %v5971 = vadd.f32 %v5922, %v5970
        %5972 = vmatmul.bf16.gmra.mxu0 %v1101
        %v5973 = vpop.f32.mrf.mxu0
        %v5974 = vadd.f32 %v5925, %v5973
        %v5975 = vpop.f32.mrf.mxu0
        %v5976 = vadd.f32 %v5927, %v5975
        %5977 = vmatmul.bf16.gmra.mxu0 %v1109
        %v5978 = vpop.f32.mrf.mxu0
        %v5979 = vadd.f32 %v5930, %v5978
        %v5980 = vpop.f32.mrf.mxu0
        %v5981 = vadd.f32 %v5932, %v5980
        %5982 = vmatmul.bf16.gmra.mxu0 %v1117
        %v5983 = vpop.f32.mrf.mxu0
        %v5984 = vadd.f32 %v5935, %v5983
        %v5985 = vpop.f32.mrf.mxu0
        %v5986 = vadd.f32 %v5937, %v5985
        %5987 = vmatmul.bf16.gmra.mxu0 %v1125
        %v5988 = vpop.f32.mrf.mxu0
        %v5989 = vadd.f32 %v5940, %v5988
        %v5990 = vpop.f32.mrf.mxu0
        %v5991 = vadd.f32 %v5942, %v5990
        %5992 = vmatmul.bf16.gmra.mxu0 %v1133
        %v5993 = vpop.f32.mrf.mxu0
        %v5994 = vadd.f32 %v5945, %v5993
        %v5995 = vpop.f32.mrf.mxu0
        %v5996 = vadd.f32 %v5947, %v5995
        %5997 = vmatmul.bf16.gmra.mxu0 %v1141
        %v5998 = vpop.f32.mrf.mxu0
        %v5999 = vadd.f32 %v5950, %v5998
        %v6000 = vpop.f32.mrf.mxu0
        %v6001 = vadd.f32 %v5952, %v6000
        %6002 = vmatmul.bf16.gmra.mxu0 %v1149
        %v6003 = vpop.f32.mrf.mxu0
        %v6004 = vadd.f32 %v5955, %v6003
        %v6005 = vpop.f32.mrf.mxu0
        %v6006 = vadd.f32 %v5957, %v6005
        %6007 = vdwg.mxu0
        %6008 = vmatpush.bf16.msra.mxu0 %v3536
        %6009 = vmatpush.bf16.msra.mxu0 %v3528
        %6010 = vmatpush.bf16.msra.mxu0 %v3520
        %6011 = vmatpush.bf16.msra.mxu0 %v3512
        %6012 = vmatpush.bf16.msra.mxu0 %v3504
        %6013 = vmatpush.bf16.msra.mxu0 %v3496
        %6014 = vmatpush.bf16.msra.mxu0 %v3488
        %6015 = vmatpush.bf16.msra.mxu0 %v3480
        %6016 = vmatmul.bf16.gmra.mxu0 %v1094
        %v6017 = vpop.f32.mrf.mxu0
        %v6018 = vadd.f32 %v5969, %v6017
        %v6019 = vpop.f32.mrf.mxu0
        %v6020 = vadd.f32 %v5971, %v6019
        %6021 = vmatmul.bf16.gmra.mxu0 %v1102
        %v6022 = vpop.f32.mrf.mxu0
        %v6023 = vadd.f32 %v5974, %v6022
        %v6024 = vpop.f32.mrf.mxu0
        %v6025 = vadd.f32 %v5976, %v6024
        %6026 = vmatmul.bf16.gmra.mxu0 %v1110
        %v6027 = vpop.f32.mrf.mxu0
        %v6028 = vadd.f32 %v5979, %v6027
        %v6029 = vpop.f32.mrf.mxu0
        %v6030 = vadd.f32 %v5981, %v6029
        %6031 = vmatmul.bf16.gmra.mxu0 %v1118
        %v6032 = vpop.f32.mrf.mxu0
        %v6033 = vadd.f32 %v5984, %v6032
        %v6034 = vpop.f32.mrf.mxu0
        %v6035 = vadd.f32 %v5986, %v6034
        %6036 = vmatmul.bf16.gmra.mxu0 %v1126
        %v6037 = vpop.f32.mrf.mxu0
        %v6038 = vadd.f32 %v5989, %v6037
        %v6039 = vpop.f32.mrf.mxu0
        %v6040 = vadd.f32 %v5991, %v6039
        %6041 = vmatmul.bf16.gmra.mxu0 %v1134
        %v6042 = vpop.f32.mrf.mxu0
        %v6043 = vadd.f32 %v5994, %v6042
        %v6044 = vpop.f32.mrf.mxu0
        %v6045 = vadd.f32 %v5996, %v6044
        %6046 = vmatmul.bf16.gmra.mxu0 %v1142
        %v6047 = vpop.f32.mrf.mxu0
        %v6048 = vadd.f32 %v5999, %v6047
        %v6049 = vpop.f32.mrf.mxu0
        %v6050 = vadd.f32 %v6001, %v6049
        %6051 = vmatmul.bf16.gmra.mxu0 %v1150
        %v6052 = vpop.f32.mrf.mxu0
        %v6053 = vadd.f32 %v6004, %v6052
        %v6054 = vpop.f32.mrf.mxu0
        %v6055 = vadd.f32 %v6006, %v6054
        %6056 = vdwg.mxu0
        %6057 = vmatpush.bf16.msra.mxu0 %v3600
        %6058 = vmatpush.bf16.msra.mxu0 %v3592
        %6059 = vmatpush.bf16.msra.mxu0 %v3584
        %6060 = vmatpush.bf16.msra.mxu0 %v3576
        %6061 = vmatpush.bf16.msra.mxu0 %v3568
        %6062 = vmatpush.bf16.msra.mxu0 %v3560
        %6063 = vmatpush.bf16.msra.mxu0 %v3552
        %6064 = vmatpush.bf16.msra.mxu0 %v3544
        %6065 = vmatmul.bf16.gmra.mxu0 %v1095
        %v6066 = vpop.f32.mrf.mxu0
        %v6067 = vadd.f32 %v6018, %v6066
        %v6068 = vpop.f32.mrf.mxu0
        %v6069 = vadd.f32 %v6020, %v6068
        %6070 = vmatmul.bf16.gmra.mxu0 %v1103
        %v6071 = vpop.f32.mrf.mxu0
        %v6072 = vadd.f32 %v6023, %v6071
        %v6073 = vpop.f32.mrf.mxu0
        %v6074 = vadd.f32 %v6025, %v6073
        %6075 = vmatmul.bf16.gmra.mxu0 %v1111
        %v6076 = vpop.f32.mrf.mxu0
        %v6077 = vadd.f32 %v6028, %v6076
        %v6078 = vpop.f32.mrf.mxu0
        %v6079 = vadd.f32 %v6030, %v6078
        %6080 = vmatmul.bf16.gmra.mxu0 %v1119
        %v6081 = vpop.f32.mrf.mxu0
        %v6082 = vadd.f32 %v6033, %v6081
        %v6083 = vpop.f32.mrf.mxu0
        %v6084 = vadd.f32 %v6035, %v6083
        %6085 = vmatmul.bf16.gmra.mxu0 %v1127
        %v6086 = vpop.f32.mrf.mxu0
        %v6087 = vadd.f32 %v6038, %v6086
        %v6088 = vpop.f32.mrf.mxu0
        %v6089 = vadd.f32 %v6040, %v6088
        %6090 = vmatmul.bf16.gmra.mxu0 %v1135
        %v6091 = vpop.f32.mrf.mxu0
        %v6092 = vadd.f32 %v6043, %v6091
        %v6093 = vpop.f32.mrf.mxu0
        %v6094 = vadd.f32 %v6045, %v6093
        %6095 = vmatmul.bf16.gmra.mxu0 %v1143
        %v6096 = vpop.f32.mrf.mxu0
        %v6097 = vadd.f32 %v6048, %v6096
        %v6098 = vpop.f32.mrf.mxu0
        %v6099 = vadd.f32 %v6050, %v6098
        %6100 = vmatmul.bf16.gmra.mxu0 %v1151
        %v6101 = vpop.f32.mrf.mxu0
        %v6102 = vadd.f32 %v6053, %v6101
        %v6103 = vpop.f32.mrf.mxu0
        %v6104 = vadd.f32 %v6055, %v6103
        %6105 = vdwg.mxu0
        %6106 = vmatpush.bf16.msra.mxu0 %v3664
        %6107 = vmatpush.bf16.msra.mxu0 %v3656
        %6108 = vmatpush.bf16.msra.mxu0 %v3648
        %6109 = vmatpush.bf16.msra.mxu0 %v3640
        %6110 = vmatpush.bf16.msra.mxu0 %v3632
        %6111 = vmatpush.bf16.msra.mxu0 %v3624
        %6112 = vmatpush.bf16.msra.mxu0 %v3616
        %6113 = vmatpush.bf16.msra.mxu0 %v3608
        %6114 = vmatmul.bf16.gmra.mxu0 %v1096
        %v6115 = vpop.f32.mrf.mxu0
        %v6116 = vadd.f32 %v6067, %v6115
        %v6117 = vpop.f32.mrf.mxu0
        %v6118 = vadd.f32 %v6069, %v6117
        %6119 = vmatmul.bf16.gmra.mxu0 %v1104
        %v6120 = vpop.f32.mrf.mxu0
        %v6121 = vadd.f32 %v6072, %v6120
        %v6122 = vpop.f32.mrf.mxu0
        %v6123 = vadd.f32 %v6074, %v6122
        %6124 = vmatmul.bf16.gmra.mxu0 %v1112
        %v6125 = vpop.f32.mrf.mxu0
        %v6126 = vadd.f32 %v6077, %v6125
        %v6127 = vpop.f32.mrf.mxu0
        %v6128 = vadd.f32 %v6079, %v6127
        %6129 = vmatmul.bf16.gmra.mxu0 %v1120
        %v6130 = vpop.f32.mrf.mxu0
        %v6131 = vadd.f32 %v6082, %v6130
        %v6132 = vpop.f32.mrf.mxu0
        %v6133 = vadd.f32 %v6084, %v6132
        %6134 = vmatmul.bf16.gmra.mxu0 %v1128
        %v6135 = vpop.f32.mrf.mxu0
        %v6136 = vadd.f32 %v6087, %v6135
        %v6137 = vpop.f32.mrf.mxu0
        %v6138 = vadd.f32 %v6089, %v6137
        %6139 = vmatmul.bf16.gmra.mxu0 %v1136
        %v6140 = vpop.f32.mrf.mxu0
        %v6141 = vadd.f32 %v6092, %v6140
        %v6142 = vpop.f32.mrf.mxu0
        %v6143 = vadd.f32 %v6094, %v6142
        %6144 = vmatmul.bf16.gmra.mxu0 %v1144
        %v6145 = vpop.f32.mrf.mxu0
        %v6146 = vadd.f32 %v6097, %v6145
        %v6147 = vpop.f32.mrf.mxu0
        %v6148 = vadd.f32 %v6099, %v6147
        %6149 = vmatmul.bf16.gmra.mxu0 %v1152
        %v6150 = vpop.f32.mrf.mxu0
        %v6151 = vadd.f32 %v6102, %v6150
        %v6152 = vpop.f32.mrf.mxu0
        %v6153 = vadd.f32 %v6104, %v6152
        %6154 = vdwg.mxu0
        %6155 = vmatpush.bf16.msra.mxu0 %v3728
        %6156 = vmatpush.bf16.msra.mxu0 %v3720
        %6157 = vmatpush.bf16.msra.mxu0 %v3712
        %6158 = vmatpush.bf16.msra.mxu0 %v3704
        %6159 = vmatpush.bf16.msra.mxu0 %v3696
        %6160 = vmatpush.bf16.msra.mxu0 %v3688
        %6161 = vmatpush.bf16.msra.mxu0 %v3680
        %6162 = vmatpush.bf16.msra.mxu0 %v3672
        %6163 = vmatmul.bf16.gmra.mxu0 %v1097
        %v6164 = vpop.f32.mrf.mxu0
        %v6165 = vadd.f32 %v6116, %v6164
        %v6166 = vpop.f32.mrf.mxu0
        %v6167 = vadd.f32 %v6118, %v6166
        %6168 = vmatmul.bf16.gmra.mxu0 %v1105
        %v6169 = vpop.f32.mrf.mxu0
        %v6170 = vadd.f32 %v6121, %v6169
        %v6171 = vpop.f32.mrf.mxu0
        %v6172 = vadd.f32 %v6123, %v6171
        %6173 = vmatmul.bf16.gmra.mxu0 %v1113
        %v6174 = vpop.f32.mrf.mxu0
        %v6175 = vadd.f32 %v6126, %v6174
        %v6176 = vpop.f32.mrf.mxu0
        %v6177 = vadd.f32 %v6128, %v6176
        %6178 = vmatmul.bf16.gmra.mxu0 %v1121
        %v6179 = vpop.f32.mrf.mxu0
        %v6180 = vadd.f32 %v6131, %v6179
        %v6181 = vpop.f32.mrf.mxu0
        %v6182 = vadd.f32 %v6133, %v6181
        %6183 = vmatmul.bf16.gmra.mxu0 %v1129
        %v6184 = vpop.f32.mrf.mxu0
        %v6185 = vadd.f32 %v6136, %v6184
        %v6186 = vpop.f32.mrf.mxu0
        %v6187 = vadd.f32 %v6138, %v6186
        %6188 = vmatmul.bf16.gmra.mxu0 %v1137
        %v6189 = vpop.f32.mrf.mxu0
        %v6190 = vadd.f32 %v6141, %v6189
        %v6191 = vpop.f32.mrf.mxu0
        %v6192 = vadd.f32 %v6143, %v6191
        %6193 = vmatmul.bf16.gmra.mxu0 %v1145
        %v6194 = vpop.f32.mrf.mxu0
        %v6195 = vadd.f32 %v6146, %v6194
        %v6196 = vpop.f32.mrf.mxu0
        %v6197 = vadd.f32 %v6148, %v6196
        %6198 = vmatmul.bf16.gmra.mxu0 %v1153
        %v6199 = vpop.f32.mrf.mxu0
        %v6200 = vadd.f32 %v6151, %v6199
        %v6201 = vpop.f32.mrf.mxu0
        %v6202 = vadd.f32 %v6153, %v6201
        %6203 = vdwg.mxu0
        %6204 = vmatpush.bf16.msra.mxu0 %v3281
        %6205 = vmatpush.bf16.msra.mxu0 %v3273
        %6206 = vmatpush.bf16.msra.mxu0 %v3265
        %6207 = vmatpush.bf16.msra.mxu0 %v3257
        %6208 = vmatpush.bf16.msra.mxu0 %v3249
        %6209 = vmatpush.bf16.msra.mxu0 %v3241
        %6210 = vmatpush.bf16.msra.mxu0 %v3233
        %6211 = vmatpush.bf16.msra.mxu0 %v3225
        %6212 = vmatmul.bf16.gmra.mxu0 %v1090
        %v6213 = vpop.f32.mrf.mxu0
        %v6214 = vadd.f32 %v1673, %v6213
        %v6215 = vpop.f32.mrf.mxu0
        %v6216 = vadd.f32 %v1673, %v6215
        %6217 = vmatmul.bf16.gmra.mxu0 %v1098
        %v6218 = vpop.f32.mrf.mxu0
        %v6219 = vadd.f32 %v1673, %v6218
        %v6220 = vpop.f32.mrf.mxu0
        %v6221 = vadd.f32 %v1673, %v6220
        %6222 = vmatmul.bf16.gmra.mxu0 %v1106
        %v6223 = vpop.f32.mrf.mxu0
        %v6224 = vadd.f32 %v1673, %v6223
        %v6225 = vpop.f32.mrf.mxu0
        %v6226 = vadd.f32 %v1673, %v6225
        %6227 = vmatmul.bf16.gmra.mxu0 %v1114
        %v6228 = vpop.f32.mrf.mxu0
        %v6229 = vadd.f32 %v1673, %v6228
        %v6230 = vpop.f32.mrf.mxu0
        %v6231 = vadd.f32 %v1673, %v6230
        %6232 = vmatmul.bf16.gmra.mxu0 %v1122
        %v6233 = vpop.f32.mrf.mxu0
        %v6234 = vadd.f32 %v1673, %v6233
        %v6235 = vpop.f32.mrf.mxu0
        %v6236 = vadd.f32 %v1673, %v6235
        %6237 = vmatmul.bf16.gmra.mxu0 %v1130
        %v6238 = vpop.f32.mrf.mxu0
        %v6239 = vadd.f32 %v1673, %v6238
        %v6240 = vpop.f32.mrf.mxu0
        %v6241 = vadd.f32 %v1673, %v6240
        %6242 = vmatmul.bf16.gmra.mxu0 %v1138
        %v6243 = vpop.f32.mrf.mxu0
        %v6244 = vadd.f32 %v1673, %v6243
        %v6245 = vpop.f32.mrf.mxu0
        %v6246 = vadd.f32 %v1673, %v6245
        %6247 = vmatmul.bf16.gmra.mxu0 %v1146
        %v6248 = vpop.f32.mrf.mxu0
        %v6249 = vadd.f32 %v1673, %v6248
        %v6250 = vpop.f32.mrf.mxu0
        %v6251 = vadd.f32 %v1673, %v6250
        %6252 = vdwg.mxu0
        %6253 = vmatpush.bf16.msra.mxu0 %v3345
        %6254 = vmatpush.bf16.msra.mxu0 %v3337
        %6255 = vmatpush.bf16.msra.mxu0 %v3329
        %6256 = vmatpush.bf16.msra.mxu0 %v3321
        %6257 = vmatpush.bf16.msra.mxu0 %v3313
        %6258 = vmatpush.bf16.msra.mxu0 %v3305
        %6259 = vmatpush.bf16.msra.mxu0 %v3297
        %6260 = vmatpush.bf16.msra.mxu0 %v3289
        %6261 = vmatmul.bf16.gmra.mxu0 %v1091
        %v6262 = vpop.f32.mrf.mxu0
        %v6263 = vadd.f32 %v6214, %v6262
        %v6264 = vpop.f32.mrf.mxu0
        %v6265 = vadd.f32 %v6216, %v6264
        %6266 = vmatmul.bf16.gmra.mxu0 %v1099
        %v6267 = vpop.f32.mrf.mxu0
        %v6268 = vadd.f32 %v6219, %v6267
        %v6269 = vpop.f32.mrf.mxu0
        %v6270 = vadd.f32 %v6221, %v6269
        %6271 = vmatmul.bf16.gmra.mxu0 %v1107
        %v6272 = vpop.f32.mrf.mxu0
        %v6273 = vadd.f32 %v6224, %v6272
        %v6274 = vpop.f32.mrf.mxu0
        %v6275 = vadd.f32 %v6226, %v6274
        %6276 = vmatmul.bf16.gmra.mxu0 %v1115
        %v6277 = vpop.f32.mrf.mxu0
        %v6278 = vadd.f32 %v6229, %v6277
        %v6279 = vpop.f32.mrf.mxu0
        %v6280 = vadd.f32 %v6231, %v6279
        %6281 = vmatmul.bf16.gmra.mxu0 %v1123
        %v6282 = vpop.f32.mrf.mxu0
        %v6283 = vadd.f32 %v6234, %v6282
        %v6284 = vpop.f32.mrf.mxu0
        %v6285 = vadd.f32 %v6236, %v6284
        %6286 = vmatmul.bf16.gmra.mxu0 %v1131
        %v6287 = vpop.f32.mrf.mxu0
        %v6288 = vadd.f32 %v6239, %v6287
        %v6289 = vpop.f32.mrf.mxu0
        %v6290 = vadd.f32 %v6241, %v6289
        %6291 = vmatmul.bf16.gmra.mxu0 %v1139
        %v6292 = vpop.f32.mrf.mxu0
        %v6293 = vadd.f32 %v6244, %v6292
        %v6294 = vpop.f32.mrf.mxu0
        %v6295 = vadd.f32 %v6246, %v6294
        %6296 = vmatmul.bf16.gmra.mxu0 %v1147
        %v6297 = vpop.f32.mrf.mxu0
        %v6298 = vadd.f32 %v6249, %v6297
        %v6299 = vpop.f32.mrf.mxu0
        %v6300 = vadd.f32 %v6251, %v6299
        %6301 = vdwg.mxu0
        %6302 = vmatpush.bf16.msra.mxu0 %v3409
        %6303 = vmatpush.bf16.msra.mxu0 %v3401
        %6304 = vmatpush.bf16.msra.mxu0 %v3393
        %6305 = vmatpush.bf16.msra.mxu0 %v3385
        %6306 = vmatpush.bf16.msra.mxu0 %v3377
        %6307 = vmatpush.bf16.msra.mxu0 %v3369
        %6308 = vmatpush.bf16.msra.mxu0 %v3361
        %6309 = vmatpush.bf16.msra.mxu0 %v3353
        %6310 = vmatmul.bf16.gmra.mxu0 %v1092
        %v6311 = vpop.f32.mrf.mxu0
        %v6312 = vadd.f32 %v6263, %v6311
        %v6313 = vpop.f32.mrf.mxu0
        %v6314 = vadd.f32 %v6265, %v6313
        %6315 = vmatmul.bf16.gmra.mxu0 %v1100
        %v6316 = vpop.f32.mrf.mxu0
        %v6317 = vadd.f32 %v6268, %v6316
        %v6318 = vpop.f32.mrf.mxu0
        %v6319 = vadd.f32 %v6270, %v6318
        %6320 = vmatmul.bf16.gmra.mxu0 %v1108
        %v6321 = vpop.f32.mrf.mxu0
        %v6322 = vadd.f32 %v6273, %v6321
        %v6323 = vpop.f32.mrf.mxu0
        %v6324 = vadd.f32 %v6275, %v6323
        %6325 = vmatmul.bf16.gmra.mxu0 %v1116
        %v6326 = vpop.f32.mrf.mxu0
        %v6327 = vadd.f32 %v6278, %v6326
        %v6328 = vpop.f32.mrf.mxu0
        %v6329 = vadd.f32 %v6280, %v6328
        %6330 = vmatmul.bf16.gmra.mxu0 %v1124
        %v6331 = vpop.f32.mrf.mxu0
        %v6332 = vadd.f32 %v6283, %v6331
        %v6333 = vpop.f32.mrf.mxu0
        %v6334 = vadd.f32 %v6285, %v6333
        %6335 = vmatmul.bf16.gmra.mxu0 %v1132
        %v6336 = vpop.f32.mrf.mxu0
        %v6337 = vadd.f32 %v6288, %v6336
        %v6338 = vpop.f32.mrf.mxu0
        %v6339 = vadd.f32 %v6290, %v6338
        %6340 = vmatmul.bf16.gmra.mxu0 %v1140
        %v6341 = vpop.f32.mrf.mxu0
        %v6342 = vadd.f32 %v6293, %v6341
        %v6343 = vpop.f32.mrf.mxu0
        %v6344 = vadd.f32 %v6295, %v6343
        %6345 = vmatmul.bf16.gmra.mxu0 %v1148
        %v6346 = vpop.f32.mrf.mxu0
        %v6347 = vadd.f32 %v6298, %v6346
        %v6348 = vpop.f32.mrf.mxu0
        %v6349 = vadd.f32 %v6300, %v6348
        %6350 = vdwg.mxu0
        %6351 = vmatpush.bf16.msra.mxu0 %v3473
        %6352 = vmatpush.bf16.msra.mxu0 %v3465
        %6353 = vmatpush.bf16.msra.mxu0 %v3457
        %6354 = vmatpush.bf16.msra.mxu0 %v3449
        %6355 = vmatpush.bf16.msra.mxu0 %v3441
        %6356 = vmatpush.bf16.msra.mxu0 %v3433
        %6357 = vmatpush.bf16.msra.mxu0 %v3425
        %6358 = vmatpush.bf16.msra.mxu0 %v3417
        %6359 = vmatmul.bf16.gmra.mxu0 %v1093
        %v6360 = vpop.f32.mrf.mxu0
        %v6361 = vadd.f32 %v6312, %v6360
        %v6362 = vpop.f32.mrf.mxu0
        %v6363 = vadd.f32 %v6314, %v6362
        %6364 = vmatmul.bf16.gmra.mxu0 %v1101
        %v6365 = vpop.f32.mrf.mxu0
        %v6366 = vadd.f32 %v6317, %v6365
        %v6367 = vpop.f32.mrf.mxu0
        %v6368 = vadd.f32 %v6319, %v6367
        %6369 = vmatmul.bf16.gmra.mxu0 %v1109
        %v6370 = vpop.f32.mrf.mxu0
        %v6371 = vadd.f32 %v6322, %v6370
        %v6372 = vpop.f32.mrf.mxu0
        %v6373 = vadd.f32 %v6324, %v6372
        %6374 = vmatmul.bf16.gmra.mxu0 %v1117
        %v6375 = vpop.f32.mrf.mxu0
        %v6376 = vadd.f32 %v6327, %v6375
        %v6377 = vpop.f32.mrf.mxu0
        %v6378 = vadd.f32 %v6329, %v6377
        %6379 = vmatmul.bf16.gmra.mxu0 %v1125
        %v6380 = vpop.f32.mrf.mxu0
        %v6381 = vadd.f32 %v6332, %v6380
        %v6382 = vpop.f32.mrf.mxu0
        %v6383 = vadd.f32 %v6334, %v6382
        %6384 = vmatmul.bf16.gmra.mxu0 %v1133
        %v6385 = vpop.f32.mrf.mxu0
        %v6386 = vadd.f32 %v6337, %v6385
        %v6387 = vpop.f32.mrf.mxu0
        %v6388 = vadd.f32 %v6339, %v6387
        %6389 = vmatmul.bf16.gmra.mxu0 %v1141
        %v6390 = vpop.f32.mrf.mxu0
        %v6391 = vadd.f32 %v6342, %v6390
        %v6392 = vpop.f32.mrf.mxu0
        %v6393 = vadd.f32 %v6344, %v6392
        %6394 = vmatmul.bf16.gmra.mxu0 %v1149
        %v6395 = vpop.f32.mrf.mxu0
        %v6396 = vadd.f32 %v6347, %v6395
        %v6397 = vpop.f32.mrf.mxu0
        %v6398 = vadd.f32 %v6349, %v6397
        %6399 = vdwg.mxu0
        %6400 = vmatpush.bf16.msra.mxu0 %v3537
        %6401 = vmatpush.bf16.msra.mxu0 %v3529
        %6402 = vmatpush.bf16.msra.mxu0 %v3521
        %6403 = vmatpush.bf16.msra.mxu0 %v3513
        %6404 = vmatpush.bf16.msra.mxu0 %v3505
        %6405 = vmatpush.bf16.msra.mxu0 %v3497
        %6406 = vmatpush.bf16.msra.mxu0 %v3489
        %6407 = vmatpush.bf16.msra.mxu0 %v3481
        %6408 = vmatmul.bf16.gmra.mxu0 %v1094
        %v6409 = vpop.f32.mrf.mxu0
        %v6410 = vadd.f32 %v6361, %v6409
        %v6411 = vpop.f32.mrf.mxu0
        %v6412 = vadd.f32 %v6363, %v6411
        %6413 = vmatmul.bf16.gmra.mxu0 %v1102
        %v6414 = vpop.f32.mrf.mxu0
        %v6415 = vadd.f32 %v6366, %v6414
        %v6416 = vpop.f32.mrf.mxu0
        %v6417 = vadd.f32 %v6368, %v6416
        %6418 = vmatmul.bf16.gmra.mxu0 %v1110
        %v6419 = vpop.f32.mrf.mxu0
        %v6420 = vadd.f32 %v6371, %v6419
        %v6421 = vpop.f32.mrf.mxu0
        %v6422 = vadd.f32 %v6373, %v6421
        %6423 = vmatmul.bf16.gmra.mxu0 %v1118
        %v6424 = vpop.f32.mrf.mxu0
        %v6425 = vadd.f32 %v6376, %v6424
        %v6426 = vpop.f32.mrf.mxu0
        %v6427 = vadd.f32 %v6378, %v6426
        %6428 = vmatmul.bf16.gmra.mxu0 %v1126
        %v6429 = vpop.f32.mrf.mxu0
        %v6430 = vadd.f32 %v6381, %v6429
        %v6431 = vpop.f32.mrf.mxu0
        %v6432 = vadd.f32 %v6383, %v6431
        %6433 = vmatmul.bf16.gmra.mxu0 %v1134
        %v6434 = vpop.f32.mrf.mxu0
        %v6435 = vadd.f32 %v6386, %v6434
        %v6436 = vpop.f32.mrf.mxu0
        %v6437 = vadd.f32 %v6388, %v6436
        %6438 = vmatmul.bf16.gmra.mxu0 %v1142
        %v6439 = vpop.f32.mrf.mxu0
        %v6440 = vadd.f32 %v6391, %v6439
        %v6441 = vpop.f32.mrf.mxu0
        %v6442 = vadd.f32 %v6393, %v6441
        %6443 = vmatmul.bf16.gmra.mxu0 %v1150
        %v6444 = vpop.f32.mrf.mxu0
        %v6445 = vadd.f32 %v6396, %v6444
        %v6446 = vpop.f32.mrf.mxu0
        %v6447 = vadd.f32 %v6398, %v6446
        %6448 = vdwg.mxu0
        %6449 = vmatpush.bf16.msra.mxu0 %v3601
        %6450 = vmatpush.bf16.msra.mxu0 %v3593
        %6451 = vmatpush.bf16.msra.mxu0 %v3585
        %6452 = vmatpush.bf16.msra.mxu0 %v3577
        %6453 = vmatpush.bf16.msra.mxu0 %v3569
        %6454 = vmatpush.bf16.msra.mxu0 %v3561
        %6455 = vmatpush.bf16.msra.mxu0 %v3553
        %6456 = vmatpush.bf16.msra.mxu0 %v3545
        %6457 = vmatmul.bf16.gmra.mxu0 %v1095
        %v6458 = vpop.f32.mrf.mxu0
        %v6459 = vadd.f32 %v6410, %v6458
        %v6460 = vpop.f32.mrf.mxu0
        %v6461 = vadd.f32 %v6412, %v6460
        %6462 = vmatmul.bf16.gmra.mxu0 %v1103
        %v6463 = vpop.f32.mrf.mxu0
        %v6464 = vadd.f32 %v6415, %v6463
        %v6465 = vpop.f32.mrf.mxu0
        %v6466 = vadd.f32 %v6417, %v6465
        %6467 = vmatmul.bf16.gmra.mxu0 %v1111
        %v6468 = vpop.f32.mrf.mxu0
        %v6469 = vadd.f32 %v6420, %v6468
        %v6470 = vpop.f32.mrf.mxu0
        %v6471 = vadd.f32 %v6422, %v6470
        %6472 = vmatmul.bf16.gmra.mxu0 %v1119
        %v6473 = vpop.f32.mrf.mxu0
        %v6474 = vadd.f32 %v6425, %v6473
        %v6475 = vpop.f32.mrf.mxu0
        %v6476 = vadd.f32 %v6427, %v6475
        %6477 = vmatmul.bf16.gmra.mxu0 %v1127
        %v6478 = vpop.f32.mrf.mxu0
        %v6479 = vadd.f32 %v6430, %v6478
        %v6480 = vpop.f32.mrf.mxu0
        %v6481 = vadd.f32 %v6432, %v6480
        %6482 = vmatmul.bf16.gmra.mxu0 %v1135
        %v6483 = vpop.f32.mrf.mxu0
        %v6484 = vadd.f32 %v6435, %v6483
        %v6485 = vpop.f32.mrf.mxu0
        %v6486 = vadd.f32 %v6437, %v6485
        %6487 = vmatmul.bf16.gmra.mxu0 %v1143
        %v6488 = vpop.f32.mrf.mxu0
        %v6489 = vadd.f32 %v6440, %v6488
        %v6490 = vpop.f32.mrf.mxu0
        %v6491 = vadd.f32 %v6442, %v6490
        %6492 = vmatmul.bf16.gmra.mxu0 %v1151
        %v6493 = vpop.f32.mrf.mxu0
        %v6494 = vadd.f32 %v6445, %v6493
        %v6495 = vpop.f32.mrf.mxu0
        %v6496 = vadd.f32 %v6447, %v6495
        %6497 = vdwg.mxu0
        %6498 = vmatpush.bf16.msra.mxu0 %v3665
        %6499 = vmatpush.bf16.msra.mxu0 %v3657
        %6500 = vmatpush.bf16.msra.mxu0 %v3649
        %6501 = vmatpush.bf16.msra.mxu0 %v3641
        %6502 = vmatpush.bf16.msra.mxu0 %v3633
        %6503 = vmatpush.bf16.msra.mxu0 %v3625
        %6504 = vmatpush.bf16.msra.mxu0 %v3617
        %6505 = vmatpush.bf16.msra.mxu0 %v3609
        %6506 = vmatmul.bf16.gmra.mxu0 %v1096
        %v6507 = vpop.f32.mrf.mxu0
        %v6508 = vadd.f32 %v6459, %v6507
        %v6509 = vpop.f32.mrf.mxu0
        %v6510 = vadd.f32 %v6461, %v6509
        %6511 = vmatmul.bf16.gmra.mxu0 %v1104
        %v6512 = vpop.f32.mrf.mxu0
        %v6513 = vadd.f32 %v6464, %v6512
        %v6514 = vpop.f32.mrf.mxu0
        %v6515 = vadd.f32 %v6466, %v6514
        %6516 = vmatmul.bf16.gmra.mxu0 %v1112
        %v6517 = vpop.f32.mrf.mxu0
        %v6518 = vadd.f32 %v6469, %v6517
        %v6519 = vpop.f32.mrf.mxu0
        %v6520 = vadd.f32 %v6471, %v6519
        %6521 = vmatmul.bf16.gmra.mxu0 %v1120
        %v6522 = vpop.f32.mrf.mxu0
        %v6523 = vadd.f32 %v6474, %v6522
        %v6524 = vpop.f32.mrf.mxu0
        %v6525 = vadd.f32 %v6476, %v6524
        %6526 = vmatmul.bf16.gmra.mxu0 %v1128
        %v6527 = vpop.f32.mrf.mxu0
        %v6528 = vadd.f32 %v6479, %v6527
        %v6529 = vpop.f32.mrf.mxu0
        %v6530 = vadd.f32 %v6481, %v6529
        %6531 = vmatmul.bf16.gmra.mxu0 %v1136
        %v6532 = vpop.f32.mrf.mxu0
        %v6533 = vadd.f32 %v6484, %v6532
        %v6534 = vpop.f32.mrf.mxu0
        %v6535 = vadd.f32 %v6486, %v6534
        %6536 = vmatmul.bf16.gmra.mxu0 %v1144
        %v6537 = vpop.f32.mrf.mxu0
        %v6538 = vadd.f32 %v6489, %v6537
        %v6539 = vpop.f32.mrf.mxu0
        %v6540 = vadd.f32 %v6491, %v6539
        %6541 = vmatmul.bf16.gmra.mxu0 %v1152
        %v6542 = vpop.f32.mrf.mxu0
        %v6543 = vadd.f32 %v6494, %v6542
        %v6544 = vpop.f32.mrf.mxu0
        %v6545 = vadd.f32 %v6496, %v6544
        %6546 = vdwg.mxu0
        %6547 = vmatpush.bf16.msra.mxu0 %v3729
        %6548 = vmatpush.bf16.msra.mxu0 %v3721
        %6549 = vmatpush.bf16.msra.mxu0 %v3713
        %6550 = vmatpush.bf16.msra.mxu0 %v3705
        %6551 = vmatpush.bf16.msra.mxu0 %v3697
        %6552 = vmatpush.bf16.msra.mxu0 %v3689
        %6553 = vmatpush.bf16.msra.mxu0 %v3681
        %6554 = vmatpush.bf16.msra.mxu0 %v3673
        %6555 = vmatmul.bf16.gmra.mxu0 %v1097
        %v6556 = vpop.f32.mrf.mxu0
        %v6557 = vadd.f32 %v6508, %v6556
        %v6558 = vpop.f32.mrf.mxu0
        %v6559 = vadd.f32 %v6510, %v6558
        %6560 = vmatmul.bf16.gmra.mxu0 %v1105
        %v6561 = vpop.f32.mrf.mxu0
        %v6562 = vadd.f32 %v6513, %v6561
        %v6563 = vpop.f32.mrf.mxu0
        %v6564 = vadd.f32 %v6515, %v6563
        %6565 = vmatmul.bf16.gmra.mxu0 %v1113
        %v6566 = vpop.f32.mrf.mxu0
        %v6567 = vadd.f32 %v6518, %v6566
        %v6568 = vpop.f32.mrf.mxu0
        %v6569 = vadd.f32 %v6520, %v6568
        %6570 = vmatmul.bf16.gmra.mxu0 %v1121
        %v6571 = vpop.f32.mrf.mxu0
        %v6572 = vadd.f32 %v6523, %v6571
        %v6573 = vpop.f32.mrf.mxu0
        %v6574 = vadd.f32 %v6525, %v6573
        %6575 = vmatmul.bf16.gmra.mxu0 %v1129
        %v6576 = vpop.f32.mrf.mxu0
        %v6577 = vadd.f32 %v6528, %v6576
        %v6578 = vpop.f32.mrf.mxu0
        %v6579 = vadd.f32 %v6530, %v6578
        %6580 = vmatmul.bf16.gmra.mxu0 %v1137
        %v6581 = vpop.f32.mrf.mxu0
        %v6582 = vadd.f32 %v6533, %v6581
        %v6583 = vpop.f32.mrf.mxu0
        %v6584 = vadd.f32 %v6535, %v6583
        %6585 = vmatmul.bf16.gmra.mxu0 %v1145
        %v6586 = vpop.f32.mrf.mxu0
        %v6587 = vadd.f32 %v6538, %v6586
        %v6588 = vpop.f32.mrf.mxu0
        %v6589 = vadd.f32 %v6540, %v6588
        %6590 = vmatmul.bf16.gmra.mxu0 %v1153
        %v6591 = vpop.f32.mrf.mxu0
        %v6592 = vadd.f32 %v6543, %v6591
        %v6593 = vpop.f32.mrf.mxu0
        %v6594 = vadd.f32 %v6545, %v6593
        %6595 = vdwg.mxu0
        %6596 = vmatpush.bf16.msra.mxu0 %v3282
        %6597 = vmatpush.bf16.msra.mxu0 %v3274
        %6598 = vmatpush.bf16.msra.mxu0 %v3266
        %6599 = vmatpush.bf16.msra.mxu0 %v3258
        %6600 = vmatpush.bf16.msra.mxu0 %v3250
        %6601 = vmatpush.bf16.msra.mxu0 %v3242
        %6602 = vmatpush.bf16.msra.mxu0 %v3234
        %6603 = vmatpush.bf16.msra.mxu0 %v3226
        %6604 = vmatmul.bf16.gmra.mxu0 %v1090
        %v6605 = vpop.f32.mrf.mxu0
        %v6606 = vadd.f32 %v1674, %v6605
        %v6607 = vpop.f32.mrf.mxu0
        %v6608 = vadd.f32 %v1674, %v6607
        %6609 = vmatmul.bf16.gmra.mxu0 %v1098
        %v6610 = vpop.f32.mrf.mxu0
        %v6611 = vadd.f32 %v1674, %v6610
        %v6612 = vpop.f32.mrf.mxu0
        %v6613 = vadd.f32 %v1674, %v6612
        %6614 = vmatmul.bf16.gmra.mxu0 %v1106
        %v6615 = vpop.f32.mrf.mxu0
        %v6616 = vadd.f32 %v1674, %v6615
        %v6617 = vpop.f32.mrf.mxu0
        %v6618 = vadd.f32 %v1674, %v6617
        %6619 = vmatmul.bf16.gmra.mxu0 %v1114
        %v6620 = vpop.f32.mrf.mxu0
        %v6621 = vadd.f32 %v1674, %v6620
        %v6622 = vpop.f32.mrf.mxu0
        %v6623 = vadd.f32 %v1674, %v6622
        %6624 = vmatmul.bf16.gmra.mxu0 %v1122
        %v6625 = vpop.f32.mrf.mxu0
        %v6626 = vadd.f32 %v1674, %v6625
        %v6627 = vpop.f32.mrf.mxu0
        %v6628 = vadd.f32 %v1674, %v6627
        %6629 = vmatmul.bf16.gmra.mxu0 %v1130
        %v6630 = vpop.f32.mrf.mxu0
        %v6631 = vadd.f32 %v1674, %v6630
        %v6632 = vpop.f32.mrf.mxu0
        %v6633 = vadd.f32 %v1674, %v6632
        %6634 = vmatmul.bf16.gmra.mxu0 %v1138
        %v6635 = vpop.f32.mrf.mxu0
        %v6636 = vadd.f32 %v1674, %v6635
        %v6637 = vpop.f32.mrf.mxu0
        %v6638 = vadd.f32 %v1674, %v6637
        %6639 = vmatmul.bf16.gmra.mxu0 %v1146
        %v6640 = vpop.f32.mrf.mxu0
        %v6641 = vadd.f32 %v1674, %v6640
        %v6642 = vpop.f32.mrf.mxu0
        %v6643 = vadd.f32 %v1674, %v6642
        %6644 = vdwg.mxu0
        %6645 = vmatpush.bf16.msra.mxu0 %v3346
        %6646 = vmatpush.bf16.msra.mxu0 %v3338
        %6647 = vmatpush.bf16.msra.mxu0 %v3330
        %6648 = vmatpush.bf16.msra.mxu0 %v3322
        %6649 = vmatpush.bf16.msra.mxu0 %v3314
        %6650 = vmatpush.bf16.msra.mxu0 %v3306
        %6651 = vmatpush.bf16.msra.mxu0 %v3298
        %6652 = vmatpush.bf16.msra.mxu0 %v3290
        %6653 = vmatmul.bf16.gmra.mxu0 %v1091
        %v6654 = vpop.f32.mrf.mxu0
        %v6655 = vadd.f32 %v6606, %v6654
        %v6656 = vpop.f32.mrf.mxu0
        %v6657 = vadd.f32 %v6608, %v6656
        %6658 = vmatmul.bf16.gmra.mxu0 %v1099
        %v6659 = vpop.f32.mrf.mxu0
        %v6660 = vadd.f32 %v6611, %v6659
        %v6661 = vpop.f32.mrf.mxu0
        %v6662 = vadd.f32 %v6613, %v6661
        %6663 = vmatmul.bf16.gmra.mxu0 %v1107
        %v6664 = vpop.f32.mrf.mxu0
        %v6665 = vadd.f32 %v6616, %v6664
        %v6666 = vpop.f32.mrf.mxu0
        %v6667 = vadd.f32 %v6618, %v6666
        %6668 = vmatmul.bf16.gmra.mxu0 %v1115
        %v6669 = vpop.f32.mrf.mxu0
        %v6670 = vadd.f32 %v6621, %v6669
        %v6671 = vpop.f32.mrf.mxu0
        %v6672 = vadd.f32 %v6623, %v6671
        %6673 = vmatmul.bf16.gmra.mxu0 %v1123
        %v6674 = vpop.f32.mrf.mxu0
        %v6675 = vadd.f32 %v6626, %v6674
        %v6676 = vpop.f32.mrf.mxu0
        %v6677 = vadd.f32 %v6628, %v6676
        %6678 = vmatmul.bf16.gmra.mxu0 %v1131
        %v6679 = vpop.f32.mrf.mxu0
        %v6680 = vadd.f32 %v6631, %v6679
        %v6681 = vpop.f32.mrf.mxu0
        %v6682 = vadd.f32 %v6633, %v6681
        %6683 = vmatmul.bf16.gmra.mxu0 %v1139
        %v6684 = vpop.f32.mrf.mxu0
        %v6685 = vadd.f32 %v6636, %v6684
        %v6686 = vpop.f32.mrf.mxu0
        %v6687 = vadd.f32 %v6638, %v6686
        %6688 = vmatmul.bf16.gmra.mxu0 %v1147
        %v6689 = vpop.f32.mrf.mxu0
        %v6690 = vadd.f32 %v6641, %v6689
        %v6691 = vpop.f32.mrf.mxu0
        %v6692 = vadd.f32 %v6643, %v6691
        %6693 = vdwg.mxu0
        %6694 = vmatpush.bf16.msra.mxu0 %v3410
        %6695 = vmatpush.bf16.msra.mxu0 %v3402
        %6696 = vmatpush.bf16.msra.mxu0 %v3394
        %6697 = vmatpush.bf16.msra.mxu0 %v3386
        %6698 = vmatpush.bf16.msra.mxu0 %v3378
        %6699 = vmatpush.bf16.msra.mxu0 %v3370
        %6700 = vmatpush.bf16.msra.mxu0 %v3362
        %6701 = vmatpush.bf16.msra.mxu0 %v3354
        %6702 = vmatmul.bf16.gmra.mxu0 %v1092
        %v6703 = vpop.f32.mrf.mxu0
        %v6704 = vadd.f32 %v6655, %v6703
        %v6705 = vpop.f32.mrf.mxu0
        %v6706 = vadd.f32 %v6657, %v6705
        %6707 = vmatmul.bf16.gmra.mxu0 %v1100
        %v6708 = vpop.f32.mrf.mxu0
        %v6709 = vadd.f32 %v6660, %v6708
        %v6710 = vpop.f32.mrf.mxu0
        %v6711 = vadd.f32 %v6662, %v6710
        %6712 = vmatmul.bf16.gmra.mxu0 %v1108
        %v6713 = vpop.f32.mrf.mxu0
        %v6714 = vadd.f32 %v6665, %v6713
        %v6715 = vpop.f32.mrf.mxu0
        %v6716 = vadd.f32 %v6667, %v6715
        %6717 = vmatmul.bf16.gmra.mxu0 %v1116
        %v6718 = vpop.f32.mrf.mxu0
        %v6719 = vadd.f32 %v6670, %v6718
        %v6720 = vpop.f32.mrf.mxu0
        %v6721 = vadd.f32 %v6672, %v6720
        %6722 = vmatmul.bf16.gmra.mxu0 %v1124
        %v6723 = vpop.f32.mrf.mxu0
        %v6724 = vadd.f32 %v6675, %v6723
        %v6725 = vpop.f32.mrf.mxu0
        %v6726 = vadd.f32 %v6677, %v6725
        %6727 = vmatmul.bf16.gmra.mxu0 %v1132
        %v6728 = vpop.f32.mrf.mxu0
        %v6729 = vadd.f32 %v6680, %v6728
        %v6730 = vpop.f32.mrf.mxu0
        %v6731 = vadd.f32 %v6682, %v6730
        %6732 = vmatmul.bf16.gmra.mxu0 %v1140
        %v6733 = vpop.f32.mrf.mxu0
        %v6734 = vadd.f32 %v6685, %v6733
        %v6735 = vpop.f32.mrf.mxu0
        %v6736 = vadd.f32 %v6687, %v6735
        %6737 = vmatmul.bf16.gmra.mxu0 %v1148
        %v6738 = vpop.f32.mrf.mxu0
        %v6739 = vadd.f32 %v6690, %v6738
        %v6740 = vpop.f32.mrf.mxu0
        %v6741 = vadd.f32 %v6692, %v6740
        %6742 = vdwg.mxu0
        %6743 = vmatpush.bf16.msra.mxu0 %v3474
        %6744 = vmatpush.bf16.msra.mxu0 %v3466
        %6745 = vmatpush.bf16.msra.mxu0 %v3458
        %6746 = vmatpush.bf16.msra.mxu0 %v3450
        %6747 = vmatpush.bf16.msra.mxu0 %v3442
        %6748 = vmatpush.bf16.msra.mxu0 %v3434
        %6749 = vmatpush.bf16.msra.mxu0 %v3426
        %6750 = vmatpush.bf16.msra.mxu0 %v3418
        %6751 = vmatmul.bf16.gmra.mxu0 %v1093
        %v6752 = vpop.f32.mrf.mxu0
        %v6753 = vadd.f32 %v6704, %v6752
        %v6754 = vpop.f32.mrf.mxu0
        %v6755 = vadd.f32 %v6706, %v6754
        %6756 = vmatmul.bf16.gmra.mxu0 %v1101
        %v6757 = vpop.f32.mrf.mxu0
        %v6758 = vadd.f32 %v6709, %v6757
        %v6759 = vpop.f32.mrf.mxu0
        %v6760 = vadd.f32 %v6711, %v6759
        %6761 = vmatmul.bf16.gmra.mxu0 %v1109
        %v6762 = vpop.f32.mrf.mxu0
        %v6763 = vadd.f32 %v6714, %v6762
        %v6764 = vpop.f32.mrf.mxu0
        %v6765 = vadd.f32 %v6716, %v6764
        %6766 = vmatmul.bf16.gmra.mxu0 %v1117
        %v6767 = vpop.f32.mrf.mxu0
        %v6768 = vadd.f32 %v6719, %v6767
        %v6769 = vpop.f32.mrf.mxu0
        %v6770 = vadd.f32 %v6721, %v6769
        %6771 = vmatmul.bf16.gmra.mxu0 %v1125
        %v6772 = vpop.f32.mrf.mxu0
        %v6773 = vadd.f32 %v6724, %v6772
        %v6774 = vpop.f32.mrf.mxu0
        %v6775 = vadd.f32 %v6726, %v6774
        %6776 = vmatmul.bf16.gmra.mxu0 %v1133
        %v6777 = vpop.f32.mrf.mxu0
        %v6778 = vadd.f32 %v6729, %v6777
        %v6779 = vpop.f32.mrf.mxu0
        %v6780 = vadd.f32 %v6731, %v6779
        %6781 = vmatmul.bf16.gmra.mxu0 %v1141
        %v6782 = vpop.f32.mrf.mxu0
        %v6783 = vadd.f32 %v6734, %v6782
        %v6784 = vpop.f32.mrf.mxu0
        %v6785 = vadd.f32 %v6736, %v6784
        %6786 = vmatmul.bf16.gmra.mxu0 %v1149
        %v6787 = vpop.f32.mrf.mxu0
        %v6788 = vadd.f32 %v6739, %v6787
        %v6789 = vpop.f32.mrf.mxu0
        %v6790 = vadd.f32 %v6741, %v6789
        %6791 = vdwg.mxu0
        %6792 = vmatpush.bf16.msra.mxu0 %v3538
        %6793 = vmatpush.bf16.msra.mxu0 %v3530
        %6794 = vmatpush.bf16.msra.mxu0 %v3522
        %6795 = vmatpush.bf16.msra.mxu0 %v3514
        %6796 = vmatpush.bf16.msra.mxu0 %v3506
        %6797 = vmatpush.bf16.msra.mxu0 %v3498
        %6798 = vmatpush.bf16.msra.mxu0 %v3490
        %6799 = vmatpush.bf16.msra.mxu0 %v3482
        %6800 = vmatmul.bf16.gmra.mxu0 %v1094
        %v6801 = vpop.f32.mrf.mxu0
        %v6802 = vadd.f32 %v6753, %v6801
        %v6803 = vpop.f32.mrf.mxu0
        %v6804 = vadd.f32 %v6755, %v6803
        %6805 = vmatmul.bf16.gmra.mxu0 %v1102
        %v6806 = vpop.f32.mrf.mxu0
        %v6807 = vadd.f32 %v6758, %v6806
        %v6808 = vpop.f32.mrf.mxu0
        %v6809 = vadd.f32 %v6760, %v6808
        %6810 = vmatmul.bf16.gmra.mxu0 %v1110
        %v6811 = vpop.f32.mrf.mxu0
        %v6812 = vadd.f32 %v6763, %v6811
        %v6813 = vpop.f32.mrf.mxu0
        %v6814 = vadd.f32 %v6765, %v6813
        %6815 = vmatmul.bf16.gmra.mxu0 %v1118
        %v6816 = vpop.f32.mrf.mxu0
        %v6817 = vadd.f32 %v6768, %v6816
        %v6818 = vpop.f32.mrf.mxu0
        %v6819 = vadd.f32 %v6770, %v6818
        %6820 = vmatmul.bf16.gmra.mxu0 %v1126
        %v6821 = vpop.f32.mrf.mxu0
        %v6822 = vadd.f32 %v6773, %v6821
        %v6823 = vpop.f32.mrf.mxu0
        %v6824 = vadd.f32 %v6775, %v6823
        %6825 = vmatmul.bf16.gmra.mxu0 %v1134
        %v6826 = vpop.f32.mrf.mxu0
        %v6827 = vadd.f32 %v6778, %v6826
        %v6828 = vpop.f32.mrf.mxu0
        %v6829 = vadd.f32 %v6780, %v6828
        %6830 = vmatmul.bf16.gmra.mxu0 %v1142
        %v6831 = vpop.f32.mrf.mxu0
        %v6832 = vadd.f32 %v6783, %v6831
        %v6833 = vpop.f32.mrf.mxu0
        %v6834 = vadd.f32 %v6785, %v6833
        %6835 = vmatmul.bf16.gmra.mxu0 %v1150
        %v6836 = vpop.f32.mrf.mxu0
        %v6837 = vadd.f32 %v6788, %v6836
        %v6838 = vpop.f32.mrf.mxu0
        %v6839 = vadd.f32 %v6790, %v6838
        %6840 = vdwg.mxu0
        %6841 = vmatpush.bf16.msra.mxu0 %v3602
        %6842 = vmatpush.bf16.msra.mxu0 %v3594
        %6843 = vmatpush.bf16.msra.mxu0 %v3586
        %6844 = vmatpush.bf16.msra.mxu0 %v3578
        %6845 = vmatpush.bf16.msra.mxu0 %v3570
        %6846 = vmatpush.bf16.msra.mxu0 %v3562
        %6847 = vmatpush.bf16.msra.mxu0 %v3554
        %6848 = vmatpush.bf16.msra.mxu0 %v3546
        %6849 = vmatmul.bf16.gmra.mxu0 %v1095
        %v6850 = vpop.f32.mrf.mxu0
        %v6851 = vadd.f32 %v6802, %v6850
        %v6852 = vpop.f32.mrf.mxu0
        %v6853 = vadd.f32 %v6804, %v6852
        %6854 = vmatmul.bf16.gmra.mxu0 %v1103
        %v6855 = vpop.f32.mrf.mxu0
        %v6856 = vadd.f32 %v6807, %v6855
        %v6857 = vpop.f32.mrf.mxu0
        %v6858 = vadd.f32 %v6809, %v6857
        %6859 = vmatmul.bf16.gmra.mxu0 %v1111
        %v6860 = vpop.f32.mrf.mxu0
        %v6861 = vadd.f32 %v6812, %v6860
        %v6862 = vpop.f32.mrf.mxu0
        %v6863 = vadd.f32 %v6814, %v6862
        %6864 = vmatmul.bf16.gmra.mxu0 %v1119
        %v6865 = vpop.f32.mrf.mxu0
        %v6866 = vadd.f32 %v6817, %v6865
        %v6867 = vpop.f32.mrf.mxu0
        %v6868 = vadd.f32 %v6819, %v6867
        %6869 = vmatmul.bf16.gmra.mxu0 %v1127
        %v6870 = vpop.f32.mrf.mxu0
        %v6871 = vadd.f32 %v6822, %v6870
        %v6872 = vpop.f32.mrf.mxu0
        %v6873 = vadd.f32 %v6824, %v6872
        %6874 = vmatmul.bf16.gmra.mxu0 %v1135
        %v6875 = vpop.f32.mrf.mxu0
        %v6876 = vadd.f32 %v6827, %v6875
        %v6877 = vpop.f32.mrf.mxu0
        %v6878 = vadd.f32 %v6829, %v6877
        %6879 = vmatmul.bf16.gmra.mxu0 %v1143
        %v6880 = vpop.f32.mrf.mxu0
        %v6881 = vadd.f32 %v6832, %v6880
        %v6882 = vpop.f32.mrf.mxu0
        %v6883 = vadd.f32 %v6834, %v6882
        %6884 = vmatmul.bf16.gmra.mxu0 %v1151
        %v6885 = vpop.f32.mrf.mxu0
        %v6886 = vadd.f32 %v6837, %v6885
        %v6887 = vpop.f32.mrf.mxu0
        %v6888 = vadd.f32 %v6839, %v6887
        %6889 = vdwg.mxu0
        %6890 = vmatpush.bf16.msra.mxu0 %v3666
        %6891 = vmatpush.bf16.msra.mxu0 %v3658
        %6892 = vmatpush.bf16.msra.mxu0 %v3650
        %6893 = vmatpush.bf16.msra.mxu0 %v3642
        %6894 = vmatpush.bf16.msra.mxu0 %v3634
        %6895 = vmatpush.bf16.msra.mxu0 %v3626
        %6896 = vmatpush.bf16.msra.mxu0 %v3618
        %6897 = vmatpush.bf16.msra.mxu0 %v3610
        %6898 = vmatmul.bf16.gmra.mxu0 %v1096
        %v6899 = vpop.f32.mrf.mxu0
        %v6900 = vadd.f32 %v6851, %v6899
        %v6901 = vpop.f32.mrf.mxu0
        %v6902 = vadd.f32 %v6853, %v6901
        %6903 = vmatmul.bf16.gmra.mxu0 %v1104
        %v6904 = vpop.f32.mrf.mxu0
        %v6905 = vadd.f32 %v6856, %v6904
        %v6906 = vpop.f32.mrf.mxu0
        %v6907 = vadd.f32 %v6858, %v6906
        %6908 = vmatmul.bf16.gmra.mxu0 %v1112
        %v6909 = vpop.f32.mrf.mxu0
        %v6910 = vadd.f32 %v6861, %v6909
        %v6911 = vpop.f32.mrf.mxu0
        %v6912 = vadd.f32 %v6863, %v6911
        %6913 = vmatmul.bf16.gmra.mxu0 %v1120
        %v6914 = vpop.f32.mrf.mxu0
        %v6915 = vadd.f32 %v6866, %v6914
        %v6916 = vpop.f32.mrf.mxu0
        %v6917 = vadd.f32 %v6868, %v6916
        %6918 = vmatmul.bf16.gmra.mxu0 %v1128
        %v6919 = vpop.f32.mrf.mxu0
        %v6920 = vadd.f32 %v6871, %v6919
        %v6921 = vpop.f32.mrf.mxu0
        %v6922 = vadd.f32 %v6873, %v6921
        %6923 = vmatmul.bf16.gmra.mxu0 %v1136
        %v6924 = vpop.f32.mrf.mxu0
        %v6925 = vadd.f32 %v6876, %v6924
        %v6926 = vpop.f32.mrf.mxu0
        %v6927 = vadd.f32 %v6878, %v6926
        %6928 = vmatmul.bf16.gmra.mxu0 %v1144
        %v6929 = vpop.f32.mrf.mxu0
        %v6930 = vadd.f32 %v6881, %v6929
        %v6931 = vpop.f32.mrf.mxu0
        %v6932 = vadd.f32 %v6883, %v6931
        %6933 = vmatmul.bf16.gmra.mxu0 %v1152
        %v6934 = vpop.f32.mrf.mxu0
        %v6935 = vadd.f32 %v6886, %v6934
        %v6936 = vpop.f32.mrf.mxu0
        %v6937 = vadd.f32 %v6888, %v6936
        %6938 = vdwg.mxu0
        %6939 = vmatpush.bf16.msra.mxu0 %v3730
        %6940 = vmatpush.bf16.msra.mxu0 %v3722
        %6941 = vmatpush.bf16.msra.mxu0 %v3714
        %6942 = vmatpush.bf16.msra.mxu0 %v3706
        %6943 = vmatpush.bf16.msra.mxu0 %v3698
        %6944 = vmatpush.bf16.msra.mxu0 %v3690
        %6945 = vmatpush.bf16.msra.mxu0 %v3682
        %6946 = vmatpush.bf16.msra.mxu0 %v3674
        %6947 = vmatmul.bf16.gmra.mxu0 %v1097
        %v6948 = vpop.f32.mrf.mxu0
        %v6949 = vadd.f32 %v6900, %v6948
        %v6950 = vpop.f32.mrf.mxu0
        %v6951 = vadd.f32 %v6902, %v6950
        %6952 = vmatmul.bf16.gmra.mxu0 %v1105
        %v6953 = vpop.f32.mrf.mxu0
        %v6954 = vadd.f32 %v6905, %v6953
        %v6955 = vpop.f32.mrf.mxu0
        %v6956 = vadd.f32 %v6907, %v6955
        %6957 = vmatmul.bf16.gmra.mxu0 %v1113
        %v6958 = vpop.f32.mrf.mxu0
        %v6959 = vadd.f32 %v6910, %v6958
        %v6960 = vpop.f32.mrf.mxu0
        %v6961 = vadd.f32 %v6912, %v6960
        %6962 = vmatmul.bf16.gmra.mxu0 %v1121
        %v6963 = vpop.f32.mrf.mxu0
        %v6964 = vadd.f32 %v6915, %v6963
        %v6965 = vpop.f32.mrf.mxu0
        %v6966 = vadd.f32 %v6917, %v6965
        %6967 = vmatmul.bf16.gmra.mxu0 %v1129
        %v6968 = vpop.f32.mrf.mxu0
        %v6969 = vadd.f32 %v6920, %v6968
        %v6970 = vpop.f32.mrf.mxu0
        %v6971 = vadd.f32 %v6922, %v6970
        %6972 = vmatmul.bf16.gmra.mxu0 %v1137
        %v6973 = vpop.f32.mrf.mxu0
        %v6974 = vadd.f32 %v6925, %v6973
        %v6975 = vpop.f32.mrf.mxu0
        %v6976 = vadd.f32 %v6927, %v6975
        %6977 = vmatmul.bf16.gmra.mxu0 %v1145
        %v6978 = vpop.f32.mrf.mxu0
        %v6979 = vadd.f32 %v6930, %v6978
        %v6980 = vpop.f32.mrf.mxu0
        %v6981 = vadd.f32 %v6932, %v6980
        %6982 = vmatmul.bf16.gmra.mxu0 %v1153
        %v6983 = vpop.f32.mrf.mxu0
        %v6984 = vadd.f32 %v6935, %v6983
        %v6985 = vpop.f32.mrf.mxu0
        %v6986 = vadd.f32 %v6937, %v6985
        %6987 = vdwg.mxu0
        %6988 = vmatpush.bf16.msra.mxu0 %v3283
        %6989 = vmatpush.bf16.msra.mxu0 %v3275
        %6990 = vmatpush.bf16.msra.mxu0 %v3267
        %6991 = vmatpush.bf16.msra.mxu0 %v3259
        %6992 = vmatpush.bf16.msra.mxu0 %v3251
        %6993 = vmatpush.bf16.msra.mxu0 %v3243
        %6994 = vmatpush.bf16.msra.mxu0 %v3235
        %6995 = vmatpush.bf16.msra.mxu0 %v3227
        %6996 = vmatmul.bf16.gmra.mxu0 %v1090
        %v6997 = vpop.f32.mrf.mxu0
        %v6998 = vadd.f32 %v1675, %v6997
        %v6999 = vpop.f32.mrf.mxu0
        %v7000 = vadd.f32 %v1675, %v6999
        %7001 = vmatmul.bf16.gmra.mxu0 %v1098
        %v7002 = vpop.f32.mrf.mxu0
        %v7003 = vadd.f32 %v1675, %v7002
        %v7004 = vpop.f32.mrf.mxu0
        %v7005 = vadd.f32 %v1675, %v7004
        %7006 = vmatmul.bf16.gmra.mxu0 %v1106
        %v7007 = vpop.f32.mrf.mxu0
        %v7008 = vadd.f32 %v1675, %v7007
        %v7009 = vpop.f32.mrf.mxu0
        %v7010 = vadd.f32 %v1675, %v7009
        %7011 = vmatmul.bf16.gmra.mxu0 %v1114
        %v7012 = vpop.f32.mrf.mxu0
        %v7013 = vadd.f32 %v1675, %v7012
        %v7014 = vpop.f32.mrf.mxu0
        %v7015 = vadd.f32 %v1675, %v7014
        %7016 = vmatmul.bf16.gmra.mxu0 %v1122
        %v7017 = vpop.f32.mrf.mxu0
        %v7018 = vadd.f32 %v1675, %v7017
        %v7019 = vpop.f32.mrf.mxu0
        %v7020 = vadd.f32 %v1675, %v7019
        %7021 = vmatmul.bf16.gmra.mxu0 %v1130
        %v7022 = vpop.f32.mrf.mxu0
        %v7023 = vadd.f32 %v1675, %v7022
        %v7024 = vpop.f32.mrf.mxu0
        %v7025 = vadd.f32 %v1675, %v7024
        %7026 = vmatmul.bf16.gmra.mxu0 %v1138
        %v7027 = vpop.f32.mrf.mxu0
        %v7028 = vadd.f32 %v1675, %v7027
        %v7029 = vpop.f32.mrf.mxu0
        %v7030 = vadd.f32 %v1675, %v7029
        %7031 = vmatmul.bf16.gmra.mxu0 %v1146
        %v7032 = vpop.f32.mrf.mxu0
        %v7033 = vadd.f32 %v1675, %v7032
        %v7034 = vpop.f32.mrf.mxu0
        %v7035 = vadd.f32 %v1675, %v7034
        %7036 = vdwg.mxu0
        %7037 = vmatpush.bf16.msra.mxu0 %v3347
        %7038 = vmatpush.bf16.msra.mxu0 %v3339
        %7039 = vmatpush.bf16.msra.mxu0 %v3331
        %7040 = vmatpush.bf16.msra.mxu0 %v3323
        %7041 = vmatpush.bf16.msra.mxu0 %v3315
        %7042 = vmatpush.bf16.msra.mxu0 %v3307
        %7043 = vmatpush.bf16.msra.mxu0 %v3299
        %7044 = vmatpush.bf16.msra.mxu0 %v3291
        %7045 = vmatmul.bf16.gmra.mxu0 %v1091
        %v7046 = vpop.f32.mrf.mxu0
        %v7047 = vadd.f32 %v6998, %v7046
        %v7048 = vpop.f32.mrf.mxu0
        %v7049 = vadd.f32 %v7000, %v7048
        %7050 = vmatmul.bf16.gmra.mxu0 %v1099
        %v7051 = vpop.f32.mrf.mxu0
        %v7052 = vadd.f32 %v7003, %v7051
        %v7053 = vpop.f32.mrf.mxu0
        %v7054 = vadd.f32 %v7005, %v7053
        %7055 = vmatmul.bf16.gmra.mxu0 %v1107
        %v7056 = vpop.f32.mrf.mxu0
        %v7057 = vadd.f32 %v7008, %v7056
        %v7058 = vpop.f32.mrf.mxu0
        %v7059 = vadd.f32 %v7010, %v7058
        %7060 = vmatmul.bf16.gmra.mxu0 %v1115
        %v7061 = vpop.f32.mrf.mxu0
        %v7062 = vadd.f32 %v7013, %v7061
        %v7063 = vpop.f32.mrf.mxu0
        %v7064 = vadd.f32 %v7015, %v7063
        %7065 = vmatmul.bf16.gmra.mxu0 %v1123
        %v7066 = vpop.f32.mrf.mxu0
        %v7067 = vadd.f32 %v7018, %v7066
        %v7068 = vpop.f32.mrf.mxu0
        %v7069 = vadd.f32 %v7020, %v7068
        %7070 = vmatmul.bf16.gmra.mxu0 %v1131
        %v7071 = vpop.f32.mrf.mxu0
        %v7072 = vadd.f32 %v7023, %v7071
        %v7073 = vpop.f32.mrf.mxu0
        %v7074 = vadd.f32 %v7025, %v7073
        %7075 = vmatmul.bf16.gmra.mxu0 %v1139
        %v7076 = vpop.f32.mrf.mxu0
        %v7077 = vadd.f32 %v7028, %v7076
        %v7078 = vpop.f32.mrf.mxu0
        %v7079 = vadd.f32 %v7030, %v7078
        %7080 = vmatmul.bf16.gmra.mxu0 %v1147
        %v7081 = vpop.f32.mrf.mxu0
        %v7082 = vadd.f32 %v7033, %v7081
        %v7083 = vpop.f32.mrf.mxu0
        %v7084 = vadd.f32 %v7035, %v7083
        %7085 = vdwg.mxu0
        %7086 = vmatpush.bf16.msra.mxu0 %v3411
        %7087 = vmatpush.bf16.msra.mxu0 %v3403
        %7088 = vmatpush.bf16.msra.mxu0 %v3395
        %7089 = vmatpush.bf16.msra.mxu0 %v3387
        %7090 = vmatpush.bf16.msra.mxu0 %v3379
        %7091 = vmatpush.bf16.msra.mxu0 %v3371
        %7092 = vmatpush.bf16.msra.mxu0 %v3363
        %7093 = vmatpush.bf16.msra.mxu0 %v3355
        %7094 = vmatmul.bf16.gmra.mxu0 %v1092
        %v7095 = vpop.f32.mrf.mxu0
        %v7096 = vadd.f32 %v7047, %v7095
        %v7097 = vpop.f32.mrf.mxu0
        %v7098 = vadd.f32 %v7049, %v7097
        %7099 = vmatmul.bf16.gmra.mxu0 %v1100
        %v7100 = vpop.f32.mrf.mxu0
        %v7101 = vadd.f32 %v7052, %v7100
        %v7102 = vpop.f32.mrf.mxu0
        %v7103 = vadd.f32 %v7054, %v7102
        %7104 = vmatmul.bf16.gmra.mxu0 %v1108
        %v7105 = vpop.f32.mrf.mxu0
        %v7106 = vadd.f32 %v7057, %v7105
        %v7107 = vpop.f32.mrf.mxu0
        %v7108 = vadd.f32 %v7059, %v7107
        %7109 = vmatmul.bf16.gmra.mxu0 %v1116
        %v7110 = vpop.f32.mrf.mxu0
        %v7111 = vadd.f32 %v7062, %v7110
        %v7112 = vpop.f32.mrf.mxu0
        %v7113 = vadd.f32 %v7064, %v7112
        %7114 = vmatmul.bf16.gmra.mxu0 %v1124
        %v7115 = vpop.f32.mrf.mxu0
        %v7116 = vadd.f32 %v7067, %v7115
        %v7117 = vpop.f32.mrf.mxu0
        %v7118 = vadd.f32 %v7069, %v7117
        %7119 = vmatmul.bf16.gmra.mxu0 %v1132
        %v7120 = vpop.f32.mrf.mxu0
        %v7121 = vadd.f32 %v7072, %v7120
        %v7122 = vpop.f32.mrf.mxu0
        %v7123 = vadd.f32 %v7074, %v7122
        %7124 = vmatmul.bf16.gmra.mxu0 %v1140
        %v7125 = vpop.f32.mrf.mxu0
        %v7126 = vadd.f32 %v7077, %v7125
        %v7127 = vpop.f32.mrf.mxu0
        %v7128 = vadd.f32 %v7079, %v7127
        %7129 = vmatmul.bf16.gmra.mxu0 %v1148
        %v7130 = vpop.f32.mrf.mxu0
        %v7131 = vadd.f32 %v7082, %v7130
        %v7132 = vpop.f32.mrf.mxu0
        %v7133 = vadd.f32 %v7084, %v7132
        %7134 = vdwg.mxu0
        %7135 = vmatpush.bf16.msra.mxu0 %v3475
        %7136 = vmatpush.bf16.msra.mxu0 %v3467
        %7137 = vmatpush.bf16.msra.mxu0 %v3459
        %7138 = vmatpush.bf16.msra.mxu0 %v3451
        %7139 = vmatpush.bf16.msra.mxu0 %v3443
        %7140 = vmatpush.bf16.msra.mxu0 %v3435
        %7141 = vmatpush.bf16.msra.mxu0 %v3427
        %7142 = vmatpush.bf16.msra.mxu0 %v3419
        %7143 = vmatmul.bf16.gmra.mxu0 %v1093
        %v7144 = vpop.f32.mrf.mxu0
        %v7145 = vadd.f32 %v7096, %v7144
        %v7146 = vpop.f32.mrf.mxu0
        %v7147 = vadd.f32 %v7098, %v7146
        %7148 = vmatmul.bf16.gmra.mxu0 %v1101
        %v7149 = vpop.f32.mrf.mxu0
        %v7150 = vadd.f32 %v7101, %v7149
        %v7151 = vpop.f32.mrf.mxu0
        %v7152 = vadd.f32 %v7103, %v7151
        %7153 = vmatmul.bf16.gmra.mxu0 %v1109
        %v7154 = vpop.f32.mrf.mxu0
        %v7155 = vadd.f32 %v7106, %v7154
        %v7156 = vpop.f32.mrf.mxu0
        %v7157 = vadd.f32 %v7108, %v7156
        %7158 = vmatmul.bf16.gmra.mxu0 %v1117
        %v7159 = vpop.f32.mrf.mxu0
        %v7160 = vadd.f32 %v7111, %v7159
        %v7161 = vpop.f32.mrf.mxu0
        %v7162 = vadd.f32 %v7113, %v7161
        %7163 = vmatmul.bf16.gmra.mxu0 %v1125
        %v7164 = vpop.f32.mrf.mxu0
        %v7165 = vadd.f32 %v7116, %v7164
        %v7166 = vpop.f32.mrf.mxu0
        %v7167 = vadd.f32 %v7118, %v7166
        %7168 = vmatmul.bf16.gmra.mxu0 %v1133
        %v7169 = vpop.f32.mrf.mxu0
        %v7170 = vadd.f32 %v7121, %v7169
        %v7171 = vpop.f32.mrf.mxu0
        %v7172 = vadd.f32 %v7123, %v7171
        %7173 = vmatmul.bf16.gmra.mxu0 %v1141
        %v7174 = vpop.f32.mrf.mxu0
        %v7175 = vadd.f32 %v7126, %v7174
        %v7176 = vpop.f32.mrf.mxu0
        %v7177 = vadd.f32 %v7128, %v7176
        %7178 = vmatmul.bf16.gmra.mxu0 %v1149
        %v7179 = vpop.f32.mrf.mxu0
        %v7180 = vadd.f32 %v7131, %v7179
        %v7181 = vpop.f32.mrf.mxu0
        %v7182 = vadd.f32 %v7133, %v7181
        %7183 = vdwg.mxu0
        %7184 = vmatpush.bf16.msra.mxu0 %v3539
        %7185 = vmatpush.bf16.msra.mxu0 %v3531
        %7186 = vmatpush.bf16.msra.mxu0 %v3523
        %7187 = vmatpush.bf16.msra.mxu0 %v3515
        %7188 = vmatpush.bf16.msra.mxu0 %v3507
        %7189 = vmatpush.bf16.msra.mxu0 %v3499
        %7190 = vmatpush.bf16.msra.mxu0 %v3491
        %7191 = vmatpush.bf16.msra.mxu0 %v3483
        %7192 = vmatmul.bf16.gmra.mxu0 %v1094
        %v7193 = vpop.f32.mrf.mxu0
        %v7194 = vadd.f32 %v7145, %v7193
        %v7195 = vpop.f32.mrf.mxu0
        %v7196 = vadd.f32 %v7147, %v7195
        %7197 = vmatmul.bf16.gmra.mxu0 %v1102
        %v7198 = vpop.f32.mrf.mxu0
        %v7199 = vadd.f32 %v7150, %v7198
        %v7200 = vpop.f32.mrf.mxu0
        %v7201 = vadd.f32 %v7152, %v7200
        %7202 = vmatmul.bf16.gmra.mxu0 %v1110
        %v7203 = vpop.f32.mrf.mxu0
        %v7204 = vadd.f32 %v7155, %v7203
        %v7205 = vpop.f32.mrf.mxu0
        %v7206 = vadd.f32 %v7157, %v7205
        %7207 = vmatmul.bf16.gmra.mxu0 %v1118
        %v7208 = vpop.f32.mrf.mxu0
        %v7209 = vadd.f32 %v7160, %v7208
        %v7210 = vpop.f32.mrf.mxu0
        %v7211 = vadd.f32 %v7162, %v7210
        %7212 = vmatmul.bf16.gmra.mxu0 %v1126
        %v7213 = vpop.f32.mrf.mxu0
        %v7214 = vadd.f32 %v7165, %v7213
        %v7215 = vpop.f32.mrf.mxu0
        %v7216 = vadd.f32 %v7167, %v7215
        %7217 = vmatmul.bf16.gmra.mxu0 %v1134
        %v7218 = vpop.f32.mrf.mxu0
        %v7219 = vadd.f32 %v7170, %v7218
        %v7220 = vpop.f32.mrf.mxu0
        %v7221 = vadd.f32 %v7172, %v7220
        %7222 = vmatmul.bf16.gmra.mxu0 %v1142
        %v7223 = vpop.f32.mrf.mxu0
        %v7224 = vadd.f32 %v7175, %v7223
        %v7225 = vpop.f32.mrf.mxu0
        %v7226 = vadd.f32 %v7177, %v7225
        %7227 = vmatmul.bf16.gmra.mxu0 %v1150
        %v7228 = vpop.f32.mrf.mxu0
        %v7229 = vadd.f32 %v7180, %v7228
        %v7230 = vpop.f32.mrf.mxu0
        %v7231 = vadd.f32 %v7182, %v7230
        %7232 = vdwg.mxu0
        %7233 = vmatpush.bf16.msra.mxu0 %v3603
        %7234 = vmatpush.bf16.msra.mxu0 %v3595
        %7235 = vmatpush.bf16.msra.mxu0 %v3587
        %7236 = vmatpush.bf16.msra.mxu0 %v3579
        %7237 = vmatpush.bf16.msra.mxu0 %v3571
        %7238 = vmatpush.bf16.msra.mxu0 %v3563
        %7239 = vmatpush.bf16.msra.mxu0 %v3555
        %7240 = vmatpush.bf16.msra.mxu0 %v3547
        %7241 = vmatmul.bf16.gmra.mxu0 %v1095
        %v7242 = vpop.f32.mrf.mxu0
        %v7243 = vadd.f32 %v7194, %v7242
        %v7244 = vpop.f32.mrf.mxu0
        %v7245 = vadd.f32 %v7196, %v7244
        %7246 = vmatmul.bf16.gmra.mxu0 %v1103
        %v7247 = vpop.f32.mrf.mxu0
        %v7248 = vadd.f32 %v7199, %v7247
        %v7249 = vpop.f32.mrf.mxu0
        %v7250 = vadd.f32 %v7201, %v7249
        %7251 = vmatmul.bf16.gmra.mxu0 %v1111
        %v7252 = vpop.f32.mrf.mxu0
        %v7253 = vadd.f32 %v7204, %v7252
        %v7254 = vpop.f32.mrf.mxu0
        %v7255 = vadd.f32 %v7206, %v7254
        %7256 = vmatmul.bf16.gmra.mxu0 %v1119
        %v7257 = vpop.f32.mrf.mxu0
        %v7258 = vadd.f32 %v7209, %v7257
        %v7259 = vpop.f32.mrf.mxu0
        %v7260 = vadd.f32 %v7211, %v7259
        %7261 = vmatmul.bf16.gmra.mxu0 %v1127
        %v7262 = vpop.f32.mrf.mxu0
        %v7263 = vadd.f32 %v7214, %v7262
        %v7264 = vpop.f32.mrf.mxu0
        %v7265 = vadd.f32 %v7216, %v7264
        %7266 = vmatmul.bf16.gmra.mxu0 %v1135
        %v7267 = vpop.f32.mrf.mxu0
        %v7268 = vadd.f32 %v7219, %v7267
        %v7269 = vpop.f32.mrf.mxu0
        %v7270 = vadd.f32 %v7221, %v7269
        %7271 = vmatmul.bf16.gmra.mxu0 %v1143
        %v7272 = vpop.f32.mrf.mxu0
        %v7273 = vadd.f32 %v7224, %v7272
        %v7274 = vpop.f32.mrf.mxu0
        %v7275 = vadd.f32 %v7226, %v7274
        %7276 = vmatmul.bf16.gmra.mxu0 %v1151
        %v7277 = vpop.f32.mrf.mxu0
        %v7278 = vadd.f32 %v7229, %v7277
        %v7279 = vpop.f32.mrf.mxu0
        %v7280 = vadd.f32 %v7231, %v7279
        %7281 = vdwg.mxu0
        %7282 = vmatpush.bf16.msra.mxu0 %v3667
        %7283 = vmatpush.bf16.msra.mxu0 %v3659
        %7284 = vmatpush.bf16.msra.mxu0 %v3651
        %7285 = vmatpush.bf16.msra.mxu0 %v3643
        %7286 = vmatpush.bf16.msra.mxu0 %v3635
        %7287 = vmatpush.bf16.msra.mxu0 %v3627
        %7288 = vmatpush.bf16.msra.mxu0 %v3619
        %7289 = vmatpush.bf16.msra.mxu0 %v3611
        %7290 = vmatmul.bf16.gmra.mxu0 %v1096
        %v7291 = vpop.f32.mrf.mxu0
        %v7292 = vadd.f32 %v7243, %v7291
        %v7293 = vpop.f32.mrf.mxu0
        %v7294 = vadd.f32 %v7245, %v7293
        %7295 = vmatmul.bf16.gmra.mxu0 %v1104
        %v7296 = vpop.f32.mrf.mxu0
        %v7297 = vadd.f32 %v7248, %v7296
        %v7298 = vpop.f32.mrf.mxu0
        %v7299 = vadd.f32 %v7250, %v7298
        %7300 = vmatmul.bf16.gmra.mxu0 %v1112
        %v7301 = vpop.f32.mrf.mxu0
        %v7302 = vadd.f32 %v7253, %v7301
        %v7303 = vpop.f32.mrf.mxu0
        %v7304 = vadd.f32 %v7255, %v7303
        %7305 = vmatmul.bf16.gmra.mxu0 %v1120
        %v7306 = vpop.f32.mrf.mxu0
        %v7307 = vadd.f32 %v7258, %v7306
        %v7308 = vpop.f32.mrf.mxu0
        %v7309 = vadd.f32 %v7260, %v7308
        %7310 = vmatmul.bf16.gmra.mxu0 %v1128
        %v7311 = vpop.f32.mrf.mxu0
        %v7312 = vadd.f32 %v7263, %v7311
        %v7313 = vpop.f32.mrf.mxu0
        %v7314 = vadd.f32 %v7265, %v7313
        %7315 = vmatmul.bf16.gmra.mxu0 %v1136
        %v7316 = vpop.f32.mrf.mxu0
        %v7317 = vadd.f32 %v7268, %v7316
        %v7318 = vpop.f32.mrf.mxu0
        %v7319 = vadd.f32 %v7270, %v7318
        %7320 = vmatmul.bf16.gmra.mxu0 %v1144
        %v7321 = vpop.f32.mrf.mxu0
        %v7322 = vadd.f32 %v7273, %v7321
        %v7323 = vpop.f32.mrf.mxu0
        %v7324 = vadd.f32 %v7275, %v7323
        %7325 = vmatmul.bf16.gmra.mxu0 %v1152
        %v7326 = vpop.f32.mrf.mxu0
        %v7327 = vadd.f32 %v7278, %v7326
        %v7328 = vpop.f32.mrf.mxu0
        %v7329 = vadd.f32 %v7280, %v7328
        %7330 = vdwg.mxu0
        %7331 = vmatpush.bf16.msra.mxu0 %v3731
        %7332 = vmatpush.bf16.msra.mxu0 %v3723
        %7333 = vmatpush.bf16.msra.mxu0 %v3715
        %7334 = vmatpush.bf16.msra.mxu0 %v3707
        %7335 = vmatpush.bf16.msra.mxu0 %v3699
        %7336 = vmatpush.bf16.msra.mxu0 %v3691
        %7337 = vmatpush.bf16.msra.mxu0 %v3683
        %7338 = vmatpush.bf16.msra.mxu0 %v3675
        %7339 = vmatmul.bf16.gmra.mxu0 %v1097
        %v7340 = vpop.f32.mrf.mxu0
        %v7341 = vadd.f32 %v7292, %v7340
        %v7342 = vpop.f32.mrf.mxu0
        %v7343 = vadd.f32 %v7294, %v7342
        %7344 = vmatmul.bf16.gmra.mxu0 %v1105
        %v7345 = vpop.f32.mrf.mxu0
        %v7346 = vadd.f32 %v7297, %v7345
        %v7347 = vpop.f32.mrf.mxu0
        %v7348 = vadd.f32 %v7299, %v7347
        %7349 = vmatmul.bf16.gmra.mxu0 %v1113
        %v7350 = vpop.f32.mrf.mxu0
        %v7351 = vadd.f32 %v7302, %v7350
        %v7352 = vpop.f32.mrf.mxu0
        %v7353 = vadd.f32 %v7304, %v7352
        %7354 = vmatmul.bf16.gmra.mxu0 %v1121
        %v7355 = vpop.f32.mrf.mxu0
        %v7356 = vadd.f32 %v7307, %v7355
        %v7357 = vpop.f32.mrf.mxu0
        %v7358 = vadd.f32 %v7309, %v7357
        %7359 = vmatmul.bf16.gmra.mxu0 %v1129
        %v7360 = vpop.f32.mrf.mxu0
        %v7361 = vadd.f32 %v7312, %v7360
        %v7362 = vpop.f32.mrf.mxu0
        %v7363 = vadd.f32 %v7314, %v7362
        %7364 = vmatmul.bf16.gmra.mxu0 %v1137
        %v7365 = vpop.f32.mrf.mxu0
        %v7366 = vadd.f32 %v7317, %v7365
        %v7367 = vpop.f32.mrf.mxu0
        %v7368 = vadd.f32 %v7319, %v7367
        %7369 = vmatmul.bf16.gmra.mxu0 %v1145
        %v7370 = vpop.f32.mrf.mxu0
        %v7371 = vadd.f32 %v7322, %v7370
        %v7372 = vpop.f32.mrf.mxu0
        %v7373 = vadd.f32 %v7324, %v7372
        %7374 = vmatmul.bf16.gmra.mxu0 %v1153
        %v7375 = vpop.f32.mrf.mxu0
        %v7376 = vadd.f32 %v7327, %v7375
        %v7377 = vpop.f32.mrf.mxu0
        %v7378 = vadd.f32 %v7329, %v7377
        %7379 = vdwg.mxu0
        %v7380 = vmax.f32 %v4597, 0.0
        %v7381 = vmax.f32 %v4989, 0.0
        %v7382 = vmax.f32 %v5381, 0.0
        %v7383 = vmax.f32 %v5773, 0.0
        %v7384 = vmax.f32 %v6165, 0.0
        %v7385 = vmax.f32 %v6557, 0.0
        %v7386 = vmax.f32 %v6949, 0.0
        %v7387 = vmax.f32 %v7341, 0.0
        %v7388 = vmax.f32 %v4599, 0.0
        %v7389 = vmax.f32 %v4991, 0.0
        %v7390 = vmax.f32 %v5383, 0.0
        %v7391 = vmax.f32 %v5775, 0.0
        %v7392 = vmax.f32 %v6167, 0.0
        %v7393 = vmax.f32 %v6559, 0.0
        %v7394 = vmax.f32 %v6951, 0.0
        %v7395 = vmax.f32 %v7343, 0.0
        %v7396 = vmax.f32 %v4602, 0.0
        %v7397 = vmax.f32 %v4994, 0.0
        %v7398 = vmax.f32 %v5386, 0.0
        %v7399 = vmax.f32 %v5778, 0.0
        %v7400 = vmax.f32 %v6170, 0.0
        %v7401 = vmax.f32 %v6562, 0.0
        %v7402 = vmax.f32 %v6954, 0.0
        %v7403 = vmax.f32 %v7346, 0.0
        %v7404 = vmax.f32 %v4604, 0.0
        %v7405 = vmax.f32 %v4996, 0.0
        %v7406 = vmax.f32 %v5388, 0.0
        %v7407 = vmax.f32 %v5780, 0.0
        %v7408 = vmax.f32 %v6172, 0.0
        %v7409 = vmax.f32 %v6564, 0.0
        %v7410 = vmax.f32 %v6956, 0.0
        %v7411 = vmax.f32 %v7348, 0.0
        %v7412 = vmax.f32 %v4607, 0.0
        %v7413 = vmax.f32 %v4999, 0.0
        %v7414 = vmax.f32 %v5391, 0.0
        %v7415 = vmax.f32 %v5783, 0.0
        %v7416 = vmax.f32 %v6175, 0.0
        %v7417 = vmax.f32 %v6567, 0.0
        %v7418 = vmax.f32 %v6959, 0.0
        %v7419 = vmax.f32 %v7351, 0.0
        %v7420 = vmax.f32 %v4609, 0.0
        %v7421 = vmax.f32 %v5001, 0.0
        %v7422 = vmax.f32 %v5393, 0.0
        %v7423 = vmax.f32 %v5785, 0.0
        %v7424 = vmax.f32 %v6177, 0.0
        %v7425 = vmax.f32 %v6569, 0.0
        %v7426 = vmax.f32 %v6961, 0.0
        %v7427 = vmax.f32 %v7353, 0.0
        %v7428 = vmax.f32 %v4612, 0.0
        %v7429 = vmax.f32 %v5004, 0.0
        %v7430 = vmax.f32 %v5396, 0.0
        %v7431 = vmax.f32 %v5788, 0.0
        %v7432 = vmax.f32 %v6180, 0.0
        %v7433 = vmax.f32 %v6572, 0.0
        %v7434 = vmax.f32 %v6964, 0.0
        %v7435 = vmax.f32 %v7356, 0.0
        %v7436 = vmax.f32 %v4614, 0.0
        %v7437 = vmax.f32 %v5006, 0.0
        %v7438 = vmax.f32 %v5398, 0.0
        %v7439 = vmax.f32 %v5790, 0.0
        %v7440 = vmax.f32 %v6182, 0.0
        %v7441 = vmax.f32 %v6574, 0.0
        %v7442 = vmax.f32 %v6966, 0.0
        %v7443 = vmax.f32 %v7358, 0.0
        %v7444 = vmax.f32 %v4617, 0.0
        %v7445 = vmax.f32 %v5009, 0.0
        %v7446 = vmax.f32 %v5401, 0.0
        %v7447 = vmax.f32 %v5793, 0.0
        %v7448 = vmax.f32 %v6185, 0.0
        %v7449 = vmax.f32 %v6577, 0.0
        %v7450 = vmax.f32 %v6969, 0.0
        %v7451 = vmax.f32 %v7361, 0.0
        %v7452 = vmax.f32 %v4619, 0.0
        %v7453 = vmax.f32 %v5011, 0.0
        %v7454 = vmax.f32 %v5403, 0.0
        %v7455 = vmax.f32 %v5795, 0.0
        %v7456 = vmax.f32 %v6187, 0.0
        %v7457 = vmax.f32 %v6579, 0.0
        %v7458 = vmax.f32 %v6971, 0.0
        %v7459 = vmax.f32 %v7363, 0.0
        %v7460 = vmax.f32 %v4622, 0.0
        %v7461 = vmax.f32 %v5014, 0.0
        %v7462 = vmax.f32 %v5406, 0.0
        %v7463 = vmax.f32 %v5798, 0.0
        %v7464 = vmax.f32 %v6190, 0.0
        %v7465 = vmax.f32 %v6582, 0.0
        %v7466 = vmax.f32 %v6974, 0.0
        %v7467 = vmax.f32 %v7366, 0.0
        %v7468 = vmax.f32 %v4624, 0.0
        %v7469 = vmax.f32 %v5016, 0.0
        %v7470 = vmax.f32 %v5408, 0.0
        %v7471 = vmax.f32 %v5800, 0.0
        %v7472 = vmax.f32 %v6192, 0.0
        %v7473 = vmax.f32 %v6584, 0.0
        %v7474 = vmax.f32 %v6976, 0.0
        %v7475 = vmax.f32 %v7368, 0.0
        %v7476 = vmax.f32 %v4627, 0.0
        %v7477 = vmax.f32 %v5019, 0.0
        %v7478 = vmax.f32 %v5411, 0.0
        %v7479 = vmax.f32 %v5803, 0.0
        %v7480 = vmax.f32 %v6195, 0.0
        %v7481 = vmax.f32 %v6587, 0.0
        %v7482 = vmax.f32 %v6979, 0.0
        %v7483 = vmax.f32 %v7371, 0.0
        %v7484 = vmax.f32 %v4629, 0.0
        %v7485 = vmax.f32 %v5021, 0.0
        %v7486 = vmax.f32 %v5413, 0.0
        %v7487 = vmax.f32 %v5805, 0.0
        %v7488 = vmax.f32 %v6197, 0.0
        %v7489 = vmax.f32 %v6589, 0.0
        %v7490 = vmax.f32 %v6981, 0.0
        %v7491 = vmax.f32 %v7373, 0.0
        %v7492 = vmax.f32 %v4632, 0.0
        %v7493 = vmax.f32 %v5024, 0.0
        %v7494 = vmax.f32 %v5416, 0.0
        %v7495 = vmax.f32 %v5808, 0.0
        %v7496 = vmax.f32 %v6200, 0.0
        %v7497 = vmax.f32 %v6592, 0.0
        %v7498 = vmax.f32 %v6984, 0.0
        %v7499 = vmax.f32 %v7376, 0.0
        %v7500 = vmax.f32 %v4634, 0.0
        %v7501 = vmax.f32 %v5026, 0.0
        %v7502 = vmax.f32 %v5418, 0.0
        %v7503 = vmax.f32 %v5810, 0.0
        %v7504 = vmax.f32 %v6202, 0.0
        %v7505 = vmax.f32 %v6594, 0.0
        %v7506 = vmax.f32 %v6986, 0.0
        %v7507 = vmax.f32 %v7378, 0.0
        %v7508 = vpack.c.bf16 %v7388, %v7380
        %v7509 = vpack.c.bf16 %v7389, %v7381
        %v7510 = vpack.c.bf16 %v7390, %v7382
        %v7511 = vpack.c.bf16 %v7391, %v7383
        %v7512 = vpack.c.bf16 %v7392, %v7384
        %v7513 = vpack.c.bf16 %v7393, %v7385
        %v7514 = vpack.c.bf16 %v7394, %v7386
        %v7515 = vpack.c.bf16 %v7395, %v7387
        %v7516 = vpack.c.bf16 %v7404, %v7396
        %v7517 = vpack.c.bf16 %v7405, %v7397
        %v7518 = vpack.c.bf16 %v7406, %v7398
        %v7519 = vpack.c.bf16 %v7407, %v7399
        %v7520 = vpack.c.bf16 %v7408, %v7400
        %v7521 = vpack.c.bf16 %v7409, %v7401
        %v7522 = vpack.c.bf16 %v7410, %v7402
        %v7523 = vpack.c.bf16 %v7411, %v7403
        %v7524 = vpack.c.bf16 %v7420, %v7412
        %v7525 = vpack.c.bf16 %v7421, %v7413
        %v7526 = vpack.c.bf16 %v7422, %v7414
        %v7527 = vpack.c.bf16 %v7423, %v7415
        %v7528 = vpack.c.bf16 %v7424, %v7416
        %v7529 = vpack.c.bf16 %v7425, %v7417
        %v7530 = vpack.c.bf16 %v7426, %v7418
        %v7531 = vpack.c.bf16 %v7427, %v7419
        %v7532 = vpack.c.bf16 %v7436, %v7428
        %v7533 = vpack.c.bf16 %v7437, %v7429
        %v7534 = vpack.c.bf16 %v7438, %v7430
        %v7535 = vpack.c.bf16 %v7439, %v7431
        %v7536 = vpack.c.bf16 %v7440, %v7432
        %v7537 = vpack.c.bf16 %v7441, %v7433
        %v7538 = vpack.c.bf16 %v7442, %v7434
        %v7539 = vpack.c.bf16 %v7443, %v7435
        %v7540 = vpack.c.bf16 %v7452, %v7444
        %v7541 = vpack.c.bf16 %v7453, %v7445
        %v7542 = vpack.c.bf16 %v7454, %v7446
        %v7543 = vpack.c.bf16 %v7455, %v7447
        %v7544 = vpack.c.bf16 %v7456, %v7448
        %v7545 = vpack.c.bf16 %v7457, %v7449
        %v7546 = vpack.c.bf16 %v7458, %v7450
        %v7547 = vpack.c.bf16 %v7459, %v7451
        %v7548 = vpack.c.bf16 %v7468, %v7460
        %v7549 = vpack.c.bf16 %v7469, %v7461
        %v7550 = vpack.c.bf16 %v7470, %v7462
        %v7551 = vpack.c.bf16 %v7471, %v7463
        %v7552 = vpack.c.bf16 %v7472, %v7464
        %v7553 = vpack.c.bf16 %v7473, %v7465
        %v7554 = vpack.c.bf16 %v7474, %v7466
        %v7555 = vpack.c.bf16 %v7475, %v7467
        %v7556 = vpack.c.bf16 %v7484, %v7476
        %v7557 = vpack.c.bf16 %v7485, %v7477
        %v7558 = vpack.c.bf16 %v7486, %v7478
        %v7559 = vpack.c.bf16 %v7487, %v7479
        %v7560 = vpack.c.bf16 %v7488, %v7480
        %v7561 = vpack.c.bf16 %v7489, %v7481
        %v7562 = vpack.c.bf16 %v7490, %v7482
        %v7563 = vpack.c.bf16 %v7491, %v7483
        %v7564 = vpack.c.bf16 %v7500, %v7492
        %v7565 = vpack.c.bf16 %v7501, %v7493
        %v7566 = vpack.c.bf16 %v7502, %v7494
        %v7567 = vpack.c.bf16 %v7503, %v7495
        %v7568 = vpack.c.bf16 %v7504, %v7496
        %v7569 = vpack.c.bf16 %v7505, %v7497
        %v7570 = vpack.c.bf16 %v7506, %v7498
        %v7571 = vpack.c.bf16 %v7507, %v7499
        %v7572 = vld [vmem:[#allocation10] sm:$0xf]
        %v7573 = vld [vmem:[#allocation10 + $0x4] sm:$0xf]
        %v7574 = vld [vmem:[#allocation10 + $0x8] sm:$0xf]
        %v7575 = vld [vmem:[#allocation10 + $0xc] sm:$0xf]
        %v7576 = vld [vmem:[#allocation10 + $0x10] sm:$0xf]
        %v7577 = vld [vmem:[#allocation10 + $0x14] sm:$0xf]
        %v7578 = vld [vmem:[#allocation10 + $0x18] sm:$0xf]
        %v7579 = vld [vmem:[#allocation10 + $0x1c] sm:$0xf]
        %v7580 = vld [vmem:[#allocation10 + $0x20] sm:$0xf]
        %v7581 = vld [vmem:[#allocation10 + $0x24] sm:$0xf]
        %v7582 = vld [vmem:[#allocation10 + $0x28] sm:$0xf]
        %v7583 = vld [vmem:[#allocation10 + $0x2c] sm:$0xf]
        %v7584 = vld [vmem:[#allocation10 + $0x30] sm:$0xf]
        %v7585 = vld [vmem:[#allocation10 + $0x34] sm:$0xf]
        %v7586 = vld [vmem:[#allocation10 + $0x38] sm:$0xf]
        %v7587 = vld [vmem:[#allocation10 + $0x3c] sm:$0xf]
        %v7588 = vld [vmem:[#allocation10 + $0x40] sm:$0xf]
        %v7589 = vld [vmem:[#allocation10 + $0x44] sm:$0xf]
        %v7590 = vld [vmem:[#allocation10 + $0x48] sm:$0xf]
        %v7591 = vld [vmem:[#allocation10 + $0x4c] sm:$0xf]
        %v7592 = vld [vmem:[#allocation10 + $0x50] sm:$0xf]
        %v7593 = vld [vmem:[#allocation10 + $0x54] sm:$0xf]
        %v7594 = vld [vmem:[#allocation10 + $0x58] sm:$0xf]
        %v7595 = vld [vmem:[#allocation10 + $0x5c] sm:$0xf]
        %v7596 = vld [vmem:[#allocation10 + $0x60] sm:$0xf]
        %v7597 = vld [vmem:[#allocation10 + $0x64] sm:$0xf]
        %v7598 = vld [vmem:[#allocation10 + $0x68] sm:$0xf]
        %v7599 = vld [vmem:[#allocation10 + $0x6c] sm:$0xf]
        %v7600 = vld [vmem:[#allocation10 + $0x70] sm:$0xf]
        %v7601 = vld [vmem:[#allocation10 + $0x74] sm:$0xf]
        %v7602 = vld [vmem:[#allocation10 + $0x78] sm:$0xf]
        %v7603 = vld [vmem:[#allocation10 + $0x7c] sm:$0xf]
        %v7604 = vld [vmem:[#allocation10 + $0x80] sm:$0xf]
        %v7605 = vld [vmem:[#allocation10 + $0x84] sm:$0xf]
        %v7606 = vld [vmem:[#allocation10 + $0x88] sm:$0xf]
        %v7607 = vld [vmem:[#allocation10 + $0x8c] sm:$0xf]
        %v7608 = vld [vmem:[#allocation10 + $0x90] sm:$0xf]
        %v7609 = vld [vmem:[#allocation10 + $0x94] sm:$0xf]
        %v7610 = vld [vmem:[#allocation10 + $0x98] sm:$0xf]
        %v7611 = vld [vmem:[#allocation10 + $0x9c] sm:$0xf]
        %v7612 = vld [vmem:[#allocation10 + $0xa0] sm:$0xf]
        %v7613 = vld [vmem:[#allocation10 + $0xa4] sm:$0xf]
        %v7614 = vld [vmem:[#allocation10 + $0xa8] sm:$0xf]
        %v7615 = vld [vmem:[#allocation10 + $0xac] sm:$0xf]
        %v7616 = vld [vmem:[#allocation10 + $0xb0] sm:$0xf]
        %v7617 = vld [vmem:[#allocation10 + $0xb4] sm:$0xf]
        %v7618 = vld [vmem:[#allocation10 + $0xb8] sm:$0xf]
        %v7619 = vld [vmem:[#allocation10 + $0xbc] sm:$0xf]
        %v7620 = vld [vmem:[#allocation10 + $0xc0] sm:$0xf]
        %v7621 = vld [vmem:[#allocation10 + $0xc4] sm:$0xf]
        %v7622 = vld [vmem:[#allocation10 + $0xc8] sm:$0xf]
        %v7623 = vld [vmem:[#allocation10 + $0xcc] sm:$0xf]
        %v7624 = vld [vmem:[#allocation10 + $0xd0] sm:$0xf]
        %v7625 = vld [vmem:[#allocation10 + $0xd4] sm:$0xf]
        %v7626 = vld [vmem:[#allocation10 + $0xd8] sm:$0xf]
        %v7627 = vld [vmem:[#allocation10 + $0xdc] sm:$0xf]
        %v7628 = vld [vmem:[#allocation10 + $0xe0] sm:$0xf]
        %v7629 = vld [vmem:[#allocation10 + $0xe4] sm:$0xf]
        %v7630 = vld [vmem:[#allocation10 + $0xe8] sm:$0xf]
        %v7631 = vld [vmem:[#allocation10 + $0xec] sm:$0xf]
        %v7632 = vld [vmem:[#allocation10 + $0xf0] sm:$0xf]
        %v7633 = vld [vmem:[#allocation10 + $0xf4] sm:$0xf]
        %v7634 = vld [vmem:[#allocation10 + $0xf8] sm:$0xf]
        %v7635 = vld [vmem:[#allocation10 + $0xfc] sm:$0xf]
        %v7636 = vld [vmem:[#allocation10 + $0x100] sm:$0xf]
        %v7637 = vld [vmem:[#allocation10 + $0x104] sm:$0xf]
        %v7638 = vld [vmem:[#allocation10 + $0x108] sm:$0xf]
        %v7639 = vld [vmem:[#allocation10 + $0x10c] sm:$0xf]
        %v7640 = vld [vmem:[#allocation10 + $0x110] sm:$0xf]
        %v7641 = vld [vmem:[#allocation10 + $0x114] sm:$0xf]
        %v7642 = vld [vmem:[#allocation10 + $0x118] sm:$0xf]
        %v7643 = vld [vmem:[#allocation10 + $0x11c] sm:$0xf]
        %v7644 = vld [vmem:[#allocation10 + $0x120] sm:$0xf]
        %v7645 = vld [vmem:[#allocation10 + $0x124] sm:$0xf]
        %v7646 = vld [vmem:[#allocation10 + $0x128] sm:$0xf]
        %v7647 = vld [vmem:[#allocation10 + $0x12c] sm:$0xf]
        %v7648 = vld [vmem:[#allocation10 + $0x130] sm:$0xf]
        %v7649 = vld [vmem:[#allocation10 + $0x134] sm:$0xf]
        %v7650 = vld [vmem:[#allocation10 + $0x138] sm:$0xf]
        %v7651 = vld [vmem:[#allocation10 + $0x13c] sm:$0xf]
        %v7652 = vld [vmem:[#allocation10 + $0x140] sm:$0xf]
        %v7653 = vld [vmem:[#allocation10 + $0x144] sm:$0xf]
        %v7654 = vld [vmem:[#allocation10 + $0x148] sm:$0xf]
        %v7655 = vld [vmem:[#allocation10 + $0x14c] sm:$0xf]
        %v7656 = vld [vmem:[#allocation10 + $0x150] sm:$0xf]
        %v7657 = vld [vmem:[#allocation10 + $0x154] sm:$0xf]
        %v7658 = vld [vmem:[#allocation10 + $0x158] sm:$0xf]
        %v7659 = vld [vmem:[#allocation10 + $0x15c] sm:$0xf]
        %v7660 = vld [vmem:[#allocation10 + $0x160] sm:$0xf]
        %v7661 = vld [vmem:[#allocation10 + $0x164] sm:$0xf]
        %v7662 = vld [vmem:[#allocation10 + $0x168] sm:$0xf]
        %v7663 = vld [vmem:[#allocation10 + $0x16c] sm:$0xf]
        %v7664 = vld [vmem:[#allocation10 + $0x170] sm:$0xf]
        %v7665 = vld [vmem:[#allocation10 + $0x174] sm:$0xf]
        %v7666 = vld [vmem:[#allocation10 + $0x178] sm:$0xf]
        %v7667 = vld [vmem:[#allocation10 + $0x17c] sm:$0xf]
        %v7668 = vld [vmem:[#allocation10 + $0x180] sm:$0xf]
        %v7669 = vld [vmem:[#allocation10 + $0x184] sm:$0xf]
        %v7670 = vld [vmem:[#allocation10 + $0x188] sm:$0xf]
        %v7671 = vld [vmem:[#allocation10 + $0x18c] sm:$0xf]
        %v7672 = vld [vmem:[#allocation10 + $0x190] sm:$0xf]
        %v7673 = vld [vmem:[#allocation10 + $0x194] sm:$0xf]
        %v7674 = vld [vmem:[#allocation10 + $0x198] sm:$0xf]
        %v7675 = vld [vmem:[#allocation10 + $0x19c] sm:$0xf]
        %v7676 = vld [vmem:[#allocation10 + $0x1a0] sm:$0xf]
        %v7677 = vld [vmem:[#allocation10 + $0x1a4] sm:$0xf]
        %v7678 = vld [vmem:[#allocation10 + $0x1a8] sm:$0xf]
        %v7679 = vld [vmem:[#allocation10 + $0x1ac] sm:$0xf]
        %v7680 = vld [vmem:[#allocation10 + $0x1b0] sm:$0xf]
        %v7681 = vld [vmem:[#allocation10 + $0x1b4] sm:$0xf]
        %v7682 = vld [vmem:[#allocation10 + $0x1b8] sm:$0xf]
        %v7683 = vld [vmem:[#allocation10 + $0x1bc] sm:$0xf]
        %v7684 = vld [vmem:[#allocation10 + $0x1c0] sm:$0xf]
        %v7685 = vld [vmem:[#allocation10 + $0x1c4] sm:$0xf]
        %v7686 = vld [vmem:[#allocation10 + $0x1c8] sm:$0xf]
        %v7687 = vld [vmem:[#allocation10 + $0x1cc] sm:$0xf]
        %v7688 = vld [vmem:[#allocation10 + $0x1d0] sm:$0xf]
        %v7689 = vld [vmem:[#allocation10 + $0x1d4] sm:$0xf]
        %v7690 = vld [vmem:[#allocation10 + $0x1d8] sm:$0xf]
        %v7691 = vld [vmem:[#allocation10 + $0x1dc] sm:$0xf]
        %v7692 = vld [vmem:[#allocation10 + $0x1e0] sm:$0xf]
        %v7693 = vld [vmem:[#allocation10 + $0x1e4] sm:$0xf]
        %v7694 = vld [vmem:[#allocation10 + $0x1e8] sm:$0xf]
        %v7695 = vld [vmem:[#allocation10 + $0x1ec] sm:$0xf]
        %v7696 = vld [vmem:[#allocation10 + $0x1f0] sm:$0xf]
        %v7697 = vld [vmem:[#allocation10 + $0x1f4] sm:$0xf]
        %v7698 = vld [vmem:[#allocation10 + $0x1f8] sm:$0xf]
        %v7699 = vld [vmem:[#allocation10 + $0x1fc] sm:$0xf]
        %v7700 = vld [vmem:[#allocation11] sm:$0x1]
        %v7702 = vperm.slane %v7700, 0
        %v7832 = vunpack.c.l.b16 %v7572
        %v7833 = vunpack.c.l.b16 %v7573
        %v7834 = vunpack.c.l.b16 %v7574
        %v7835 = vunpack.c.l.b16 %v7575
        %v7836 = vunpack.c.l.b16 %v7576
        %v7837 = vunpack.c.l.b16 %v7577
        %v7838 = vunpack.c.l.b16 %v7578
        %v7839 = vunpack.c.l.b16 %v7579
        %v7840 = vunpack.c.l.b16 %v7580
        %v7841 = vunpack.c.l.b16 %v7581
        %v7842 = vunpack.c.l.b16 %v7582
        %v7843 = vunpack.c.l.b16 %v7583
        %v7844 = vunpack.c.l.b16 %v7584
        %v7845 = vunpack.c.l.b16 %v7585
        %v7846 = vunpack.c.l.b16 %v7586
        %v7847 = vunpack.c.l.b16 %v7587
        %v7848 = vunpack.c.l.b16 %v7588
        %v7849 = vunpack.c.l.b16 %v7589
        %v7850 = vunpack.c.l.b16 %v7590
        %v7851 = vunpack.c.l.b16 %v7591
        %v7852 = vunpack.c.l.b16 %v7592
        %v7853 = vunpack.c.l.b16 %v7593
        %v7854 = vunpack.c.l.b16 %v7594
        %v7855 = vunpack.c.l.b16 %v7595
        %v7856 = vunpack.c.l.b16 %v7596
        %v7857 = vunpack.c.l.b16 %v7597
        %v7858 = vunpack.c.l.b16 %v7598
        %v7859 = vunpack.c.l.b16 %v7599
        %v7860 = vunpack.c.l.b16 %v7600
        %v7861 = vunpack.c.l.b16 %v7601
        %v7862 = vunpack.c.l.b16 %v7602
        %v7863 = vunpack.c.l.b16 %v7603
        %v7864 = vunpack.c.l.b16 %v7604
        %v7865 = vunpack.c.l.b16 %v7605
        %v7866 = vunpack.c.l.b16 %v7606
        %v7867 = vunpack.c.l.b16 %v7607
        %v7868 = vunpack.c.l.b16 %v7608
        %v7869 = vunpack.c.l.b16 %v7609
        %v7870 = vunpack.c.l.b16 %v7610
        %v7871 = vunpack.c.l.b16 %v7611
        %v7872 = vunpack.c.l.b16 %v7612
        %v7873 = vunpack.c.l.b16 %v7613
        %v7874 = vunpack.c.l.b16 %v7614
        %v7875 = vunpack.c.l.b16 %v7615
        %v7876 = vunpack.c.l.b16 %v7616
        %v7877 = vunpack.c.l.b16 %v7617
        %v7878 = vunpack.c.l.b16 %v7618
        %v7879 = vunpack.c.l.b16 %v7619
        %v7880 = vunpack.c.l.b16 %v7620
        %v7881 = vunpack.c.l.b16 %v7621
        %v7882 = vunpack.c.l.b16 %v7622
        %v7883 = vunpack.c.l.b16 %v7623
        %v7884 = vunpack.c.l.b16 %v7624
        %v7885 = vunpack.c.l.b16 %v7625
        %v7886 = vunpack.c.l.b16 %v7626
        %v7887 = vunpack.c.l.b16 %v7627
        %v7888 = vunpack.c.l.b16 %v7628
        %v7889 = vunpack.c.l.b16 %v7629
        %v7890 = vunpack.c.l.b16 %v7630
        %v7891 = vunpack.c.l.b16 %v7631
        %v7892 = vunpack.c.l.b16 %v7632
        %v7893 = vunpack.c.l.b16 %v7633
        %v7894 = vunpack.c.l.b16 %v7634
        %v7895 = vunpack.c.l.b16 %v7635
        %v7896 = vunpack.c.l.b16 %v7636
        %v7897 = vunpack.c.l.b16 %v7637
        %v7898 = vunpack.c.l.b16 %v7638
        %v7899 = vunpack.c.l.b16 %v7639
        %v7900 = vunpack.c.l.b16 %v7640
        %v7901 = vunpack.c.l.b16 %v7641
        %v7902 = vunpack.c.l.b16 %v7642
        %v7903 = vunpack.c.l.b16 %v7643
        %v7904 = vunpack.c.l.b16 %v7644
        %v7905 = vunpack.c.l.b16 %v7645
        %v7906 = vunpack.c.l.b16 %v7646
        %v7907 = vunpack.c.l.b16 %v7647
        %v7908 = vunpack.c.l.b16 %v7648
        %v7909 = vunpack.c.l.b16 %v7649
        %v7910 = vunpack.c.l.b16 %v7650
        %v7911 = vunpack.c.l.b16 %v7651
        %v7912 = vunpack.c.l.b16 %v7652
        %v7913 = vunpack.c.l.b16 %v7653
        %v7914 = vunpack.c.l.b16 %v7654
        %v7915 = vunpack.c.l.b16 %v7655
        %v7916 = vunpack.c.l.b16 %v7656
        %v7917 = vunpack.c.l.b16 %v7657
        %v7918 = vunpack.c.l.b16 %v7658
        %v7919 = vunpack.c.l.b16 %v7659
        %v7920 = vunpack.c.l.b16 %v7660
        %v7921 = vunpack.c.l.b16 %v7661
        %v7922 = vunpack.c.l.b16 %v7662
        %v7923 = vunpack.c.l.b16 %v7663
        %v7924 = vunpack.c.l.b16 %v7664
        %v7925 = vunpack.c.l.b16 %v7665
        %v7926 = vunpack.c.l.b16 %v7666
        %v7927 = vunpack.c.l.b16 %v7667
        %v7928 = vunpack.c.l.b16 %v7668
        %v7929 = vunpack.c.l.b16 %v7669
        %v7930 = vunpack.c.l.b16 %v7670
        %v7931 = vunpack.c.l.b16 %v7671
        %v7932 = vunpack.c.l.b16 %v7672
        %v7933 = vunpack.c.l.b16 %v7673
        %v7934 = vunpack.c.l.b16 %v7674
        %v7935 = vunpack.c.l.b16 %v7675
        %v7936 = vunpack.c.l.b16 %v7676
        %v7937 = vunpack.c.l.b16 %v7677
        %v7938 = vunpack.c.l.b16 %v7678
        %v7939 = vunpack.c.l.b16 %v7679
        %v7940 = vunpack.c.l.b16 %v7680
        %v7941 = vunpack.c.l.b16 %v7681
        %v7942 = vunpack.c.l.b16 %v7682
        %v7943 = vunpack.c.l.b16 %v7683
        %v7944 = vunpack.c.l.b16 %v7684
        %v7945 = vunpack.c.l.b16 %v7685
        %v7946 = vunpack.c.l.b16 %v7686
        %v7947 = vunpack.c.l.b16 %v7687
        %v7948 = vunpack.c.l.b16 %v7688
        %v7949 = vunpack.c.l.b16 %v7689
        %v7950 = vunpack.c.l.b16 %v7690
        %v7951 = vunpack.c.l.b16 %v7691
        %v7952 = vunpack.c.l.b16 %v7692
        %v7953 = vunpack.c.l.b16 %v7693
        %v7954 = vunpack.c.l.b16 %v7694
        %v7955 = vunpack.c.l.b16 %v7695
        %v7956 = vunpack.c.l.b16 %v7696
        %v7957 = vunpack.c.l.b16 %v7697
        %v7958 = vunpack.c.l.b16 %v7698
        %v7959 = vunpack.c.l.b16 %v7699
        %v7960 = vpack.c.b16 %v7833, %v7832
        %v7961 = vpack.c.b16 %v7835, %v7834
        %v7962 = vpack.c.b16 %v7837, %v7836
        %v7963 = vpack.c.b16 %v7839, %v7838
        %v7964 = vpack.c.b16 %v7841, %v7840
        %v7965 = vpack.c.b16 %v7843, %v7842
        %v7966 = vpack.c.b16 %v7845, %v7844
        %v7967 = vpack.c.b16 %v7847, %v7846
        %v7968 = vpack.c.b16 %v7849, %v7848
        %v7969 = vpack.c.b16 %v7851, %v7850
        %v7970 = vpack.c.b16 %v7853, %v7852
        %v7971 = vpack.c.b16 %v7855, %v7854
        %v7972 = vpack.c.b16 %v7857, %v7856
        %v7973 = vpack.c.b16 %v7859, %v7858
        %v7974 = vpack.c.b16 %v7861, %v7860
        %v7975 = vpack.c.b16 %v7863, %v7862
        %v7976 = vpack.c.b16 %v7865, %v7864
        %v7977 = vpack.c.b16 %v7867, %v7866
        %v7978 = vpack.c.b16 %v7869, %v7868
        %v7979 = vpack.c.b16 %v7871, %v7870
        %v7980 = vpack.c.b16 %v7873, %v7872
        %v7981 = vpack.c.b16 %v7875, %v7874
        %v7982 = vpack.c.b16 %v7877, %v7876
        %v7983 = vpack.c.b16 %v7879, %v7878
        %v7984 = vpack.c.b16 %v7881, %v7880
        %v7985 = vpack.c.b16 %v7883, %v7882
        %v7986 = vpack.c.b16 %v7885, %v7884
        %v7987 = vpack.c.b16 %v7887, %v7886
        %v7988 = vpack.c.b16 %v7889, %v7888
        %v7989 = vpack.c.b16 %v7891, %v7890
        %v7990 = vpack.c.b16 %v7893, %v7892
        %v7991 = vpack.c.b16 %v7895, %v7894
        %v7992 = vpack.c.b16 %v7897, %v7896
        %v7993 = vpack.c.b16 %v7899, %v7898
        %v7994 = vpack.c.b16 %v7901, %v7900
        %v7995 = vpack.c.b16 %v7903, %v7902
        %v7996 = vpack.c.b16 %v7905, %v7904
        %v7997 = vpack.c.b16 %v7907, %v7906
        %v7998 = vpack.c.b16 %v7909, %v7908
        %v7999 = vpack.c.b16 %v7911, %v7910
        %v8000 = vpack.c.b16 %v7913, %v7912
        %v8001 = vpack.c.b16 %v7915, %v7914
        %v8002 = vpack.c.b16 %v7917, %v7916
        %v8003 = vpack.c.b16 %v7919, %v7918
        %v8004 = vpack.c.b16 %v7921, %v7920
        %v8005 = vpack.c.b16 %v7923, %v7922
        %v8006 = vpack.c.b16 %v7925, %v7924
        %v8007 = vpack.c.b16 %v7927, %v7926
        %v8008 = vpack.c.b16 %v7929, %v7928
        %v8009 = vpack.c.b16 %v7931, %v7930
        %v8010 = vpack.c.b16 %v7933, %v7932
        %v8011 = vpack.c.b16 %v7935, %v7934
        %v8012 = vpack.c.b16 %v7937, %v7936
        %v8013 = vpack.c.b16 %v7939, %v7938
        %v8014 = vpack.c.b16 %v7941, %v7940
        %v8015 = vpack.c.b16 %v7943, %v7942
        %v8016 = vpack.c.b16 %v7945, %v7944
        %v8017 = vpack.c.b16 %v7947, %v7946
        %v8018 = vpack.c.b16 %v7949, %v7948
        %v8019 = vpack.c.b16 %v7951, %v7950
        %v8020 = vpack.c.b16 %v7953, %v7952
        %v8021 = vpack.c.b16 %v7955, %v7954
        %v8022 = vpack.c.b16 %v7957, %v7956
        %v8023 = vpack.c.b16 %v7959, %v7958
        %8088 = vmatpush.bf16.msra.mxu0 %v7967
        %8089 = vmatpush.bf16.msra.mxu0 %v7966
        %8090 = vmatpush.bf16.msra.mxu0 %v7965
        %8091 = vmatpush.bf16.msra.mxu0 %v7964
        %8092 = vmatpush.bf16.msra.mxu0 %v7963
        %8093 = vmatpush.bf16.msra.mxu0 %v7962
        %8094 = vmatpush.bf16.msra.mxu0 %v7961
        %8095 = vmatpush.bf16.msra.mxu0 %v7960
        %8096 = vmatmul.bf16.gmra.mxu0 %v7508
        %v8097 = vpop.f32.mrf.mxu0
        %v8098 = vadd.f32 %v7702, %v8097
        %v8099 = vpop.f32.mrf.mxu0
        %v8100 = vadd.f32 %v7702, %v8099
        %8101 = vmatmul.bf16.gmra.mxu0 %v7516
        %v8102 = vpop.f32.mrf.mxu0
        %v8103 = vadd.f32 %v7702, %v8102
        %v8104 = vpop.f32.mrf.mxu0
        %v8105 = vadd.f32 %v7702, %v8104
        %8106 = vmatmul.bf16.gmra.mxu0 %v7524
        %v8107 = vpop.f32.mrf.mxu0
        %v8108 = vadd.f32 %v7702, %v8107
        %v8109 = vpop.f32.mrf.mxu0
        %v8110 = vadd.f32 %v7702, %v8109
        %8111 = vmatmul.bf16.gmra.mxu0 %v7532
        %v8112 = vpop.f32.mrf.mxu0
        %v8113 = vadd.f32 %v7702, %v8112
        %v8114 = vpop.f32.mrf.mxu0
        %v8115 = vadd.f32 %v7702, %v8114
        %8116 = vmatmul.bf16.gmra.mxu0 %v7540
        %v8117 = vpop.f32.mrf.mxu0
        %v8118 = vadd.f32 %v7702, %v8117
        %v8119 = vpop.f32.mrf.mxu0
        %v8120 = vadd.f32 %v7702, %v8119
        %8121 = vmatmul.bf16.gmra.mxu0 %v7548
        %v8122 = vpop.f32.mrf.mxu0
        %v8123 = vadd.f32 %v7702, %v8122
        %v8124 = vpop.f32.mrf.mxu0
        %v8125 = vadd.f32 %v7702, %v8124
        %8126 = vmatmul.bf16.gmra.mxu0 %v7556
        %v8127 = vpop.f32.mrf.mxu0
        %v8128 = vadd.f32 %v7702, %v8127
        %v8129 = vpop.f32.mrf.mxu0
        %v8130 = vadd.f32 %v7702, %v8129
        %8131 = vmatmul.bf16.gmra.mxu0 %v7564
        %v8132 = vpop.f32.mrf.mxu0
        %v8133 = vadd.f32 %v7702, %v8132
        %v8134 = vpop.f32.mrf.mxu0
        %v8135 = vadd.f32 %v7702, %v8134
        %8136 = vdwg.mxu0
        %8137 = vmatpush.bf16.msra.mxu0 %v7975
        %8138 = vmatpush.bf16.msra.mxu0 %v7974
        %8139 = vmatpush.bf16.msra.mxu0 %v7973
        %8140 = vmatpush.bf16.msra.mxu0 %v7972
        %8141 = vmatpush.bf16.msra.mxu0 %v7971
        %8142 = vmatpush.bf16.msra.mxu0 %v7970
        %8143 = vmatpush.bf16.msra.mxu0 %v7969
        %8144 = vmatpush.bf16.msra.mxu0 %v7968
        %8145 = vmatmul.bf16.gmra.mxu0 %v7509
        %v8146 = vpop.f32.mrf.mxu0
        %v8147 = vadd.f32 %v8098, %v8146
        %v8148 = vpop.f32.mrf.mxu0
        %v8149 = vadd.f32 %v8100, %v8148
        %8150 = vmatmul.bf16.gmra.mxu0 %v7517
        %v8151 = vpop.f32.mrf.mxu0
        %v8152 = vadd.f32 %v8103, %v8151
        %v8153 = vpop.f32.mrf.mxu0
        %v8154 = vadd.f32 %v8105, %v8153
        %8155 = vmatmul.bf16.gmra.mxu0 %v7525
        %v8156 = vpop.f32.mrf.mxu0
        %v8157 = vadd.f32 %v8108, %v8156
        %v8158 = vpop.f32.mrf.mxu0
        %v8159 = vadd.f32 %v8110, %v8158
        %8160 = vmatmul.bf16.gmra.mxu0 %v7533
        %v8161 = vpop.f32.mrf.mxu0
        %v8162 = vadd.f32 %v8113, %v8161
        %v8163 = vpop.f32.mrf.mxu0
        %v8164 = vadd.f32 %v8115, %v8163
        %8165 = vmatmul.bf16.gmra.mxu0 %v7541
        %v8166 = vpop.f32.mrf.mxu0
        %v8167 = vadd.f32 %v8118, %v8166
        %v8168 = vpop.f32.mrf.mxu0
        %v8169 = vadd.f32 %v8120, %v8168
        %8170 = vmatmul.bf16.gmra.mxu0 %v7549
        %v8171 = vpop.f32.mrf.mxu0
        %v8172 = vadd.f32 %v8123, %v8171
        %v8173 = vpop.f32.mrf.mxu0
        %v8174 = vadd.f32 %v8125, %v8173
        %8175 = vmatmul.bf16.gmra.mxu0 %v7557
        %v8176 = vpop.f32.mrf.mxu0
        %v8177 = vadd.f32 %v8128, %v8176
        %v8178 = vpop.f32.mrf.mxu0
        %v8179 = vadd.f32 %v8130, %v8178
        %8180 = vmatmul.bf16.gmra.mxu0 %v7565
        %v8181 = vpop.f32.mrf.mxu0
        %v8182 = vadd.f32 %v8133, %v8181
        %v8183 = vpop.f32.mrf.mxu0
        %v8184 = vadd.f32 %v8135, %v8183
        %8185 = vdwg.mxu0
        %8186 = vmatpush.bf16.msra.mxu0 %v7983
        %8187 = vmatpush.bf16.msra.mxu0 %v7982
        %8188 = vmatpush.bf16.msra.mxu0 %v7981
        %8189 = vmatpush.bf16.msra.mxu0 %v7980
        %8190 = vmatpush.bf16.msra.mxu0 %v7979
        %8191 = vmatpush.bf16.msra.mxu0 %v7978
        %8192 = vmatpush.bf16.msra.mxu0 %v7977
        %8193 = vmatpush.bf16.msra.mxu0 %v7976
        %8194 = vmatmul.bf16.gmra.mxu0 %v7510
        %v8195 = vpop.f32.mrf.mxu0
        %v8196 = vadd.f32 %v8147, %v8195
        %v8197 = vpop.f32.mrf.mxu0
        %v8198 = vadd.f32 %v8149, %v8197
        %8199 = vmatmul.bf16.gmra.mxu0 %v7518
        %v8200 = vpop.f32.mrf.mxu0
        %v8201 = vadd.f32 %v8152, %v8200
        %v8202 = vpop.f32.mrf.mxu0
        %v8203 = vadd.f32 %v8154, %v8202
        %8204 = vmatmul.bf16.gmra.mxu0 %v7526
        %v8205 = vpop.f32.mrf.mxu0
        %v8206 = vadd.f32 %v8157, %v8205
        %v8207 = vpop.f32.mrf.mxu0
        %v8208 = vadd.f32 %v8159, %v8207
        %8209 = vmatmul.bf16.gmra.mxu0 %v7534
        %v8210 = vpop.f32.mrf.mxu0
        %v8211 = vadd.f32 %v8162, %v8210
        %v8212 = vpop.f32.mrf.mxu0
        %v8213 = vadd.f32 %v8164, %v8212
        %8214 = vmatmul.bf16.gmra.mxu0 %v7542
        %v8215 = vpop.f32.mrf.mxu0
        %v8216 = vadd.f32 %v8167, %v8215
        %v8217 = vpop.f32.mrf.mxu0
        %v8218 = vadd.f32 %v8169, %v8217
        %8219 = vmatmul.bf16.gmra.mxu0 %v7550
        %v8220 = vpop.f32.mrf.mxu0
        %v8221 = vadd.f32 %v8172, %v8220
        %v8222 = vpop.f32.mrf.mxu0
        %v8223 = vadd.f32 %v8174, %v8222
        %8224 = vmatmul.bf16.gmra.mxu0 %v7558
        %v8225 = vpop.f32.mrf.mxu0
        %v8226 = vadd.f32 %v8177, %v8225
        %v8227 = vpop.f32.mrf.mxu0
        %v8228 = vadd.f32 %v8179, %v8227
        %8229 = vmatmul.bf16.gmra.mxu0 %v7566
        %v8230 = vpop.f32.mrf.mxu0
        %v8231 = vadd.f32 %v8182, %v8230
        %v8232 = vpop.f32.mrf.mxu0
        %v8233 = vadd.f32 %v8184, %v8232
        %8234 = vdwg.mxu0
        %8235 = vmatpush.bf16.msra.mxu0 %v7991
        %8236 = vmatpush.bf16.msra.mxu0 %v7990
        %8237 = vmatpush.bf16.msra.mxu0 %v7989
        %8238 = vmatpush.bf16.msra.mxu0 %v7988
        %8239 = vmatpush.bf16.msra.mxu0 %v7987
        %8240 = vmatpush.bf16.msra.mxu0 %v7986
        %8241 = vmatpush.bf16.msra.mxu0 %v7985
        %8242 = vmatpush.bf16.msra.mxu0 %v7984
        %8243 = vmatmul.bf16.gmra.mxu0 %v7511
        %v8244 = vpop.f32.mrf.mxu0
        %v8245 = vadd.f32 %v8196, %v8244
        %v8246 = vpop.f32.mrf.mxu0
        %v8247 = vadd.f32 %v8198, %v8246
        %8248 = vmatmul.bf16.gmra.mxu0 %v7519
        %v8249 = vpop.f32.mrf.mxu0
        %v8250 = vadd.f32 %v8201, %v8249
        %v8251 = vpop.f32.mrf.mxu0
        %v8252 = vadd.f32 %v8203, %v8251
        %8253 = vmatmul.bf16.gmra.mxu0 %v7527
        %v8254 = vpop.f32.mrf.mxu0
        %v8255 = vadd.f32 %v8206, %v8254
        %v8256 = vpop.f32.mrf.mxu0
        %v8257 = vadd.f32 %v8208, %v8256
        %8258 = vmatmul.bf16.gmra.mxu0 %v7535
        %v8259 = vpop.f32.mrf.mxu0
        %v8260 = vadd.f32 %v8211, %v8259
        %v8261 = vpop.f32.mrf.mxu0
        %v8262 = vadd.f32 %v8213, %v8261
        %8263 = vmatmul.bf16.gmra.mxu0 %v7543
        %v8264 = vpop.f32.mrf.mxu0
        %v8265 = vadd.f32 %v8216, %v8264
        %v8266 = vpop.f32.mrf.mxu0
        %v8267 = vadd.f32 %v8218, %v8266
        %8268 = vmatmul.bf16.gmra.mxu0 %v7551
        %v8269 = vpop.f32.mrf.mxu0
        %v8270 = vadd.f32 %v8221, %v8269
        %v8271 = vpop.f32.mrf.mxu0
        %v8272 = vadd.f32 %v8223, %v8271
        %8273 = vmatmul.bf16.gmra.mxu0 %v7559
        %v8274 = vpop.f32.mrf.mxu0
        %v8275 = vadd.f32 %v8226, %v8274
        %v8276 = vpop.f32.mrf.mxu0
        %v8277 = vadd.f32 %v8228, %v8276
        %8278 = vmatmul.bf16.gmra.mxu0 %v7567
        %v8279 = vpop.f32.mrf.mxu0
        %v8280 = vadd.f32 %v8231, %v8279
        %v8281 = vpop.f32.mrf.mxu0
        %v8282 = vadd.f32 %v8233, %v8281
        %8283 = vdwg.mxu0
        %8284 = vmatpush.bf16.msra.mxu0 %v7999
        %8285 = vmatpush.bf16.msra.mxu0 %v7998
        %8286 = vmatpush.bf16.msra.mxu0 %v7997
        %8287 = vmatpush.bf16.msra.mxu0 %v7996
        %8288 = vmatpush.bf16.msra.mxu0 %v7995
        %8289 = vmatpush.bf16.msra.mxu0 %v7994
        %8290 = vmatpush.bf16.msra.mxu0 %v7993
        %8291 = vmatpush.bf16.msra.mxu0 %v7992
        %8292 = vmatmul.bf16.gmra.mxu0 %v7512
        %v8293 = vpop.f32.mrf.mxu0
        %v8294 = vadd.f32 %v8245, %v8293
        %v8295 = vpop.f32.mrf.mxu0
        %v8296 = vadd.f32 %v8247, %v8295
        %8297 = vmatmul.bf16.gmra.mxu0 %v7520
        %v8298 = vpop.f32.mrf.mxu0
        %v8299 = vadd.f32 %v8250, %v8298
        %v8300 = vpop.f32.mrf.mxu0
        %v8301 = vadd.f32 %v8252, %v8300
        %8302 = vmatmul.bf16.gmra.mxu0 %v7528
        %v8303 = vpop.f32.mrf.mxu0
        %v8304 = vadd.f32 %v8255, %v8303
        %v8305 = vpop.f32.mrf.mxu0
        %v8306 = vadd.f32 %v8257, %v8305
        %8307 = vmatmul.bf16.gmra.mxu0 %v7536
        %v8308 = vpop.f32.mrf.mxu0
        %v8309 = vadd.f32 %v8260, %v8308
        %v8310 = vpop.f32.mrf.mxu0
        %v8311 = vadd.f32 %v8262, %v8310
        %8312 = vmatmul.bf16.gmra.mxu0 %v7544
        %v8313 = vpop.f32.mrf.mxu0
        %v8314 = vadd.f32 %v8265, %v8313
        %v8315 = vpop.f32.mrf.mxu0
        %v8316 = vadd.f32 %v8267, %v8315
        %8317 = vmatmul.bf16.gmra.mxu0 %v7552
        %v8318 = vpop.f32.mrf.mxu0
        %v8319 = vadd.f32 %v8270, %v8318
        %v8320 = vpop.f32.mrf.mxu0
        %v8321 = vadd.f32 %v8272, %v8320
        %8322 = vmatmul.bf16.gmra.mxu0 %v7560
        %v8323 = vpop.f32.mrf.mxu0
        %v8324 = vadd.f32 %v8275, %v8323
        %v8325 = vpop.f32.mrf.mxu0
        %v8326 = vadd.f32 %v8277, %v8325
        %8327 = vmatmul.bf16.gmra.mxu0 %v7568
        %v8328 = vpop.f32.mrf.mxu0
        %v8329 = vadd.f32 %v8280, %v8328
        %v8330 = vpop.f32.mrf.mxu0
        %v8331 = vadd.f32 %v8282, %v8330
        %8332 = vdwg.mxu0
        %8333 = vmatpush.bf16.msra.mxu0 %v8007
        %8334 = vmatpush.bf16.msra.mxu0 %v8006
        %8335 = vmatpush.bf16.msra.mxu0 %v8005
        %8336 = vmatpush.bf16.msra.mxu0 %v8004
        %8337 = vmatpush.bf16.msra.mxu0 %v8003
        %8338 = vmatpush.bf16.msra.mxu0 %v8002
        %8339 = vmatpush.bf16.msra.mxu0 %v8001
        %8340 = vmatpush.bf16.msra.mxu0 %v8000
        %8341 = vmatmul.bf16.gmra.mxu0 %v7513
        %v8342 = vpop.f32.mrf.mxu0
        %v8343 = vadd.f32 %v8294, %v8342
        %v8344 = vpop.f32.mrf.mxu0
        %v8345 = vadd.f32 %v8296, %v8344
        %8346 = vmatmul.bf16.gmra.mxu0 %v7521
        %v8347 = vpop.f32.mrf.mxu0
        %v8348 = vadd.f32 %v8299, %v8347
        %v8349 = vpop.f32.mrf.mxu0
        %v8350 = vadd.f32 %v8301, %v8349
        %8351 = vmatmul.bf16.gmra.mxu0 %v7529
        %v8352 = vpop.f32.mrf.mxu0
        %v8353 = vadd.f32 %v8304, %v8352
        %v8354 = vpop.f32.mrf.mxu0
        %v8355 = vadd.f32 %v8306, %v8354
        %8356 = vmatmul.bf16.gmra.mxu0 %v7537
        %v8357 = vpop.f32.mrf.mxu0
        %v8358 = vadd.f32 %v8309, %v8357
        %v8359 = vpop.f32.mrf.mxu0
        %v8360 = vadd.f32 %v8311, %v8359
        %8361 = vmatmul.bf16.gmra.mxu0 %v7545
        %v8362 = vpop.f32.mrf.mxu0
        %v8363 = vadd.f32 %v8314, %v8362
        %v8364 = vpop.f32.mrf.mxu0
        %v8365 = vadd.f32 %v8316, %v8364
        %8366 = vmatmul.bf16.gmra.mxu0 %v7553
        %v8367 = vpop.f32.mrf.mxu0
        %v8368 = vadd.f32 %v8319, %v8367
        %v8369 = vpop.f32.mrf.mxu0
        %v8370 = vadd.f32 %v8321, %v8369
        %8371 = vmatmul.bf16.gmra.mxu0 %v7561
        %v8372 = vpop.f32.mrf.mxu0
        %v8373 = vadd.f32 %v8324, %v8372
        %v8374 = vpop.f32.mrf.mxu0
        %v8375 = vadd.f32 %v8326, %v8374
        %8376 = vmatmul.bf16.gmra.mxu0 %v7569
        %v8377 = vpop.f32.mrf.mxu0
        %v8378 = vadd.f32 %v8329, %v8377
        %v8379 = vpop.f32.mrf.mxu0
        %v8380 = vadd.f32 %v8331, %v8379
        %8381 = vdwg.mxu0
        %8382 = vmatpush.bf16.msra.mxu0 %v8015
        %8383 = vmatpush.bf16.msra.mxu0 %v8014
        %8384 = vmatpush.bf16.msra.mxu0 %v8013
        %8385 = vmatpush.bf16.msra.mxu0 %v8012
        %8386 = vmatpush.bf16.msra.mxu0 %v8011
        %8387 = vmatpush.bf16.msra.mxu0 %v8010
        %8388 = vmatpush.bf16.msra.mxu0 %v8009
        %8389 = vmatpush.bf16.msra.mxu0 %v8008
        %8390 = vmatmul.bf16.gmra.mxu0 %v7514
        %v8391 = vpop.f32.mrf.mxu0
        %v8392 = vadd.f32 %v8343, %v8391
        %v8393 = vpop.f32.mrf.mxu0
        %v8394 = vadd.f32 %v8345, %v8393
        %8395 = vmatmul.bf16.gmra.mxu0 %v7522
        %v8396 = vpop.f32.mrf.mxu0
        %v8397 = vadd.f32 %v8348, %v8396
        %v8398 = vpop.f32.mrf.mxu0
        %v8399 = vadd.f32 %v8350, %v8398
        %8400 = vmatmul.bf16.gmra.mxu0 %v7530
        %v8401 = vpop.f32.mrf.mxu0
        %v8402 = vadd.f32 %v8353, %v8401
        %v8403 = vpop.f32.mrf.mxu0
        %v8404 = vadd.f32 %v8355, %v8403
        %8405 = vmatmul.bf16.gmra.mxu0 %v7538
        %v8406 = vpop.f32.mrf.mxu0
        %v8407 = vadd.f32 %v8358, %v8406
        %v8408 = vpop.f32.mrf.mxu0
        %v8409 = vadd.f32 %v8360, %v8408
        %8410 = vmatmul.bf16.gmra.mxu0 %v7546
        %v8411 = vpop.f32.mrf.mxu0
        %v8412 = vadd.f32 %v8363, %v8411
        %v8413 = vpop.f32.mrf.mxu0
        %v8414 = vadd.f32 %v8365, %v8413
        %8415 = vmatmul.bf16.gmra.mxu0 %v7554
        %v8416 = vpop.f32.mrf.mxu0
        %v8417 = vadd.f32 %v8368, %v8416
        %v8418 = vpop.f32.mrf.mxu0
        %v8419 = vadd.f32 %v8370, %v8418
        %8420 = vmatmul.bf16.gmra.mxu0 %v7562
        %v8421 = vpop.f32.mrf.mxu0
        %v8422 = vadd.f32 %v8373, %v8421
        %v8423 = vpop.f32.mrf.mxu0
        %v8424 = vadd.f32 %v8375, %v8423
        %8425 = vmatmul.bf16.gmra.mxu0 %v7570
        %v8426 = vpop.f32.mrf.mxu0
        %v8427 = vadd.f32 %v8378, %v8426
        %v8428 = vpop.f32.mrf.mxu0
        %v8429 = vadd.f32 %v8380, %v8428
        %8430 = vdwg.mxu0
        %8431 = vmatpush.bf16.msra.mxu0 %v8023
        %8432 = vmatpush.bf16.msra.mxu0 %v8022
        %8433 = vmatpush.bf16.msra.mxu0 %v8021
        %8434 = vmatpush.bf16.msra.mxu0 %v8020
        %8435 = vmatpush.bf16.msra.mxu0 %v8019
        %8436 = vmatpush.bf16.msra.mxu0 %v8018
        %8437 = vmatpush.bf16.msra.mxu0 %v8017
        %8438 = vmatpush.bf16.msra.mxu0 %v8016
        %8439 = vmatmul.bf16.gmra.mxu0 %v7515
        %v8440 = vpop.f32.mrf.mxu0
        %v8441 = vadd.f32 %v8392, %v8440
        %v8442 = vpop.f32.mrf.mxu0
        %v8443 = vadd.f32 %v8394, %v8442
        %8444 = vmatmul.bf16.gmra.mxu0 %v7523
        %v8445 = vpop.f32.mrf.mxu0
        %v8446 = vadd.f32 %v8397, %v8445
        %v8447 = vpop.f32.mrf.mxu0
        %v8448 = vadd.f32 %v8399, %v8447
        %8449 = vmatmul.bf16.gmra.mxu0 %v7531
        %v8450 = vpop.f32.mrf.mxu0
        %v8451 = vadd.f32 %v8402, %v8450
        %v8452 = vpop.f32.mrf.mxu0
        %v8453 = vadd.f32 %v8404, %v8452
        %8454 = vmatmul.bf16.gmra.mxu0 %v7539
        %v8455 = vpop.f32.mrf.mxu0
        %v8456 = vadd.f32 %v8407, %v8455
        %v8457 = vpop.f32.mrf.mxu0
        %v8458 = vadd.f32 %v8409, %v8457
        %8459 = vmatmul.bf16.gmra.mxu0 %v7547
        %v8460 = vpop.f32.mrf.mxu0
        %v8461 = vadd.f32 %v8412, %v8460
        %v8462 = vpop.f32.mrf.mxu0
        %v8463 = vadd.f32 %v8414, %v8462
        %8464 = vmatmul.bf16.gmra.mxu0 %v7555
        %v8465 = vpop.f32.mrf.mxu0
        %v8466 = vadd.f32 %v8417, %v8465
        %v8467 = vpop.f32.mrf.mxu0
        %v8468 = vadd.f32 %v8419, %v8467
        %8469 = vmatmul.bf16.gmra.mxu0 %v7563
        %v8470 = vpop.f32.mrf.mxu0
        %v8471 = vadd.f32 %v8422, %v8470
        %v8472 = vpop.f32.mrf.mxu0
        %v8473 = vadd.f32 %v8424, %v8472
        %8474 = vmatmul.bf16.gmra.mxu0 %v7571
        %v8475 = vpop.f32.mrf.mxu0
        %v8476 = vadd.f32 %v8427, %v8475
        %v8477 = vpop.f32.mrf.mxu0
        %v8478 = vadd.f32 %v8429, %v8477
        %8479 = vdwg.mxu0
        %v8480 = vxor.u32 %v8441, 2147483648
        %v8481 = vxor.u32 %v8443, 2147483648
        %v8482 = vxor.u32 %v8446, 2147483648
        %v8483 = vxor.u32 %v8448, 2147483648
        %v8484 = vxor.u32 %v8451, 2147483648
        %v8485 = vxor.u32 %v8453, 2147483648
        %v8486 = vxor.u32 %v8456, 2147483648
        %v8487 = vxor.u32 %v8458, 2147483648
        %v8488 = vxor.u32 %v8461, 2147483648
        %v8489 = vxor.u32 %v8463, 2147483648
        %v8490 = vxor.u32 %v8466, 2147483648
        %v8491 = vxor.u32 %v8468, 2147483648
        %v8492 = vxor.u32 %v8471, 2147483648
        %v8493 = vxor.u32 %v8473, 2147483648
        %v8494 = vxor.u32 %v8476, 2147483648
        %v8495 = vxor.u32 %v8478, 2147483648
        %v8496 = vmul.f32 %v8480, 1.442695
        %v8497 = vpow.pop %v8496
        %v8498 = vmul.f32 %v8481, 1.442695
        %v8499 = vpow.pop %v8498
        %v8500 = vmul.f32 %v8482, 1.442695
        %v8501 = vpow.pop %v8500
        %v8502 = vmul.f32 %v8483, 1.442695
        %v8503 = vpow.pop %v8502
        %v8504 = vmul.f32 %v8484, 1.442695
        %v8505 = vpow.pop %v8504
        %v8506 = vmul.f32 %v8485, 1.442695
        %v8507 = vpow.pop %v8506
        %v8508 = vmul.f32 %v8486, 1.442695
        %v8509 = vpow.pop %v8508
        %v8510 = vmul.f32 %v8487, 1.442695
        %v8511 = vpow.pop %v8510
        %v8512 = vmul.f32 %v8488, 1.442695
        %v8513 = vpow.pop %v8512
        %v8514 = vmul.f32 %v8489, 1.442695
        %v8515 = vpow.pop %v8514
        %v8516 = vmul.f32 %v8490, 1.442695
        %v8517 = vpow.pop %v8516
        %v8518 = vmul.f32 %v8491, 1.442695
        %v8519 = vpow.pop %v8518
        %v8520 = vmul.f32 %v8492, 1.442695
        %v8521 = vpow.pop %v8520
        %v8522 = vmul.f32 %v8493, 1.442695
        %v8523 = vpow.pop %v8522
        %v8524 = vmul.f32 %v8494, 1.442695
        %v8525 = vpow.pop %v8524
        %v8526 = vmul.f32 %v8495, 1.442695
        %v8527 = vpow.pop %v8526
        %v8528 = vadd.f32 %v8497, 1.0
        %v8529 = vadd.f32 %v8499, 1.0
        %v8530 = vadd.f32 %v8501, 1.0
        %v8531 = vadd.f32 %v8503, 1.0
        %v8532 = vadd.f32 %v8505, 1.0
        %v8533 = vadd.f32 %v8507, 1.0
        %v8534 = vadd.f32 %v8509, 1.0
        %v8535 = vadd.f32 %v8511, 1.0
        %v8536 = vadd.f32 %v8513, 1.0
        %v8537 = vadd.f32 %v8515, 1.0
        %v8538 = vadd.f32 %v8517, 1.0
        %v8539 = vadd.f32 %v8519, 1.0
        %v8540 = vadd.f32 %v8521, 1.0
        %v8541 = vadd.f32 %v8523, 1.0
        %v8542 = vadd.f32 %v8525, 1.0
        %v8543 = vadd.f32 %v8527, 1.0
        %v8544 = vrcp.pop %v8528
        %v8545 = vmul.f32 %v8528, %v8544
        %v8546 = vsub.f32 1.0, %v8545
        %v8547 = vmul.f32 %v8544, %v8546
        %v8548 = vadd.f32 %v8544, %v8547
        %vm8549 = vweird.f32 %v8528
        %vm8550 = vweird.f32 %v8544
        %vm8551 = vmor %vm8549, %vm8550
        %v8552 = vsel %vm8551, %v8544, %v8548
        %v8553 = vand.u32 2147483647, %v8528
        %vm8554 = vcmp.eq.f32.partialorder %v8553, 8.507059e+37
        %v8555 = vand.u32 %v8528, 2147483648
        %v8556 = vor.u32 1.1754944e-38, %v8555
        %v8557 = vsel %vm8554, %v8556, %v8552
        %v8558 = vmul.f32 1.0, %v8557
        %v8559 = vrcp.pop %v8529
        %v8560 = vmul.f32 %v8529, %v8559
        %v8561 = vsub.f32 1.0, %v8560
        %v8562 = vmul.f32 %v8559, %v8561
        %v8563 = vadd.f32 %v8559, %v8562
        %vm8564 = vweird.f32 %v8529
        %vm8565 = vweird.f32 %v8559
        %vm8566 = vmor %vm8564, %vm8565
        %v8567 = vsel %vm8566, %v8559, %v8563
        %v8568 = vand.u32 2147483647, %v8529
        %vm8569 = vcmp.eq.f32.partialorder %v8568, 8.507059e+37
        %v8570 = vand.u32 %v8529, 2147483648
        %v8571 = vor.u32 1.1754944e-38, %v8570
        %v8572 = vsel %vm8569, %v8571, %v8567
        %v8573 = vmul.f32 1.0, %v8572
        %v8574 = vrcp.pop %v8530
        %v8575 = vmul.f32 %v8530, %v8574
        %v8576 = vsub.f32 1.0, %v8575
        %v8577 = vmul.f32 %v8574, %v8576
        %v8578 = vadd.f32 %v8574, %v8577
        %vm8579 = vweird.f32 %v8530
        %vm8580 = vweird.f32 %v8574
        %vm8581 = vmor %vm8579, %vm8580
        %v8582 = vsel %vm8581, %v8574, %v8578
        %v8583 = vand.u32 2147483647, %v8530
        %vm8584 = vcmp.eq.f32.partialorder %v8583, 8.507059e+37
        %v8585 = vand.u32 %v8530, 2147483648
        %v8586 = vor.u32 1.1754944e-38, %v8585
        %v8587 = vsel %vm8584, %v8586, %v8582
        %v8588 = vmul.f32 1.0, %v8587
        %v8589 = vrcp.pop %v8531
        %v8590 = vmul.f32 %v8531, %v8589
        %v8591 = vsub.f32 1.0, %v8590
        %v8592 = vmul.f32 %v8589, %v8591
        %v8593 = vadd.f32 %v8589, %v8592
        %vm8594 = vweird.f32 %v8531
        %vm8595 = vweird.f32 %v8589
        %vm8596 = vmor %vm8594, %vm8595
        %v8597 = vsel %vm8596, %v8589, %v8593
        %v8598 = vand.u32 2147483647, %v8531
        %vm8599 = vcmp.eq.f32.partialorder %v8598, 8.507059e+37
        %v8600 = vand.u32 %v8531, 2147483648
        %v8601 = vor.u32 1.1754944e-38, %v8600
        %v8602 = vsel %vm8599, %v8601, %v8597
        %v8603 = vmul.f32 1.0, %v8602
        %v8604 = vrcp.pop %v8532
        %v8605 = vmul.f32 %v8532, %v8604
        %v8606 = vsub.f32 1.0, %v8605
        %v8607 = vmul.f32 %v8604, %v8606
        %v8608 = vadd.f32 %v8604, %v8607
        %vm8609 = vweird.f32 %v8532
        %vm8610 = vweird.f32 %v8604
        %vm8611 = vmor %vm8609, %vm8610
        %v8612 = vsel %vm8611, %v8604, %v8608
        %v8613 = vand.u32 2147483647, %v8532
        %vm8614 = vcmp.eq.f32.partialorder %v8613, 8.507059e+37
        %v8615 = vand.u32 %v8532, 2147483648
        %v8616 = vor.u32 1.1754944e-38, %v8615
        %v8617 = vsel %vm8614, %v8616, %v8612
        %v8618 = vmul.f32 1.0, %v8617
        %v8619 = vrcp.pop %v8533
        %v8620 = vmul.f32 %v8533, %v8619
        %v8621 = vsub.f32 1.0, %v8620
        %v8622 = vmul.f32 %v8619, %v8621
        %v8623 = vadd.f32 %v8619, %v8622
        %vm8624 = vweird.f32 %v8533
        %vm8625 = vweird.f32 %v8619
        %vm8626 = vmor %vm8624, %vm8625
        %v8627 = vsel %vm8626, %v8619, %v8623
        %v8628 = vand.u32 2147483647, %v8533
        %vm8629 = vcmp.eq.f32.partialorder %v8628, 8.507059e+37
        %v8630 = vand.u32 %v8533, 2147483648
        %v8631 = vor.u32 1.1754944e-38, %v8630
        %v8632 = vsel %vm8629, %v8631, %v8627
        %v8633 = vmul.f32 1.0, %v8632
        %v8634 = vrcp.pop %v8534
        %v8635 = vmul.f32 %v8534, %v8634
        %v8636 = vsub.f32 1.0, %v8635
        %v8637 = vmul.f32 %v8634, %v8636
        %v8638 = vadd.f32 %v8634, %v8637
        %vm8639 = vweird.f32 %v8534
        %vm8640 = vweird.f32 %v8634
        %vm8641 = vmor %vm8639, %vm8640
        %v8642 = vsel %vm8641, %v8634, %v8638
        %v8643 = vand.u32 2147483647, %v8534
        %vm8644 = vcmp.eq.f32.partialorder %v8643, 8.507059e+37
        %v8645 = vand.u32 %v8534, 2147483648
        %v8646 = vor.u32 1.1754944e-38, %v8645
        %v8647 = vsel %vm8644, %v8646, %v8642
        %v8648 = vmul.f32 1.0, %v8647
        %v8649 = vrcp.pop %v8535
        %v8650 = vmul.f32 %v8535, %v8649
        %v8651 = vsub.f32 1.0, %v8650
        %v8652 = vmul.f32 %v8649, %v8651
        %v8653 = vadd.f32 %v8649, %v8652
        %vm8654 = vweird.f32 %v8535
        %vm8655 = vweird.f32 %v8649
        %vm8656 = vmor %vm8654, %vm8655
        %v8657 = vsel %vm8656, %v8649, %v8653
        %v8658 = vand.u32 2147483647, %v8535
        %vm8659 = vcmp.eq.f32.partialorder %v8658, 8.507059e+37
        %v8660 = vand.u32 %v8535, 2147483648
        %v8661 = vor.u32 1.1754944e-38, %v8660
        %v8662 = vsel %vm8659, %v8661, %v8657
        %v8663 = vmul.f32 1.0, %v8662
        %v8664 = vrcp.pop %v8536
        %v8665 = vmul.f32 %v8536, %v8664
        %v8666 = vsub.f32 1.0, %v8665
        %v8667 = vmul.f32 %v8664, %v8666
        %v8668 = vadd.f32 %v8664, %v8667
        %vm8669 = vweird.f32 %v8536
        %vm8670 = vweird.f32 %v8664
        %vm8671 = vmor %vm8669, %vm8670
        %v8672 = vsel %vm8671, %v8664, %v8668
        %v8673 = vand.u32 2147483647, %v8536
        %vm8674 = vcmp.eq.f32.partialorder %v8673, 8.507059e+37
        %v8675 = vand.u32 %v8536, 2147483648
        %v8676 = vor.u32 1.1754944e-38, %v8675
        %v8677 = vsel %vm8674, %v8676, %v8672
        %v8678 = vmul.f32 1.0, %v8677
        %v8679 = vrcp.pop %v8537
        %v8680 = vmul.f32 %v8537, %v8679
        %v8681 = vsub.f32 1.0, %v8680
        %v8682 = vmul.f32 %v8679, %v8681
        %v8683 = vadd.f32 %v8679, %v8682
        %vm8684 = vweird.f32 %v8537
        %vm8685 = vweird.f32 %v8679
        %vm8686 = vmor %vm8684, %vm8685
        %v8687 = vsel %vm8686, %v8679, %v8683
        %v8688 = vand.u32 2147483647, %v8537
        %vm8689 = vcmp.eq.f32.partialorder %v8688, 8.507059e+37
        %v8690 = vand.u32 %v8537, 2147483648
        %v8691 = vor.u32 1.1754944e-38, %v8690
        %v8692 = vsel %vm8689, %v8691, %v8687
        %v8693 = vmul.f32 1.0, %v8692
        %v8694 = vrcp.pop %v8538
        %v8695 = vmul.f32 %v8538, %v8694
        %v8696 = vsub.f32 1.0, %v8695
        %v8697 = vmul.f32 %v8694, %v8696
        %v8698 = vadd.f32 %v8694, %v8697
        %vm8699 = vweird.f32 %v8538
        %vm8700 = vweird.f32 %v8694
        %vm8701 = vmor %vm8699, %vm8700
        %v8702 = vsel %vm8701, %v8694, %v8698
        %v8703 = vand.u32 2147483647, %v8538
        %vm8704 = vcmp.eq.f32.partialorder %v8703, 8.507059e+37
        %v8705 = vand.u32 %v8538, 2147483648
        %v8706 = vor.u32 1.1754944e-38, %v8705
        %v8707 = vsel %vm8704, %v8706, %v8702
        %v8708 = vmul.f32 1.0, %v8707
        %v8709 = vrcp.pop %v8539
        %v8710 = vmul.f32 %v8539, %v8709
        %v8711 = vsub.f32 1.0, %v8710
        %v8712 = vmul.f32 %v8709, %v8711
        %v8713 = vadd.f32 %v8709, %v8712
        %vm8714 = vweird.f32 %v8539
        %vm8715 = vweird.f32 %v8709
        %vm8716 = vmor %vm8714, %vm8715
        %v8717 = vsel %vm8716, %v8709, %v8713
        %v8718 = vand.u32 2147483647, %v8539
        %vm8719 = vcmp.eq.f32.partialorder %v8718, 8.507059e+37
        %v8720 = vand.u32 %v8539, 2147483648
        %v8721 = vor.u32 1.1754944e-38, %v8720
        %v8722 = vsel %vm8719, %v8721, %v8717
        %v8723 = vmul.f32 1.0, %v8722
        %v8724 = vrcp.pop %v8540
        %v8725 = vmul.f32 %v8540, %v8724
        %v8726 = vsub.f32 1.0, %v8725
        %v8727 = vmul.f32 %v8724, %v8726
        %v8728 = vadd.f32 %v8724, %v8727
        %vm8729 = vweird.f32 %v8540
        %vm8730 = vweird.f32 %v8724
        %vm8731 = vmor %vm8729, %vm8730
        %v8732 = vsel %vm8731, %v8724, %v8728
        %v8733 = vand.u32 2147483647, %v8540
        %vm8734 = vcmp.eq.f32.partialorder %v8733, 8.507059e+37
        %v8735 = vand.u32 %v8540, 2147483648
        %v8736 = vor.u32 1.1754944e-38, %v8735
        %v8737 = vsel %vm8734, %v8736, %v8732
        %v8738 = vmul.f32 1.0, %v8737
        %v8739 = vrcp.pop %v8541
        %v8740 = vmul.f32 %v8541, %v8739
        %v8741 = vsub.f32 1.0, %v8740
        %v8742 = vmul.f32 %v8739, %v8741
        %v8743 = vadd.f32 %v8739, %v8742
        %vm8744 = vweird.f32 %v8541
        %vm8745 = vweird.f32 %v8739
        %vm8746 = vmor %vm8744, %vm8745
        %v8747 = vsel %vm8746, %v8739, %v8743
        %v8748 = vand.u32 2147483647, %v8541
        %vm8749 = vcmp.eq.f32.partialorder %v8748, 8.507059e+37
        %v8750 = vand.u32 %v8541, 2147483648
        %v8751 = vor.u32 1.1754944e-38, %v8750
        %v8752 = vsel %vm8749, %v8751, %v8747
        %v8753 = vmul.f32 1.0, %v8752
        %v8754 = vrcp.pop %v8542
        %v8755 = vmul.f32 %v8542, %v8754
        %v8756 = vsub.f32 1.0, %v8755
        %v8757 = vmul.f32 %v8754, %v8756
        %v8758 = vadd.f32 %v8754, %v8757
        %vm8759 = vweird.f32 %v8542
        %vm8760 = vweird.f32 %v8754
        %vm8761 = vmor %vm8759, %vm8760
        %v8762 = vsel %vm8761, %v8754, %v8758
        %v8763 = vand.u32 2147483647, %v8542
        %vm8764 = vcmp.eq.f32.partialorder %v8763, 8.507059e+37
        %v8765 = vand.u32 %v8542, 2147483648
        %v8766 = vor.u32 1.1754944e-38, %v8765
        %v8767 = vsel %vm8764, %v8766, %v8762
        %v8768 = vmul.f32 1.0, %v8767
        %v8769 = vrcp.pop %v8543
        %v8770 = vmul.f32 %v8543, %v8769
        %v8771 = vsub.f32 1.0, %v8770
        %v8772 = vmul.f32 %v8769, %v8771
        %v8773 = vadd.f32 %v8769, %v8772
        %vm8774 = vweird.f32 %v8543
        %vm8775 = vweird.f32 %v8769
        %vm8776 = vmor %vm8774, %vm8775
        %v8777 = vsel %vm8776, %v8769, %v8773
        %v8778 = vand.u32 2147483647, %v8543
        %vm8779 = vcmp.eq.f32.partialorder %v8778, 8.507059e+37
        %v8780 = vand.u32 %v8543, 2147483648
        %v8781 = vor.u32 1.1754944e-38, %v8780
        %v8782 = vsel %vm8779, %v8781, %v8777
        %v8783 = vmul.f32 1.0, %v8782
        %8784 = vst [vmem:[%s366] sm:$0xff] %v8558
        %8785 = vst [vmem:[%s366 + $0x8] sm:$0xff] %v8573
        %8786 = vst [vmem:[%s366 + $0x10] sm:$0xff] %v8588
        %8787 = vst [vmem:[%s366 + $0x18] sm:$0xff] %v8603
        %8788 = vst [vmem:[%s366 + $0x20] sm:$0xff] %v8618
        %8789 = vst [vmem:[%s366 + $0x28] sm:$0xff] %v8633
        %8790 = vst [vmem:[%s366 + $0x30] sm:$0xff] %v8648
        %8791 = vst [vmem:[%s366 + $0x38] sm:$0xff] %v8663
        %8792 = vst [vmem:[%s366 + $0x40] sm:$0xff] %v8678
        %8793 = vst [vmem:[%s366 + $0x48] sm:$0xff] %v8693
        %8794 = vst [vmem:[%s366 + $0x50] sm:$0xff] %v8708
        %8795 = vst [vmem:[%s366 + $0x58] sm:$0xff] %v8723
        %8796 = vst [vmem:[%s366 + $0x60] sm:$0xff] %v8738
        %8797 = vst [vmem:[%s366 + $0x68] sm:$0xff] %v8753
        %8798 = vst [vmem:[%s366 + $0x70] sm:$0xff] %v8768
        %8799 = vst [vmem:[%s366 + $0x78] sm:$0xff] %v8783
        %s8800 = sand.u32 %s185, 1
        %s8801 = scalar_lea.sflag [#allocation4], %s8800
        %s8802 = sand.u32 %s185, 1
        %s8803 = smul.addr %s8802, 128
        %s8804 = scalar_lea.vmem [#allocation13], %s8803
        // Predicated region
        $region73: #{tpu_custom_call.1} parent=47 // pred_check
          %p8805 = pneg %p195
        $region74: #{tpu_custom_call.1} parent=47 // pred_check_branch
          %8807 = sbr.rel (%p8805) target = $region76
        $region75: #{tpu_custom_call.1} parent=47 // pred_region
          %s8808 = smul.u32 16, %s25
          %8810 = vsyncadd %s8801, 0
          %s8811 = smul.addr %s8808, 8
          %s8812 = scalar_lea.hbm %s7, %s8811
          %s8813 = sshll.u32 %s8804, 4
          %s8814 = int_to_ptr.vmem [resolvable:$true] %s8813
          %s8815 = sshll.u32 %s8812, 4
          %s8816 = int_to_ptr.hbm [resolvable:$true] %s8815
          %8821 = dma.vmem_to_hbm [thread:$0]  %s8814, 2048, %s8816, %s8801, 128, 128, 8
        $region76: #{tpu_custom_call.1} parent=47 // pred_fallthru
          _
      $region48: #{tpu_custom_call.1} parent=5 // pred_fallthru
        _
      %p8822 = scmp.le.s32.totalorder 2, %s20
      // Predicated region
      $region77: #{tpu_custom_call.1} parent=5 // pred_check
        %p8823 = pneg %p8822
      $region78: #{tpu_custom_call.1} parent=5 // pred_check_branch
        %8825 = sbr.rel (%p8823) target = $region80
      $region79: #{tpu_custom_call.1} parent=5 // pred_region
        %s8826 = ssub.s32 %s20, 2
        // Predicated region
        $region81: #{tpu_custom_call.1} parent=79 // pred_check
          %p8827 = pneg %p201
        $region82: #{tpu_custom_call.1} parent=79 // pred_check_branch
          %8829 = sbr.rel (%p8827) target = $region84
        $region83: #{tpu_custom_call.1} parent=79 // pred_region
          %s8830 = sand.u32 %s186, 1
          %s8831 = scalar_lea.sflag [#allocation4], %s8830
          %s8832 = sand.u32 %s186, 1
          %s8833 = smul.addr %s8832, 128
          %s8834 = scalar_lea.vmem [#allocation13], %s8833
          %8836 = dma.done %s8831, 2048
        $region84: #{tpu_custom_call.1} parent=79 // pred_fallthru
          _
      $region80: #{tpu_custom_call.1} parent=5 // pred_fallthru
        _
    $region6: #{tpu_custom_call.1} parent=1 // loop_footer
      %s24 = sadd.s32 1, %s20
    $region7: #{tpu_custom_call.1} parent=1 // loop_footer_branch
      %19 = sbr.rel target = $region3
    $region8: #{tpu_custom_call.1} parent=1 // loop_exit
      _
    %8837 = vsyncpa [#allocation3], 1
    %s8838 = scalar_lea.sflag [#allocation3], 1
    %8839 = vsyncpa %s8838, 1
    %8840 = vsyncpa [#allocation6], 1
    %8841 = vsyncpa [#allocation9], 1
    %8842 = vsyncpa [#allocation12], 1
    %8843 = vsyncpa [#allocation4], 1
    %s8844 = scalar_lea.sflag [#allocation4], 1
    %8845 = vsyncpa %s8844, 1

</llo_original>
